<compile_context>
chip_gen: v7x
topology: tpu7x:2x2x1
jax: 0.10.0
libtpu: 0.0.40
codegen_flags: <defaults>
</compile_context>

<pallas_src>
import math

import jax
import jax.numpy as jnp
import numpy as np
from jax.experimental import pallas as pl
from jax.experimental.pallas import tpu as pltpu

# Conv-matmul operand dtype (weights + conv-input staging scratch).
# Accumulation is always f32 via preferred_element_type.
MATMUL_DTYPE = jnp.bfloat16


# --------------------------------------------------------------------------
# Fused Pallas kernel (one grid step == Btile images)
# --------------------------------------------------------------------------

def _make_fused_kernel(H, Btile, nblocks, k_size):
    HP = H + 2                  # padded rows per image (1-row halo top/bottom)
    N = Btile * HP              # rows of the stacked padded-layout activation
    pad = k_size // 2

    def kernel(x_ref, w_in_ref, b_in_ref, w_blk_ref, b_blk_ref, scal_ref,
               pw_ref, bexp_ref, poolh_ref, expand_ref, hmask_ref, cmask_ref,
               w_out_ref, b_out_ref, o_ref, pad_in_ref, pad_c_ref):
        f32 = jnp.float32

        def conv3(p_ref, w_ref, base, bias_row):
            # p_ref: (N+2, W*Cin) staging slab; row s holds activation row s-1,
            # rows 0 and N+1 are extra zero guards.  w_ref[base+dy] is the
            # (W*Cin, W*Cout) block-Toeplitz matrix for kernel row dy.
            acc = jnp.dot(p_ref[0:N, :], w_ref[base + 0],
                          preferred_element_type=f32)
            acc = acc + jnp.dot(p_ref[1:N + 1, :], w_ref[base + 1],
                                preferred_element_type=f32)
            acc = acc + jnp.dot(p_ref[2:N + 2, :], w_ref[base + 2],
                                preferred_element_type=f32)
            return acc + bias_row          # (N, W*Cout); halo rows hold garbage

        hmask = hmask_ref[...]             # (N, 1): 1 on valid rows, 0 on halos

        # ---- zero only the rows that are never overwritten ------------------
        # pad_in: guard/halo row pairs {k*HP, k*HP+1}, k = 0..Btile.
        for k in range(Btile + 1):
            pad_in_ref[k * HP:k * HP + 2, :] = jnp.zeros(
                (2, pad_in_ref.shape[1]), pad_in_ref.dtype)
        # pad_c: rows 1..N are fully rewritten every stage; only guards 0, N+1.
        pad_c_ref[0:1, :] = jnp.zeros((1, pad_c_ref.shape[1]), pad_c_ref.dtype)
        pad_c_ref[N + 1:N + 2, :] = jnp.zeros((1, pad_c_ref.shape[1]),
                                              pad_c_ref.dtype)

        # ---- in_conv2D: 3x3, in_c -> C --------------------------------------
        for b in range(Btile):
            pad_in_ref[b * HP + 2:b * HP + 2 + H, :] = (
                x_ref[b].astype(pad_in_ref.dtype))
        cur = conv3(pad_in_ref, w_in_ref, 0, b_in_ref[...]) * hmask   # (N, W*C)
        residual = cur

        # ---- SpaSpeBlocks (static unroll; see TODO about fori_loop) ----------
        for blk in range(nblocks):
            r = cur
            # stage1 PydSpaSpeConv (regrouped into one 3x3 conv) + PReLU
            pad_c_ref[1:N + 1, :] = cur.astype(pad_c_ref.dtype)
            t = conv3(pad_c_ref, w_blk_ref, (2 * blk) * 3, b_blk_ref[2 * blk])
            a = scal_ref[blk * (1 + k_size)]                  # shared PReLU alpha
            t = jnp.where(t >= 0.0, t, a * t)
            t = t * hmask                                     # re-zero halos
            # stage2 PydSpaSpeConv (regrouped)
            pad_c_ref[1:N + 1, :] = t.astype(pad_c_ref.dtype)
            t = conv3(pad_c_ref, w_blk_ref, (2 * blk + 1) * 3,
                      b_blk_ref[2 * blk + 1])

            # --- AttentionCorECAModule ---------------------------------------
            # per-image mean over H (halo rows excluded via poolh weights)
            ph = jnp.dot(poolh_ref[...], t, preferred_element_type=f32)  # (Bt, WC)
            # gate_h: k-tap banded conv along C == lane rolls + masks (no
            # (WC,WC) matrix, no MXU weight push)
            gacc = jnp.zeros_like(ph)
            for i in range(k_size):
                coef = scal_ref[blk * (1 + k_size) + 1 + i]
                shift = (pad - i) % ph.shape[1]
                shifted = ph if shift == 0 else pltpu.roll(ph, shift, axis=1)
                gacc = gacc + coef * (shifted * cmask_ref[i])
            y_h = jax.nn.sigmoid(gacc)                                   # (Bt, WC)
            # broadcast y_h over the H rows of each image (tiny K=Btile matmul)
            y_h_rows = jnp.dot(expand_ref[...], y_h,
                               preferred_element_type=f32)               # (N, WC)
            # gate_w: mean over W + band along C folded into one (WC, C) matrix
            y_w = jax.nn.sigmoid(jnp.dot(t, pw_ref[blk],
                                         preferred_element_type=f32))    # (N, C)
            y_w_rows = jnp.dot(y_w, bexp_ref[...],
                               preferred_element_type=f32)               # (N, WC)
            cur = (t * y_h_rows * y_w_rows) * hmask + r

        # ---- outer skip + out_conv2D: 3x3, C -> out_c -------------------------
        cur = cur + residual
        pad_c_ref[1:N + 1, :] = cur.astype(pad_c_ref.dtype)
        out = conv3(pad_c_ref, w_out_ref, 0, b_out_ref[...])             # (N, WOC)
        for b in range(Btile):
            o_ref[b] = out[b * HP + 1:b * HP + 1 + H, :]

    return kernel


# --------------------------------------------------------------------------
# Wrapper-side weight preparation (tiny, once per jit trace)
# --------------------------------------------------------------------------

def _regroup_pyd(p):
    """Fold PydSpaSpeConv (1x1 + 3x3 + (3x3 -> 1x1)) into one 3x3 conv.
    Mirrors PydSpaSpeConv.perform_regroup() of the PyTorch module (exact)."""
    w = p['spa']['w'] + jnp.einsum('hwim,mo->hwio',
                                   p['ss_spa']['w'], p['ss_spe']['w'])
    w = w.at[1, 1].add(p['spe']['w'])
    b = (p['spa']['b'] + p['spe']['b']
         + jnp.dot(p['ss_spa']['b'], p['ss_spe']['w']) + p['ss_spe']['b'])
    return w, b


def _row_conv_mats(w, W):
    """(3,3,Cin,Cout) 'same'-conv weight -> 3 block-Toeplitz matrices
    (W*Cin, W*Cout), one per kernel row dy; W-direction zero padding is folded
    into the band structure."""
    mats = []
    for dy in range(3):
        m = jnp.zeros((W * w.shape[2], W * w.shape[3]), jnp.float32)
        for dx in range(3):
            sel = jnp.eye(W, W, k=1 - dx, dtype=jnp.float32)   # wi == wo + dx - 1
            m = m + jnp.kron(sel, w[dy, dx])
        mats.append(m)
    return jnp.stack(mats)                                      # (3, W*Cin, W*Cout)


def _band_matrix(g, C):
    """Banded (C,C) gate: (pool @ M)[.., c] = sum_i g[i]*pool[.., c-pad+i]
    (1-channel ECA cross-correlation along C with zero padding)."""
    k = g.shape[0]
    pad = k // 2
    m = jnp.zeros((C, C), jnp.float32)
    for i in range(k):
        m = m + g[i] * jnp.eye(C, C, k=pad - i, dtype=jnp.float32)
    return m


def _tile_bias(b, W):
    # bias[co] -> (1, W*Cout) row matching the (rows, W*Cout) activation slab.
    return jnp.tile(b.astype(jnp.float32), W).reshape(1, -1)


# --------------------------------------------------------------------------
# Forward
# --------------------------------------------------------------------------

def repcpsi_forward(params, x_nchw):
    """RepCPSI forward.  Input/output are NCHW exactly like the PyTorch module."""
    x = x_nchw.astype(jnp.float32)
    B, in_c, H, W = x.shape
    C = params['in_conv']['w'].shape[-1]
    out_c = params['out_conv']['w'].shape[-1]
    nblocks = len(params['blocks'])
    k_size = int(params['blocks'][0]['gate_h'].shape[0]) if nblocks else 5

    # ---- batch tiling: feed the MXU M ~= Btile*(H+2) rows per weight load ----
    nB = max(1, -(-B // 8))          # number of grid steps (<= 8 images each)
    Btile = -(-B // nB)              # images per step
    Bp = nB * Btile
    HP, N = H + 2, Btile * (H + 2)

    # ---- pad input channels so W*in_c is a multiple of 128 lanes -------------
    mult = 128 // math.gcd(W, 128)
    in_c_p = -(-in_c // mult) * mult
    WICp, WC, WOC = W * in_c_p, W * C, W * out_c

    xp = jnp.pad(x, ((0, Bp - B), (0, in_c_p - in_c), (0, 0), (0, 0)))
    xs = jnp.transpose(xp, (0, 2, 3, 1)).reshape(Bp, H, WICp)   # lane-dense slab

    # ---- conv weights as block-Toeplitz row matrices (bf16) -------------------
    w_in_hwio = jnp.pad(params['in_conv']['w'],
                        ((0, 0), (0, 0), (0, in_c_p - in_c), (0, 0)))
    w_in = _row_conv_mats(w_in_hwio, W).astype(MATMUL_DTYPE)     # (3, WICp, WC)
    b_in = _tile_bias(params['in_conv']['b'], W)
    w_out = _row_conv_mats(params['out_conv']['w'], W).astype(MATMUL_DTYPE)
    b_out = _tile_bias(params['out_conv']['b'], W)

    eye_c = jnp.eye(C, dtype=jnp.float32)
    pool_w_mat = jnp.tile(eye_c, (W, 1)) / float(W)              # (WC, C): mean over W
    bexp = jnp.kron(jnp.ones((1, W), jnp.float32), eye_c)        # (C, WC): W-broadcast

    w_blk, b_blk, pw, scal = [], [], [], []
    for blk in params['blocks']:
        w1, b1 = _regroup_pyd(blk['stage1'])
        w2, b2 = _regroup_pyd(blk['stage2'])
        w_blk += [_row_conv_mats(w1, W), _row_conv_mats(w2, W)]
        b_blk += [_tile_bias(b1, W), _tile_bias(b2, W)]
        pw.append(jnp.dot(pool_w_mat, _band_matrix(blk['gate_w'], C)))  # (WC, C)
        scal.append(jnp.concatenate([blk['prelu_a'][:1], blk['gate_h']]))
    w_blk = jnp.concatenate(w_blk, axis=0).astype(MATMUL_DTYPE)  # (6*nb, WC, WC)
    b_blk = jnp.stack(b_blk)                                     # (2*nb, 1, WC)
    pw = jnp.stack(pw).astype(jnp.float32)                       # (nb, WC, C)
    scal = jnp.concatenate(scal).astype(jnp.float32)             # (nb*(1+k),) SMEM

    # ---- small structural constants -------------------------------------------
    row = jnp.arange(N)
    valid = (row % HP >= 1) & (row % HP <= H)
    img = row // HP
    hmask = valid.astype(jnp.float32).reshape(N, 1)              # zero-halo mask
    poolh = ((valid[None, :] & (img[None, :] == jnp.arange(Btile)[:, None]))
             .astype(jnp.float32)) / float(H)                    # (Btile, N)
    expand = (img[:, None] == jnp.arange(Btile)[None, :]).astype(jnp.float32)
    lane_c = jnp.arange(WC) % C
    pad_k = k_size // 2
    cmask = jnp.stack([((lane_c + i - pad_k >= 0) & (lane_c + i - pad_k < C))
                       .astype(jnp.float32) for i in range(k_size)]
                      ).reshape(k_size, 1, WC)

    # ---- VMEM budget: derive from actual buffer sizes, clip to device capacity --
    cap = 128 * 1024 * 1024
    try:
        cap = int(pltpu.get_tpu_info().vmem_capacity_bytes)
    except Exception:
        pass
    def _nb(a):
        return int(a.size) * np.dtype(a.dtype).itemsize
    weight_bytes = sum(_nb(a) for a in (w_in, b_in, w_blk, b_blk, pw, bexp,
                                        poolh, expand, hmask, cmask, w_out, b_out))
    io_bytes = Btile * H * (WICp + WOC) * 4
    scratch_bytes = (N + 2) * (WICp + WC) * np.dtype(MATMUL_DTYPE).itemsize
    live_bytes = 8 * N * WC * 4                 # live f32 temporaries / spill slack
    need = 2 * weight_bytes + 2 * io_bytes + scratch_bytes + live_bytes
    vmem_limit = int(min(cap, max(32 * 1024 * 1024, int(1.5 * need) + (4 << 20))))

    kernel = _make_fused_kernel(H, Btile, nblocks, k_size)
    out = pl.pallas_call(
        kernel,
        out_shape=jax.ShapeDtypeStruct((Bp, H, WOC), jnp.float32),
        grid=(nB,),
        in_specs=[
            pl.BlockSpec((Btile, H, WICp), lambda g: (g, 0, 0)),        # x slab
            pl.BlockSpec((3, WICp, WC), lambda g: (0, 0, 0)),           # w_in
            pl.BlockSpec((1, WC), lambda g: (0, 0)),                    # b_in
            pl.BlockSpec((6 * nblocks, WC, WC), lambda g: (0, 0, 0)),   # w_blk
            pl.BlockSpec((2 * nblocks, 1, WC), lambda g: (0, 0, 0)),    # b_blk
            pl.BlockSpec(memory_space=pltpu.MemorySpace.SMEM),          # alphas+gate_h taps
            pl.BlockSpec((nblocks, WC, C), lambda g: (0, 0, 0)),        # pool_w@band_w
            pl.BlockSpec((C, WC), lambda g: (0, 0)),                    # W-broadcast mat
            pl.BlockSpec((Btile, N), lambda g: (0, 0)),                 # per-image H-pool
            pl.BlockSpec((N, Btile), lambda g: (0, 0)),                 # per-image H-expand
            pl.BlockSpec((N, 1), lambda g: (0, 0)),                     # halo mask
            pl.BlockSpec((k_size, 1, WC), lambda g: (0, 0, 0)),         # gate_h lane masks
            pl.BlockSpec((3, WC, WOC), lambda g: (0, 0, 0)),            # w_out
            pl.BlockSpec((1, WOC), lambda g: (0, 0)),                   # b_out
        ],
        out_specs=pl.BlockSpec((Btile, H, WOC), lambda g: (g, 0, 0)),
        scratch_shapes=[
            pltpu.VMEM((N + 2, WICp), MATMUL_DTYPE),   # stacked halo slab, in_conv
            pltpu.VMEM((N + 2, WC), MATMUL_DTYPE),     # stacked halo slab, C stages
        ],
        compiler_params=pltpu.CompilerParams(
            dimension_semantics=("parallel",),
            vmem_limit_bytes=vmem_limit,
        ),
    )(xs, w_in, b_in, w_blk, b_blk, scal, pw, bexp, poolh, expand, hmask,
      cmask, w_out, b_out)

    # lane-dense slab -> NCHW (drop batch padding)
    out = out[:B].reshape(B, H, W, out_c)
    return jnp.transpose(out, (0, 3, 1, 2))


# --------------------------------------------------------------------------
# Parameter init (matches the PyTorch module's structure, regroup=False)
# --------------------------------------------------------------------------

def init_params(key, in_c, inter_c, out_c, nblocks, k_size):
    keys = iter(jax.random.split(key, 4096))

    def nrm(shape, scale):
        return scale * jax.random.normal(next(keys), shape, jnp.float32)

    def conv3_p(cin, cout):
        return {'w': nrm((3, 3, cin, cout), 0.1), 'b': nrm((cout,), 0.1)}

    def conv1_p(cin, cout):
        return {'w': nrm((cin, cout), 0.1), 'b': nrm((cout,), 0.1)}

    def pyd_p(cin, cout):
        return {'spe': conv1_p(cin, cout), 'spa': conv3_p(cin, cout),
                'ss_spa': conv3_p(cin, cout), 'ss_spe': conv1_p(cout, cout)}

    params = {'in_conv': conv3_p(in_c, inter_c), 'blocks': [],
              'out_conv': conv3_p(inter_c, out_c)}
    for _ in range(nblocks):
        params['blocks'].append({
            'stage1': pyd_p(inter_c, inter_c),
            'prelu_a': jnp.array([0.25], jnp.float32),   # nn.PReLU() default
            'stage2': pyd_p(inter_c, inter_c),
            'gate_h': nrm((k_size,), 0.3),
            'gate_w': nrm((k_size,), 0.3),
        })
    return params


# --------------------------------------------------------------------------
# Pure-JAX (NCHW) reference mirroring the PyTorch forward, for validation.
# --------------------------------------------------------------------------

def _conv_ref(x, w_hwio, b, padding):
    w = jnp.transpose(w_hwio, (3, 2, 0, 1))  # -> OIHW
    out = jax.lax.conv_general_dilated(
        x, w, (1, 1), padding, dimension_numbers=('NCHW', 'OIHW', 'NCHW'))
    return out + b[None, :, None, None]


def _conv1_ref(x, w_io, b):
    w = jnp.transpose(w_io, (1, 0))[:, :, None, None]  # OIHW 1x1
    out = jax.lax.conv_general_dilated(
        x, w, (1, 1), 'VALID', dimension_numbers=('NCHW', 'OIHW', 'NCHW'))
    return out + b[None, :, None, None]


def _pyd_ref(x, p):
    out1 = _conv1_ref(x, p['spe']['w'], p['spe']['b'])
    out2 = _conv_ref(x, p['spa']['w'], p['spa']['b'], ((1, 1), (1, 1)))
    out3 = _conv1_ref(_conv_ref(x, p['ss_spa']['w'], p['ss_spa']['b'],
                                ((1, 1), (1, 1))),
                      p['ss_spe']['w'], p['ss_spe']['b'])
    return out1 + out2 + out3


def _attn_ref(x, gh, gw):
    k = gh.shape[0]
    pad = k // 2
    ph = jnp.transpose(jnp.mean(x, axis=2, keepdims=True), (0, 2, 1, 3))  # (B,1,C,W)
    pw = jnp.transpose(jnp.mean(x, axis=3, keepdims=True), (0, 3, 2, 1))  # (B,1,H,C)
    yh = jax.lax.conv_general_dilated(
        ph, gh.reshape(1, 1, k, 1), (1, 1), ((pad, pad), (0, 0)),
        dimension_numbers=('NCHW', 'OIHW', 'NCHW'))
    yw = jax.lax.conv_general_dilated(
        pw, gw.reshape(1, 1, 1, k), (1, 1), ((0, 0), (pad, pad)),
        dimension_numbers=('NCHW', 'OIHW', 'NCHW'))
    yh = jax.nn.sigmoid(jnp.transpose(yh, (0, 2, 1, 3)))  # (B,C,1,W)
    yw = jax.nn.sigmoid(jnp.transpose(yw, (0, 3, 2, 1)))  # (B,C,H,1)
    return x * yh * yw


def repcpsi_ref(params, x):
    out = _conv_ref(x, params['in_conv']['w'], params['in_conv']['b'],
                    ((1, 1), (1, 1)))
    residual = out
    for blk in params['blocks']:
        r = out
        t = _pyd_ref(out, blk['stage1'])
        a = blk['prelu_a'][0]
        t = jnp.where(t >= 0, t, a * t)
        t = _pyd_ref(t, blk['stage2'])
        out = _attn_ref(t, blk['gate_h'], blk['gate_w']) + r
    out = out + residual
    return _conv_ref(out, params['out_conv']['w'], params['out_conv']['b'],
                     ((1, 1), (1, 1)))


# --------------------------------------------------------------------------

if __name__ == "__main__":
    key = jax.random.PRNGKey(0)
    B, in_c, H, W = 2, 3, 16, 16
    inter_c, out_c, nblocks, k_size = 16, 8, 2, 5

    pkey, xkey = jax.random.split(key)
    params = init_params(pkey, in_c, inter_c, out_c, nblocks, k_size)
    x = jax.random.normal(xkey, (B, in_c, H, W), jnp.float32)   # NCHW, like PyTorch

    fwd = jax.jit(repcpsi_forward)
    y = jax.block_until_ready(fwd(params, x))
    assert y.shape == (B, out_c, H, W), y.shape

    y_ref = repcpsi_ref(params, x)
    err = float(jnp.max(jnp.abs(y - y_ref)))
    scale = float(jnp.max(jnp.abs(y_ref))) + 1e-6
    # bf16 conv operands (f32 accumulation) -> small rounding vs f32 reference.
    assert err < 3e-2 * scale, f"mismatch: max abs err {err} (scale {scale})"

    print("KERNEL_OK")
</pallas_src>

<mosaic_0001>
module attributes {stable_mosaic.version = 11 : i64} {
  func.func @kernel(%arg0: i32, %arg1: memref<2x16x128xf32, #tpu.memory_space<vmem>>, %arg2: memref<3x128x256xbf16, #tpu.memory_space<vmem>>, %arg3: memref<1x256xf32, #tpu.memory_space<vmem>>, %arg4: memref<12x256x256xbf16, #tpu.memory_space<vmem>>, %arg5: memref<4x1x256xf32, #tpu.memory_space<vmem>>, %arg6: memref<12xf32, #tpu.memory_space<smem>>, %arg7: memref<2x256x16xf32, #tpu.memory_space<vmem>>, %arg8: memref<16x256xf32, #tpu.memory_space<vmem>>, %arg9: memref<2x36xf32, #tpu.memory_space<vmem>>, %arg10: memref<36x2xf32, #tpu.memory_space<vmem>>, %arg11: memref<36x1xf32, #tpu.memory_space<vmem>>, %arg12: memref<5x1x256xf32, #tpu.memory_space<vmem>>, %arg13: memref<3x256x128xbf16, #tpu.memory_space<vmem>>, %arg14: memref<1x128xf32, #tpu.memory_space<vmem>>, %arg15: memref<2x16x128xf32, #tpu.memory_space<vmem>>, %arg16: memref<38x128xbf16, #tpu.memory_space<vmem>>, %arg17: memref<38x256xbf16, #tpu.memory_space<vmem>>) attributes {dimension_semantics = [#tpu.dimension_semantics<parallel>], iteration_bounds = array<i64: 1>, scalar_prefetch = 0 : i64, scratch_operands = 2 : i64, tpu.core_type = #tpu.core_type<tc>, window_params = [{transform_indices = @transform_0, window_bounds = array<i64: 2, 16, 128>}, {pipeline_mode = #tpu.pipeline_mode<synchronous>, transform_indices = @transform_1, window_bounds = array<i64: 3, 128, 256>}, {pipeline_mode = #tpu.pipeline_mode<synchronous>, transform_indices = @transform_2, window_bounds = array<i64: 1, 256>}, {pipeline_mode = #tpu.pipeline_mode<synchronous>, transform_indices = @transform_3, window_bounds = array<i64: 12, 256, 256>}, {pipeline_mode = #tpu.pipeline_mode<synchronous>, transform_indices = @transform_4, window_bounds = array<i64: 4, 1, 256>}, {transform_indices = @transform_5, window_bounds = array<i64: 12>}, {pipeline_mode = #tpu.pipeline_mode<synchronous>, transform_indices = @transform_6, window_bounds = array<i64: 2, 256, 16>}, {pipeline_mode = #tpu.pipeline_mode<synchronous>, transform_indices = @transform_7, window_bounds = array<i64: 16, 256>}, {pipeline_mode = #tpu.pipeline_mode<synchronous>, transform_indices = @transform_8, window_bounds = array<i64: 2, 36>}, {pipeline_mode = #tpu.pipeline_mode<synchronous>, transform_indices = @transform_9, window_bounds = array<i64: 36, 2>}, {pipeline_mode = #tpu.pipeline_mode<synchronous>, transform_indices = @transform_10, window_bounds = array<i64: 36, 1>}, {pipeline_mode = #tpu.pipeline_mode<synchronous>, transform_indices = @transform_11, window_bounds = array<i64: 5, 1, 256>}, {pipeline_mode = #tpu.pipeline_mode<synchronous>, transform_indices = @transform_12, window_bounds = array<i64: 3, 256, 128>}, {pipeline_mode = #tpu.pipeline_mode<synchronous>, transform_indices = @transform_13, window_bounds = array<i64: 1, 128>}, {transform_indices = @transform_14, window_bounds = array<i64: 2, 16, 128>}]} {
    %c0 = arith.constant 0 : index
    %c0_0 = arith.constant 0 : index
    %0 = vector.load %arg11[%c0, %c0_0] : memref<36x1xf32, #tpu.memory_space<vmem>>, vector<36x1xf32>
    %cst = arith.constant 0.000000e+00 : bf16
    %1 = vector.broadcast %cst : bf16 to vector<2x128xbf16>
    %c0_1 = arith.constant 0 : index
    %c0_2 = arith.constant 0 : index
    %2 = vector.load %arg16[%c0_1, %c0_2] : memref<38x128xbf16, #tpu.memory_space<vmem>>, vector<2x128xbf16>
    tpu.vector_store %arg16[%c0_1, %c0_2], %1 {strides = array<i32>} : memref<38x128xbf16, #tpu.memory_space<vmem>>, vector<2x128xbf16>,
    %cst_3 = arith.constant 0.000000e+00 : bf16
    %3 = vector.broadcast %cst_3 : bf16 to vector<2x128xbf16>
    %c18 = arith.constant 18 : index
    %c0_4 = arith.constant 0 : index
    %4 = vector.load %arg16[%c18, %c0_4] : memref<38x128xbf16, #tpu.memory_space<vmem>>, vector<2x128xbf16>
    tpu.vector_store %arg16[%c18, %c0_4], %3 {strides = array<i32>} : memref<38x128xbf16, #tpu.memory_space<vmem>>, vector<2x128xbf16>,
    %cst_5 = arith.constant 0.000000e+00 : bf16
    %5 = vector.broadcast %cst_5 : bf16 to vector<2x128xbf16>
    %c36 = arith.constant 36 : index
    %c0_6 = arith.constant 0 : index
    %6 = vector.load %arg16[%c36, %c0_6] : memref<38x128xbf16, #tpu.memory_space<vmem>>, vector<2x128xbf16>
    tpu.vector_store %arg16[%c36, %c0_6], %5 {strides = array<i32>} : memref<38x128xbf16, #tpu.memory_space<vmem>>, vector<2x128xbf16>,
    %cst_7 = arith.constant 0.000000e+00 : bf16
    %7 = vector.broadcast %cst_7 : bf16 to vector<1x256xbf16>
    %c0_8 = arith.constant 0 : index
    %c0_9 = arith.constant 0 : index
    %8 = vector.load %arg17[%c0_8, %c0_9] : memref<38x256xbf16, #tpu.memory_space<vmem>>, vector<1x256xbf16>
    tpu.vector_store %arg17[%c0_8, %c0_9], %7 {strides = array<i32>} : memref<38x256xbf16, #tpu.memory_space<vmem>>, vector<1x256xbf16>,
    %cst_10 = arith.constant 0.000000e+00 : bf16
    %9 = vector.broadcast %cst_10 : bf16 to vector<1x256xbf16>
    %c37 = arith.constant 37 : index
    %c0_11 = arith.constant 0 : index
    %10 = vector.load %arg17[%c37, %c0_11] : memref<38x256xbf16, #tpu.memory_space<vmem>>, vector<1x256xbf16>
    tpu.vector_store %arg17[%c37, %c0_11], %9 {strides = array<i32>} : memref<38x256xbf16, #tpu.memory_space<vmem>>, vector<1x256xbf16>,
    %c0_12 = arith.constant 0 : index
    %c0_13 = arith.constant 0 : index
    %c0_14 = arith.constant 0 : index
    %11 = vector.load %arg1[%c0_12, %c0_13, %c0_14] : memref<2x16x128xf32, #tpu.memory_space<vmem>>, vector<1x16x128xf32>
    %12 = vector.shape_cast %11 : vector<1x16x128xf32> to vector<16x128xf32>
    %13 = arith.truncf %12 : vector<16x128xf32> to vector<16x128xbf16>
    %c2 = arith.constant 2 : index
    %c0_15 = arith.constant 0 : index
    %14 = vector.load %arg16[%c2, %c0_15] : memref<38x128xbf16, #tpu.memory_space<vmem>>, vector<16x128xbf16>
    tpu.vector_store %arg16[%c2, %c0_15], %13 {strides = array<i32>} : memref<38x128xbf16, #tpu.memory_space<vmem>>, vector<16x128xbf16>,
    %c1 = arith.constant 1 : index
    %c0_16 = arith.constant 0 : index
    %c0_17 = arith.constant 0 : index
    %15 = vector.load %arg1[%c1, %c0_16, %c0_17] : memref<2x16x128xf32, #tpu.memory_space<vmem>>, vector<1x16x128xf32>
    %16 = vector.shape_cast %15 : vector<1x16x128xf32> to vector<16x128xf32>
    %17 = arith.truncf %16 : vector<16x128xf32> to vector<16x128xbf16>
    %c20 = arith.constant 20 : index
    %c0_18 = arith.constant 0 : index
    %18 = vector.load %arg16[%c20, %c0_18] : memref<38x128xbf16, #tpu.memory_space<vmem>>, vector<16x128xbf16>
    tpu.vector_store %arg16[%c20, %c0_18], %17 {strides = array<i32>} : memref<38x128xbf16, #tpu.memory_space<vmem>>, vector<16x128xbf16>,
    %c0_19 = arith.constant 0 : index
    %c0_20 = arith.constant 0 : index
    %19 = vector.load %arg3[%c0_19, %c0_20] : memref<1x256xf32, #tpu.memory_space<vmem>>, vector<1x256xf32>
    %c0_21 = arith.constant 0 : index
    %c0_22 = arith.constant 0 : index
    %20 = vector.load %arg16[%c0_21, %c0_22] : memref<38x128xbf16, #tpu.memory_space<vmem>>, vector<36x128xbf16>
    %c0_23 = arith.constant 0 : index
    %c0_24 = arith.constant 0 : index
    %c0_25 = arith.constant 0 : index
    %21 = vector.load %arg2[%c0_23, %c0_24, %c0_25] : memref<3x128x256xbf16, #tpu.memory_space<vmem>>, vector<1x128x256xbf16>
    %22 = vector.shape_cast %21 : vector<1x128x256xbf16> to vector<128x256xbf16>
    %cst_26 = arith.constant dense<0.000000e+00> : vector<36x256xf32>
    %23 = tpu.matmul %20, %22, %cst_26 {dimension_numbers = #tpu.dot_dimension_numbers<[1], [0], [0], [1], [0, 0, 1, 1], [], []>} : vector<36x128xbf16>, vector<128x256xbf16>, vector<36x256xf32> -> vector<36x256xf32>
    %c1_27 = arith.constant 1 : index
    %c0_28 = arith.constant 0 : index
    %24 = vector.load %arg16[%c1_27, %c0_28] : memref<38x128xbf16, #tpu.memory_space<vmem>>, vector<36x128xbf16>
    %c1_29 = arith.constant 1 : index
    %c0_30 = arith.constant 0 : index
    %c0_31 = arith.constant 0 : index
    %25 = vector.load %arg2[%c1_29, %c0_30, %c0_31] : memref<3x128x256xbf16, #tpu.memory_space<vmem>>, vector<1x128x256xbf16>
    %26 = vector.shape_cast %25 : vector<1x128x256xbf16> to vector<128x256xbf16>
    %cst_32 = arith.constant dense<0.000000e+00> : vector<36x256xf32>
    %27 = tpu.matmul %24, %26, %cst_32 {dimension_numbers = #tpu.dot_dimension_numbers<[1], [0], [0], [1], [0, 0, 1, 1], [], []>} : vector<36x128xbf16>, vector<128x256xbf16>, vector<36x256xf32> -> vector<36x256xf32>
    %28 = arith.addf %23, %27 : vector<36x256xf32>
    %c2_33 = arith.constant 2 : index
    %c0_34 = arith.constant 0 : index
    %29 = vector.load %arg16[%c2_33, %c0_34] : memref<38x128xbf16, #tpu.memory_space<vmem>>, vector<36x128xbf16>
    %c2_35 = arith.constant 2 : index
    %c0_36 = arith.constant 0 : index
    %c0_37 = arith.constant 0 : index
    %30 = vector.load %arg2[%c2_35, %c0_36, %c0_37] : memref<3x128x256xbf16, #tpu.memory_space<vmem>>, vector<1x128x256xbf16>
    %31 = vector.shape_cast %30 : vector<1x128x256xbf16> to vector<128x256xbf16>
    %cst_38 = arith.constant dense<0.000000e+00> : vector<36x256xf32>
    %32 = tpu.matmul %29, %31, %cst_38 {dimension_numbers = #tpu.dot_dimension_numbers<[1], [0], [0], [1], [0, 0, 1, 1], [], []>} : vector<36x128xbf16>, vector<128x256xbf16>, vector<36x256xf32> -> vector<36x256xf32>
    %33 = arith.addf %28, %32 : vector<36x256xf32>
    %34 = vector.broadcast %19 : vector<1x256xf32> to vector<36x256xf32>
    %35 = arith.addf %33, %34 : vector<36x256xf32>
    %36 = vector.broadcast %0 : vector<36x1xf32> to vector<36x256xf32>
    %37 = arith.mulf %35, %36 : vector<36x256xf32>
    %38 = arith.truncf %37 : vector<36x256xf32> to vector<36x256xbf16>
    %c1_39 = arith.constant 1 : index
    %c0_40 = arith.constant 0 : index
    %39 = vector.load %arg17[%c1_39, %c0_40] : memref<38x256xbf16, #tpu.memory_space<vmem>>, vector<36x256xbf16>
    tpu.vector_store %arg17[%c1_39, %c0_40], %38 {strides = array<i32>} : memref<38x256xbf16, #tpu.memory_space<vmem>>, vector<36x256xbf16>,
    %c0_41 = arith.constant 0 : index
    %c0_42 = arith.constant 0 : index
    %c0_43 = arith.constant 0 : index
    %40 = vector.load %arg5[%c0_41, %c0_42, %c0_43] : memref<4x1x256xf32, #tpu.memory_space<vmem>>, vector<1x1x256xf32>
    %41 = vector.shape_cast %40 : vector<1x1x256xf32> to vector<1x256xf32>
    %c0_44 = arith.constant 0 : index
    %c0_45 = arith.constant 0 : index
    %42 = vector.load %arg17[%c0_44, %c0_45] : memref<38x256xbf16, #tpu.memory_space<vmem>>, vector<36x256xbf16>
    %c0_46 = arith.constant 0 : index
    %c0_47 = arith.constant 0 : index
    %c0_48 = arith.constant 0 : index
    %43 = vector.load %arg4[%c0_46, %c0_47, %c0_48] : memref<12x256x256xbf16, #tpu.memory_space<vmem>>, vector<1x256x256xbf16>
    %44 = vector.shape_cast %43 : vector<1x256x256xbf16> to vector<256x256xbf16>
    %cst_49 = arith.constant dense<0.000000e+00> : vector<36x256xf32>
    %45 = tpu.matmul %42, %44, %cst_49 {dimension_numbers = #tpu.dot_dimension_numbers<[1], [0], [0], [1], [0, 0, 1, 1], [], []>} : vector<36x256xbf16>, vector<256x256xbf16>, vector<36x256xf32> -> vector<36x256xf32>
    %c1_50 = arith.constant 1 : index
    %c0_51 = arith.constant 0 : index
    %46 = vector.load %arg17[%c1_50, %c0_51] : memref<38x256xbf16, #tpu.memory_space<vmem>>, vector<36x256xbf16>
    %c1_52 = arith.constant 1 : index
    %c0_53 = arith.constant 0 : index
    %c0_54 = arith.constant 0 : index
    %47 = vector.load %arg4[%c1_52, %c0_53, %c0_54] : memref<12x256x256xbf16, #tpu.memory_space<vmem>>, vector<1x256x256xbf16>
    %48 = vector.shape_cast %47 : vector<1x256x256xbf16> to vector<256x256xbf16>
    %cst_55 = arith.constant dense<0.000000e+00> : vector<36x256xf32>
    %49 = tpu.matmul %46, %48, %cst_55 {dimension_numbers = #tpu.dot_dimension_numbers<[1], [0], [0], [1], [0, 0, 1, 1], [], []>} : vector<36x256xbf16>, vector<256x256xbf16>, vector<36x256xf32> -> vector<36x256xf32>
    %50 = arith.addf %45, %49 : vector<36x256xf32>
    %c2_56 = arith.constant 2 : index
    %c0_57 = arith.constant 0 : index
    %51 = vector.load %arg17[%c2_56, %c0_57] : memref<38x256xbf16, #tpu.memory_space<vmem>>, vector<36x256xbf16>
    %c2_58 = arith.constant 2 : index
    %c0_59 = arith.constant 0 : index
    %c0_60 = arith.constant 0 : index
    %52 = vector.load %arg4[%c2_58, %c0_59, %c0_60] : memref<12x256x256xbf16, #tpu.memory_space<vmem>>, vector<1x256x256xbf16>
    %53 = vector.shape_cast %52 : vector<1x256x256xbf16> to vector<256x256xbf16>
    %cst_61 = arith.constant dense<0.000000e+00> : vector<36x256xf32>
    %54 = tpu.matmul %51, %53, %cst_61 {dimension_numbers = #tpu.dot_dimension_numbers<[1], [0], [0], [1], [0, 0, 1, 1], [], []>} : vector<36x256xbf16>, vector<256x256xbf16>, vector<36x256xf32> -> vector<36x256xf32>
    %55 = arith.addf %50, %54 : vector<36x256xf32>
    %56 = vector.broadcast %41 : vector<1x256xf32> to vector<36x256xf32>
    %57 = arith.addf %55, %56 : vector<36x256xf32>
    %c0_62 = arith.constant 0 : index
    %58 = memref.load %arg6[%c0_62] : memref<12xf32, #tpu.memory_space<smem>>
    %cst_63 = arith.constant 0.000000e+00 : f32
    %59 = vector.broadcast %cst_63 : f32 to vector<36x256xf32>
    %60 = arith.cmpf oge, %57, %59 : vector<36x256xf32>
    %61 = vector.broadcast %58 : f32 to vector<36x256xf32>
    %62 = arith.mulf %61, %57 : vector<36x256xf32>
    %63 = arith.select %60, %57, %62 : vector<36x256xi1>, vector<36x256xf32>
    %64 = vector.broadcast %0 : vector<36x1xf32> to vector<36x256xf32>
    %65 = arith.mulf %63, %64 : vector<36x256xf32>
    %66 = arith.truncf %65 : vector<36x256xf32> to vector<36x256xbf16>
    %c1_64 = arith.constant 1 : index
    %c0_65 = arith.constant 0 : index
    %67 = vector.load %arg17[%c1_64, %c0_65] : memref<38x256xbf16, #tpu.memory_space<vmem>>, vector<36x256xbf16>
    tpu.vector_store %arg17[%c1_64, %c0_65], %66 {strides = array<i32>} : memref<38x256xbf16, #tpu.memory_space<vmem>>, vector<36x256xbf16>,
    %c1_66 = arith.constant 1 : index
    %c0_67 = arith.constant 0 : index
    %c0_68 = arith.constant 0 : index
    %68 = vector.load %arg5[%c1_66, %c0_67, %c0_68] : memref<4x1x256xf32, #tpu.memory_space<vmem>>, vector<1x1x256xf32>
    %69 = vector.shape_cast %68 : vector<1x1x256xf32> to vector<1x256xf32>
    %c0_69 = arith.constant 0 : index
    %c0_70 = arith.constant 0 : index
    %70 = vector.load %arg17[%c0_69, %c0_70] : memref<38x256xbf16, #tpu.memory_space<vmem>>, vector<36x256xbf16>
    %c3 = arith.constant 3 : index
    %c0_71 = arith.constant 0 : index
    %c0_72 = arith.constant 0 : index
    %71 = vector.load %arg4[%c3, %c0_71, %c0_72] : memref<12x256x256xbf16, #tpu.memory_space<vmem>>, vector<1x256x256xbf16>
    %72 = vector.shape_cast %71 : vector<1x256x256xbf16> to vector<256x256xbf16>
    %cst_73 = arith.constant dense<0.000000e+00> : vector<36x256xf32>
    %73 = tpu.matmul %70, %72, %cst_73 {dimension_numbers = #tpu.dot_dimension_numbers<[1], [0], [0], [1], [0, 0, 1, 1], [], []>} : vector<36x256xbf16>, vector<256x256xbf16>, vector<36x256xf32> -> vector<36x256xf32>
    %c1_74 = arith.constant 1 : index
    %c0_75 = arith.constant 0 : index
    %74 = vector.load %arg17[%c1_74, %c0_75] : memref<38x256xbf16, #tpu.memory_space<vmem>>, vector<36x256xbf16>
    %c4 = arith.constant 4 : index
    %c0_76 = arith.constant 0 : index
    %c0_77 = arith.constant 0 : index
    %75 = vector.load %arg4[%c4, %c0_76, %c0_77] : memref<12x256x256xbf16, #tpu.memory_space<vmem>>, vector<1x256x256xbf16>
    %76 = vector.shape_cast %75 : vector<1x256x256xbf16> to vector<256x256xbf16>
    %cst_78 = arith.constant dense<0.000000e+00> : vector<36x256xf32>
    %77 = tpu.matmul %74, %76, %cst_78 {dimension_numbers = #tpu.dot_dimension_numbers<[1], [0], [0], [1], [0, 0, 1, 1], [], []>} : vector<36x256xbf16>, vector<256x256xbf16>, vector<36x256xf32> -> vector<36x256xf32>
    %78 = arith.addf %73, %77 : vector<36x256xf32>
    %c2_79 = arith.constant 2 : index
    %c0_80 = arith.constant 0 : index
    %79 = vector.load %arg17[%c2_79, %c0_80] : memref<38x256xbf16, #tpu.memory_space<vmem>>, vector<36x256xbf16>
    %c5 = arith.constant 5 : index
    %c0_81 = arith.constant 0 : index
    %c0_82 = arith.constant 0 : index
    %80 = vector.load %arg4[%c5, %c0_81, %c0_82] : memref<12x256x256xbf16, #tpu.memory_space<vmem>>, vector<1x256x256xbf16>
    %81 = vector.shape_cast %80 : vector<1x256x256xbf16> to vector<256x256xbf16>
    %cst_83 = arith.constant dense<0.000000e+00> : vector<36x256xf32>
    %82 = tpu.matmul %79, %81, %cst_83 {dimension_numbers = #tpu.dot_dimension_numbers<[1], [0], [0], [1], [0, 0, 1, 1], [], []>} : vector<36x256xbf16>, vector<256x256xbf16>, vector<36x256xf32> -> vector<36x256xf32>
    %83 = arith.addf %78, %82 : vector<36x256xf32>
    %84 = vector.broadcast %69 : vector<1x256xf32> to vector<36x256xf32>
    %85 = arith.addf %83, %84 : vector<36x256xf32>
    %c0_84 = arith.constant 0 : index
    %c0_85 = arith.constant 0 : index
    %86 = vector.load %arg9[%c0_84, %c0_85] : memref<2x36xf32, #tpu.memory_space<vmem>>, vector<2x36xf32>
    %cst_86 = arith.constant dense<0.000000e+00> : vector<2x256xf32>
    %87 = tpu.matmul %86, %85, %cst_86 {dimension_numbers = #tpu.dot_dimension_numbers<[1], [0], [0], [1], [0, 0, 1, 1], [], []>} : vector<2x36xf32>, vector<36x256xf32>, vector<2x256xf32> -> vector<2x256xf32>
    %cst_87 = arith.constant 0.000000e+00 : f32
    %88 = vector.broadcast %cst_87 : f32 to vector<2x256xf32>
    %c1_88 = arith.constant 1 : index
    %89 = memref.load %arg6[%c1_88] : memref<12xf32, #tpu.memory_space<smem>>
    %c2_i32 = arith.constant 2 : i32
    %90 = tpu.dynamic_rotate %87 by %c2_i32 dim 1 : vector<2x256xf32>, i32 -> vector<2x256xf32>
    %c0_89 = arith.constant 0 : index
    %c0_90 = arith.constant 0 : index
    %c0_91 = arith.constant 0 : index
    %91 = vector.load %arg12[%c0_89, %c0_90, %c0_91] : memref<5x1x256xf32, #tpu.memory_space<vmem>>, vector<1x1x256xf32>
    %92 = vector.shape_cast %91 : vector<1x1x256xf32> to vector<1x256xf32>
    %93 = vector.broadcast %92 : vector<1x256xf32> to vector<2x256xf32>
    %94 = arith.mulf %90, %93 : vector<2x256xf32>
    %95 = vector.broadcast %89 : f32 to vector<2x256xf32>
    %96 = arith.mulf %95, %94 : vector<2x256xf32>
    %97 = arith.addf %88, %96 : vector<2x256xf32>
    %c2_92 = arith.constant 2 : index
    %98 = memref.load %arg6[%c2_92] : memref<12xf32, #tpu.memory_space<smem>>
    %c1_i32 = arith.constant 1 : i32
    %99 = tpu.dynamic_rotate %87 by %c1_i32 dim 1 : vector<2x256xf32>, i32 -> vector<2x256xf32>
    %c1_93 = arith.constant 1 : index
    %c0_94 = arith.constant 0 : index
    %c0_95 = arith.constant 0 : index
    %100 = vector.load %arg12[%c1_93, %c0_94, %c0_95] : memref<5x1x256xf32, #tpu.memory_space<vmem>>, vector<1x1x256xf32>
    %101 = vector.shape_cast %100 : vector<1x1x256xf32> to vector<1x256xf32>
    %102 = vector.broadcast %101 : vector<1x256xf32> to vector<2x256xf32>
    %103 = arith.mulf %99, %102 : vector<2x256xf32>
    %104 = vector.broadcast %98 : f32 to vector<2x256xf32>
    %105 = arith.mulf %104, %103 : vector<2x256xf32>
    %106 = arith.addf %97, %105 : vector<2x256xf32>
    %c3_96 = arith.constant 3 : index
    %107 = memref.load %arg6[%c3_96] : memref<12xf32, #tpu.memory_space<smem>>
    %c2_97 = arith.constant 2 : index
    %c0_98 = arith.constant 0 : index
    %c0_99 = arith.constant 0 : index
    %108 = vector.load %arg12[%c2_97, %c0_98, %c0_99] : memref<5x1x256xf32, #tpu.memory_space<vmem>>, vector<1x1x256xf32>
    %109 = vector.shape_cast %108 : vector<1x1x256xf32> to vector<1x256xf32>
    %110 = vector.broadcast %109 : vector<1x256xf32> to vector<2x256xf32>
    %111 = arith.mulf %87, %110 : vector<2x256xf32>
    %112 = vector.broadcast %107 : f32 to vector<2x256xf32>
    %113 = arith.mulf %112, %111 : vector<2x256xf32>
    %114 = arith.addf %106, %113 : vector<2x256xf32>
    %c4_100 = arith.constant 4 : index
    %115 = memref.load %arg6[%c4_100] : memref<12xf32, #tpu.memory_space<smem>>
    %c255_i32 = arith.constant 255 : i32
    %116 = tpu.dynamic_rotate %87 by %c255_i32 dim 1 : vector<2x256xf32>, i32 -> vector<2x256xf32>
    %c3_101 = arith.constant 3 : index
    %c0_102 = arith.constant 0 : index
    %c0_103 = arith.constant 0 : index
    %117 = vector.load %arg12[%c3_101, %c0_102, %c0_103] : memref<5x1x256xf32, #tpu.memory_space<vmem>>, vector<1x1x256xf32>
    %118 = vector.shape_cast %117 : vector<1x1x256xf32> to vector<1x256xf32>
    %119 = vector.broadcast %118 : vector<1x256xf32> to vector<2x256xf32>
    %120 = arith.mulf %116, %119 : vector<2x256xf32>
    %121 = vector.broadcast %115 : f32 to vector<2x256xf32>
    %122 = arith.mulf %121, %120 : vector<2x256xf32>
    %123 = arith.addf %114, %122 : vector<2x256xf32>
    %c5_104 = arith.constant 5 : index
    %124 = memref.load %arg6[%c5_104] : memref<12xf32, #tpu.memory_space<smem>>
    %c254_i32 = arith.constant 254 : i32
    %125 = tpu.dynamic_rotate %87 by %c254_i32 dim 1 : vector<2x256xf32>, i32 -> vector<2x256xf32>
    %c4_105 = arith.constant 4 : index
    %c0_106 = arith.constant 0 : index
    %c0_107 = arith.constant 0 : index
    %126 = vector.load %arg12[%c4_105, %c0_106, %c0_107] : memref<5x1x256xf32, #tpu.memory_space<vmem>>, vector<1x1x256xf32>
    %127 = vector.shape_cast %126 : vector<1x1x256xf32> to vector<1x256xf32>
    %128 = vector.broadcast %127 : vector<1x256xf32> to vector<2x256xf32>
    %129 = arith.mulf %125, %128 : vector<2x256xf32>
    %130 = vector.broadcast %124 : f32 to vector<2x256xf32>
    %131 = arith.mulf %130, %129 : vector<2x256xf32>
    %132 = arith.addf %123, %131 : vector<2x256xf32>
    %133 = arith.negf %132 : vector<2x256xf32>
    %134 = math.exp %133 : vector<2x256xf32>
    %cst_108 = arith.constant 1.000000e+00 : f32
    %135 = vector.broadcast %cst_108 : f32 to vector<2x256xf32>
    %136 = arith.addf %135, %134 : vector<2x256xf32>
    %137 = arith.divf %135, %136 : vector<2x256xf32>
    %c0_109 = arith.constant 0 : index
    %c0_110 = arith.constant 0 : index
    %138 = vector.load %arg10[%c0_109, %c0_110] : memref<36x2xf32, #tpu.memory_space<vmem>>, vector<36x2xf32>
    %cst_111 = arith.constant dense<0.000000e+00> : vector<36x256xf32>
    %139 = tpu.matmul %138, %137, %cst_111 {dimension_numbers = #tpu.dot_dimension_numbers<[1], [0], [0], [1], [0, 0, 1, 1], [], []>} : vector<36x2xf32>, vector<2x256xf32>, vector<36x256xf32> -> vector<36x256xf32>
    %c0_112 = arith.constant 0 : index
    %c0_113 = arith.constant 0 : index
    %c0_114 = arith.constant 0 : index
    %140 = vector.load %arg7[%c0_112, %c0_113, %c0_114] : memref<2x256x16xf32, #tpu.memory_space<vmem>>, vector<1x256x16xf32>
    %141 = vector.shape_cast %140 : vector<1x256x16xf32> to vector<256x16xf32>
    %cst_115 = arith.constant dense<0.000000e+00> : vector<36x16xf32>
    %142 = tpu.matmul %85, %141, %cst_115 {dimension_numbers = #tpu.dot_dimension_numbers<[1], [0], [0], [1], [0, 0, 1, 1], [], []>} : vector<36x256xf32>, vector<256x16xf32>, vector<36x16xf32> -> vector<36x16xf32>
    %143 = arith.negf %142 : vector<36x16xf32>
    %144 = math.exp %143 : vector<36x16xf32>
    %cst_116 = arith.constant 1.000000e+00 : f32
    %145 = vector.broadcast %cst_116 : f32 to vector<36x16xf32>
    %146 = arith.addf %145, %144 : vector<36x16xf32>
    %147 = arith.divf %145, %146 : vector<36x16xf32>
    %c0_117 = arith.constant 0 : index
    %c0_118 = arith.constant 0 : index
    %148 = vector.load %arg8[%c0_117, %c0_118] : memref<16x256xf32, #tpu.memory_space<vmem>>, vector<16x256xf32>
    %cst_119 = arith.constant dense<0.000000e+00> : vector<36x256xf32>
    %149 = tpu.matmul %147, %148, %cst_119 {dimension_numbers = #tpu.dot_dimension_numbers<[1], [0], [0], [1], [0, 0, 1, 1], [], []>} : vector<36x16xf32>, vector<16x256xf32>, vector<36x256xf32> -> vector<36x256xf32>
    %150 = arith.mulf %85, %139 : vector<36x256xf32>
    %151 = arith.mulf %150, %149 : vector<36x256xf32>
    %152 = vector.broadcast %0 : vector<36x1xf32> to vector<36x256xf32>
    %153 = arith.mulf %151, %152 : vector<36x256xf32>
    %154 = arith.addf %153, %37 : vector<36x256xf32>
    %155 = arith.truncf %154 : vector<36x256xf32> to vector<36x256xbf16>
    %c1_120 = arith.constant 1 : index
    %c0_121 = arith.constant 0 : index
    %156 = vector.load %arg17[%c1_120, %c0_121] : memref<38x256xbf16, #tpu.memory_space<vmem>>, vector<36x256xbf16>
    tpu.vector_store %arg17[%c1_120, %c0_121], %155 {strides = array<i32>} : memref<38x256xbf16, #tpu.memory_space<vmem>>, vector<36x256xbf16>,
    %c2_122 = arith.constant 2 : index
    %c0_123 = arith.constant 0 : index
    %c0_124 = arith.constant 0 : index
    %157 = vector.load %arg5[%c2_122, %c0_123, %c0_124] : memref<4x1x256xf32, #tpu.memory_space<vmem>>, vector<1x1x256xf32>
    %158 = vector.shape_cast %157 : vector<1x1x256xf32> to vector<1x256xf32>
    %c0_125 = arith.constant 0 : index
    %c0_126 = arith.constant 0 : index
    %159 = vector.load %arg17[%c0_125, %c0_126] : memref<38x256xbf16, #tpu.memory_space<vmem>>, vector<36x256xbf16>
    %c6 = arith.constant 6 : index
    %c0_127 = arith.constant 0 : index
    %c0_128 = arith.constant 0 : index
    %160 = vector.load %arg4[%c6, %c0_127, %c0_128] : memref<12x256x256xbf16, #tpu.memory_space<vmem>>, vector<1x256x256xbf16>
    %161 = vector.shape_cast %160 : vector<1x256x256xbf16> to vector<256x256xbf16>
    %cst_129 = arith.constant dense<0.000000e+00> : vector<36x256xf32>
    %162 = tpu.matmul %159, %161, %cst_129 {dimension_numbers = #tpu.dot_dimension_numbers<[1], [0], [0], [1], [0, 0, 1, 1], [], []>} : vector<36x256xbf16>, vector<256x256xbf16>, vector<36x256xf32> -> vector<36x256xf32>
    %c1_130 = arith.constant 1 : index
    %c0_131 = arith.constant 0 : index
    %163 = vector.load %arg17[%c1_130, %c0_131] : memref<38x256xbf16, #tpu.memory_space<vmem>>, vector<36x256xbf16>
    %c7 = arith.constant 7 : index
    %c0_132 = arith.constant 0 : index
    %c0_133 = arith.constant 0 : index
    %164 = vector.load %arg4[%c7, %c0_132, %c0_133] : memref<12x256x256xbf16, #tpu.memory_space<vmem>>, vector<1x256x256xbf16>
    %165 = vector.shape_cast %164 : vector<1x256x256xbf16> to vector<256x256xbf16>
    %cst_134 = arith.constant dense<0.000000e+00> : vector<36x256xf32>
    %166 = tpu.matmul %163, %165, %cst_134 {dimension_numbers = #tpu.dot_dimension_numbers<[1], [0], [0], [1], [0, 0, 1, 1], [], []>} : vector<36x256xbf16>, vector<256x256xbf16>, vector<36x256xf32> -> vector<36x256xf32>
    %167 = arith.addf %162, %166 : vector<36x256xf32>
    %c2_135 = arith.constant 2 : index
    %c0_136 = arith.constant 0 : index
    %168 = vector.load %arg17[%c2_135, %c0_136] : memref<38x256xbf16, #tpu.memory_space<vmem>>, vector<36x256xbf16>
    %c8 = arith.constant 8 : index
    %c0_137 = arith.constant 0 : index
    %c0_138 = arith.constant 0 : index
    %169 = vector.load %arg4[%c8, %c0_137, %c0_138] : memref<12x256x256xbf16, #tpu.memory_space<vmem>>, vector<1x256x256xbf16>
    %170 = vector.shape_cast %169 : vector<1x256x256xbf16> to vector<256x256xbf16>
    %cst_139 = arith.constant dense<0.000000e+00> : vector<36x256xf32>
    %171 = tpu.matmul %168, %170, %cst_139 {dimension_numbers = #tpu.dot_dimension_numbers<[1], [0], [0], [1], [0, 0, 1, 1], [], []>} : vector<36x256xbf16>, vector<256x256xbf16>, vector<36x256xf32> -> vector<36x256xf32>
    %172 = arith.addf %167, %171 : vector<36x256xf32>
    %173 = vector.broadcast %158 : vector<1x256xf32> to vector<36x256xf32>
    %174 = arith.addf %172, %173 : vector<36x256xf32>
    %c6_140 = arith.constant 6 : index
    %175 = memref.load %arg6[%c6_140] : memref<12xf32, #tpu.memory_space<smem>>
    %cst_141 = arith.constant 0.000000e+00 : f32
    %176 = vector.broadcast %cst_141 : f32 to vector<36x256xf32>
    %177 = arith.cmpf oge, %174, %176 : vector<36x256xf32>
    %178 = vector.broadcast %175 : f32 to vector<36x256xf32>
    %179 = arith.mulf %178, %174 : vector<36x256xf32>
    %180 = arith.select %177, %174, %179 : vector<36x256xi1>, vector<36x256xf32>
    %181 = vector.broadcast %0 : vector<36x1xf32> to vector<36x256xf32>
    %182 = arith.mulf %180, %181 : vector<36x256xf32>
    %183 = arith.truncf %182 : vector<36x256xf32> to vector<36x256xbf16>
    %c1_142 = arith.constant 1 : index
    %c0_143 = arith.constant 0 : index
    %184 = vector.load %arg17[%c1_142, %c0_143] : memref<38x256xbf16, #tpu.memory_space<vmem>>, vector<36x256xbf16>
    tpu.vector_store %arg17[%c1_142, %c0_143], %183 {strides = array<i32>} : memref<38x256xbf16, #tpu.memory_space<vmem>>, vector<36x256xbf16>,
    %c3_144 = arith.constant 3 : index
    %c0_145 = arith.constant 0 : index
    %c0_146 = arith.constant 0 : index
    %185 = vector.load %arg5[%c3_144, %c0_145, %c0_146] : memref<4x1x256xf32, #tpu.memory_space<vmem>>, vector<1x1x256xf32>
    %186 = vector.shape_cast %185 : vector<1x1x256xf32> to vector<1x256xf32>
    %c0_147 = arith.constant 0 : index
    %c0_148 = arith.constant 0 : index
    %187 = vector.load %arg17[%c0_147, %c0_148] : memref<38x256xbf16, #tpu.memory_space<vmem>>, vector<36x256xbf16>
    %c9 = arith.constant 9 : index
    %c0_149 = arith.constant 0 : index
    %c0_150 = arith.constant 0 : index
    %188 = vector.load %arg4[%c9, %c0_149, %c0_150] : memref<12x256x256xbf16, #tpu.memory_space<vmem>>, vector<1x256x256xbf16>
    %189 = vector.shape_cast %188 : vector<1x256x256xbf16> to vector<256x256xbf16>
    %cst_151 = arith.constant dense<0.000000e+00> : vector<36x256xf32>
    %190 = tpu.matmul %187, %189, %cst_151 {dimension_numbers = #tpu.dot_dimension_numbers<[1], [0], [0], [1], [0, 0, 1, 1], [], []>} : vector<36x256xbf16>, vector<256x256xbf16>, vector<36x256xf32> -> vector<36x256xf32>
    %c1_152 = arith.constant 1 : index
    %c0_153 = arith.constant 0 : index
    %191 = vector.load %arg17[%c1_152, %c0_153] : memref<38x256xbf16, #tpu.memory_space<vmem>>, vector<36x256xbf16>
    %c10 = arith.constant 10 : index
    %c0_154 = arith.constant 0 : index
    %c0_155 = arith.constant 0 : index
    %192 = vector.load %arg4[%c10, %c0_154, %c0_155] : memref<12x256x256xbf16, #tpu.memory_space<vmem>>, vector<1x256x256xbf16>
    %193 = vector.shape_cast %192 : vector<1x256x256xbf16> to vector<256x256xbf16>
    %cst_156 = arith.constant dense<0.000000e+00> : vector<36x256xf32>
    %194 = tpu.matmul %191, %193, %cst_156 {dimension_numbers = #tpu.dot_dimension_numbers<[1], [0], [0], [1], [0, 0, 1, 1], [], []>} : vector<36x256xbf16>, vector<256x256xbf16>, vector<36x256xf32> -> vector<36x256xf32>
    %195 = arith.addf %190, %194 : vector<36x256xf32>
    %c2_157 = arith.constant 2 : index
    %c0_158 = arith.constant 0 : index
    %196 = vector.load %arg17[%c2_157, %c0_158] : memref<38x256xbf16, #tpu.memory_space<vmem>>, vector<36x256xbf16>
    %c11 = arith.constant 11 : index
    %c0_159 = arith.constant 0 : index
    %c0_160 = arith.constant 0 : index
    %197 = vector.load %arg4[%c11, %c0_159, %c0_160] : memref<12x256x256xbf16, #tpu.memory_space<vmem>>, vector<1x256x256xbf16>
    %198 = vector.shape_cast %197 : vector<1x256x256xbf16> to vector<256x256xbf16>
    %cst_161 = arith.constant dense<0.000000e+00> : vector<36x256xf32>
    %199 = tpu.matmul %196, %198, %cst_161 {dimension_numbers = #tpu.dot_dimension_numbers<[1], [0], [0], [1], [0, 0, 1, 1], [], []>} : vector<36x256xbf16>, vector<256x256xbf16>, vector<36x256xf32> -> vector<36x256xf32>
    %200 = arith.addf %195, %199 : vector<36x256xf32>
    %201 = vector.broadcast %186 : vector<1x256xf32> to vector<36x256xf32>
    %202 = arith.addf %200, %201 : vector<36x256xf32>
    %c0_162 = arith.constant 0 : index
    %c0_163 = arith.constant 0 : index
    %203 = vector.load %arg9[%c0_162, %c0_163] : memref<2x36xf32, #tpu.memory_space<vmem>>, vector<2x36xf32>
    %cst_164 = arith.constant dense<0.000000e+00> : vector<2x256xf32>
    %204 = tpu.matmul %203, %202, %cst_164 {dimension_numbers = #tpu.dot_dimension_numbers<[1], [0], [0], [1], [0, 0, 1, 1], [], []>} : vector<2x36xf32>, vector<36x256xf32>, vector<2x256xf32> -> vector<2x256xf32>
    %cst_165 = arith.constant 0.000000e+00 : f32
    %205 = vector.broadcast %cst_165 : f32 to vector<2x256xf32>
    %c7_166 = arith.constant 7 : index
    %206 = memref.load %arg6[%c7_166] : memref<12xf32, #tpu.memory_space<smem>>
    %c2_i32_167 = arith.constant 2 : i32
    %207 = tpu.dynamic_rotate %204 by %c2_i32_167 dim 1 : vector<2x256xf32>, i32 -> vector<2x256xf32>
    %c0_168 = arith.constant 0 : index
    %c0_169 = arith.constant 0 : index
    %c0_170 = arith.constant 0 : index
    %208 = vector.load %arg12[%c0_168, %c0_169, %c0_170] : memref<5x1x256xf32, #tpu.memory_space<vmem>>, vector<1x1x256xf32>
    %209 = vector.shape_cast %208 : vector<1x1x256xf32> to vector<1x256xf32>
    %210 = vector.broadcast %209 : vector<1x256xf32> to vector<2x256xf32>
    %211 = arith.mulf %207, %210 : vector<2x256xf32>
    %212 = vector.broadcast %206 : f32 to vector<2x256xf32>
    %213 = arith.mulf %212, %211 : vector<2x256xf32>
    %214 = arith.addf %205, %213 : vector<2x256xf32>
    %c8_171 = arith.constant 8 : index
    %215 = memref.load %arg6[%c8_171] : memref<12xf32, #tpu.memory_space<smem>>
    %c1_i32_172 = arith.constant 1 : i32
    %216 = tpu.dynamic_rotate %204 by %c1_i32_172 dim 1 : vector<2x256xf32>, i32 -> vector<2x256xf32>
    %c1_173 = arith.constant 1 : index
    %c0_174 = arith.constant 0 : index
    %c0_175 = arith.constant 0 : index
    %217 = vector.load %arg12[%c1_173, %c0_174, %c0_175] : memref<5x1x256xf32, #tpu.memory_space<vmem>>, vector<1x1x256xf32>
    %218 = vector.shape_cast %217 : vector<1x1x256xf32> to vector<1x256xf32>
    %219 = vector.broadcast %218 : vector<1x256xf32> to vector<2x256xf32>
    %220 = arith.mulf %216, %219 : vector<2x256xf32>
    %221 = vector.broadcast %215 : f32 to vector<2x256xf32>
    %222 = arith.mulf %221, %220 : vector<2x256xf32>
    %223 = arith.addf %214, %222 : vector<2x256xf32>
    %c9_176 = arith.constant 9 : index
    %224 = memref.load %arg6[%c9_176] : memref<12xf32, #tpu.memory_space<smem>>
    %c2_177 = arith.constant 2 : index
    %c0_178 = arith.constant 0 : index
    %c0_179 = arith.constant 0 : index
    %225 = vector.load %arg12[%c2_177, %c0_178, %c0_179] : memref<5x1x256xf32, #tpu.memory_space<vmem>>, vector<1x1x256xf32>
    %226 = vector.shape_cast %225 : vector<1x1x256xf32> to vector<1x256xf32>
    %227 = vector.broadcast %226 : vector<1x256xf32> to vector<2x256xf32>
    %228 = arith.mulf %204, %227 : vector<2x256xf32>
    %229 = vector.broadcast %224 : f32 to vector<2x256xf32>
    %230 = arith.mulf %229, %228 : vector<2x256xf32>
    %231 = arith.addf %223, %230 : vector<2x256xf32>
    %c10_180 = arith.constant 10 : index
    %232 = memref.load %arg6[%c10_180] : memref<12xf32, #tpu.memory_space<smem>>
    %c255_i32_181 = arith.constant 255 : i32
    %233 = tpu.dynamic_rotate %204 by %c255_i32_181 dim 1 : vector<2x256xf32>, i32 -> vector<2x256xf32>
    %c3_182 = arith.constant 3 : index
    %c0_183 = arith.constant 0 : index
    %c0_184 = arith.constant 0 : index
    %234 = vector.load %arg12[%c3_182, %c0_183, %c0_184] : memref<5x1x256xf32, #tpu.memory_space<vmem>>, vector<1x1x256xf32>
    %235 = vector.shape_cast %234 : vector<1x1x256xf32> to vector<1x256xf32>
    %236 = vector.broadcast %235 : vector<1x256xf32> to vector<2x256xf32>
    %237 = arith.mulf %233, %236 : vector<2x256xf32>
    %238 = vector.broadcast %232 : f32 to vector<2x256xf32>
    %239 = arith.mulf %238, %237 : vector<2x256xf32>
    %240 = arith.addf %231, %239 : vector<2x256xf32>
    %c11_185 = arith.constant 11 : index
    %241 = memref.load %arg6[%c11_185] : memref<12xf32, #tpu.memory_space<smem>>
    %c254_i32_186 = arith.constant 254 : i32
    %242 = tpu.dynamic_rotate %204 by %c254_i32_186 dim 1 : vector<2x256xf32>, i32 -> vector<2x256xf32>
    %c4_187 = arith.constant 4 : index
    %c0_188 = arith.constant 0 : index
    %c0_189 = arith.constant 0 : index
    %243 = vector.load %arg12[%c4_187, %c0_188, %c0_189] : memref<5x1x256xf32, #tpu.memory_space<vmem>>, vector<1x1x256xf32>
    %244 = vector.shape_cast %243 : vector<1x1x256xf32> to vector<1x256xf32>
    %245 = vector.broadcast %244 : vector<1x256xf32> to vector<2x256xf32>
    %246 = arith.mulf %242, %245 : vector<2x256xf32>
    %247 = vector.broadcast %241 : f32 to vector<2x256xf32>
    %248 = arith.mulf %247, %246 : vector<2x256xf32>
    %249 = arith.addf %240, %248 : vector<2x256xf32>
    %250 = arith.negf %249 : vector<2x256xf32>
    %251 = math.exp %250 : vector<2x256xf32>
    %cst_190 = arith.constant 1.000000e+00 : f32
    %252 = vector.broadcast %cst_190 : f32 to vector<2x256xf32>
    %253 = arith.addf %252, %251 : vector<2x256xf32>
    %254 = arith.divf %252, %253 : vector<2x256xf32>
    %c0_191 = arith.constant 0 : index
    %c0_192 = arith.constant 0 : index
    %255 = vector.load %arg10[%c0_191, %c0_192] : memref<36x2xf32, #tpu.memory_space<vmem>>, vector<36x2xf32>
    %cst_193 = arith.constant dense<0.000000e+00> : vector<36x256xf32>
    %256 = tpu.matmul %255, %254, %cst_193 {dimension_numbers = #tpu.dot_dimension_numbers<[1], [0], [0], [1], [0, 0, 1, 1], [], []>} : vector<36x2xf32>, vector<2x256xf32>, vector<36x256xf32> -> vector<36x256xf32>
    %c1_194 = arith.constant 1 : index
    %c0_195 = arith.constant 0 : index
    %c0_196 = arith.constant 0 : index
    %257 = vector.load %arg7[%c1_194, %c0_195, %c0_196] : memref<2x256x16xf32, #tpu.memory_space<vmem>>, vector<1x256x16xf32>
    %258 = vector.shape_cast %257 : vector<1x256x16xf32> to vector<256x16xf32>
    %cst_197 = arith.constant dense<0.000000e+00> : vector<36x16xf32>
    %259 = tpu.matmul %202, %258, %cst_197 {dimension_numbers = #tpu.dot_dimension_numbers<[1], [0], [0], [1], [0, 0, 1, 1], [], []>} : vector<36x256xf32>, vector<256x16xf32>, vector<36x16xf32> -> vector<36x16xf32>
    %260 = arith.negf %259 : vector<36x16xf32>
    %261 = math.exp %260 : vector<36x16xf32>
    %cst_198 = arith.constant 1.000000e+00 : f32
    %262 = vector.broadcast %cst_198 : f32 to vector<36x16xf32>
    %263 = arith.addf %262, %261 : vector<36x16xf32>
    %264 = arith.divf %262, %263 : vector<36x16xf32>
    %c0_199 = arith.constant 0 : index
    %c0_200 = arith.constant 0 : index
    %265 = vector.load %arg8[%c0_199, %c0_200] : memref<16x256xf32, #tpu.memory_space<vmem>>, vector<16x256xf32>
    %cst_201 = arith.constant dense<0.000000e+00> : vector<36x256xf32>
    %266 = tpu.matmul %264, %265, %cst_201 {dimension_numbers = #tpu.dot_dimension_numbers<[1], [0], [0], [1], [0, 0, 1, 1], [], []>} : vector<36x16xf32>, vector<16x256xf32>, vector<36x256xf32> -> vector<36x256xf32>
    %267 = arith.mulf %202, %256 : vector<36x256xf32>
    %268 = arith.mulf %267, %266 : vector<36x256xf32>
    %269 = vector.broadcast %0 : vector<36x1xf32> to vector<36x256xf32>
    %270 = arith.mulf %268, %269 : vector<36x256xf32>
    %271 = arith.addf %270, %154 : vector<36x256xf32>
    %272 = arith.addf %271, %37 : vector<36x256xf32>
    %273 = arith.truncf %272 : vector<36x256xf32> to vector<36x256xbf16>
    %c1_202 = arith.constant 1 : index
    %c0_203 = arith.constant 0 : index
    %274 = vector.load %arg17[%c1_202, %c0_203] : memref<38x256xbf16, #tpu.memory_space<vmem>>, vector<36x256xbf16>
    tpu.vector_store %arg17[%c1_202, %c0_203], %273 {strides = array<i32>} : memref<38x256xbf16, #tpu.memory_space<vmem>>, vector<36x256xbf16>,
    %c0_204 = arith.constant 0 : index
    %c0_205 = arith.constant 0 : index
    %275 = vector.load %arg14[%c0_204, %c0_205] : memref<1x128xf32, #tpu.memory_space<vmem>>, vector<1x128xf32>
    %c0_206 = arith.constant 0 : index
    %c0_207 = arith.constant 0 : index
    %276 = vector.load %arg17[%c0_206, %c0_207] : memref<38x256xbf16, #tpu.memory_space<vmem>>, vector<36x256xbf16>
    %c0_208 = arith.constant 0 : index
    %c0_209 = arith.constant 0 : index
    %c0_210 = arith.constant 0 : index
    %277 = vector.load %arg13[%c0_208, %c0_209, %c0_210] : memref<3x256x128xbf16, #tpu.memory_space<vmem>>, vector<1x256x128xbf16>
    %278 = vector.shape_cast %277 : vector<1x256x128xbf16> to vector<256x128xbf16>
    %cst_211 = arith.constant dense<0.000000e+00> : vector<36x128xf32>
    %279 = tpu.matmul %276, %278, %cst_211 {dimension_numbers = #tpu.dot_dimension_numbers<[1], [0], [0], [1], [0, 0, 1, 1], [], []>} : vector<36x256xbf16>, vector<256x128xbf16>, vector<36x128xf32> -> vector<36x128xf32>
    %c1_212 = arith.constant 1 : index
    %c0_213 = arith.constant 0 : index
    %280 = vector.load %arg17[%c1_212, %c0_213] : memref<38x256xbf16, #tpu.memory_space<vmem>>, vector<36x256xbf16>
    %c1_214 = arith.constant 1 : index
    %c0_215 = arith.constant 0 : index
    %c0_216 = arith.constant 0 : index
    %281 = vector.load %arg13[%c1_214, %c0_215, %c0_216] : memref<3x256x128xbf16, #tpu.memory_space<vmem>>, vector<1x256x128xbf16>
    %282 = vector.shape_cast %281 : vector<1x256x128xbf16> to vector<256x128xbf16>
    %cst_217 = arith.constant dense<0.000000e+00> : vector<36x128xf32>
    %283 = tpu.matmul %280, %282, %cst_217 {dimension_numbers = #tpu.dot_dimension_numbers<[1], [0], [0], [1], [0, 0, 1, 1], [], []>} : vector<36x256xbf16>, vector<256x128xbf16>, vector<36x128xf32> -> vector<36x128xf32>
    %284 = arith.addf %279, %283 : vector<36x128xf32>
    %c2_218 = arith.constant 2 : index
    %c0_219 = arith.constant 0 : index
    %285 = vector.load %arg17[%c2_218, %c0_219] : memref<38x256xbf16, #tpu.memory_space<vmem>>, vector<36x256xbf16>
    %c2_220 = arith.constant 2 : index
    %c0_221 = arith.constant 0 : index
    %c0_222 = arith.constant 0 : index
    %286 = vector.load %arg13[%c2_220, %c0_221, %c0_222] : memref<3x256x128xbf16, #tpu.memory_space<vmem>>, vector<1x256x128xbf16>
    %287 = vector.shape_cast %286 : vector<1x256x128xbf16> to vector<256x128xbf16>
    %cst_223 = arith.constant dense<0.000000e+00> : vector<36x128xf32>
    %288 = tpu.matmul %285, %287, %cst_223 {dimension_numbers = #tpu.dot_dimension_numbers<[1], [0], [0], [1], [0, 0, 1, 1], [], []>} : vector<36x256xbf16>, vector<256x128xbf16>, vector<36x128xf32> -> vector<36x128xf32>
    %289 = arith.addf %284, %288 : vector<36x128xf32>
    %290 = vector.broadcast %275 : vector<1x128xf32> to vector<36x128xf32>
    %291 = arith.addf %289, %290 : vector<36x128xf32>
    %292 = vector.extract_strided_slice %291 {offsets = [1, 0], sizes = [16, 128], strides = [1, 1]} : vector<36x128xf32> to vector<16x128xf32>
    %c0_224 = arith.constant 0 : index
    %c0_225 = arith.constant 0 : index
    %c0_226 = arith.constant 0 : index
    %293 = vector.load %arg15[%c0_224, %c0_225, %c0_226] : memref<2x16x128xf32, #tpu.memory_space<vmem>>, vector<1x16x128xf32>
    %294 = vector.shape_cast %293 : vector<1x16x128xf32> to vector<16x128xf32>
    %295 = vector.shape_cast %292 : vector<16x128xf32> to vector<1x16x128xf32>
    tpu.vector_store %arg15[%c0_224, %c0_225, %c0_226], %295 {strides = array<i32>} : memref<2x16x128xf32, #tpu.memory_space<vmem>>, vector<1x16x128xf32>,
    %296 = vector.extract_strided_slice %291 {offsets = [19, 0], sizes = [16, 128], strides = [1, 1]} : vector<36x128xf32> to vector<16x128xf32>
    %c1_227 = arith.constant 1 : index
    %c0_228 = arith.constant 0 : index
    %c0_229 = arith.constant 0 : index
    %297 = vector.load %arg15[%c1_227, %c0_228, %c0_229] : memref<2x16x128xf32, #tpu.memory_space<vmem>>, vector<1x16x128xf32>
    %298 = vector.shape_cast %297 : vector<1x16x128xf32> to vector<16x128xf32>
    %299 = vector.shape_cast %296 : vector<16x128xf32> to vector<1x16x128xf32>
    tpu.vector_store %arg15[%c1_227, %c0_228, %c0_229], %299 {strides = array<i32>} : memref<2x16x128xf32, #tpu.memory_space<vmem>>, vector<1x16x128xf32>,
    return
  }
  func.func @transform_0(%arg0: i32) -> (i32, i32, i32) {
    %c0_i32 = arith.constant 0 : i32
    %c0_i32_0 = arith.constant 0 : i32
    %c0_i32_1 = arith.constant 0 : i32
    return %arg0, %c0_i32, %c0_i32_0 : i32, i32, i32
  }
  func.func @transform_1(%arg0: i32) -> (i32, i32, i32) {
    %c0_i32 = arith.constant 0 : i32
    %c0_i32_0 = arith.constant 0 : i32
    %c0_i32_1 = arith.constant 0 : i32
    %c0_i32_2 = arith.constant 0 : i32
    return %c0_i32, %c0_i32_0, %c0_i32_1 : i32, i32, i32
  }
  func.func @transform_2(%arg0: i32) -> (i32, i32) {
    %c0_i32 = arith.constant 0 : i32
    %c0_i32_0 = arith.constant 0 : i32
    %c0_i32_1 = arith.constant 0 : i32
    return %c0_i32, %c0_i32_0 : i32, i32
  }
  func.func @transform_3(%arg0: i32) -> (i32, i32, i32) {
    %c0_i32 = arith.constant 0 : i32
    %c0_i32_0 = arith.constant 0 : i32
    %c0_i32_1 = arith.constant 0 : i32
    %c0_i32_2 = arith.constant 0 : i32
    return %c0_i32, %c0_i32_0, %c0_i32_1 : i32, i32, i32
  }
  func.func @transform_4(%arg0: i32) -> (i32, i32, i32) {
    %c0_i32 = arith.constant 0 : i32
    %c0_i32_0 = arith.constant 0 : i32
    %c0_i32_1 = arith.constant 0 : i32
    %c0_i32_2 = arith.constant 0 : i32
    return %c0_i32, %c0_i32_0, %c0_i32_1 : i32, i32, i32
  }
  func.func @transform_5(%arg0: i32) -> i32 {
    %c0_i32 = arith.constant 0 : i32
    %c0_i32_0 = arith.constant 0 : i32
    return %c0_i32 : i32
  }
  func.func @transform_6(%arg0: i32) -> (i32, i32, i32) {
    %c0_i32 = arith.constant 0 : i32
    %c0_i32_0 = arith.constant 0 : i32
    %c0_i32_1 = arith.constant 0 : i32
    %c0_i32_2 = arith.constant 0 : i32
    return %c0_i32, %c0_i32_0, %c0_i32_1 : i32, i32, i32
  }
  func.func @transform_7(%arg0: i32) -> (i32, i32) {
    %c0_i32 = arith.constant 0 : i32
    %c0_i32_0 = arith.constant 0 : i32
    %c0_i32_1 = arith.constant 0 : i32
    return %c0_i32, %c0_i32_0 : i32, i32
  }
  func.func @transform_8(%arg0: i32) -> (i32, i32) {
    %c0_i32 = arith.constant 0 : i32
    %c0_i32_0 = arith.constant 0 : i32
    %c0_i32_1 = arith.constant 0 : i32
    return %c0_i32, %c0_i32_0 : i32, i32
  }
  func.func @transform_9(%arg0: i32) -> (i32, i32) {
    %c0_i32 = arith.constant 0 : i32
    %c0_i32_0 = arith.constant 0 : i32
    %c0_i32_1 = arith.constant 0 : i32
    return %c0_i32, %c0_i32_0 : i32, i32
  }
  func.func @transform_10(%arg0: i32) -> (i32, i32) {
    %c0_i32 = arith.constant 0 : i32
    %c0_i32_0 = arith.constant 0 : i32
    %c0_i32_1 = arith.constant 0 : i32
    return %c0_i32, %c0_i32_0 : i32, i32
  }
  func.func @transform_11(%arg0: i32) -> (i32, i32, i32) {
    %c0_i32 = arith.constant 0 : i32
    %c0_i32_0 = arith.constant 0 : i32
    %c0_i32_1 = arith.constant 0 : i32
    %c0_i32_2 = arith.constant 0 : i32
    return %c0_i32, %c0_i32_0, %c0_i32_1 : i32, i32, i32
  }
  func.func @transform_12(%arg0: i32) -> (i32, i32, i32) {
    %c0_i32 = arith.constant 0 : i32
    %c0_i32_0 = arith.constant 0 : i32
    %c0_i32_1 = arith.constant 0 : i32
    %c0_i32_2 = arith.constant 0 : i32
    return %c0_i32, %c0_i32_0, %c0_i32_1 : i32, i32, i32
  }
  func.func @transform_13(%arg0: i32) -> (i32, i32) {
    %c0_i32 = arith.constant 0 : i32
    %c0_i32_0 = arith.constant 0 : i32
    %c0_i32_1 = arith.constant 0 : i32
    return %c0_i32, %c0_i32_0 : i32, i32
  }
  func.func @transform_14(%arg0: i32) -> (i32, i32, i32) {
    %c0_i32 = arith.constant 0 : i32
    %c0_i32_0 = arith.constant 0 : i32
    %c0_i32_1 = arith.constant 0 : i32
    return %arg0, %c0_i32, %c0_i32_0 : i32, i32, i32
  }
}

</mosaic_0001>

<llo_original>
// kernel: tile.65
$region0: #{tile.65}
  #allocation0 [shape = 's32[1]{0}', space=sflag, size = 0x4, scoped, tag = 'scoped memory for tile.65']
  %s0 = inlined_call_operand.vmem [shape: f32[16], index: 0, kind: input, shape index: {}]
  %s1 = inlined_call_operand.vmem [shape: f32[16,16], index: 1, kind: output, shape index: {}]
  // Predicated region
  $region2: #{tile.65} parent=0 // pred_check
    _
  $region3: #{tile.65} parent=0 // pred_check_branch
    %3 = sbr.rel (0) target = $region5
  $region4: #{tile.65} parent=0 // pred_region
    _
  $region5: #{tile.65} parent=0 // pred_fallthru
    _
  %v4 = vld [vmem:[%s0] ss:$0 sm:$0xff]
  %5 = vst [vmem:[%s1] sm:$0xff] %v4
  %s6 = scalar_lea.vmem %s1, 8
  %7 = vst [vmem:[%s6] sm:$0xff] %v4

// kernel: tile.69
$region0: #{tile.69}
  %s0 = inlined_call_operand.vmem [shape: f32[16,16], index: 0, kind: input, shape index: {}]
  %s1 = inlined_call_operand.vmem [shape: f32[1,1,256], index: 1, kind: output, shape index: {}]
  $region1: #{tile.69} parent=0
    #allocation0 [shape = 'u8[8192]{0}', space=vmem, size = 0x2000, scoped, tag = 'scoped mem for output reshape']
    %s2 = smov 3
    %v3 = vld [vmem:[%s0] ss:$8 sm:%s2]
    %vm4 = vcmask 130048
    %5 = vst.msk [vmem:[#allocation0] ss:$8 sm:$0x3] %vm4, %v3
    %s6 = scalar_lea.vmem %s0, 7
    %s7 = smov 3
    %v8 = vld [vmem:[%s6] ss:$8 sm:%s7]
    %9 = vrot.lane.b32.xlu0 %v8, 112
    %v10 = vpop.permute.xlu0 %9
    %vm11 = vcmask 1048448
    %12 = vst.msk [vmem:[#allocation0] ss:$8 sm:$0x3] %vm11, %v10
    %s13 = scalar_lea.vmem %s0, 6
    %s14 = smov 3
    %v15 = vld [vmem:[%s13] ss:$8 sm:%s14]
    %16 = vrot.lane.b32.xlu0 %v15, 96
    %v17 = vpop.permute.xlu0 %16
    %vm18 = vcmask 917248
    %19 = vst.msk [vmem:[#allocation0] ss:$8 sm:$0x3] %vm18, %v17
    %s20 = scalar_lea.vmem %s0, 5
    %s21 = smov 3
    %v22 = vld [vmem:[%s20] ss:$8 sm:%s21]
    %23 = vrot.lane.b32.xlu0 %v22, 80
    %v24 = vpop.permute.xlu0 %23
    %vm25 = vcmask 786048
    %26 = vst.msk [vmem:[#allocation0] ss:$8 sm:$0x3] %vm25, %v24
    %s27 = scalar_lea.vmem %s0, 4
    %s28 = smov 3
    %v29 = vld [vmem:[%s27] ss:$8 sm:%s28]
    %30 = vrot.lane.b32.xlu0 %v29, 64
    %v31 = vpop.permute.xlu0 %30
    %vm32 = vcmask 654848
    %33 = vst.msk [vmem:[#allocation0] ss:$8 sm:$0x3] %vm32, %v31
    %s34 = scalar_lea.vmem %s0, 3
    %s35 = smov 3
    %v36 = vld [vmem:[%s34] ss:$8 sm:%s35]
    %37 = vrot.lane.b32.xlu0 %v36, 48
    %v38 = vpop.permute.xlu0 %37
    %vm39 = vcmask 523648
    %40 = vst.msk [vmem:[#allocation0] ss:$8 sm:$0x3] %vm39, %v38
    %s41 = scalar_lea.vmem %s0, 2
    %s42 = smov 3
    %v43 = vld [vmem:[%s41] ss:$8 sm:%s42]
    %44 = vrot.lane.b32.xlu0 %v43, 32
    %v45 = vpop.permute.xlu0 %44
    %vm46 = vcmask 392448
    %47 = vst.msk [vmem:[#allocation0] ss:$8 sm:$0x3] %vm46, %v45
    %s48 = scalar_lea.vmem %s0, 1
    %s49 = smov 3
    %v50 = vld [vmem:[%s48] ss:$8 sm:%s49]
    %51 = vrot.lane.b32.xlu0 %v50, 16
    %v52 = vpop.permute.xlu0 %51
    %vm53 = vcmask 261248
    %54 = vst.msk [vmem:[#allocation0] ss:$8 sm:$0x3] %vm53, %v52
    %s56 = sshllo.u32 0, 1
    %v58 = vld [vmem:[#allocation0] sm:%s56]
    %s59 = sshllo.u32 0, 1
    %60 = vst [vmem:[%s1] sm:%s59] %v58
    %s61 = scalar_lea.vmem [#allocation0], 8
    %v62 = vld [vmem:[%s61] sm:%s56]
    %s63 = sshllo.u32 0, 1
    %s64 = scalar_lea.vmem %s1, 1
    %65 = vst [vmem:[%s64] sm:%s63] %v62

// kernel: tile.38
$region0: #{tile.38}
  #allocation2 [shape = 's32[1]{0}', space=sflag, size = 0x4, scoped, tag = 'scoped memory for tile.38']
  %s0 = inlined_call_operand.hbm [shape: f32[16], index: 0, kind: input, shape index: {}]
  %s1 = inlined_call_operand.vmem [shape: f32[16,16], index: 1, kind: output, shape index: {}]
  $region1: #{tile.38} parent=0
    #allocation0 [shape = 'u8[512]{0}', space=vmem, size = 0x400, scoped, tag = 'operand span for operand 0']
    #allocation1 [shape = 's32[1]{0}', space=sflag, size = 0x4, scoped, tag = 'scoped memory for tile.38']
    %2 = vsyncpa [#allocation1], 0
    // Predicated region
    $region2: #{tile.38} parent=1 // pred_check
      _
    $region3: #{tile.38} parent=1 // pred_check_branch
      %4 = sbr.rel (0) target = $region5
    $region4: #{tile.38} parent=1 // pred_region
      %s6 = ssub.s32 16, 16
      %7 = vsyncadd [#allocation1], %s6
      %s9 = sshll.u32 [#allocation0], 4
      %s10 = int_to_ptr.vmem [resolvable:$true] %s9
      %12 = dma.hbm_to_vmem [thread:$0]  %s0, 16, %s10, [#allocation1]
    $region5: #{tile.38} parent=1 // pred_fallthru
      _
    // Predicated region
    $region6: #{tile.38} parent=1 // pred_check
      _
    $region7: #{tile.38} parent=1 // pred_check_branch
      %14 = sbr.rel (0) target = $region9
    $region8: #{tile.38} parent=1 // pred_region
      %15 = dma.done [#allocation1], 16
    $region9: #{tile.38} parent=1 // pred_fallthru
      _
    %v16 = vld [vmem:[#allocation0] ss:$0 sm:$0xff]
    %17 = vst [vmem:[%s1] sm:$0xff] %v16
    %s18 = scalar_lea.vmem %s1, 8
    %19 = vst [vmem:[%s18] sm:$0xff] %v16
    %20 = vsyncpa [#allocation1], 1

// kernel: tile.43
$region0: #{tile.43}
  #allocation2 [shape = 's32[1]{0}', space=sflag, size = 0x4, scoped, tag = 'scoped memory for tile.43']
  %s0 = inlined_call_operand.hbm [shape: f32[8], index: 0, kind: input, shape index: {}]
  %s1 = inlined_call_operand.vmem [shape: f32[16,8], index: 1, kind: output, shape index: {}]
  $region1: #{tile.43} parent=0
    #allocation0 [shape = 'u8[512]{0}', space=vmem, size = 0x400, scoped, tag = 'operand span for operand 0']
    #allocation1 [shape = 's32[1]{0}', space=sflag, size = 0x4, scoped, tag = 'scoped memory for tile.43']
    %2 = vsyncpa [#allocation1], 0
    // Predicated region
    $region2: #{tile.43} parent=1 // pred_check
      _
    $region3: #{tile.43} parent=1 // pred_check_branch
      %4 = sbr.rel (0) target = $region5
    $region4: #{tile.43} parent=1 // pred_region
      %s6 = ssub.s32 16, 16
      %7 = vsyncadd [#allocation1], %s6
      %s9 = sshll.u32 [#allocation0], 4
      %s10 = int_to_ptr.vmem [resolvable:$true] %s9
      %12 = dma.hbm_to_vmem [thread:$0]  %s0, 16, %s10, [#allocation1]
    $region5: #{tile.43} parent=1 // pred_fallthru
      _
    // Predicated region
    $region6: #{tile.43} parent=1 // pred_check
      _
    $region7: #{tile.43} parent=1 // pred_check_branch
      %14 = sbr.rel (0) target = $region9
    $region8: #{tile.43} parent=1 // pred_region
      %15 = dma.done [#allocation1], 16
    $region9: #{tile.43} parent=1 // pred_fallthru
      _
    %v16 = vld [vmem:[#allocation0] ss:$0 sm:$0xff]
    %17 = vst [vmem:[%s1] sm:$0xff] %v16
    %s18 = scalar_lea.vmem %s1, 8
    %19 = vst [vmem:[%s18] sm:$0xff] %v16
    %20 = vsyncpa [#allocation1], 1

// kernel: tile.44
$region0: #{tile.44}
  %s0 = inlined_call_operand.vmem [shape: f32[16,8], index: 0, kind: input, shape index: {}]
  %s1 = inlined_call_operand.vmem [shape: f32[1,128], index: 1, kind: output, shape index: {}]
  $region1: #{tile.44} parent=0
    #allocation0 [shape = 'u8[4096]{0}', space=vmem, size = 0x1000, scoped, tag = 'scoped mem for output reshape']
    %v2 = vld [vmem:[%s0] sm:$0x1]
    %vm3 = vcmask 64512
    %4 = vst.msk [vmem:[#allocation0] sm:$0x1] %vm3, %v2
    %s5 = scalar_lea.vmem %s0, 15
    %v6 = vld [vmem:[%s5] sm:$0x1]
    %7 = vrot.lane.b32.xlu0 %v6, 120
    %v8 = vpop.permute.xlu0 %7
    %vm9 = vcmask 1048512
    %10 = vst.msk [vmem:[#allocation0] sm:$0x1] %vm9, %v8
    %s11 = scalar_lea.vmem %s0, 14
    %v12 = vld [vmem:[%s11] sm:$0x1]
    %13 = vrot.lane.b32.xlu0 %v12, 112
    %v14 = vpop.permute.xlu0 %13
    %vm15 = vcmask 982912
    %16 = vst.msk [vmem:[#allocation0] sm:$0x1] %vm15, %v14
    %s17 = scalar_lea.vmem %s0, 13
    %v18 = vld [vmem:[%s17] sm:$0x1]
    %19 = vrot.lane.b32.xlu0 %v18, 104
    %v20 = vpop.permute.xlu0 %19
    %vm21 = vcmask 917312
    %22 = vst.msk [vmem:[#allocation0] sm:$0x1] %vm21, %v20
    %s23 = scalar_lea.vmem %s0, 12
    %v24 = vld [vmem:[%s23] sm:$0x1]
    %25 = vrot.lane.b32.xlu0 %v24, 96
    %v26 = vpop.permute.xlu0 %25
    %vm27 = vcmask 851712
    %28 = vst.msk [vmem:[#allocation0] sm:$0x1] %vm27, %v26
    %s29 = scalar_lea.vmem %s0, 11
    %v30 = vld [vmem:[%s29] sm:$0x1]
    %31 = vrot.lane.b32.xlu0 %v30, 88
    %v32 = vpop.permute.xlu0 %31
    %vm33 = vcmask 786112
    %34 = vst.msk [vmem:[#allocation0] sm:$0x1] %vm33, %v32
    %s35 = scalar_lea.vmem %s0, 10
    %v36 = vld [vmem:[%s35] sm:$0x1]
    %37 = vrot.lane.b32.xlu0 %v36, 80
    %v38 = vpop.permute.xlu0 %37
    %vm39 = vcmask 720512
    %40 = vst.msk [vmem:[#allocation0] sm:$0x1] %vm39, %v38
    %s41 = scalar_lea.vmem %s0, 9
    %v42 = vld [vmem:[%s41] sm:$0x1]
    %43 = vrot.lane.b32.xlu0 %v42, 72
    %v44 = vpop.permute.xlu0 %43
    %vm45 = vcmask 654912
    %46 = vst.msk [vmem:[#allocation0] sm:$0x1] %vm45, %v44
    %s47 = scalar_lea.vmem %s0, 8
    %v48 = vld [vmem:[%s47] sm:$0x1]
    %49 = vrot.lane.b32.xlu0 %v48, 64
    %v50 = vpop.permute.xlu0 %49
    %vm51 = vcmask 589312
    %52 = vst.msk [vmem:[#allocation0] sm:$0x1] %vm51, %v50
    %s53 = scalar_lea.vmem %s0, 7
    %v54 = vld [vmem:[%s53] sm:$0x1]
    %55 = vrot.lane.b32.xlu0 %v54, 56
    %v56 = vpop.permute.xlu0 %55
    %vm57 = vcmask 523712
    %58 = vst.msk [vmem:[#allocation0] sm:$0x1] %vm57, %v56
    %s59 = scalar_lea.vmem %s0, 6
    %v60 = vld [vmem:[%s59] sm:$0x1]
    %61 = vrot.lane.b32.xlu0 %v60, 48
    %v62 = vpop.permute.xlu0 %61
    %vm63 = vcmask 458112
    %64 = vst.msk [vmem:[#allocation0] sm:$0x1] %vm63, %v62
    %s65 = scalar_lea.vmem %s0, 5
    %v66 = vld [vmem:[%s65] sm:$0x1]
    %67 = vrot.lane.b32.xlu0 %v66, 40
    %v68 = vpop.permute.xlu0 %67
    %vm69 = vcmask 392512
    %70 = vst.msk [vmem:[#allocation0] sm:$0x1] %vm69, %v68
    %s71 = scalar_lea.vmem %s0, 4
    %v72 = vld [vmem:[%s71] sm:$0x1]
    %73 = vrot.lane.b32.xlu0 %v72, 32
    %v74 = vpop.permute.xlu0 %73
    %vm75 = vcmask 326912
    %76 = vst.msk [vmem:[#allocation0] sm:$0x1] %vm75, %v74
    %s77 = scalar_lea.vmem %s0, 3
    %v78 = vld [vmem:[%s77] sm:$0x1]
    %79 = vrot.lane.b32.xlu0 %v78, 24
    %v80 = vpop.permute.xlu0 %79
    %vm81 = vcmask 261312
    %82 = vst.msk [vmem:[#allocation0] sm:$0x1] %vm81, %v80
    %s83 = scalar_lea.vmem %s0, 2
    %v84 = vld [vmem:[%s83] sm:$0x1]
    %85 = vrot.lane.b32.xlu0 %v84, 16
    %v86 = vpop.permute.xlu0 %85
    %vm87 = vcmask 195712
    %88 = vst.msk [vmem:[#allocation0] sm:$0x1] %vm87, %v86
    %s89 = scalar_lea.vmem %s0, 1
    %v90 = vld [vmem:[%s89] sm:$0x1]
    %91 = vrot.lane.b32.xlu0 %v90, 8
    %v92 = vpop.permute.xlu0 %91
    %vm93 = vcmask 130112
    %94 = vst.msk [vmem:[#allocation0] sm:$0x1] %vm93, %v92
    %s96 = sshllo.u32 0, 1
    %v98 = vld [vmem:[#allocation0] sm:%s96]
    %s99 = sshllo.u32 0, 1
    %100 = vst [vmem:[%s1] sm:%s99] %v98

// kernel: tile.39
$region0: #{tile.39}
  %s0 = inlined_call_operand.vmem [shape: f32[16,16], index: 0, kind: input, shape index: {}]
  %s1 = inlined_call_operand.vmem [shape: f32[1,256], index: 1, kind: output, shape index: {}]
  $region1: #{tile.39} parent=0
    #allocation0 [shape = 'u8[8192]{0}', space=vmem, size = 0x2000, scoped, tag = 'scoped mem for output reshape']
    %s2 = smov 3
    %v3 = vld [vmem:[%s0] ss:$8 sm:%s2]
    %vm4 = vcmask 130048
    %5 = vst.msk [vmem:[#allocation0] ss:$8 sm:$0x3] %vm4, %v3
    %s6 = scalar_lea.vmem %s0, 7
    %s7 = smov 3
    %v8 = vld [vmem:[%s6] ss:$8 sm:%s7]
    %9 = vrot.lane.b32.xlu0 %v8, 112
    %v10 = vpop.permute.xlu0 %9
    %vm11 = vcmask 1048448
    %12 = vst.msk [vmem:[#allocation0] ss:$8 sm:$0x3] %vm11, %v10
    %s13 = scalar_lea.vmem %s0, 6
    %s14 = smov 3
    %v15 = vld [vmem:[%s13] ss:$8 sm:%s14]
    %16 = vrot.lane.b32.xlu0 %v15, 96
    %v17 = vpop.permute.xlu0 %16
    %vm18 = vcmask 917248
    %19 = vst.msk [vmem:[#allocation0] ss:$8 sm:$0x3] %vm18, %v17
    %s20 = scalar_lea.vmem %s0, 5
    %s21 = smov 3
    %v22 = vld [vmem:[%s20] ss:$8 sm:%s21]
    %23 = vrot.lane.b32.xlu0 %v22, 80
    %v24 = vpop.permute.xlu0 %23
    %vm25 = vcmask 786048
    %26 = vst.msk [vmem:[#allocation0] ss:$8 sm:$0x3] %vm25, %v24
    %s27 = scalar_lea.vmem %s0, 4
    %s28 = smov 3
    %v29 = vld [vmem:[%s27] ss:$8 sm:%s28]
    %30 = vrot.lane.b32.xlu0 %v29, 64
    %v31 = vpop.permute.xlu0 %30
    %vm32 = vcmask 654848
    %33 = vst.msk [vmem:[#allocation0] ss:$8 sm:$0x3] %vm32, %v31
    %s34 = scalar_lea.vmem %s0, 3
    %s35 = smov 3
    %v36 = vld [vmem:[%s34] ss:$8 sm:%s35]
    %37 = vrot.lane.b32.xlu0 %v36, 48
    %v38 = vpop.permute.xlu0 %37
    %vm39 = vcmask 523648
    %40 = vst.msk [vmem:[#allocation0] ss:$8 sm:$0x3] %vm39, %v38
    %s41 = scalar_lea.vmem %s0, 2
    %s42 = smov 3
    %v43 = vld [vmem:[%s41] ss:$8 sm:%s42]
    %44 = vrot.lane.b32.xlu0 %v43, 32
    %v45 = vpop.permute.xlu0 %44
    %vm46 = vcmask 392448
    %47 = vst.msk [vmem:[#allocation0] ss:$8 sm:$0x3] %vm46, %v45
    %s48 = scalar_lea.vmem %s0, 1
    %s49 = smov 3
    %v50 = vld [vmem:[%s48] ss:$8 sm:%s49]
    %51 = vrot.lane.b32.xlu0 %v50, 16
    %v52 = vpop.permute.xlu0 %51
    %vm53 = vcmask 261248
    %54 = vst.msk [vmem:[#allocation0] ss:$8 sm:$0x3] %vm53, %v52
    %s56 = sshllo.u32 0, 1
    %v58 = vld [vmem:[#allocation0] sm:%s56]
    %s59 = sshllo.u32 0, 1
    %60 = vst [vmem:[%s1] sm:%s59] %v58
    %s61 = scalar_lea.vmem [#allocation0], 8
    %v62 = vld [vmem:[%s61] sm:%s56]
    %s63 = sshllo.u32 0, 1
    %s64 = scalar_lea.vmem %s1, 1
    %65 = vst [vmem:[%s64] sm:%s63] %v62

// kernel: repcpsi_forward.1
$region0: #{repcpsi_forward.1}
  #allocation0 [shape = 'u32[]', space=smem, size = 0x4, offset = 0x4, fixed_abs, tag = 'smem constant byte address 0x4 - core index']
  #allocation1 [shape = 'u32[144,128]{1,0:T(1,128)}', space=vmem, size = 0x12000, scoped, tag = 'internal scratch']
  #allocation2 [shape = 'bf16[38,128]{1,0:T(8,128)(2,1)}', space=vmem, size = 0x2800, scoped, tag = 'scratch operand']
  #allocation3 [shape = 'bf16[38,256]{1,0:T(8,128)(2,1)}', space=vmem, size = 0x5000, scoped, tag = 'scratch operand']
  %s0 = inlined_call_operand.vmem [shape: f32[2,16,128], index: 0, kind: input, shape index: {}]
  %s1 = inlined_call_operand.vmem [shape: bf16[3,128,256], index: 1, kind: input, shape index: {}]
  %s2 = inlined_call_operand.vmem [shape: f32[1,256], index: 2, kind: input, shape index: {}]
  %s3 = inlined_call_operand.vmem [shape: bf16[12,256,256], index: 3, kind: input, shape index: {}]
  %s4 = inlined_call_operand.vmem [shape: f32[4,1,256], index: 4, kind: input, shape index: {}]
  %s5 = inlined_call_operand.vmem [shape: f32[12], index: 5, kind: input, shape index: {}]
  %s6 = inlined_call_operand.vmem [shape: f32[2,256,16], index: 6, kind: input, shape index: {}]
  %s7 = inlined_call_operand.vmem [shape: f32[16,256], index: 7, kind: input, shape index: {}]
  %s8 = inlined_call_operand.vmem [shape: f32[2,36], index: 8, kind: input, shape index: {}]
  %s9 = inlined_call_operand.vmem [shape: f32[36,2], index: 9, kind: input, shape index: {}]
  %s10 = inlined_call_operand.vmem [shape: f32[36,1], index: 10, kind: input, shape index: {}]
  %s11 = inlined_call_operand.vmem [shape: f32[5,1,256], index: 11, kind: input, shape index: {}]
  %s12 = inlined_call_operand.vmem [shape: bf16[3,256,128], index: 12, kind: input, shape index: {}]
  %s13 = inlined_call_operand.vmem [shape: f32[1,128], index: 13, kind: input, shape index: {}]
  %s14 = inlined_call_operand.vmem [shape: f32[2,16,128], index: 14, kind: output, shape index: {}]
  %s15 = sld [smem:[#allocation0]]
  $region70: #{repcpsi_forward.1} parent=0
    _
  %s17 = ssub.s32 1, %s15
  %s18 = scalar_select 0, %s17, %s15
  $region1: #{repcpsi_forward.1} parent=0
    #allocation4 [shape = 'u8[512]{0}', space=smem, size = 0x200, scoped, tag = 'input window, operand 5, single buffered']
    #allocation5 [shape = 's32[1]{0}', space=sflag, size = 0x4, scoped, tag = 'scoped memory for repcpsi_forward.1']
    %19 = vsyncpa [#allocation5], 0
    // Predicated region
    $region2: #{repcpsi_forward.1} parent=1 // pred_check
      _
    $region3: #{repcpsi_forward.1} parent=1 // pred_check_branch
      %21 = sbr.rel (0) target = $region5
    $region4: #{repcpsi_forward.1} parent=1 // pred_region
      _
    $region5: #{repcpsi_forward.1} parent=1 // pred_fallthru
      _
    // Predicated region
    $region6: #{repcpsi_forward.1} parent=1 // pred_check
      _
    $region7: #{repcpsi_forward.1} parent=1 // pred_check_branch
      %23 = sbr.rel (0) target = $region9
    $region8: #{repcpsi_forward.1} parent=1 // pred_region
      _
    $region9: #{repcpsi_forward.1} parent=1 // pred_fallthru
      _
    // Predicated region
    $region10: #{repcpsi_forward.1} parent=1 // pred_check
      _
    $region11: #{repcpsi_forward.1} parent=1 // pred_check_branch
      %25 = sbr.rel (0) target = $region13
    $region12: #{repcpsi_forward.1} parent=1 // pred_region
      _
    $region13: #{repcpsi_forward.1} parent=1 // pred_fallthru
      _
    // Predicated region
    $region14: #{repcpsi_forward.1} parent=1 // pred_check
      _
    $region15: #{repcpsi_forward.1} parent=1 // pred_check_branch
      %27 = sbr.rel (0) target = $region17
    $region16: #{repcpsi_forward.1} parent=1 // pred_region
      _
    $region17: #{repcpsi_forward.1} parent=1 // pred_fallthru
      _
    // Predicated region
    $region18: #{repcpsi_forward.1} parent=1 // pred_check
      _
    $region19: #{repcpsi_forward.1} parent=1 // pred_check_branch
      %29 = sbr.rel (0) target = $region21
    $region20: #{repcpsi_forward.1} parent=1 // pred_region
      _
    $region21: #{repcpsi_forward.1} parent=1 // pred_fallthru
      _
    // Predicated region
    $region22: #{repcpsi_forward.1} parent=1 // pred_check
      _
    $region23: #{repcpsi_forward.1} parent=1 // pred_check_branch
      %31 = sbr.rel (0) target = $region25
    $region24: #{repcpsi_forward.1} parent=1 // pred_region
      %s33 = ssub.s32 16, 16
      %34 = vsyncadd [#allocation5], %s33
      %s36 = sshll.u32 %s5, 4
      %s37 = int_to_ptr.vmem [resolvable:$true] %s36
      %39 = dma.vmem_to_smem %s37, 16, [#allocation4], [#allocation5]
    $region25: #{repcpsi_forward.1} parent=1 // pred_fallthru
      _
    // Predicated region
    $region26: #{repcpsi_forward.1} parent=1 // pred_check
      _
    $region27: #{repcpsi_forward.1} parent=1 // pred_check_branch
      %41 = sbr.rel (0) target = $region29
    $region28: #{repcpsi_forward.1} parent=1 // pred_region
      _
    $region29: #{repcpsi_forward.1} parent=1 // pred_fallthru
      _
    // Predicated region
    $region30: #{repcpsi_forward.1} parent=1 // pred_check
      _
    $region31: #{repcpsi_forward.1} parent=1 // pred_check_branch
      %43 = sbr.rel (0) target = $region33
    $region32: #{repcpsi_forward.1} parent=1 // pred_region
      _
    $region33: #{repcpsi_forward.1} parent=1 // pred_fallthru
      _
    // Predicated region
    $region34: #{repcpsi_forward.1} parent=1 // pred_check
      _
    $region35: #{repcpsi_forward.1} parent=1 // pred_check_branch
      %45 = sbr.rel (0) target = $region37
    $region36: #{repcpsi_forward.1} parent=1 // pred_region
      _
    $region37: #{repcpsi_forward.1} parent=1 // pred_fallthru
      _
    // Predicated region
    $region38: #{repcpsi_forward.1} parent=1 // pred_check
      _
    $region39: #{repcpsi_forward.1} parent=1 // pred_check_branch
      %47 = sbr.rel (0) target = $region41
    $region40: #{repcpsi_forward.1} parent=1 // pred_region
      _
    $region41: #{repcpsi_forward.1} parent=1 // pred_fallthru
      _
    // Predicated region
    $region42: #{repcpsi_forward.1} parent=1 // pred_check
      _
    $region43: #{repcpsi_forward.1} parent=1 // pred_check_branch
      %49 = sbr.rel (0) target = $region45
    $region44: #{repcpsi_forward.1} parent=1 // pred_region
      _
    $region45: #{repcpsi_forward.1} parent=1 // pred_fallthru
      _
    // Predicated region
    $region46: #{repcpsi_forward.1} parent=1 // pred_check
      _
    $region47: #{repcpsi_forward.1} parent=1 // pred_check_branch
      %51 = sbr.rel (0) target = $region49
    $region48: #{repcpsi_forward.1} parent=1 // pred_region
      _
    $region49: #{repcpsi_forward.1} parent=1 // pred_fallthru
      _
    // Predicated region
    $region50: #{repcpsi_forward.1} parent=1 // pred_check
      _
    $region51: #{repcpsi_forward.1} parent=1 // pred_check_branch
      %53 = sbr.rel (0) target = $region53
    $region52: #{repcpsi_forward.1} parent=1 // pred_region
      _
    $region53: #{repcpsi_forward.1} parent=1 // pred_fallthru
      _
    // Predicated region
    $region54: #{repcpsi_forward.1} parent=1 // pred_check
      _
    $region55: #{repcpsi_forward.1} parent=1 // pred_check_branch
      %55 = sbr.rel (0) target = $region57
    $region56: #{repcpsi_forward.1} parent=1 // pred_region
      _
    $region57: #{repcpsi_forward.1} parent=1 // pred_fallthru
      _
    // Predicated region
    $region58: #{repcpsi_forward.1} parent=1 // pred_check
      _
    $region59: #{repcpsi_forward.1} parent=1 // pred_check_branch
      %57 = sbr.rel (0) target = $region61
    $region60: #{repcpsi_forward.1} parent=1 // pred_region
      %58 = dma.done [#allocation5], 16
    $region61: #{repcpsi_forward.1} parent=1 // pred_fallthru
      _
    %59 = sfence
    %v61 = vld [vmem:[%s10] sm:$0xff]
    %v62 = vld [vmem:[%s10 + $0x8] sm:$0xff]
    %v63 = vld [vmem:[%s10 + $0x10] sm:$0xff]
    %v64 = vld [vmem:[%s10 + $0x18] sm:$0xff]
    %v65 = vld [vmem:[%s10 + $0x20] sm:$0xf]
    %66 = vst [vmem:[#allocation2] sm:$0x1] 0
    %67 = vst [vmem:[#allocation2 + $0x8] sm:$0x2] 0
    %68 = vst [vmem:[#allocation2 + $0x10] sm:$0x4] 0
    %vm69 = vcmask 1040384
    %vm70 = vsmask.f32 256
    %vm71 = vmand %vm69, %vm70
    %vm72 = vcmask 1044484
    %vm73 = vsmask.f32 4352
    %vm74 = vmand %vm72, %vm73
    %vm75 = vmor %vm74, %vm71
    %v76 = vld [vmem:[#allocation3] sm:$0x11]
    %v77 = vsel %vm75, 0, %v76
    %78 = vst [vmem:[#allocation3] sm:$0x11] %v77
    %vm79 = vcmask 1042434
    %vm80 = vsmask.f32 7946
    %vm81 = vmand %vm79, %vm80
    %vm82 = vcmask 1046534
    %vm83 = vsmask.f32 7962
    %vm84 = vmand %vm82, %vm83
    %vm85 = vmor %vm84, %vm81
    %v86 = vld [vmem:[#allocation3 + $0x20] sm:$0x44]
    %v87 = vsel %vm85, 0, %v86
    %88 = vst [vmem:[#allocation3 + $0x20] sm:$0x44] %v87
    %v89 = vld [vmem:[%s0] sm:$0xff]
    %v90 = vld [vmem:[%s0 + $0x8] sm:$0xff]
    %v91 = vpack.c.bf16 %v90, %v89
    %v93 = vunpack.c.l.b16 %v91
    %v94 = vunpack.c.h.b16 %v91
    %v95 = vpack.c.b16 %v93, %v93
    %v96 = vpack.c.b16 %v94, %v94
    %vm97 = vmor %vm69, %vm72
    %v98 = vrot.slane %v95, 7
    %v99 = vrot.slane %v98, 4
    %v100 = vrot.slane %v96, 7
    %v101 = vsel %vm97, %v99, %v100
    %v102 = vrot.slane %v100, 4
    %106 = vst [vmem:[#allocation2] sm:$0xe] %v98
    %107 = vst [vmem:[#allocation2 + $0x4] sm:$0xf] %v101
    %108 = vst [vmem:[#allocation2 + $0x8] sm:$0x1] %v102
    %s109 = scalar_lea.vmem %s0, 16
    %v110 = vld [vmem:[%s109] sm:$0xff]
    %v111 = vld [vmem:[%s109 + $0x8] sm:$0xff]
    %v112 = vpack.c.bf16 %v111, %v110
    %v114 = vunpack.c.l.b16 %v112
    %v115 = vunpack.c.h.b16 %v112
    %v116 = vpack.c.b16 %v114, %v114
    %v117 = vpack.c.b16 %v115, %v115
    %vm118 = vcmask 1041408
    %vm119 = vcmask 1045508
    %vm120 = vmor %vm118, %vm119
    %v121 = vrot.slane %v116, 6
    %v122 = vrot.slane %v121, 4
    %v123 = vrot.slane %v117, 6
    %v124 = vsel %vm120, %v122, %v123
    %v125 = vrot.slane %v123, 4
    %129 = vst [vmem:[#allocation2 + $0x8] sm:$0xc] %v121
    %130 = vst [vmem:[#allocation2 + $0xc] sm:$0xf] %v124
    %131 = vst [vmem:[#allocation2 + $0x10] sm:$0x3] %v125
    %v132 = vld [vmem:[%s2] sm:$0x3]
    %v133 = vld [vmem:[#allocation2] sm:$0xf]
    %v134 = vld [vmem:[#allocation2 + $0x4] sm:$0xf]
    %v135 = vld [vmem:[#allocation2 + $0x8] sm:$0xf]
    %v136 = vld [vmem:[#allocation2 + $0xc] sm:$0xf]
    %v137 = vld [vmem:[#allocation2 + $0x10] sm:$0x3]
    %v138 = vld [vmem:[%s1] sm:$0xff]
    %v139 = vld [vmem:[%s1 + $0x8] sm:$0xff]
    %v140 = vld [vmem:[%s1 + $0x10] sm:$0xff]
    %v141 = vld [vmem:[%s1 + $0x18] sm:$0xff]
    %v142 = vld [vmem:[%s1 + $0x20] sm:$0xff]
    %v143 = vld [vmem:[%s1 + $0x28] sm:$0xff]
    %v144 = vld [vmem:[%s1 + $0x30] sm:$0xff]
    %v145 = vld [vmem:[%s1 + $0x38] sm:$0xff]
    %v146 = vld [vmem:[%s1 + $0x40] sm:$0xff]
    %v147 = vld [vmem:[%s1 + $0x48] sm:$0xff]
    %v148 = vld [vmem:[%s1 + $0x50] sm:$0xff]
    %v149 = vld [vmem:[%s1 + $0x58] sm:$0xff]
    %v150 = vld [vmem:[%s1 + $0x60] sm:$0xff]
    %v151 = vld [vmem:[%s1 + $0x68] sm:$0xff]
    %v152 = vld [vmem:[%s1 + $0x70] sm:$0xff]
    %v153 = vld [vmem:[%s1 + $0x78] sm:$0xff]
    %v154 = vld [vmem:[#allocation2 + $0x10] sm:$0x7]
    %s155 = scalar_lea.vmem %s1, 128
    %v156 = vld [vmem:[%s155] sm:$0xff]
    %v157 = vld [vmem:[%s155 + $0x8] sm:$0xff]
    %v158 = vld [vmem:[%s155 + $0x10] sm:$0xff]
    %v159 = vld [vmem:[%s155 + $0x18] sm:$0xff]
    %v160 = vld [vmem:[%s155 + $0x20] sm:$0xff]
    %v161 = vld [vmem:[%s155 + $0x28] sm:$0xff]
    %v162 = vld [vmem:[%s155 + $0x30] sm:$0xff]
    %v163 = vld [vmem:[%s155 + $0x38] sm:$0xff]
    %v164 = vld [vmem:[%s155 + $0x40] sm:$0xff]
    %v165 = vld [vmem:[%s155 + $0x48] sm:$0xff]
    %v166 = vld [vmem:[%s155 + $0x50] sm:$0xff]
    %v167 = vld [vmem:[%s155 + $0x58] sm:$0xff]
    %v168 = vld [vmem:[%s155 + $0x60] sm:$0xff]
    %v169 = vld [vmem:[%s155 + $0x68] sm:$0xff]
    %v170 = vld [vmem:[%s155 + $0x70] sm:$0xff]
    %v171 = vld [vmem:[%s155 + $0x78] sm:$0xff]
    %v177 = vunpack.c.l.b16 %v133
    %v178 = vunpack.c.l.b16 %v134
    %v179 = vunpack.c.l.b16 %v135
    %v180 = vunpack.c.l.b16 %v136
    %v181 = vunpack.c.l.b16 %v154
    %v182 = vpack.c.b16 %v178, %v177
    %v183 = vpack.c.b16 %v180, %v179
    %v184 = vpack.c.b16 %v181, %v181
    %vm185 = vsmask.f32 7424
    %v187 = vshrl.u32 %v182, 16
    %v189 = vshll.u32 %v182, 16
    %v191 = vrot.slane %v189, 1
    %v192 = vor.u32 %v187, %v191
    %v194 = vshll.u32 %v183, 16
    %v196 = vrot.slane %v194, 1
    %v197 = vsel %vm185, %v192, %v196
    %v198 = vshrl.u32 %v183, 16
    %v200 = vor.u32 %v198, %v196
    %v202 = vshll.u32 %v184, 16
    %v204 = vrot.slane %v202, 1
    %v205 = vsel %vm185, %v200, %v204
    %v206 = vshrl.u32 %v184, 16
    %v208 = vor.u32 %v206, %v204
    %v228 = vunpack.c.l.b16 %v156
    %v229 = vunpack.c.h.b16 %v156
    %v230 = vunpack.c.l.b16 %v157
    %v231 = vunpack.c.h.b16 %v157
    %v232 = vunpack.c.l.b16 %v158
    %v233 = vunpack.c.h.b16 %v158
    %v234 = vunpack.c.l.b16 %v159
    %v235 = vunpack.c.h.b16 %v159
    %v236 = vunpack.c.l.b16 %v160
    %v237 = vunpack.c.h.b16 %v160
    %v238 = vunpack.c.l.b16 %v161
    %v239 = vunpack.c.h.b16 %v161
    %v240 = vunpack.c.l.b16 %v162
    %v241 = vunpack.c.h.b16 %v162
    %v242 = vunpack.c.l.b16 %v163
    %v243 = vunpack.c.h.b16 %v163
    %v244 = vunpack.c.l.b16 %v164
    %v245 = vunpack.c.h.b16 %v164
    %v246 = vunpack.c.l.b16 %v165
    %v247 = vunpack.c.h.b16 %v165
    %v248 = vunpack.c.l.b16 %v166
    %v249 = vunpack.c.h.b16 %v166
    %v250 = vunpack.c.l.b16 %v167
    %v251 = vunpack.c.h.b16 %v167
    %v252 = vunpack.c.l.b16 %v168
    %v253 = vunpack.c.h.b16 %v168
    %v254 = vunpack.c.l.b16 %v169
    %v255 = vunpack.c.h.b16 %v169
    %v256 = vunpack.c.l.b16 %v170
    %v257 = vunpack.c.h.b16 %v170
    %v258 = vunpack.c.l.b16 %v171
    %v259 = vunpack.c.h.b16 %v171
    %v260 = vpack.c.b16 %v230, %v228
    %v261 = vpack.c.b16 %v231, %v229
    %v262 = vpack.c.b16 %v234, %v232
    %v263 = vpack.c.b16 %v235, %v233
    %v264 = vpack.c.b16 %v238, %v236
    %v265 = vpack.c.b16 %v239, %v237
    %v266 = vpack.c.b16 %v242, %v240
    %v267 = vpack.c.b16 %v243, %v241
    %v268 = vpack.c.b16 %v246, %v244
    %v269 = vpack.c.b16 %v247, %v245
    %v270 = vpack.c.b16 %v250, %v248
    %v271 = vpack.c.b16 %v251, %v249
    %v272 = vpack.c.b16 %v254, %v252
    %v273 = vpack.c.b16 %v255, %v253
    %v274 = vpack.c.b16 %v258, %v256
    %v275 = vpack.c.b16 %v259, %v257
    %292 = vmatprep.subr.bf16.mxu0 %v261
    %293 = vmatpush1.bf16.msra.mxu0 %v260
    %294 = vmatprep.subr.bf16.mxu0 %v263
    %295 = vmatpush1.bf16.msra.mxu0 %v262
    %296 = vmatprep.subr.bf16.mxu0 %v265
    %297 = vmatpush1.bf16.msra.mxu0 %v264
    %298 = vmatprep.subr.bf16.mxu0 %v267
    %299 = vmatpush1.bf16.msra.mxu0 %v266
    %300 = vmatprep.subr.bf16.mxu0 %v269
    %301 = vmatpush1.bf16.msra.mxu0 %v268
    %302 = vmatprep.subr.bf16.mxu0 %v271
    %303 = vmatpush1.bf16.msra.mxu0 %v270
    %304 = vmatprep.subr.bf16.mxu0 %v273
    %305 = vmatpush1.bf16.msra.mxu0 %v272
    %306 = vmatprep.subr.bf16.mxu0 %v275
    %307 = vmatpush1.bf16.msra.mxu0 %v274
    %308 = vmatprep.subr.bf16.mxu0 0
    %309 = vmatpush1.bf16.msra.mxu0 0
    %310 = vmatprep.subr.bf16.mxu0 0
    %311 = vmatpush1.bf16.msra.mxu0 0
    %312 = vmatprep.subr.bf16.mxu0 0
    %313 = vmatpush1.bf16.msra.mxu0 0
    %314 = vmatprep.subr.bf16.mxu0 0
    %315 = vmatpush1.bf16.msra.mxu0 0
    %316 = vmatprep.subr.bf16.mxu0 0
    %317 = vmatpush1.bf16.msra.mxu0 0
    %318 = vmatprep.subr.bf16.mxu0 0
    %319 = vmatpush1.bf16.msra.mxu0 0
    %320 = vmatprep.subr.bf16.mxu0 0
    %321 = vmatpush1.bf16.msra.mxu0 0
    %322 = vmatprep.subr.bf16.mxu0 0
    %323 = vmatpush1.bf16.msra.mxu0 0
    %324 = vmatprep.mubr.bf16.mxu0 0
    %325 = vmatmul.mubr.bf16.gmra.mrb[0].mxu0 %v197
    %v326 = vpop.f32.mrb[0].mxu0
    %v327 = vadd.f32 0.0, %v326
    %v328 = vpop.f32.mrb[0].mxu0
    %v329 = vadd.f32 0.0, %v328
    %v330 = vpop.f32.mrb[0].mxu0
    %v331 = vadd.f32 0.0, %v330
    %v332 = vpop.f32.mrb[0].mxu0
    %v333 = vadd.f32 0.0, %v332
    %334 = vmatprep.mubr.bf16.mxu0 0
    %335 = vmatmul.mubr.bf16.gmra.mrb[0].mxu0 %v205
    %v336 = vpop.f32.mrb[0].mxu0
    %v337 = vadd.f32 0.0, %v336
    %v338 = vpop.f32.mrb[0].mxu0
    %v339 = vadd.f32 0.0, %v338
    %v340 = vpop.f32.mrb[0].mxu0
    %v341 = vadd.f32 0.0, %v340
    %v342 = vpop.f32.mrb[0].mxu0
    %v343 = vadd.f32 0.0, %v342
    %344 = vmatprep.mubr.bf16.mxu0 0
    %345 = vmatmul.mubr.bf16.gmra.mrb[0].mxu0 %v208
    %v346 = vpop.f32.mrb[0].mxu0
    %v347 = vadd.f32 0.0, %v346
    %v348 = vpop.f32.mrb[0].mxu0
    %v349 = vadd.f32 0.0, %v348
    %v350 = vpop.f32.mrb[0].mxu0
    %v351 = vpop.f32.mrb[0].mxu0
    %352 = vdwg.mxu0
    %v354 = vunpack.c.l.b16 %v137
    %v355 = vpack.c.b16 %v354, %v354
    %v375 = vunpack.c.l.b16 %v138
    %v376 = vunpack.c.h.b16 %v138
    %v377 = vunpack.c.l.b16 %v139
    %v378 = vunpack.c.h.b16 %v139
    %v379 = vunpack.c.l.b16 %v140
    %v380 = vunpack.c.h.b16 %v140
    %v381 = vunpack.c.l.b16 %v141
    %v382 = vunpack.c.h.b16 %v141
    %v383 = vunpack.c.l.b16 %v142
    %v384 = vunpack.c.h.b16 %v142
    %v385 = vunpack.c.l.b16 %v143
    %v386 = vunpack.c.h.b16 %v143
    %v387 = vunpack.c.l.b16 %v144
    %v388 = vunpack.c.h.b16 %v144
    %v389 = vunpack.c.l.b16 %v145
    %v390 = vunpack.c.h.b16 %v145
    %v391 = vunpack.c.l.b16 %v146
    %v392 = vunpack.c.h.b16 %v146
    %v393 = vunpack.c.l.b16 %v147
    %v394 = vunpack.c.h.b16 %v147
    %v395 = vunpack.c.l.b16 %v148
    %v396 = vunpack.c.h.b16 %v148
    %v397 = vunpack.c.l.b16 %v149
    %v398 = vunpack.c.h.b16 %v149
    %v399 = vunpack.c.l.b16 %v150
    %v400 = vunpack.c.h.b16 %v150
    %v401 = vunpack.c.l.b16 %v151
    %v402 = vunpack.c.h.b16 %v151
    %v403 = vunpack.c.l.b16 %v152
    %v404 = vunpack.c.h.b16 %v152
    %v405 = vunpack.c.l.b16 %v153
    %v406 = vunpack.c.h.b16 %v153
    %v407 = vpack.c.b16 %v377, %v375
    %v408 = vpack.c.b16 %v378, %v376
    %v409 = vpack.c.b16 %v381, %v379
    %v410 = vpack.c.b16 %v382, %v380
    %v411 = vpack.c.b16 %v385, %v383
    %v412 = vpack.c.b16 %v386, %v384
    %v413 = vpack.c.b16 %v389, %v387
    %v414 = vpack.c.b16 %v390, %v388
    %v415 = vpack.c.b16 %v393, %v391
    %v416 = vpack.c.b16 %v394, %v392
    %v417 = vpack.c.b16 %v397, %v395
    %v418 = vpack.c.b16 %v398, %v396
    %v419 = vpack.c.b16 %v401, %v399
    %v420 = vpack.c.b16 %v402, %v400
    %v421 = vpack.c.b16 %v405, %v403
    %v422 = vpack.c.b16 %v406, %v404
    %439 = vmatprep.subr.bf16.mxu0 %v408
    %440 = vmatpush1.bf16.msra.mxu0 %v407
    %441 = vmatprep.subr.bf16.mxu0 %v410
    %442 = vmatpush1.bf16.msra.mxu0 %v409
    %443 = vmatprep.subr.bf16.mxu0 %v412
    %444 = vmatpush1.bf16.msra.mxu0 %v411
    %445 = vmatprep.subr.bf16.mxu0 %v414
    %446 = vmatpush1.bf16.msra.mxu0 %v413
    %447 = vmatprep.subr.bf16.mxu0 %v416
    %448 = vmatpush1.bf16.msra.mxu0 %v415
    %449 = vmatprep.subr.bf16.mxu0 %v418
    %450 = vmatpush1.bf16.msra.mxu0 %v417
    %451 = vmatprep.subr.bf16.mxu0 %v420
    %452 = vmatpush1.bf16.msra.mxu0 %v419
    %453 = vmatprep.subr.bf16.mxu0 %v422
    %454 = vmatpush1.bf16.msra.mxu0 %v421
    %455 = vmatprep.subr.bf16.mxu0 0
    %456 = vmatpush1.bf16.msra.mxu0 0
    %457 = vmatprep.subr.bf16.mxu0 0
    %458 = vmatpush1.bf16.msra.mxu0 0
    %459 = vmatprep.subr.bf16.mxu0 0
    %460 = vmatpush1.bf16.msra.mxu0 0
    %461 = vmatprep.subr.bf16.mxu0 0
    %462 = vmatpush1.bf16.msra.mxu0 0
    %463 = vmatprep.subr.bf16.mxu0 0
    %464 = vmatpush1.bf16.msra.mxu0 0
    %465 = vmatprep.subr.bf16.mxu0 0
    %466 = vmatpush1.bf16.msra.mxu0 0
    %467 = vmatprep.subr.bf16.mxu0 0
    %468 = vmatpush1.bf16.msra.mxu0 0
    %469 = vmatprep.subr.bf16.mxu0 0
    %470 = vmatpush1.bf16.msra.mxu0 0
    %471 = vmatprep.mubr.bf16.mxu0 0
    %472 = vmatmul.mubr.bf16.gmra.mrb[0].mxu0 %v182
    %v473 = vpop.f32.mrb[0].mxu0
    %v474 = vadd.f32 %v327, %v473
    %v475 = vpop.f32.mrb[0].mxu0
    %v476 = vadd.f32 %v329, %v475
    %v477 = vpop.f32.mrb[0].mxu0
    %v478 = vadd.f32 %v331, %v477
    %v479 = vpop.f32.mrb[0].mxu0
    %v480 = vadd.f32 %v333, %v479
    %481 = vmatprep.mubr.bf16.mxu0 0
    %482 = vmatmul.mubr.bf16.gmra.mrb[0].mxu0 %v183
    %v483 = vpop.f32.mrb[0].mxu0
    %v484 = vadd.f32 %v337, %v483
    %v485 = vpop.f32.mrb[0].mxu0
    %v486 = vadd.f32 %v339, %v485
    %v487 = vpop.f32.mrb[0].mxu0
    %v488 = vadd.f32 %v341, %v487
    %v489 = vpop.f32.mrb[0].mxu0
    %v490 = vadd.f32 %v343, %v489
    %491 = vmatprep.mubr.bf16.mxu0 0
    %492 = vmatmul.mubr.bf16.gmra.mrb[0].mxu0 %v355
    %v493 = vpop.f32.mrb[0].mxu0
    %v494 = vadd.f32 %v347, %v493
    %v495 = vpop.f32.mrb[0].mxu0
    %v496 = vadd.f32 %v349, %v495
    %v497 = vpop.f32.mrb[0].mxu0
    %v498 = vpop.f32.mrb[0].mxu0
    %499 = vdwg.mxu0
    %v500 = vld [vmem:[#allocation2] sm:$0xe]
    %s501 = scalar_lea.vmem %s1, 256
    %v502 = vld [vmem:[%s501] sm:$0xff]
    %v503 = vld [vmem:[%s501 + $0x8] sm:$0xff]
    %v504 = vld [vmem:[%s501 + $0x10] sm:$0xff]
    %v505 = vld [vmem:[%s501 + $0x18] sm:$0xff]
    %v506 = vld [vmem:[%s501 + $0x20] sm:$0xff]
    %v507 = vld [vmem:[%s501 + $0x28] sm:$0xff]
    %v508 = vld [vmem:[%s501 + $0x30] sm:$0xff]
    %v509 = vld [vmem:[%s501 + $0x38] sm:$0xff]
    %v510 = vld [vmem:[%s501 + $0x40] sm:$0xff]
    %v511 = vld [vmem:[%s501 + $0x48] sm:$0xff]
    %v512 = vld [vmem:[%s501 + $0x50] sm:$0xff]
    %v513 = vld [vmem:[%s501 + $0x58] sm:$0xff]
    %v514 = vld [vmem:[%s501 + $0x60] sm:$0xff]
    %v515 = vld [vmem:[%s501 + $0x68] sm:$0xff]
    %v516 = vld [vmem:[%s501 + $0x70] sm:$0xff]
    %v517 = vld [vmem:[%s501 + $0x78] sm:$0xff]
    %v519 = vunpack.c.l.b16 %v500
    %v520 = vpack.c.b16 %v178, %v519
    %vm521 = vcmask 1046528
    %v522 = vrot.slane %v520, 1
    %v523 = vrot.slane %v183, 1
    %v524 = vsel %vm521, %v522, %v523
    %v525 = vrot.slane %v184, 1
    %v526 = vsel %vm521, %v523, %v525
    %v546 = vunpack.c.l.b16 %v502
    %v547 = vunpack.c.h.b16 %v502
    %v548 = vunpack.c.l.b16 %v503
    %v549 = vunpack.c.h.b16 %v503
    %v550 = vunpack.c.l.b16 %v504
    %v551 = vunpack.c.h.b16 %v504
    %v552 = vunpack.c.l.b16 %v505
    %v553 = vunpack.c.h.b16 %v505
    %v554 = vunpack.c.l.b16 %v506
    %v555 = vunpack.c.h.b16 %v506
    %v556 = vunpack.c.l.b16 %v507
    %v557 = vunpack.c.h.b16 %v507
    %v558 = vunpack.c.l.b16 %v508
    %v559 = vunpack.c.h.b16 %v508
    %v560 = vunpack.c.l.b16 %v509
    %v561 = vunpack.c.h.b16 %v509
    %v562 = vunpack.c.l.b16 %v510
    %v563 = vunpack.c.h.b16 %v510
    %v564 = vunpack.c.l.b16 %v511
    %v565 = vunpack.c.h.b16 %v511
    %v566 = vunpack.c.l.b16 %v512
    %v567 = vunpack.c.h.b16 %v512
    %v568 = vunpack.c.l.b16 %v513
    %v569 = vunpack.c.h.b16 %v513
    %v570 = vunpack.c.l.b16 %v514
    %v571 = vunpack.c.h.b16 %v514
    %v572 = vunpack.c.l.b16 %v515
    %v573 = vunpack.c.h.b16 %v515
    %v574 = vunpack.c.l.b16 %v516
    %v575 = vunpack.c.h.b16 %v516
    %v576 = vunpack.c.l.b16 %v517
    %v577 = vunpack.c.h.b16 %v517
    %v578 = vpack.c.b16 %v548, %v546
    %v579 = vpack.c.b16 %v549, %v547
    %v580 = vpack.c.b16 %v552, %v550
    %v581 = vpack.c.b16 %v553, %v551
    %v582 = vpack.c.b16 %v556, %v554
    %v583 = vpack.c.b16 %v557, %v555
    %v584 = vpack.c.b16 %v560, %v558
    %v585 = vpack.c.b16 %v561, %v559
    %v586 = vpack.c.b16 %v564, %v562
    %v587 = vpack.c.b16 %v565, %v563
    %v588 = vpack.c.b16 %v568, %v566
    %v589 = vpack.c.b16 %v569, %v567
    %v590 = vpack.c.b16 %v572, %v570
    %v591 = vpack.c.b16 %v573, %v571
    %v592 = vpack.c.b16 %v576, %v574
    %v593 = vpack.c.b16 %v577, %v575
    %610 = vmatprep.subr.bf16.mxu0 %v579
    %611 = vmatpush1.bf16.msra.mxu0 %v578
    %612 = vmatprep.subr.bf16.mxu0 %v581
    %613 = vmatpush1.bf16.msra.mxu0 %v580
    %614 = vmatprep.subr.bf16.mxu0 %v583
    %615 = vmatpush1.bf16.msra.mxu0 %v582
    %616 = vmatprep.subr.bf16.mxu0 %v585
    %617 = vmatpush1.bf16.msra.mxu0 %v584
    %618 = vmatprep.subr.bf16.mxu0 %v587
    %619 = vmatpush1.bf16.msra.mxu0 %v586
    %620 = vmatprep.subr.bf16.mxu0 %v589
    %621 = vmatpush1.bf16.msra.mxu0 %v588
    %622 = vmatprep.subr.bf16.mxu0 %v591
    %623 = vmatpush1.bf16.msra.mxu0 %v590
    %624 = vmatprep.subr.bf16.mxu0 %v593
    %625 = vmatpush1.bf16.msra.mxu0 %v592
    %626 = vmatprep.subr.bf16.mxu0 0
    %627 = vmatpush1.bf16.msra.mxu0 0
    %628 = vmatprep.subr.bf16.mxu0 0
    %629 = vmatpush1.bf16.msra.mxu0 0
    %630 = vmatprep.subr.bf16.mxu0 0
    %631 = vmatpush1.bf16.msra.mxu0 0
    %632 = vmatprep.subr.bf16.mxu0 0
    %633 = vmatpush1.bf16.msra.mxu0 0
    %634 = vmatprep.subr.bf16.mxu0 0
    %635 = vmatpush1.bf16.msra.mxu0 0
    %636 = vmatprep.subr.bf16.mxu0 0
    %637 = vmatpush1.bf16.msra.mxu0 0
    %638 = vmatprep.subr.bf16.mxu0 0
    %639 = vmatpush1.bf16.msra.mxu0 0
    %640 = vmatprep.subr.bf16.mxu0 0
    %641 = vmatpush1.bf16.msra.mxu0 0
    %642 = vmatprep.mubr.bf16.mxu0 0
    %643 = vmatmul.mubr.bf16.gmra.mrb[0].mxu0 %v524
    %v644 = vpop.f32.mrb[0].mxu0
    %v645 = vadd.f32 0.0, %v644
    %v646 = vpop.f32.mrb[0].mxu0
    %v647 = vadd.f32 0.0, %v646
    %v648 = vpop.f32.mrb[0].mxu0
    %v649 = vadd.f32 0.0, %v648
    %v650 = vpop.f32.mrb[0].mxu0
    %v651 = vadd.f32 0.0, %v650
    %652 = vmatprep.mubr.bf16.mxu0 0
    %653 = vmatmul.mubr.bf16.gmra.mrb[0].mxu0 %v526
    %v654 = vpop.f32.mrb[0].mxu0
    %v655 = vadd.f32 0.0, %v654
    %v656 = vpop.f32.mrb[0].mxu0
    %v657 = vadd.f32 0.0, %v656
    %v658 = vpop.f32.mrb[0].mxu0
    %v659 = vadd.f32 0.0, %v658
    %v660 = vpop.f32.mrb[0].mxu0
    %v661 = vadd.f32 0.0, %v660
    %662 = vmatprep.mubr.bf16.mxu0 0
    %663 = vmatmul.mubr.bf16.gmra.mrb[0].mxu0 %v525
    %v664 = vpop.f32.mrb[0].mxu0
    %v665 = vadd.f32 0.0, %v664
    %v666 = vpop.f32.mrb[0].mxu0
    %v667 = vadd.f32 0.0, %v666
    %v668 = vpop.f32.mrb[0].mxu0
    %v669 = vpop.f32.mrb[0].mxu0
    %670 = vdwg.mxu0
    %v671 = vadd.f32 %v474, %v645
    %v672 = vadd.f32 %v476, %v647
    %v673 = vadd.f32 %v478, %v649
    %v674 = vadd.f32 %v480, %v651
    %v675 = vadd.f32 %v484, %v655
    %v676 = vadd.f32 %v486, %v657
    %v677 = vadd.f32 %v488, %v659
    %v678 = vadd.f32 %v490, %v661
    %v679 = vadd.f32 %v494, %v665
    %v680 = vadd.f32 %v496, %v667
    %v682 = vlaneseq
    %v683 = vshrl.u32 %v682, 7
    %v684 = vsub.s32 0, %v683
    %v685 = vrot.slane %v132, %v684
    %v686 = vlaneseq
    %v687 = vshrl.u32 %v686, 7
    %v688 = vsub.s32 1, %v687
    %v689 = vrot.slane %v132, %v688
    %v692 = vadd.f32 %v671, %v685
    %v693 = vadd.f32 %v672, %v689
    %v694 = vadd.f32 %v673, %v685
    %v695 = vadd.f32 %v674, %v689
    %v696 = vadd.f32 %v675, %v685
    %v697 = vadd.f32 %v676, %v689
    %v698 = vadd.f32 %v677, %v685
    %v699 = vadd.f32 %v678, %v689
    %v700 = vadd.f32 %v679, %v685
    %v701 = vadd.f32 %v680, %v689
    %703 = vset.pattern.permute.xlu0 0
    %704 = vperm.xlu0 %703, %v61
    %v705 = vpop.permute.xlu0 %704
    %708 = vset.pattern.permute.xlu0 0
    %709 = vperm.xlu0 %708, %v62
    %v710 = vpop.permute.xlu0 %709
    %713 = vset.pattern.permute.xlu0 0
    %714 = vperm.xlu0 %713, %v63
    %v715 = vpop.permute.xlu0 %714
    %718 = vset.pattern.permute.xlu0 0
    %719 = vperm.xlu0 %718, %v64
    %v720 = vpop.permute.xlu0 %719
    %723 = vset.pattern.permute.xlu0 0
    %724 = vperm.xlu0 %723, %v65
    %v725 = vpop.permute.xlu0 %724
    %v727 = vmul.f32 %v692, %v705
    %v728 = vmul.f32 %v693, %v705
    %v729 = vmul.f32 %v694, %v710
    %v730 = vmul.f32 %v695, %v710
    %v731 = vmul.f32 %v696, %v715
    %v732 = vmul.f32 %v697, %v715
    %v733 = vmul.f32 %v698, %v720
    %v734 = vmul.f32 %v699, %v720
    %v735 = vmul.f32 %v700, %v725
    %v736 = vmul.f32 %v701, %v725
    %v737 = vpack.c.bf16 %v729, %v727
    %v738 = vpack.c.bf16 %v730, %v728
    %v739 = vpack.c.bf16 %v733, %v731
    %v740 = vpack.c.bf16 %v734, %v732
    %v741 = vpack.c.bf16 %v735, %v735
    %v742 = vpack.c.bf16 %v736, %v736
    %v749 = vunpack.c.l.b16 %v737
    %v750 = vunpack.c.l.b16 %v738
    %v751 = vunpack.c.h.b16 %v737
    %v752 = vunpack.c.h.b16 %v738
    %v753 = vunpack.c.l.b16 %v739
    %v754 = vunpack.c.l.b16 %v740
    %v755 = vunpack.c.h.b16 %v739
    %v756 = vunpack.c.h.b16 %v740
    %v757 = vunpack.c.l.b16 %v741
    %v758 = vunpack.c.l.b16 %v742
    %v759 = vpack.c.b16 %v750, %v749
    %v760 = vpack.c.b16 %v752, %v751
    %v761 = vpack.c.b16 %v754, %v753
    %v762 = vpack.c.b16 %v756, %v755
    %v763 = vpack.c.b16 %v758, %v757
    %vm764 = vsmask.f32 4368
    %vm765 = vmor %vm70, %vm764
    %v767 = vshrl.u32 %v759, 16
    %v769 = vrot.slane %v767, 7
    %v770 = vshll.u32 %v759, 16
    %v772 = vor.u32 %v769, %v770
    %v773 = vrot.slane %v769, 4
    %v775 = vshrl.u32 %v760, 16
    %v777 = vrot.slane %v775, 7
    %v778 = vshll.u32 %v760, 16
    %v780 = vor.u32 %v777, %v778
    %v781 = vsel %vm765, %v773, %v780
    %v782 = vrot.slane %v777, 4
    %v784 = vshrl.u32 %v761, 16
    %v786 = vrot.slane %v784, 7
    %v787 = vshll.u32 %v761, 16
    %v789 = vor.u32 %v786, %v787
    %v790 = vsel %vm765, %v782, %v789
    %v791 = vrot.slane %v786, 4
    %v793 = vshrl.u32 %v762, 16
    %v795 = vrot.slane %v793, 7
    %v796 = vshll.u32 %v762, 16
    %v798 = vor.u32 %v795, %v796
    %v799 = vsel %vm765, %v791, %v798
    %v800 = vrot.slane %v795, 4
    %v802 = vshrl.u32 %v763, 16
    %v804 = vrot.slane %v802, 7
    %v805 = vshll.u32 %v763, 16
    %v807 = vor.u32 %v804, %v805
    %v808 = vsel %vm765, %v800, %v807
    %vm814 = vcmask 1043456
    %vm815 = vsmask.f32 7938
    %vm816 = vmand %vm814, %vm815
    %vm817 = vcmask 1047556
    %vm818 = vsmask.f32 7954
    %vm819 = vmand %vm817, %vm818
    %vm820 = vmor %vm819, %vm816
    %v821 = vld [vmem:[#allocation3] sm:$0xff]
    %v822 = vsel %vm820, %v772, %v821
    %823 = vst [vmem:[#allocation3] sm:$0xff] %v822
    %824 = vst [vmem:[#allocation3 + $0x8] sm:$0xff] %v781
    %825 = vst [vmem:[#allocation3 + $0x10] sm:$0xff] %v790
    %826 = vst [vmem:[#allocation3 + $0x18] sm:$0xff] %v799
    %vm827 = vcmask 1042432
    %vm828 = vsmask.f32 2304
    %vm829 = vmand %vm827, %vm828
    %vm830 = vcmask 1046532
    %vm831 = vsmask.f32 6400
    %vm832 = vmand %vm830, %vm831
    %vm833 = vmor %vm832, %vm829
    %v834 = vld [vmem:[#allocation3 + $0x20] sm:$0x77]
    %v835 = vsel %vm833, %v808, %v834
    %836 = vst [vmem:[#allocation3 + $0x20] sm:$0x77] %v835
    %v837 = vld [vmem:[%s4] sm:$0x3]
    %v838 = vld [vmem:[#allocation3] sm:$0xff]
    %v839 = vld [vmem:[#allocation3 + $0x8] sm:$0xff]
    %v840 = vld [vmem:[#allocation3 + $0x10] sm:$0xff]
    %v841 = vld [vmem:[#allocation3 + $0x18] sm:$0xff]
    %v842 = vld [vmem:[#allocation3 + $0x20] sm:$0x33]
    %v843 = vld [vmem:[%s3] sm:$0xff]
    %v844 = vld [vmem:[%s3 + $0x8] sm:$0xff]
    %v845 = vld [vmem:[%s3 + $0x10] sm:$0xff]
    %v846 = vld [vmem:[%s3 + $0x18] sm:$0xff]
    %v847 = vld [vmem:[%s3 + $0x20] sm:$0xff]
    %v848 = vld [vmem:[%s3 + $0x28] sm:$0xff]
    %v849 = vld [vmem:[%s3 + $0x30] sm:$0xff]
    %v850 = vld [vmem:[%s3 + $0x38] sm:$0xff]
    %v851 = vld [vmem:[%s3 + $0x40] sm:$0xff]
    %v852 = vld [vmem:[%s3 + $0x48] sm:$0xff]
    %v853 = vld [vmem:[%s3 + $0x50] sm:$0xff]
    %v854 = vld [vmem:[%s3 + $0x58] sm:$0xff]
    %v855 = vld [vmem:[%s3 + $0x60] sm:$0xff]
    %v856 = vld [vmem:[%s3 + $0x68] sm:$0xff]
    %v857 = vld [vmem:[%s3 + $0x70] sm:$0xff]
    %v858 = vld [vmem:[%s3 + $0x78] sm:$0xff]
    %v859 = vld [vmem:[%s3 + $0x80] sm:$0xff]
    %v860 = vld [vmem:[%s3 + $0x88] sm:$0xff]
    %v861 = vld [vmem:[%s3 + $0x90] sm:$0xff]
    %v862 = vld [vmem:[%s3 + $0x98] sm:$0xff]
    %v863 = vld [vmem:[%s3 + $0xa0] sm:$0xff]
    %v864 = vld [vmem:[%s3 + $0xa8] sm:$0xff]
    %v865 = vld [vmem:[%s3 + $0xb0] sm:$0xff]
    %v866 = vld [vmem:[%s3 + $0xb8] sm:$0xff]
    %v867 = vld [vmem:[%s3 + $0xc0] sm:$0xff]
    %v868 = vld [vmem:[%s3 + $0xc8] sm:$0xff]
    %v869 = vld [vmem:[%s3 + $0xd0] sm:$0xff]
    %v870 = vld [vmem:[%s3 + $0xd8] sm:$0xff]
    %v871 = vld [vmem:[%s3 + $0xe0] sm:$0xff]
    %v872 = vld [vmem:[%s3 + $0xe8] sm:$0xff]
    %v873 = vld [vmem:[%s3 + $0xf0] sm:$0xff]
    %v874 = vld [vmem:[%s3 + $0xf8] sm:$0xff]
    %v875 = vld [vmem:[#allocation3 + $0x20] sm:$0x77]
    %s876 = scalar_lea.vmem %s3, 256
    %v877 = vld [vmem:[%s876] sm:$0xff]
    %v878 = vld [vmem:[%s876 + $0x8] sm:$0xff]
    %v879 = vld [vmem:[%s876 + $0x10] sm:$0xff]
    %v880 = vld [vmem:[%s876 + $0x18] sm:$0xff]
    %v881 = vld [vmem:[%s876 + $0x20] sm:$0xff]
    %v882 = vld [vmem:[%s876 + $0x28] sm:$0xff]
    %v883 = vld [vmem:[%s876 + $0x30] sm:$0xff]
    %v884 = vld [vmem:[%s876 + $0x38] sm:$0xff]
    %v885 = vld [vmem:[%s876 + $0x40] sm:$0xff]
    %v886 = vld [vmem:[%s876 + $0x48] sm:$0xff]
    %v887 = vld [vmem:[%s876 + $0x50] sm:$0xff]
    %v888 = vld [vmem:[%s876 + $0x58] sm:$0xff]
    %v889 = vld [vmem:[%s876 + $0x60] sm:$0xff]
    %v890 = vld [vmem:[%s876 + $0x68] sm:$0xff]
    %v891 = vld [vmem:[%s876 + $0x70] sm:$0xff]
    %v892 = vld [vmem:[%s876 + $0x78] sm:$0xff]
    %v893 = vld [vmem:[%s876 + $0x80] sm:$0xff]
    %v894 = vld [vmem:[%s876 + $0x88] sm:$0xff]
    %v895 = vld [vmem:[%s876 + $0x90] sm:$0xff]
    %v896 = vld [vmem:[%s876 + $0x98] sm:$0xff]
    %v897 = vld [vmem:[%s876 + $0xa0] sm:$0xff]
    %v898 = vld [vmem:[%s876 + $0xa8] sm:$0xff]
    %v899 = vld [vmem:[%s876 + $0xb0] sm:$0xff]
    %v900 = vld [vmem:[%s876 + $0xb8] sm:$0xff]
    %v901 = vld [vmem:[%s876 + $0xc0] sm:$0xff]
    %v902 = vld [vmem:[%s876 + $0xc8] sm:$0xff]
    %v903 = vld [vmem:[%s876 + $0xd0] sm:$0xff]
    %v904 = vld [vmem:[%s876 + $0xd8] sm:$0xff]
    %v905 = vld [vmem:[%s876 + $0xe0] sm:$0xff]
    %v906 = vld [vmem:[%s876 + $0xe8] sm:$0xff]
    %v907 = vld [vmem:[%s876 + $0xf0] sm:$0xff]
    %v908 = vld [vmem:[%s876 + $0xf8] sm:$0xff]
    %v914 = vunpack.c.l.b16 %v838
    %v915 = vunpack.c.h.b16 %v838
    %v916 = vunpack.c.l.b16 %v839
    %v917 = vunpack.c.h.b16 %v839
    %v918 = vunpack.c.l.b16 %v840
    %v919 = vunpack.c.h.b16 %v840
    %v920 = vunpack.c.l.b16 %v841
    %v921 = vunpack.c.h.b16 %v841
    %v922 = vunpack.c.l.b16 %v875
    %v923 = vunpack.c.h.b16 %v875
    %v924 = vpack.c.b16 %v916, %v914
    %v925 = vpack.c.b16 %v917, %v915
    %v926 = vpack.c.b16 %v920, %v918
    %v927 = vpack.c.b16 %v921, %v919
    %v928 = vpack.c.b16 %v922, %v922
    %v929 = vpack.c.b16 %v923, %v923
    %v931 = vshrl.u32 %v924, 16
    %v933 = vshll.u32 %v924, 16
    %v935 = vrot.slane %v933, 1
    %v936 = vor.u32 %v931, %v935
    %v938 = vshll.u32 %v926, 16
    %v940 = vrot.slane %v938, 1
    %v941 = vsel %vm185, %v936, %v940
    %v943 = vshrl.u32 %v925, 16
    %v945 = vshll.u32 %v925, 16
    %v947 = vrot.slane %v945, 1
    %v948 = vor.u32 %v943, %v947
    %v950 = vshll.u32 %v927, 16
    %v952 = vrot.slane %v950, 1
    %v953 = vsel %vm185, %v948, %v952
    %v954 = vshrl.u32 %v926, 16
    %v956 = vor.u32 %v954, %v940
    %v958 = vshll.u32 %v928, 16
    %v960 = vrot.slane %v958, 1
    %v961 = vsel %vm185, %v956, %v960
    %v962 = vshrl.u32 %v927, 16
    %v964 = vor.u32 %v962, %v952
    %v966 = vshll.u32 %v929, 16
    %v968 = vrot.slane %v966, 1
    %v969 = vsel %vm185, %v964, %v968
    %v970 = vshrl.u32 %v928, 16
    %v972 = vor.u32 %v970, %v960
    %v973 = vshrl.u32 %v929, 16
    %v975 = vor.u32 %v973, %v968
    %v1014 = vunpack.c.l.b16 %v877
    %v1015 = vunpack.c.h.b16 %v877
    %v1016 = vunpack.c.l.b16 %v878
    %v1017 = vunpack.c.h.b16 %v878
    %v1018 = vunpack.c.l.b16 %v879
    %v1019 = vunpack.c.h.b16 %v879
    %v1020 = vunpack.c.l.b16 %v880
    %v1021 = vunpack.c.h.b16 %v880
    %v1022 = vunpack.c.l.b16 %v881
    %v1023 = vunpack.c.h.b16 %v881
    %v1024 = vunpack.c.l.b16 %v882
    %v1025 = vunpack.c.h.b16 %v882
    %v1026 = vunpack.c.l.b16 %v883
    %v1027 = vunpack.c.h.b16 %v883
    %v1028 = vunpack.c.l.b16 %v884
    %v1029 = vunpack.c.h.b16 %v884
    %v1030 = vunpack.c.l.b16 %v885
    %v1031 = vunpack.c.h.b16 %v885
    %v1032 = vunpack.c.l.b16 %v886
    %v1033 = vunpack.c.h.b16 %v886
    %v1034 = vunpack.c.l.b16 %v887
    %v1035 = vunpack.c.h.b16 %v887
    %v1036 = vunpack.c.l.b16 %v888
    %v1037 = vunpack.c.h.b16 %v888
    %v1038 = vunpack.c.l.b16 %v889
    %v1039 = vunpack.c.h.b16 %v889
    %v1040 = vunpack.c.l.b16 %v890
    %v1041 = vunpack.c.h.b16 %v890
    %v1042 = vunpack.c.l.b16 %v891
    %v1043 = vunpack.c.h.b16 %v891
    %v1044 = vunpack.c.l.b16 %v892
    %v1045 = vunpack.c.h.b16 %v892
    %v1046 = vunpack.c.l.b16 %v893
    %v1047 = vunpack.c.h.b16 %v893
    %v1048 = vunpack.c.l.b16 %v894
    %v1049 = vunpack.c.h.b16 %v894
    %v1050 = vunpack.c.l.b16 %v895
    %v1051 = vunpack.c.h.b16 %v895
    %v1052 = vunpack.c.l.b16 %v896
    %v1053 = vunpack.c.h.b16 %v896
    %v1054 = vunpack.c.l.b16 %v897
    %v1055 = vunpack.c.h.b16 %v897
    %v1056 = vunpack.c.l.b16 %v898
    %v1057 = vunpack.c.h.b16 %v898
    %v1058 = vunpack.c.l.b16 %v899
    %v1059 = vunpack.c.h.b16 %v899
    %v1060 = vunpack.c.l.b16 %v900
    %v1061 = vunpack.c.h.b16 %v900
    %v1062 = vunpack.c.l.b16 %v901
    %v1063 = vunpack.c.h.b16 %v901
    %v1064 = vunpack.c.l.b16 %v902
    %v1065 = vunpack.c.h.b16 %v902
    %v1066 = vunpack.c.l.b16 %v903
    %v1067 = vunpack.c.h.b16 %v903
    %v1068 = vunpack.c.l.b16 %v904
    %v1069 = vunpack.c.h.b16 %v904
    %v1070 = vunpack.c.l.b16 %v905
    %v1071 = vunpack.c.h.b16 %v905
    %v1072 = vunpack.c.l.b16 %v906
    %v1073 = vunpack.c.h.b16 %v906
    %v1074 = vunpack.c.l.b16 %v907
    %v1075 = vunpack.c.h.b16 %v907
    %v1076 = vunpack.c.l.b16 %v908
    %v1077 = vunpack.c.h.b16 %v908
    %v1078 = vpack.c.b16 %v1016, %v1014
    %v1079 = vpack.c.b16 %v1017, %v1015
    %v1080 = vpack.c.b16 %v1020, %v1018
    %v1081 = vpack.c.b16 %v1021, %v1019
    %v1082 = vpack.c.b16 %v1024, %v1022
    %v1083 = vpack.c.b16 %v1025, %v1023
    %v1084 = vpack.c.b16 %v1028, %v1026
    %v1085 = vpack.c.b16 %v1029, %v1027
    %v1086 = vpack.c.b16 %v1032, %v1030
    %v1087 = vpack.c.b16 %v1033, %v1031
    %v1088 = vpack.c.b16 %v1036, %v1034
    %v1089 = vpack.c.b16 %v1037, %v1035
    %v1090 = vpack.c.b16 %v1040, %v1038
    %v1091 = vpack.c.b16 %v1041, %v1039
    %v1092 = vpack.c.b16 %v1044, %v1042
    %v1093 = vpack.c.b16 %v1045, %v1043
    %v1094 = vpack.c.b16 %v1048, %v1046
    %v1095 = vpack.c.b16 %v1049, %v1047
    %v1096 = vpack.c.b16 %v1052, %v1050
    %v1097 = vpack.c.b16 %v1053, %v1051
    %v1098 = vpack.c.b16 %v1056, %v1054
    %v1099 = vpack.c.b16 %v1057, %v1055
    %v1100 = vpack.c.b16 %v1060, %v1058
    %v1101 = vpack.c.b16 %v1061, %v1059
    %v1102 = vpack.c.b16 %v1064, %v1062
    %v1103 = vpack.c.b16 %v1065, %v1063
    %v1104 = vpack.c.b16 %v1068, %v1066
    %v1105 = vpack.c.b16 %v1069, %v1067
    %v1106 = vpack.c.b16 %v1072, %v1070
    %v1107 = vpack.c.b16 %v1073, %v1071
    %v1108 = vpack.c.b16 %v1076, %v1074
    %v1109 = vpack.c.b16 %v1077, %v1075
    %1142 = vmatprep.subr.bf16.mxu0 %v1079
    %1143 = vmatpush1.bf16.msra.mxu0 %v1078
    %1144 = vmatprep.subr.bf16.mxu0 %v1081
    %1145 = vmatpush1.bf16.msra.mxu0 %v1080
    %1146 = vmatprep.subr.bf16.mxu0 %v1083
    %1147 = vmatpush1.bf16.msra.mxu0 %v1082
    %1148 = vmatprep.subr.bf16.mxu0 %v1085
    %1149 = vmatpush1.bf16.msra.mxu0 %v1084
    %1150 = vmatprep.subr.bf16.mxu0 %v1087
    %1151 = vmatpush1.bf16.msra.mxu0 %v1086
    %1152 = vmatprep.subr.bf16.mxu0 %v1089
    %1153 = vmatpush1.bf16.msra.mxu0 %v1088
    %1154 = vmatprep.subr.bf16.mxu0 %v1091
    %1155 = vmatpush1.bf16.msra.mxu0 %v1090
    %1156 = vmatprep.subr.bf16.mxu0 %v1093
    %1157 = vmatpush1.bf16.msra.mxu0 %v1092
    %1158 = vmatprep.subr.bf16.mxu0 %v1095
    %1159 = vmatpush1.bf16.msra.mxu0 %v1094
    %1160 = vmatprep.subr.bf16.mxu0 %v1097
    %1161 = vmatpush1.bf16.msra.mxu0 %v1096
    %1162 = vmatprep.subr.bf16.mxu0 %v1099
    %1163 = vmatpush1.bf16.msra.mxu0 %v1098
    %1164 = vmatprep.subr.bf16.mxu0 %v1101
    %1165 = vmatpush1.bf16.msra.mxu0 %v1100
    %1166 = vmatprep.subr.bf16.mxu0 %v1103
    %1167 = vmatpush1.bf16.msra.mxu0 %v1102
    %1168 = vmatprep.subr.bf16.mxu0 %v1105
    %1169 = vmatpush1.bf16.msra.mxu0 %v1104
    %1170 = vmatprep.subr.bf16.mxu0 %v1107
    %1171 = vmatpush1.bf16.msra.mxu0 %v1106
    %1172 = vmatprep.subr.bf16.mxu0 %v1109
    %1173 = vmatpush1.bf16.msra.mxu0 %v1108
    %1174 = vmatprep.mubr.bf16.mxu0 %v953
    %1175 = vmatmul.mubr.bf16.gmra.mrb[0].mxu0 %v941
    %v1176 = vpop.f32.mrb[0].mxu0
    %v1177 = vadd.f32 0.0, %v1176
    %v1178 = vpop.f32.mrb[0].mxu0
    %v1179 = vadd.f32 0.0, %v1178
    %v1180 = vpop.f32.mrb[0].mxu0
    %v1181 = vadd.f32 0.0, %v1180
    %v1182 = vpop.f32.mrb[0].mxu0
    %v1183 = vadd.f32 0.0, %v1182
    %1184 = vmatprep.mubr.bf16.mxu0 %v969
    %1185 = vmatmul.mubr.bf16.gmra.mrb[0].mxu0 %v961
    %v1186 = vpop.f32.mrb[0].mxu0
    %v1187 = vadd.f32 0.0, %v1186
    %v1188 = vpop.f32.mrb[0].mxu0
    %v1189 = vadd.f32 0.0, %v1188
    %v1190 = vpop.f32.mrb[0].mxu0
    %v1191 = vadd.f32 0.0, %v1190
    %v1192 = vpop.f32.mrb[0].mxu0
    %v1193 = vadd.f32 0.0, %v1192
    %1194 = vmatprep.mubr.bf16.mxu0 %v975
    %1195 = vmatmul.mubr.bf16.gmra.mrb[0].mxu0 %v972
    %v1196 = vpop.f32.mrb[0].mxu0
    %v1197 = vadd.f32 0.0, %v1196
    %v1198 = vpop.f32.mrb[0].mxu0
    %v1199 = vadd.f32 0.0, %v1198
    %v1200 = vpop.f32.mrb[0].mxu0
    %v1201 = vpop.f32.mrb[0].mxu0
    %1202 = vdwg.mxu0
    %v1204 = vunpack.c.l.b16 %v842
    %v1205 = vunpack.c.h.b16 %v842
    %v1206 = vpack.c.b16 %v1204, %v1204
    %v1207 = vpack.c.b16 %v1205, %v1205
    %v1246 = vunpack.c.l.b16 %v843
    %v1247 = vunpack.c.h.b16 %v843
    %v1248 = vunpack.c.l.b16 %v844
    %v1249 = vunpack.c.h.b16 %v844
    %v1250 = vunpack.c.l.b16 %v845
    %v1251 = vunpack.c.h.b16 %v845
    %v1252 = vunpack.c.l.b16 %v846
    %v1253 = vunpack.c.h.b16 %v846
    %v1254 = vunpack.c.l.b16 %v847
    %v1255 = vunpack.c.h.b16 %v847
    %v1256 = vunpack.c.l.b16 %v848
    %v1257 = vunpack.c.h.b16 %v848
    %v1258 = vunpack.c.l.b16 %v849
    %v1259 = vunpack.c.h.b16 %v849
    %v1260 = vunpack.c.l.b16 %v850
    %v1261 = vunpack.c.h.b16 %v850
    %v1262 = vunpack.c.l.b16 %v851
    %v1263 = vunpack.c.h.b16 %v851
    %v1264 = vunpack.c.l.b16 %v852
    %v1265 = vunpack.c.h.b16 %v852
    %v1266 = vunpack.c.l.b16 %v853
    %v1267 = vunpack.c.h.b16 %v853
    %v1268 = vunpack.c.l.b16 %v854
    %v1269 = vunpack.c.h.b16 %v854
    %v1270 = vunpack.c.l.b16 %v855
    %v1271 = vunpack.c.h.b16 %v855
    %v1272 = vunpack.c.l.b16 %v856
    %v1273 = vunpack.c.h.b16 %v856
    %v1274 = vunpack.c.l.b16 %v857
    %v1275 = vunpack.c.h.b16 %v857
    %v1276 = vunpack.c.l.b16 %v858
    %v1277 = vunpack.c.h.b16 %v858
    %v1278 = vunpack.c.l.b16 %v859
    %v1279 = vunpack.c.h.b16 %v859
    %v1280 = vunpack.c.l.b16 %v860
    %v1281 = vunpack.c.h.b16 %v860
    %v1282 = vunpack.c.l.b16 %v861
    %v1283 = vunpack.c.h.b16 %v861
    %v1284 = vunpack.c.l.b16 %v862
    %v1285 = vunpack.c.h.b16 %v862
    %v1286 = vunpack.c.l.b16 %v863
    %v1287 = vunpack.c.h.b16 %v863
    %v1288 = vunpack.c.l.b16 %v864
    %v1289 = vunpack.c.h.b16 %v864
    %v1290 = vunpack.c.l.b16 %v865
    %v1291 = vunpack.c.h.b16 %v865
    %v1292 = vunpack.c.l.b16 %v866
    %v1293 = vunpack.c.h.b16 %v866
    %v1294 = vunpack.c.l.b16 %v867
    %v1295 = vunpack.c.h.b16 %v867
    %v1296 = vunpack.c.l.b16 %v868
    %v1297 = vunpack.c.h.b16 %v868
    %v1298 = vunpack.c.l.b16 %v869
    %v1299 = vunpack.c.h.b16 %v869
    %v1300 = vunpack.c.l.b16 %v870
    %v1301 = vunpack.c.h.b16 %v870
    %v1302 = vunpack.c.l.b16 %v871
    %v1303 = vunpack.c.h.b16 %v871
    %v1304 = vunpack.c.l.b16 %v872
    %v1305 = vunpack.c.h.b16 %v872
    %v1306 = vunpack.c.l.b16 %v873
    %v1307 = vunpack.c.h.b16 %v873
    %v1308 = vunpack.c.l.b16 %v874
    %v1309 = vunpack.c.h.b16 %v874
    %v1310 = vpack.c.b16 %v1248, %v1246
    %v1311 = vpack.c.b16 %v1249, %v1247
    %v1312 = vpack.c.b16 %v1252, %v1250
    %v1313 = vpack.c.b16 %v1253, %v1251
    %v1314 = vpack.c.b16 %v1256, %v1254
    %v1315 = vpack.c.b16 %v1257, %v1255
    %v1316 = vpack.c.b16 %v1260, %v1258
    %v1317 = vpack.c.b16 %v1261, %v1259
    %v1318 = vpack.c.b16 %v1264, %v1262
    %v1319 = vpack.c.b16 %v1265, %v1263
    %v1320 = vpack.c.b16 %v1268, %v1266
    %v1321 = vpack.c.b16 %v1269, %v1267
    %v1322 = vpack.c.b16 %v1272, %v1270
    %v1323 = vpack.c.b16 %v1273, %v1271
    %v1324 = vpack.c.b16 %v1276, %v1274
    %v1325 = vpack.c.b16 %v1277, %v1275
    %v1326 = vpack.c.b16 %v1280, %v1278
    %v1327 = vpack.c.b16 %v1281, %v1279
    %v1328 = vpack.c.b16 %v1284, %v1282
    %v1329 = vpack.c.b16 %v1285, %v1283
    %v1330 = vpack.c.b16 %v1288, %v1286
    %v1331 = vpack.c.b16 %v1289, %v1287
    %v1332 = vpack.c.b16 %v1292, %v1290
    %v1333 = vpack.c.b16 %v1293, %v1291
    %v1334 = vpack.c.b16 %v1296, %v1294
    %v1335 = vpack.c.b16 %v1297, %v1295
    %v1336 = vpack.c.b16 %v1300, %v1298
    %v1337 = vpack.c.b16 %v1301, %v1299
    %v1338 = vpack.c.b16 %v1304, %v1302
    %v1339 = vpack.c.b16 %v1305, %v1303
    %v1340 = vpack.c.b16 %v1308, %v1306
    %v1341 = vpack.c.b16 %v1309, %v1307
    %1374 = vmatprep.subr.bf16.mxu0 %v1311
    %1375 = vmatpush1.bf16.msra.mxu0 %v1310
    %1376 = vmatprep.subr.bf16.mxu0 %v1313
    %1377 = vmatpush1.bf16.msra.mxu0 %v1312
    %1378 = vmatprep.subr.bf16.mxu0 %v1315
    %1379 = vmatpush1.bf16.msra.mxu0 %v1314
    %1380 = vmatprep.subr.bf16.mxu0 %v1317
    %1381 = vmatpush1.bf16.msra.mxu0 %v1316
    %1382 = vmatprep.subr.bf16.mxu0 %v1319
    %1383 = vmatpush1.bf16.msra.mxu0 %v1318
    %1384 = vmatprep.subr.bf16.mxu0 %v1321
    %1385 = vmatpush1.bf16.msra.mxu0 %v1320
    %1386 = vmatprep.subr.bf16.mxu0 %v1323
    %1387 = vmatpush1.bf16.msra.mxu0 %v1322
    %1388 = vmatprep.subr.bf16.mxu0 %v1325
    %1389 = vmatpush1.bf16.msra.mxu0 %v1324
    %1390 = vmatprep.subr.bf16.mxu0 %v1327
    %1391 = vmatpush1.bf16.msra.mxu0 %v1326
    %1392 = vmatprep.subr.bf16.mxu0 %v1329
    %1393 = vmatpush1.bf16.msra.mxu0 %v1328
    %1394 = vmatprep.subr.bf16.mxu0 %v1331
    %1395 = vmatpush1.bf16.msra.mxu0 %v1330
    %1396 = vmatprep.subr.bf16.mxu0 %v1333
    %1397 = vmatpush1.bf16.msra.mxu0 %v1332
    %1398 = vmatprep.subr.bf16.mxu0 %v1335
    %1399 = vmatpush1.bf16.msra.mxu0 %v1334
    %1400 = vmatprep.subr.bf16.mxu0 %v1337
    %1401 = vmatpush1.bf16.msra.mxu0 %v1336
    %1402 = vmatprep.subr.bf16.mxu0 %v1339
    %1403 = vmatpush1.bf16.msra.mxu0 %v1338
    %1404 = vmatprep.subr.bf16.mxu0 %v1341
    %1405 = vmatpush1.bf16.msra.mxu0 %v1340
    %1406 = vmatprep.mubr.bf16.mxu0 %v925
    %1407 = vmatmul.mubr.bf16.gmra.mrb[0].mxu0 %v924
    %v1408 = vpop.f32.mrb[0].mxu0
    %v1409 = vadd.f32 %v1177, %v1408
    %v1410 = vpop.f32.mrb[0].mxu0
    %v1411 = vadd.f32 %v1179, %v1410
    %v1412 = vpop.f32.mrb[0].mxu0
    %v1413 = vadd.f32 %v1181, %v1412
    %v1414 = vpop.f32.mrb[0].mxu0
    %v1415 = vadd.f32 %v1183, %v1414
    %1416 = vmatprep.mubr.bf16.mxu0 %v927
    %1417 = vmatmul.mubr.bf16.gmra.mrb[0].mxu0 %v926
    %v1418 = vpop.f32.mrb[0].mxu0
    %v1419 = vadd.f32 %v1187, %v1418
    %v1420 = vpop.f32.mrb[0].mxu0
    %v1421 = vadd.f32 %v1189, %v1420
    %v1422 = vpop.f32.mrb[0].mxu0
    %v1423 = vadd.f32 %v1191, %v1422
    %v1424 = vpop.f32.mrb[0].mxu0
    %v1425 = vadd.f32 %v1193, %v1424
    %1426 = vmatprep.mubr.bf16.mxu0 %v1207
    %1427 = vmatmul.mubr.bf16.gmra.mrb[0].mxu0 %v1206
    %v1428 = vpop.f32.mrb[0].mxu0
    %v1429 = vadd.f32 %v1197, %v1428
    %v1430 = vpop.f32.mrb[0].mxu0
    %v1431 = vadd.f32 %v1199, %v1430
    %v1432 = vpop.f32.mrb[0].mxu0
    %v1433 = vpop.f32.mrb[0].mxu0
    %1434 = vdwg.mxu0
    %v1435 = vld [vmem:[#allocation3] sm:$0xee]
    %s1436 = scalar_lea.vmem %s3, 512
    %v1437 = vld [vmem:[%s1436] sm:$0xff]
    %v1438 = vld [vmem:[%s1436 + $0x8] sm:$0xff]
    %v1439 = vld [vmem:[%s1436 + $0x10] sm:$0xff]
    %v1440 = vld [vmem:[%s1436 + $0x18] sm:$0xff]
    %v1441 = vld [vmem:[%s1436 + $0x20] sm:$0xff]
    %v1442 = vld [vmem:[%s1436 + $0x28] sm:$0xff]
    %v1443 = vld [vmem:[%s1436 + $0x30] sm:$0xff]
    %v1444 = vld [vmem:[%s1436 + $0x38] sm:$0xff]
    %v1445 = vld [vmem:[%s1436 + $0x40] sm:$0xff]
    %v1446 = vld [vmem:[%s1436 + $0x48] sm:$0xff]
    %v1447 = vld [vmem:[%s1436 + $0x50] sm:$0xff]
    %v1448 = vld [vmem:[%s1436 + $0x58] sm:$0xff]
    %v1449 = vld [vmem:[%s1436 + $0x60] sm:$0xff]
    %v1450 = vld [vmem:[%s1436 + $0x68] sm:$0xff]
    %v1451 = vld [vmem:[%s1436 + $0x70] sm:$0xff]
    %v1452 = vld [vmem:[%s1436 + $0x78] sm:$0xff]
    %v1453 = vld [vmem:[%s1436 + $0x80] sm:$0xff]
    %v1454 = vld [vmem:[%s1436 + $0x88] sm:$0xff]
    %v1455 = vld [vmem:[%s1436 + $0x90] sm:$0xff]
    %v1456 = vld [vmem:[%s1436 + $0x98] sm:$0xff]
    %v1457 = vld [vmem:[%s1436 + $0xa0] sm:$0xff]
    %v1458 = vld [vmem:[%s1436 + $0xa8] sm:$0xff]
    %v1459 = vld [vmem:[%s1436 + $0xb0] sm:$0xff]
    %v1460 = vld [vmem:[%s1436 + $0xb8] sm:$0xff]
    %v1461 = vld [vmem:[%s1436 + $0xc0] sm:$0xff]
    %v1462 = vld [vmem:[%s1436 + $0xc8] sm:$0xff]
    %v1463 = vld [vmem:[%s1436 + $0xd0] sm:$0xff]
    %v1464 = vld [vmem:[%s1436 + $0xd8] sm:$0xff]
    %v1465 = vld [vmem:[%s1436 + $0xe0] sm:$0xff]
    %v1466 = vld [vmem:[%s1436 + $0xe8] sm:$0xff]
    %v1467 = vld [vmem:[%s1436 + $0xf0] sm:$0xff]
    %v1468 = vld [vmem:[%s1436 + $0xf8] sm:$0xff]
    %v1470 = vunpack.c.l.b16 %v1435
    %v1471 = vunpack.c.h.b16 %v1435
    %v1472 = vpack.c.b16 %v916, %v1470
    %v1473 = vpack.c.b16 %v917, %v1471
    %v1474 = vrot.slane %v1472, 1
    %v1475 = vrot.slane %v926, 1
    %v1476 = vsel %vm521, %v1474, %v1475
    %v1477 = vrot.slane %v1473, 1
    %v1478 = vrot.slane %v927, 1
    %v1479 = vsel %vm521, %v1477, %v1478
    %v1480 = vrot.slane %v928, 1
    %v1481 = vsel %vm521, %v1475, %v1480
    %v1482 = vrot.slane %v929, 1
    %v1483 = vsel %vm521, %v1478, %v1482
    %v1522 = vunpack.c.l.b16 %v1437
    %v1523 = vunpack.c.h.b16 %v1437
    %v1524 = vunpack.c.l.b16 %v1438
    %v1525 = vunpack.c.h.b16 %v1438
    %v1526 = vunpack.c.l.b16 %v1439
    %v1527 = vunpack.c.h.b16 %v1439
    %v1528 = vunpack.c.l.b16 %v1440
    %v1529 = vunpack.c.h.b16 %v1440
    %v1530 = vunpack.c.l.b16 %v1441
    %v1531 = vunpack.c.h.b16 %v1441
    %v1532 = vunpack.c.l.b16 %v1442
    %v1533 = vunpack.c.h.b16 %v1442
    %v1534 = vunpack.c.l.b16 %v1443
    %v1535 = vunpack.c.h.b16 %v1443
    %v1536 = vunpack.c.l.b16 %v1444
    %v1537 = vunpack.c.h.b16 %v1444
    %v1538 = vunpack.c.l.b16 %v1445
    %v1539 = vunpack.c.h.b16 %v1445
    %v1540 = vunpack.c.l.b16 %v1446
    %v1541 = vunpack.c.h.b16 %v1446
    %v1542 = vunpack.c.l.b16 %v1447
    %v1543 = vunpack.c.h.b16 %v1447
    %v1544 = vunpack.c.l.b16 %v1448
    %v1545 = vunpack.c.h.b16 %v1448
    %v1546 = vunpack.c.l.b16 %v1449
    %v1547 = vunpack.c.h.b16 %v1449
    %v1548 = vunpack.c.l.b16 %v1450
    %v1549 = vunpack.c.h.b16 %v1450
    %v1550 = vunpack.c.l.b16 %v1451
    %v1551 = vunpack.c.h.b16 %v1451
    %v1552 = vunpack.c.l.b16 %v1452
    %v1553 = vunpack.c.h.b16 %v1452
    %v1554 = vunpack.c.l.b16 %v1453
    %v1555 = vunpack.c.h.b16 %v1453
    %v1556 = vunpack.c.l.b16 %v1454
    %v1557 = vunpack.c.h.b16 %v1454
    %v1558 = vunpack.c.l.b16 %v1455
    %v1559 = vunpack.c.h.b16 %v1455
    %v1560 = vunpack.c.l.b16 %v1456
    %v1561 = vunpack.c.h.b16 %v1456
    %v1562 = vunpack.c.l.b16 %v1457
    %v1563 = vunpack.c.h.b16 %v1457
    %v1564 = vunpack.c.l.b16 %v1458
    %v1565 = vunpack.c.h.b16 %v1458
    %v1566 = vunpack.c.l.b16 %v1459
    %v1567 = vunpack.c.h.b16 %v1459
    %v1568 = vunpack.c.l.b16 %v1460
    %v1569 = vunpack.c.h.b16 %v1460
    %v1570 = vunpack.c.l.b16 %v1461
    %v1571 = vunpack.c.h.b16 %v1461
    %v1572 = vunpack.c.l.b16 %v1462
    %v1573 = vunpack.c.h.b16 %v1462
    %v1574 = vunpack.c.l.b16 %v1463
    %v1575 = vunpack.c.h.b16 %v1463
    %v1576 = vunpack.c.l.b16 %v1464
    %v1577 = vunpack.c.h.b16 %v1464
    %v1578 = vunpack.c.l.b16 %v1465
    %v1579 = vunpack.c.h.b16 %v1465
    %v1580 = vunpack.c.l.b16 %v1466
    %v1581 = vunpack.c.h.b16 %v1466
    %v1582 = vunpack.c.l.b16 %v1467
    %v1583 = vunpack.c.h.b16 %v1467
    %v1584 = vunpack.c.l.b16 %v1468
    %v1585 = vunpack.c.h.b16 %v1468
    %v1586 = vpack.c.b16 %v1524, %v1522
    %v1587 = vpack.c.b16 %v1525, %v1523
    %v1588 = vpack.c.b16 %v1528, %v1526
    %v1589 = vpack.c.b16 %v1529, %v1527
    %v1590 = vpack.c.b16 %v1532, %v1530
    %v1591 = vpack.c.b16 %v1533, %v1531
    %v1592 = vpack.c.b16 %v1536, %v1534
    %v1593 = vpack.c.b16 %v1537, %v1535
    %v1594 = vpack.c.b16 %v1540, %v1538
    %v1595 = vpack.c.b16 %v1541, %v1539
    %v1596 = vpack.c.b16 %v1544, %v1542
    %v1597 = vpack.c.b16 %v1545, %v1543
    %v1598 = vpack.c.b16 %v1548, %v1546
    %v1599 = vpack.c.b16 %v1549, %v1547
    %v1600 = vpack.c.b16 %v1552, %v1550
    %v1601 = vpack.c.b16 %v1553, %v1551
    %v1602 = vpack.c.b16 %v1556, %v1554
    %v1603 = vpack.c.b16 %v1557, %v1555
    %v1604 = vpack.c.b16 %v1560, %v1558
    %v1605 = vpack.c.b16 %v1561, %v1559
    %v1606 = vpack.c.b16 %v1564, %v1562
    %v1607 = vpack.c.b16 %v1565, %v1563
    %v1608 = vpack.c.b16 %v1568, %v1566
    %v1609 = vpack.c.b16 %v1569, %v1567
    %v1610 = vpack.c.b16 %v1572, %v1570
    %v1611 = vpack.c.b16 %v1573, %v1571
    %v1612 = vpack.c.b16 %v1576, %v1574
    %v1613 = vpack.c.b16 %v1577, %v1575
    %v1614 = vpack.c.b16 %v1580, %v1578
    %v1615 = vpack.c.b16 %v1581, %v1579
    %v1616 = vpack.c.b16 %v1584, %v1582
    %v1617 = vpack.c.b16 %v1585, %v1583
    %1650 = vmatprep.subr.bf16.mxu0 %v1587
    %1651 = vmatpush1.bf16.msra.mxu0 %v1586
    %1652 = vmatprep.subr.bf16.mxu0 %v1589
    %1653 = vmatpush1.bf16.msra.mxu0 %v1588
    %1654 = vmatprep.subr.bf16.mxu0 %v1591
    %1655 = vmatpush1.bf16.msra.mxu0 %v1590
    %1656 = vmatprep.subr.bf16.mxu0 %v1593
    %1657 = vmatpush1.bf16.msra.mxu0 %v1592
    %1658 = vmatprep.subr.bf16.mxu0 %v1595
    %1659 = vmatpush1.bf16.msra.mxu0 %v1594
    %1660 = vmatprep.subr.bf16.mxu0 %v1597
    %1661 = vmatpush1.bf16.msra.mxu0 %v1596
    %1662 = vmatprep.subr.bf16.mxu0 %v1599
    %1663 = vmatpush1.bf16.msra.mxu0 %v1598
    %1664 = vmatprep.subr.bf16.mxu0 %v1601
    %1665 = vmatpush1.bf16.msra.mxu0 %v1600
    %1666 = vmatprep.subr.bf16.mxu0 %v1603
    %1667 = vmatpush1.bf16.msra.mxu0 %v1602
    %1668 = vmatprep.subr.bf16.mxu0 %v1605
    %1669 = vmatpush1.bf16.msra.mxu0 %v1604
    %1670 = vmatprep.subr.bf16.mxu0 %v1607
    %1671 = vmatpush1.bf16.msra.mxu0 %v1606
    %1672 = vmatprep.subr.bf16.mxu0 %v1609
    %1673 = vmatpush1.bf16.msra.mxu0 %v1608
    %1674 = vmatprep.subr.bf16.mxu0 %v1611
    %1675 = vmatpush1.bf16.msra.mxu0 %v1610
    %1676 = vmatprep.subr.bf16.mxu0 %v1613
    %1677 = vmatpush1.bf16.msra.mxu0 %v1612
    %1678 = vmatprep.subr.bf16.mxu0 %v1615
    %1679 = vmatpush1.bf16.msra.mxu0 %v1614
    %1680 = vmatprep.subr.bf16.mxu0 %v1617
    %1681 = vmatpush1.bf16.msra.mxu0 %v1616
    %1682 = vmatprep.mubr.bf16.mxu0 %v1479
    %1683 = vmatmul.mubr.bf16.gmra.mrb[0].mxu0 %v1476
    %v1684 = vpop.f32.mrb[0].mxu0
    %v1685 = vadd.f32 0.0, %v1684
    %v1686 = vpop.f32.mrb[0].mxu0
    %v1687 = vadd.f32 0.0, %v1686
    %v1688 = vpop.f32.mrb[0].mxu0
    %v1689 = vadd.f32 0.0, %v1688
    %v1690 = vpop.f32.mrb[0].mxu0
    %v1691 = vadd.f32 0.0, %v1690
    %1692 = vmatprep.mubr.bf16.mxu0 %v1483
    %1693 = vmatmul.mubr.bf16.gmra.mrb[0].mxu0 %v1481
    %v1694 = vpop.f32.mrb[0].mxu0
    %v1695 = vadd.f32 0.0, %v1694
    %v1696 = vpop.f32.mrb[0].mxu0
    %v1697 = vadd.f32 0.0, %v1696
    %v1698 = vpop.f32.mrb[0].mxu0
    %v1699 = vadd.f32 0.0, %v1698
    %v1700 = vpop.f32.mrb[0].mxu0
    %v1701 = vadd.f32 0.0, %v1700
    %1702 = vmatprep.mubr.bf16.mxu0 %v1482
    %1703 = vmatmul.mubr.bf16.gmra.mrb[0].mxu0 %v1480
    %v1704 = vpop.f32.mrb[0].mxu0
    %v1705 = vadd.f32 0.0, %v1704
    %v1706 = vpop.f32.mrb[0].mxu0
    %v1707 = vadd.f32 0.0, %v1706
    %v1708 = vpop.f32.mrb[0].mxu0
    %v1709 = vpop.f32.mrb[0].mxu0
    %1710 = vdwg.mxu0
    %v1711 = vadd.f32 %v1409, %v1685
    %v1712 = vadd.f32 %v1411, %v1687
    %v1713 = vadd.f32 %v1413, %v1689
    %v1714 = vadd.f32 %v1415, %v1691
    %v1715 = vadd.f32 %v1419, %v1695
    %v1716 = vadd.f32 %v1421, %v1697
    %v1717 = vadd.f32 %v1423, %v1699
    %v1718 = vadd.f32 %v1425, %v1701
    %v1719 = vadd.f32 %v1429, %v1705
    %v1720 = vadd.f32 %v1431, %v1707
    %v1722 = vlaneseq
    %v1723 = vshrl.u32 %v1722, 7
    %v1724 = vsub.s32 0, %v1723
    %v1725 = vrot.slane %v837, %v1724
    %v1726 = vlaneseq
    %v1727 = vshrl.u32 %v1726, 7
    %v1728 = vsub.s32 1, %v1727
    %v1729 = vrot.slane %v837, %v1728
    %v1732 = vadd.f32 %v1711, %v1725
    %v1733 = vadd.f32 %v1712, %v1729
    %v1734 = vadd.f32 %v1713, %v1725
    %v1735 = vadd.f32 %v1714, %v1729
    %v1736 = vadd.f32 %v1715, %v1725
    %v1737 = vadd.f32 %v1716, %v1729
    %v1738 = vadd.f32 %v1717, %v1725
    %v1739 = vadd.f32 %v1718, %v1729
    %v1740 = vadd.f32 %v1719, %v1725
    %v1741 = vadd.f32 %v1720, %v1729
    %s1742 = sld [smem:[#allocation4]]
    %vm1743 = vcmp.ge.f32.partialorder %v1732, 0.0
    %vm1744 = vcmp.ge.f32.partialorder %v1733, 0.0
    %vm1745 = vcmp.ge.f32.partialorder %v1734, 0.0
    %vm1746 = vcmp.ge.f32.partialorder %v1735, 0.0
    %vm1747 = vcmp.ge.f32.partialorder %v1736, 0.0
    %vm1748 = vcmp.ge.f32.partialorder %v1737, 0.0
    %vm1749 = vcmp.ge.f32.partialorder %v1738, 0.0
    %vm1750 = vcmp.ge.f32.partialorder %v1739, 0.0
    %vm1751 = vcmp.ge.f32.partialorder %v1740, 0.0
    %vm1752 = vcmp.ge.f32.partialorder %v1741, 0.0
    %v1753 = vstv %s1742
    %v1754 = vmul.f32 %v1753, %v1732
    %v1755 = vmul.f32 %v1753, %v1733
    %v1756 = vmul.f32 %v1753, %v1734
    %v1757 = vmul.f32 %v1753, %v1735
    %v1758 = vmul.f32 %v1753, %v1736
    %v1759 = vmul.f32 %v1753, %v1737
    %v1760 = vmul.f32 %v1753, %v1738
    %v1761 = vmul.f32 %v1753, %v1739
    %v1762 = vmul.f32 %v1753, %v1740
    %v1763 = vmul.f32 %v1753, %v1741
    %v1764 = vsel %vm1743, %v1732, %v1754
    %v1765 = vsel %vm1744, %v1733, %v1755
    %v1766 = vsel %vm1745, %v1734, %v1756
    %v1767 = vsel %vm1746, %v1735, %v1757
    %v1768 = vsel %vm1747, %v1736, %v1758
    %v1769 = vsel %vm1748, %v1737, %v1759
    %v1770 = vsel %vm1749, %v1738, %v1760
    %v1771 = vsel %vm1750, %v1739, %v1761
    %v1772 = vsel %vm1751, %v1740, %v1762
    %v1773 = vsel %vm1752, %v1741, %v1763
    %v1774 = vmul.f32 %v1764, %v705
    %v1775 = vmul.f32 %v1765, %v705
    %v1776 = vmul.f32 %v1766, %v710
    %v1777 = vmul.f32 %v1767, %v710
    %v1778 = vmul.f32 %v1768, %v715
    %v1779 = vmul.f32 %v1769, %v715
    %v1780 = vmul.f32 %v1770, %v720
    %v1781 = vmul.f32 %v1771, %v720
    %v1782 = vmul.f32 %v1772, %v725
    %v1783 = vmul.f32 %v1773, %v725
    %v1784 = vpack.c.bf16 %v1776, %v1774
    %v1785 = vpack.c.bf16 %v1777, %v1775
    %v1786 = vpack.c.bf16 %v1780, %v1778
    %v1787 = vpack.c.bf16 %v1781, %v1779
    %v1788 = vpack.c.bf16 %v1782, %v1782
    %v1789 = vpack.c.bf16 %v1783, %v1783
    %v1796 = vunpack.c.l.b16 %v1784
    %v1797 = vunpack.c.l.b16 %v1785
    %v1798 = vunpack.c.h.b16 %v1784
    %v1799 = vunpack.c.h.b16 %v1785
    %v1800 = vunpack.c.l.b16 %v1786
    %v1801 = vunpack.c.l.b16 %v1787
    %v1802 = vunpack.c.h.b16 %v1786
    %v1803 = vunpack.c.h.b16 %v1787
    %v1804 = vunpack.c.l.b16 %v1788
    %v1805 = vunpack.c.l.b16 %v1789
    %v1806 = vpack.c.b16 %v1797, %v1796
    %v1807 = vpack.c.b16 %v1799, %v1798
    %v1808 = vpack.c.b16 %v1801, %v1800
    %v1809 = vpack.c.b16 %v1803, %v1802
    %v1810 = vpack.c.b16 %v1805, %v1804
    %v1812 = vshrl.u32 %v1806, 16
    %v1814 = vrot.slane %v1812, 7
    %v1815 = vshll.u32 %v1806, 16
    %v1817 = vor.u32 %v1814, %v1815
    %v1818 = vrot.slane %v1814, 4
    %v1820 = vshrl.u32 %v1807, 16
    %v1822 = vrot.slane %v1820, 7
    %v1823 = vshll.u32 %v1807, 16
    %v1825 = vor.u32 %v1822, %v1823
    %v1826 = vsel %vm765, %v1818, %v1825
    %v1827 = vrot.slane %v1822, 4
    %v1829 = vshrl.u32 %v1808, 16
    %v1831 = vrot.slane %v1829, 7
    %v1832 = vshll.u32 %v1808, 16
    %v1834 = vor.u32 %v1831, %v1832
    %v1835 = vsel %vm765, %v1827, %v1834
    %v1836 = vrot.slane %v1831, 4
    %v1838 = vshrl.u32 %v1809, 16
    %v1840 = vrot.slane %v1838, 7
    %v1841 = vshll.u32 %v1809, 16
    %v1843 = vor.u32 %v1840, %v1841
    %v1844 = vsel %vm765, %v1836, %v1843
    %v1845 = vrot.slane %v1840, 4
    %v1847 = vshrl.u32 %v1810, 16
    %v1849 = vrot.slane %v1847, 7
    %v1850 = vshll.u32 %v1810, 16
    %v1852 = vor.u32 %v1849, %v1850
    %v1853 = vsel %vm765, %v1845, %v1852
    %v1859 = vsel %vm820, %v1817, %v838
    %1860 = vst [vmem:[#allocation3] sm:$0xff] %v1859
    %1861 = vst [vmem:[#allocation3 + $0x8] sm:$0xff] %v1826
    %1862 = vst [vmem:[#allocation3 + $0x10] sm:$0xff] %v1835
    %1863 = vst [vmem:[#allocation3 + $0x18] sm:$0xff] %v1844
    %v1864 = vld [vmem:[#allocation3 + $0x20] sm:$0x77]
    %v1865 = vsel %vm833, %v1853, %v1864
    %1866 = vst [vmem:[#allocation3 + $0x20] sm:$0x77] %v1865
    %s1867 = scalar_lea.vmem %s4, 2
    %v1868 = vld [vmem:[%s1867] sm:$0x3]
    %v1869 = vld [vmem:[#allocation3] sm:$0xff]
    %v1870 = vld [vmem:[#allocation3 + $0x8] sm:$0xff]
    %v1871 = vld [vmem:[#allocation3 + $0x10] sm:$0xff]
    %v1872 = vld [vmem:[#allocation3 + $0x18] sm:$0xff]
    %v1873 = vld [vmem:[#allocation3 + $0x20] sm:$0x33]
    %s1874 = scalar_lea.vmem %s3, 768
    %v1875 = vld [vmem:[%s1874] sm:$0xff]
    %v1876 = vld [vmem:[%s1874 + $0x8] sm:$0xff]
    %v1877 = vld [vmem:[%s1874 + $0x10] sm:$0xff]
    %v1878 = vld [vmem:[%s1874 + $0x18] sm:$0xff]
    %v1879 = vld [vmem:[%s1874 + $0x20] sm:$0xff]
    %v1880 = vld [vmem:[%s1874 + $0x28] sm:$0xff]
    %v1881 = vld [vmem:[%s1874 + $0x30] sm:$0xff]
    %v1882 = vld [vmem:[%s1874 + $0x38] sm:$0xff]
    %v1883 = vld [vmem:[%s1874 + $0x40] sm:$0xff]
    %v1884 = vld [vmem:[%s1874 + $0x48] sm:$0xff]
    %v1885 = vld [vmem:[%s1874 + $0x50] sm:$0xff]
    %v1886 = vld [vmem:[%s1874 + $0x58] sm:$0xff]
    %v1887 = vld [vmem:[%s1874 + $0x60] sm:$0xff]
    %v1888 = vld [vmem:[%s1874 + $0x68] sm:$0xff]
    %v1889 = vld [vmem:[%s1874 + $0x70] sm:$0xff]
    %v1890 = vld [vmem:[%s1874 + $0x78] sm:$0xff]
    %v1891 = vld [vmem:[%s1874 + $0x80] sm:$0xff]
    %v1892 = vld [vmem:[%s1874 + $0x88] sm:$0xff]
    %v1893 = vld [vmem:[%s1874 + $0x90] sm:$0xff]
    %v1894 = vld [vmem:[%s1874 + $0x98] sm:$0xff]
    %v1895 = vld [vmem:[%s1874 + $0xa0] sm:$0xff]
    %v1896 = vld [vmem:[%s1874 + $0xa8] sm:$0xff]
    %v1897 = vld [vmem:[%s1874 + $0xb0] sm:$0xff]
    %v1898 = vld [vmem:[%s1874 + $0xb8] sm:$0xff]
    %v1899 = vld [vmem:[%s1874 + $0xc0] sm:$0xff]
    %v1900 = vld [vmem:[%s1874 + $0xc8] sm:$0xff]
    %v1901 = vld [vmem:[%s1874 + $0xd0] sm:$0xff]
    %v1902 = vld [vmem:[%s1874 + $0xd8] sm:$0xff]
    %v1903 = vld [vmem:[%s1874 + $0xe0] sm:$0xff]
    %v1904 = vld [vmem:[%s1874 + $0xe8] sm:$0xff]
    %v1905 = vld [vmem:[%s1874 + $0xf0] sm:$0xff]
    %v1906 = vld [vmem:[%s1874 + $0xf8] sm:$0xff]
    %v1907 = vld [vmem:[#allocation3 + $0x20] sm:$0x77]
    %s1908 = scalar_lea.vmem %s3, 1024
    %v1909 = vld [vmem:[%s1908] sm:$0xff]
    %v1910 = vld [vmem:[%s1908 + $0x8] sm:$0xff]
    %v1911 = vld [vmem:[%s1908 + $0x10] sm:$0xff]
    %v1912 = vld [vmem:[%s1908 + $0x18] sm:$0xff]
    %v1913 = vld [vmem:[%s1908 + $0x20] sm:$0xff]
    %v1914 = vld [vmem:[%s1908 + $0x28] sm:$0xff]
    %v1915 = vld [vmem:[%s1908 + $0x30] sm:$0xff]
    %v1916 = vld [vmem:[%s1908 + $0x38] sm:$0xff]
    %v1917 = vld [vmem:[%s1908 + $0x40] sm:$0xff]
    %v1918 = vld [vmem:[%s1908 + $0x48] sm:$0xff]
    %v1919 = vld [vmem:[%s1908 + $0x50] sm:$0xff]
    %v1920 = vld [vmem:[%s1908 + $0x58] sm:$0xff]
    %v1921 = vld [vmem:[%s1908 + $0x60] sm:$0xff]
    %v1922 = vld [vmem:[%s1908 + $0x68] sm:$0xff]
    %v1923 = vld [vmem:[%s1908 + $0x70] sm:$0xff]
    %v1924 = vld [vmem:[%s1908 + $0x78] sm:$0xff]
    %v1925 = vld [vmem:[%s1908 + $0x80] sm:$0xff]
    %v1926 = vld [vmem:[%s1908 + $0x88] sm:$0xff]
    %v1927 = vld [vmem:[%s1908 + $0x90] sm:$0xff]
    %v1928 = vld [vmem:[%s1908 + $0x98] sm:$0xff]
    %v1929 = vld [vmem:[%s1908 + $0xa0] sm:$0xff]
    %v1930 = vld [vmem:[%s1908 + $0xa8] sm:$0xff]
    %v1931 = vld [vmem:[%s1908 + $0xb0] sm:$0xff]
    %v1932 = vld [vmem:[%s1908 + $0xb8] sm:$0xff]
    %v1933 = vld [vmem:[%s1908 + $0xc0] sm:$0xff]
    %v1934 = vld [vmem:[%s1908 + $0xc8] sm:$0xff]
    %v1935 = vld [vmem:[%s1908 + $0xd0] sm:$0xff]
    %v1936 = vld [vmem:[%s1908 + $0xd8] sm:$0xff]
    %v1937 = vld [vmem:[%s1908 + $0xe0] sm:$0xff]
    %v1938 = vld [vmem:[%s1908 + $0xe8] sm:$0xff]
    %v1939 = vld [vmem:[%s1908 + $0xf0] sm:$0xff]
    %v1940 = vld [vmem:[%s1908 + $0xf8] sm:$0xff]
    %v1946 = vunpack.c.l.b16 %v1869
    %v1947 = vunpack.c.h.b16 %v1869
    %v1948 = vunpack.c.l.b16 %v1870
    %v1949 = vunpack.c.h.b16 %v1870
    %v1950 = vunpack.c.l.b16 %v1871
    %v1951 = vunpack.c.h.b16 %v1871
    %v1952 = vunpack.c.l.b16 %v1872
    %v1953 = vunpack.c.h.b16 %v1872
    %v1954 = vunpack.c.l.b16 %v1907
    %v1955 = vunpack.c.h.b16 %v1907
    %v1956 = vpack.c.b16 %v1948, %v1946
    %v1957 = vpack.c.b16 %v1949, %v1947
    %v1958 = vpack.c.b16 %v1952, %v1950
    %v1959 = vpack.c.b16 %v1953, %v1951
    %v1960 = vpack.c.b16 %v1954, %v1954
    %v1961 = vpack.c.b16 %v1955, %v1955
    %v1963 = vshrl.u32 %v1956, 16
    %v1965 = vshll.u32 %v1956, 16
    %v1967 = vrot.slane %v1965, 1
    %v1968 = vor.u32 %v1963, %v1967
    %v1970 = vshll.u32 %v1958, 16
    %v1972 = vrot.slane %v1970, 1
    %v1973 = vsel %vm185, %v1968, %v1972
    %v1975 = vshrl.u32 %v1957, 16
    %v1977 = vshll.u32 %v1957, 16
    %v1979 = vrot.slane %v1977, 1
    %v1980 = vor.u32 %v1975, %v1979
    %v1982 = vshll.u32 %v1959, 16
    %v1984 = vrot.slane %v1982, 1
    %v1985 = vsel %vm185, %v1980, %v1984
    %v1986 = vshrl.u32 %v1958, 16
    %v1988 = vor.u32 %v1986, %v1972
    %v1990 = vshll.u32 %v1960, 16
    %v1992 = vrot.slane %v1990, 1
    %v1993 = vsel %vm185, %v1988, %v1992
    %v1994 = vshrl.u32 %v1959, 16
    %v1996 = vor.u32 %v1994, %v1984
    %v1998 = vshll.u32 %v1961, 16
    %v2000 = vrot.slane %v1998, 1
    %v2001 = vsel %vm185, %v1996, %v2000
    %v2002 = vshrl.u32 %v1960, 16
    %v2004 = vor.u32 %v2002, %v1992
    %v2005 = vshrl.u32 %v1961, 16
    %v2007 = vor.u32 %v2005, %v2000
    %v2046 = vunpack.c.l.b16 %v1909
    %v2047 = vunpack.c.h.b16 %v1909
    %v2048 = vunpack.c.l.b16 %v1910
    %v2049 = vunpack.c.h.b16 %v1910
    %v2050 = vunpack.c.l.b16 %v1911
    %v2051 = vunpack.c.h.b16 %v1911
    %v2052 = vunpack.c.l.b16 %v1912
    %v2053 = vunpack.c.h.b16 %v1912
    %v2054 = vunpack.c.l.b16 %v1913
    %v2055 = vunpack.c.h.b16 %v1913
    %v2056 = vunpack.c.l.b16 %v1914
    %v2057 = vunpack.c.h.b16 %v1914
    %v2058 = vunpack.c.l.b16 %v1915
    %v2059 = vunpack.c.h.b16 %v1915
    %v2060 = vunpack.c.l.b16 %v1916
    %v2061 = vunpack.c.h.b16 %v1916
    %v2062 = vunpack.c.l.b16 %v1917
    %v2063 = vunpack.c.h.b16 %v1917
    %v2064 = vunpack.c.l.b16 %v1918
    %v2065 = vunpack.c.h.b16 %v1918
    %v2066 = vunpack.c.l.b16 %v1919
    %v2067 = vunpack.c.h.b16 %v1919
    %v2068 = vunpack.c.l.b16 %v1920
    %v2069 = vunpack.c.h.b16 %v1920
    %v2070 = vunpack.c.l.b16 %v1921
    %v2071 = vunpack.c.h.b16 %v1921
    %v2072 = vunpack.c.l.b16 %v1922
    %v2073 = vunpack.c.h.b16 %v1922
    %v2074 = vunpack.c.l.b16 %v1923
    %v2075 = vunpack.c.h.b16 %v1923
    %v2076 = vunpack.c.l.b16 %v1924
    %v2077 = vunpack.c.h.b16 %v1924
    %v2078 = vunpack.c.l.b16 %v1925
    %v2079 = vunpack.c.h.b16 %v1925
    %v2080 = vunpack.c.l.b16 %v1926
    %v2081 = vunpack.c.h.b16 %v1926
    %v2082 = vunpack.c.l.b16 %v1927
    %v2083 = vunpack.c.h.b16 %v1927
    %v2084 = vunpack.c.l.b16 %v1928
    %v2085 = vunpack.c.h.b16 %v1928
    %v2086 = vunpack.c.l.b16 %v1929
    %v2087 = vunpack.c.h.b16 %v1929
    %v2088 = vunpack.c.l.b16 %v1930
    %v2089 = vunpack.c.h.b16 %v1930
    %v2090 = vunpack.c.l.b16 %v1931
    %v2091 = vunpack.c.h.b16 %v1931
    %v2092 = vunpack.c.l.b16 %v1932
    %v2093 = vunpack.c.h.b16 %v1932
    %v2094 = vunpack.c.l.b16 %v1933
    %v2095 = vunpack.c.h.b16 %v1933
    %v2096 = vunpack.c.l.b16 %v1934
    %v2097 = vunpack.c.h.b16 %v1934
    %v2098 = vunpack.c.l.b16 %v1935
    %v2099 = vunpack.c.h.b16 %v1935
    %v2100 = vunpack.c.l.b16 %v1936
    %v2101 = vunpack.c.h.b16 %v1936
    %v2102 = vunpack.c.l.b16 %v1937
    %v2103 = vunpack.c.h.b16 %v1937
    %v2104 = vunpack.c.l.b16 %v1938
    %v2105 = vunpack.c.h.b16 %v1938
    %v2106 = vunpack.c.l.b16 %v1939
    %v2107 = vunpack.c.h.b16 %v1939
    %v2108 = vunpack.c.l.b16 %v1940
    %v2109 = vunpack.c.h.b16 %v1940
    %v2110 = vpack.c.b16 %v2048, %v2046
    %v2111 = vpack.c.b16 %v2049, %v2047
    %v2112 = vpack.c.b16 %v2052, %v2050
    %v2113 = vpack.c.b16 %v2053, %v2051
    %v2114 = vpack.c.b16 %v2056, %v2054
    %v2115 = vpack.c.b16 %v2057, %v2055
    %v2116 = vpack.c.b16 %v2060, %v2058
    %v2117 = vpack.c.b16 %v2061, %v2059
    %v2118 = vpack.c.b16 %v2064, %v2062
    %v2119 = vpack.c.b16 %v2065, %v2063
    %v2120 = vpack.c.b16 %v2068, %v2066
    %v2121 = vpack.c.b16 %v2069, %v2067
    %v2122 = vpack.c.b16 %v2072, %v2070
    %v2123 = vpack.c.b16 %v2073, %v2071
    %v2124 = vpack.c.b16 %v2076, %v2074
    %v2125 = vpack.c.b16 %v2077, %v2075
    %v2126 = vpack.c.b16 %v2080, %v2078
    %v2127 = vpack.c.b16 %v2081, %v2079
    %v2128 = vpack.c.b16 %v2084, %v2082
    %v2129 = vpack.c.b16 %v2085, %v2083
    %v2130 = vpack.c.b16 %v2088, %v2086
    %v2131 = vpack.c.b16 %v2089, %v2087
    %v2132 = vpack.c.b16 %v2092, %v2090
    %v2133 = vpack.c.b16 %v2093, %v2091
    %v2134 = vpack.c.b16 %v2096, %v2094
    %v2135 = vpack.c.b16 %v2097, %v2095
    %v2136 = vpack.c.b16 %v2100, %v2098
    %v2137 = vpack.c.b16 %v2101, %v2099
    %v2138 = vpack.c.b16 %v2104, %v2102
    %v2139 = vpack.c.b16 %v2105, %v2103
    %v2140 = vpack.c.b16 %v2108, %v2106
    %v2141 = vpack.c.b16 %v2109, %v2107
    %2174 = vmatprep.subr.bf16.mxu0 %v2111
    %2175 = vmatpush1.bf16.msra.mxu0 %v2110
    %2176 = vmatprep.subr.bf16.mxu0 %v2113
    %2177 = vmatpush1.bf16.msra.mxu0 %v2112
    %2178 = vmatprep.subr.bf16.mxu0 %v2115
    %2179 = vmatpush1.bf16.msra.mxu0 %v2114
    %2180 = vmatprep.subr.bf16.mxu0 %v2117
    %2181 = vmatpush1.bf16.msra.mxu0 %v2116
    %2182 = vmatprep.subr.bf16.mxu0 %v2119
    %2183 = vmatpush1.bf16.msra.mxu0 %v2118
    %2184 = vmatprep.subr.bf16.mxu0 %v2121
    %2185 = vmatpush1.bf16.msra.mxu0 %v2120
    %2186 = vmatprep.subr.bf16.mxu0 %v2123
    %2187 = vmatpush1.bf16.msra.mxu0 %v2122
    %2188 = vmatprep.subr.bf16.mxu0 %v2125
    %2189 = vmatpush1.bf16.msra.mxu0 %v2124
    %2190 = vmatprep.subr.bf16.mxu0 %v2127
    %2191 = vmatpush1.bf16.msra.mxu0 %v2126
    %2192 = vmatprep.subr.bf16.mxu0 %v2129
    %2193 = vmatpush1.bf16.msra.mxu0 %v2128
    %2194 = vmatprep.subr.bf16.mxu0 %v2131
    %2195 = vmatpush1.bf16.msra.mxu0 %v2130
    %2196 = vmatprep.subr.bf16.mxu0 %v2133
    %2197 = vmatpush1.bf16.msra.mxu0 %v2132
    %2198 = vmatprep.subr.bf16.mxu0 %v2135
    %2199 = vmatpush1.bf16.msra.mxu0 %v2134
    %2200 = vmatprep.subr.bf16.mxu0 %v2137
    %2201 = vmatpush1.bf16.msra.mxu0 %v2136
    %2202 = vmatprep.subr.bf16.mxu0 %v2139
    %2203 = vmatpush1.bf16.msra.mxu0 %v2138
    %2204 = vmatprep.subr.bf16.mxu0 %v2141
    %2205 = vmatpush1.bf16.msra.mxu0 %v2140
    %2206 = vmatprep.mubr.bf16.mxu0 %v1985
    %2207 = vmatmul.mubr.bf16.gmra.mrb[0].mxu0 %v1973
    %v2208 = vpop.f32.mrb[0].mxu0
    %v2209 = vadd.f32 0.0, %v2208
    %v2210 = vpop.f32.mrb[0].mxu0
    %v2211 = vadd.f32 0.0, %v2210
    %v2212 = vpop.f32.mrb[0].mxu0
    %v2213 = vadd.f32 0.0, %v2212
    %v2214 = vpop.f32.mrb[0].mxu0
    %v2215 = vadd.f32 0.0, %v2214
    %2216 = vmatprep.mubr.bf16.mxu0 %v2001
    %2217 = vmatmul.mubr.bf16.gmra.mrb[0].mxu0 %v1993
    %v2218 = vpop.f32.mrb[0].mxu0
    %v2219 = vadd.f32 0.0, %v2218
    %v2220 = vpop.f32.mrb[0].mxu0
    %v2221 = vadd.f32 0.0, %v2220
    %v2222 = vpop.f32.mrb[0].mxu0
    %v2223 = vadd.f32 0.0, %v2222
    %v2224 = vpop.f32.mrb[0].mxu0
    %v2225 = vadd.f32 0.0, %v2224
    %2226 = vmatprep.mubr.bf16.mxu0 %v2007
    %2227 = vmatmul.mubr.bf16.gmra.mrb[0].mxu0 %v2004
    %v2228 = vpop.f32.mrb[0].mxu0
    %v2229 = vadd.f32 0.0, %v2228
    %v2230 = vpop.f32.mrb[0].mxu0
    %v2231 = vadd.f32 0.0, %v2230
    %v2232 = vpop.f32.mrb[0].mxu0
    %v2233 = vpop.f32.mrb[0].mxu0
    %2234 = vdwg.mxu0
    %v2236 = vunpack.c.l.b16 %v1873
    %v2237 = vunpack.c.h.b16 %v1873
    %v2238 = vpack.c.b16 %v2236, %v2236
    %v2239 = vpack.c.b16 %v2237, %v2237
    %v2278 = vunpack.c.l.b16 %v1875
    %v2279 = vunpack.c.h.b16 %v1875
    %v2280 = vunpack.c.l.b16 %v1876
    %v2281 = vunpack.c.h.b16 %v1876
    %v2282 = vunpack.c.l.b16 %v1877
    %v2283 = vunpack.c.h.b16 %v1877
    %v2284 = vunpack.c.l.b16 %v1878
    %v2285 = vunpack.c.h.b16 %v1878
    %v2286 = vunpack.c.l.b16 %v1879
    %v2287 = vunpack.c.h.b16 %v1879
    %v2288 = vunpack.c.l.b16 %v1880
    %v2289 = vunpack.c.h.b16 %v1880
    %v2290 = vunpack.c.l.b16 %v1881
    %v2291 = vunpack.c.h.b16 %v1881
    %v2292 = vunpack.c.l.b16 %v1882
    %v2293 = vunpack.c.h.b16 %v1882
    %v2294 = vunpack.c.l.b16 %v1883
    %v2295 = vunpack.c.h.b16 %v1883
    %v2296 = vunpack.c.l.b16 %v1884
    %v2297 = vunpack.c.h.b16 %v1884
    %v2298 = vunpack.c.l.b16 %v1885
    %v2299 = vunpack.c.h.b16 %v1885
    %v2300 = vunpack.c.l.b16 %v1886
    %v2301 = vunpack.c.h.b16 %v1886
    %v2302 = vunpack.c.l.b16 %v1887
    %v2303 = vunpack.c.h.b16 %v1887
    %v2304 = vunpack.c.l.b16 %v1888
    %v2305 = vunpack.c.h.b16 %v1888
    %v2306 = vunpack.c.l.b16 %v1889
    %v2307 = vunpack.c.h.b16 %v1889
    %v2308 = vunpack.c.l.b16 %v1890
    %v2309 = vunpack.c.h.b16 %v1890
    %v2310 = vunpack.c.l.b16 %v1891
    %v2311 = vunpack.c.h.b16 %v1891
    %v2312 = vunpack.c.l.b16 %v1892
    %v2313 = vunpack.c.h.b16 %v1892
    %v2314 = vunpack.c.l.b16 %v1893
    %v2315 = vunpack.c.h.b16 %v1893
    %v2316 = vunpack.c.l.b16 %v1894
    %v2317 = vunpack.c.h.b16 %v1894
    %v2318 = vunpack.c.l.b16 %v1895
    %v2319 = vunpack.c.h.b16 %v1895
    %v2320 = vunpack.c.l.b16 %v1896
    %v2321 = vunpack.c.h.b16 %v1896
    %v2322 = vunpack.c.l.b16 %v1897
    %v2323 = vunpack.c.h.b16 %v1897
    %v2324 = vunpack.c.l.b16 %v1898
    %v2325 = vunpack.c.h.b16 %v1898
    %v2326 = vunpack.c.l.b16 %v1899
    %v2327 = vunpack.c.h.b16 %v1899
    %v2328 = vunpack.c.l.b16 %v1900
    %v2329 = vunpack.c.h.b16 %v1900
    %v2330 = vunpack.c.l.b16 %v1901
    %v2331 = vunpack.c.h.b16 %v1901
    %v2332 = vunpack.c.l.b16 %v1902
    %v2333 = vunpack.c.h.b16 %v1902
    %v2334 = vunpack.c.l.b16 %v1903
    %v2335 = vunpack.c.h.b16 %v1903
    %v2336 = vunpack.c.l.b16 %v1904
    %v2337 = vunpack.c.h.b16 %v1904
    %v2338 = vunpack.c.l.b16 %v1905
    %v2339 = vunpack.c.h.b16 %v1905
    %v2340 = vunpack.c.l.b16 %v1906
    %v2341 = vunpack.c.h.b16 %v1906
    %v2342 = vpack.c.b16 %v2280, %v2278
    %v2343 = vpack.c.b16 %v2281, %v2279
    %v2344 = vpack.c.b16 %v2284, %v2282
    %v2345 = vpack.c.b16 %v2285, %v2283
    %v2346 = vpack.c.b16 %v2288, %v2286
    %v2347 = vpack.c.b16 %v2289, %v2287
    %v2348 = vpack.c.b16 %v2292, %v2290
    %v2349 = vpack.c.b16 %v2293, %v2291
    %v2350 = vpack.c.b16 %v2296, %v2294
    %v2351 = vpack.c.b16 %v2297, %v2295
    %v2352 = vpack.c.b16 %v2300, %v2298
    %v2353 = vpack.c.b16 %v2301, %v2299
    %v2354 = vpack.c.b16 %v2304, %v2302
    %v2355 = vpack.c.b16 %v2305, %v2303
    %v2356 = vpack.c.b16 %v2308, %v2306
    %v2357 = vpack.c.b16 %v2309, %v2307
    %v2358 = vpack.c.b16 %v2312, %v2310
    %v2359 = vpack.c.b16 %v2313, %v2311
    %v2360 = vpack.c.b16 %v2316, %v2314
    %v2361 = vpack.c.b16 %v2317, %v2315
    %v2362 = vpack.c.b16 %v2320, %v2318
    %v2363 = vpack.c.b16 %v2321, %v2319
    %v2364 = vpack.c.b16 %v2324, %v2322
    %v2365 = vpack.c.b16 %v2325, %v2323
    %v2366 = vpack.c.b16 %v2328, %v2326
    %v2367 = vpack.c.b16 %v2329, %v2327
    %v2368 = vpack.c.b16 %v2332, %v2330
    %v2369 = vpack.c.b16 %v2333, %v2331
    %v2370 = vpack.c.b16 %v2336, %v2334
    %v2371 = vpack.c.b16 %v2337, %v2335
    %v2372 = vpack.c.b16 %v2340, %v2338
    %v2373 = vpack.c.b16 %v2341, %v2339
    %2406 = vmatprep.subr.bf16.mxu0 %v2343
    %2407 = vmatpush1.bf16.msra.mxu0 %v2342
    %2408 = vmatprep.subr.bf16.mxu0 %v2345
    %2409 = vmatpush1.bf16.msra.mxu0 %v2344
    %2410 = vmatprep.subr.bf16.mxu0 %v2347
    %2411 = vmatpush1.bf16.msra.mxu0 %v2346
    %2412 = vmatprep.subr.bf16.mxu0 %v2349
    %2413 = vmatpush1.bf16.msra.mxu0 %v2348
    %2414 = vmatprep.subr.bf16.mxu0 %v2351
    %2415 = vmatpush1.bf16.msra.mxu0 %v2350
    %2416 = vmatprep.subr.bf16.mxu0 %v2353
    %2417 = vmatpush1.bf16.msra.mxu0 %v2352
    %2418 = vmatprep.subr.bf16.mxu0 %v2355
    %2419 = vmatpush1.bf16.msra.mxu0 %v2354
    %2420 = vmatprep.subr.bf16.mxu0 %v2357
    %2421 = vmatpush1.bf16.msra.mxu0 %v2356
    %2422 = vmatprep.subr.bf16.mxu0 %v2359
    %2423 = vmatpush1.bf16.msra.mxu0 %v2358
    %2424 = vmatprep.subr.bf16.mxu0 %v2361
    %2425 = vmatpush1.bf16.msra.mxu0 %v2360
    %2426 = vmatprep.subr.bf16.mxu0 %v2363
    %2427 = vmatpush1.bf16.msra.mxu0 %v2362
    %2428 = vmatprep.subr.bf16.mxu0 %v2365
    %2429 = vmatpush1.bf16.msra.mxu0 %v2364
    %2430 = vmatprep.subr.bf16.mxu0 %v2367
    %2431 = vmatpush1.bf16.msra.mxu0 %v2366
    %2432 = vmatprep.subr.bf16.mxu0 %v2369
    %2433 = vmatpush1.bf16.msra.mxu0 %v2368
    %2434 = vmatprep.subr.bf16.mxu0 %v2371
    %2435 = vmatpush1.bf16.msra.mxu0 %v2370
    %2436 = vmatprep.subr.bf16.mxu0 %v2373
    %2437 = vmatpush1.bf16.msra.mxu0 %v2372
    %2438 = vmatprep.mubr.bf16.mxu0 %v1957
    %2439 = vmatmul.mubr.bf16.gmra.mrb[0].mxu0 %v1956
    %v2440 = vpop.f32.mrb[0].mxu0
    %v2441 = vadd.f32 %v2209, %v2440
    %v2442 = vpop.f32.mrb[0].mxu0
    %v2443 = vadd.f32 %v2211, %v2442
    %v2444 = vpop.f32.mrb[0].mxu0
    %v2445 = vadd.f32 %v2213, %v2444
    %v2446 = vpop.f32.mrb[0].mxu0
    %v2447 = vadd.f32 %v2215, %v2446
    %2448 = vmatprep.mubr.bf16.mxu0 %v1959
    %2449 = vmatmul.mubr.bf16.gmra.mrb[0].mxu0 %v1958
    %v2450 = vpop.f32.mrb[0].mxu0
    %v2451 = vadd.f32 %v2219, %v2450
    %v2452 = vpop.f32.mrb[0].mxu0
    %v2453 = vadd.f32 %v2221, %v2452
    %v2454 = vpop.f32.mrb[0].mxu0
    %v2455 = vadd.f32 %v2223, %v2454
    %v2456 = vpop.f32.mrb[0].mxu0
    %v2457 = vadd.f32 %v2225, %v2456
    %2458 = vmatprep.mubr.bf16.mxu0 %v2239
    %2459 = vmatmul.mubr.bf16.gmra.mrb[0].mxu0 %v2238
    %v2460 = vpop.f32.mrb[0].mxu0
    %v2461 = vadd.f32 %v2229, %v2460
    %v2462 = vpop.f32.mrb[0].mxu0
    %v2463 = vadd.f32 %v2231, %v2462
    %v2464 = vpop.f32.mrb[0].mxu0
    %v2465 = vpop.f32.mrb[0].mxu0
    %2466 = vdwg.mxu0
    %v2467 = vld [vmem:[#allocation3] sm:$0xee]
    %s2468 = scalar_lea.vmem %s3, 1280
    %v2469 = vld [vmem:[%s2468] sm:$0xff]
    %v2470 = vld [vmem:[%s2468 + $0x8] sm:$0xff]
    %v2471 = vld [vmem:[%s2468 + $0x10] sm:$0xff]
    %v2472 = vld [vmem:[%s2468 + $0x18] sm:$0xff]
    %v2473 = vld [vmem:[%s2468 + $0x20] sm:$0xff]
    %v2474 = vld [vmem:[%s2468 + $0x28] sm:$0xff]
    %v2475 = vld [vmem:[%s2468 + $0x30] sm:$0xff]
    %v2476 = vld [vmem:[%s2468 + $0x38] sm:$0xff]
    %v2477 = vld [vmem:[%s2468 + $0x40] sm:$0xff]
    %v2478 = vld [vmem:[%s2468 + $0x48] sm:$0xff]
    %v2479 = vld [vmem:[%s2468 + $0x50] sm:$0xff]
    %v2480 = vld [vmem:[%s2468 + $0x58] sm:$0xff]
    %v2481 = vld [vmem:[%s2468 + $0x60] sm:$0xff]
    %v2482 = vld [vmem:[%s2468 + $0x68] sm:$0xff]
    %v2483 = vld [vmem:[%s2468 + $0x70] sm:$0xff]
    %v2484 = vld [vmem:[%s2468 + $0x78] sm:$0xff]
    %v2485 = vld [vmem:[%s2468 + $0x80] sm:$0xff]
    %v2486 = vld [vmem:[%s2468 + $0x88] sm:$0xff]
    %v2487 = vld [vmem:[%s2468 + $0x90] sm:$0xff]
    %v2488 = vld [vmem:[%s2468 + $0x98] sm:$0xff]
    %v2489 = vld [vmem:[%s2468 + $0xa0] sm:$0xff]
    %v2490 = vld [vmem:[%s2468 + $0xa8] sm:$0xff]
    %v2491 = vld [vmem:[%s2468 + $0xb0] sm:$0xff]
    %v2492 = vld [vmem:[%s2468 + $0xb8] sm:$0xff]
    %v2493 = vld [vmem:[%s2468 + $0xc0] sm:$0xff]
    %v2494 = vld [vmem:[%s2468 + $0xc8] sm:$0xff]
    %v2495 = vld [vmem:[%s2468 + $0xd0] sm:$0xff]
    %v2496 = vld [vmem:[%s2468 + $0xd8] sm:$0xff]
    %v2497 = vld [vmem:[%s2468 + $0xe0] sm:$0xff]
    %v2498 = vld [vmem:[%s2468 + $0xe8] sm:$0xff]
    %v2499 = vld [vmem:[%s2468 + $0xf0] sm:$0xff]
    %v2500 = vld [vmem:[%s2468 + $0xf8] sm:$0xff]
    %v2502 = vunpack.c.l.b16 %v2467
    %v2503 = vunpack.c.h.b16 %v2467
    %v2504 = vpack.c.b16 %v1948, %v2502
    %v2505 = vpack.c.b16 %v1949, %v2503
    %v2506 = vrot.slane %v2504, 1
    %v2507 = vrot.slane %v1958, 1
    %v2508 = vsel %vm521, %v2506, %v2507
    %v2509 = vrot.slane %v2505, 1
    %v2510 = vrot.slane %v1959, 1
    %v2511 = vsel %vm521, %v2509, %v2510
    %v2512 = vrot.slane %v1960, 1
    %v2513 = vsel %vm521, %v2507, %v2512
    %v2514 = vrot.slane %v1961, 1
    %v2515 = vsel %vm521, %v2510, %v2514
    %v2554 = vunpack.c.l.b16 %v2469
    %v2555 = vunpack.c.h.b16 %v2469
    %v2556 = vunpack.c.l.b16 %v2470
    %v2557 = vunpack.c.h.b16 %v2470
    %v2558 = vunpack.c.l.b16 %v2471
    %v2559 = vunpack.c.h.b16 %v2471
    %v2560 = vunpack.c.l.b16 %v2472
    %v2561 = vunpack.c.h.b16 %v2472
    %v2562 = vunpack.c.l.b16 %v2473
    %v2563 = vunpack.c.h.b16 %v2473
    %v2564 = vunpack.c.l.b16 %v2474
    %v2565 = vunpack.c.h.b16 %v2474
    %v2566 = vunpack.c.l.b16 %v2475
    %v2567 = vunpack.c.h.b16 %v2475
    %v2568 = vunpack.c.l.b16 %v2476
    %v2569 = vunpack.c.h.b16 %v2476
    %v2570 = vunpack.c.l.b16 %v2477
    %v2571 = vunpack.c.h.b16 %v2477
    %v2572 = vunpack.c.l.b16 %v2478
    %v2573 = vunpack.c.h.b16 %v2478
    %v2574 = vunpack.c.l.b16 %v2479
    %v2575 = vunpack.c.h.b16 %v2479
    %v2576 = vunpack.c.l.b16 %v2480
    %v2577 = vunpack.c.h.b16 %v2480
    %v2578 = vunpack.c.l.b16 %v2481
    %v2579 = vunpack.c.h.b16 %v2481
    %v2580 = vunpack.c.l.b16 %v2482
    %v2581 = vunpack.c.h.b16 %v2482
    %v2582 = vunpack.c.l.b16 %v2483
    %v2583 = vunpack.c.h.b16 %v2483
    %v2584 = vunpack.c.l.b16 %v2484
    %v2585 = vunpack.c.h.b16 %v2484
    %v2586 = vunpack.c.l.b16 %v2485
    %v2587 = vunpack.c.h.b16 %v2485
    %v2588 = vunpack.c.l.b16 %v2486
    %v2589 = vunpack.c.h.b16 %v2486
    %v2590 = vunpack.c.l.b16 %v2487
    %v2591 = vunpack.c.h.b16 %v2487
    %v2592 = vunpack.c.l.b16 %v2488
    %v2593 = vunpack.c.h.b16 %v2488
    %v2594 = vunpack.c.l.b16 %v2489
    %v2595 = vunpack.c.h.b16 %v2489
    %v2596 = vunpack.c.l.b16 %v2490
    %v2597 = vunpack.c.h.b16 %v2490
    %v2598 = vunpack.c.l.b16 %v2491
    %v2599 = vunpack.c.h.b16 %v2491
    %v2600 = vunpack.c.l.b16 %v2492
    %v2601 = vunpack.c.h.b16 %v2492
    %v2602 = vunpack.c.l.b16 %v2493
    %v2603 = vunpack.c.h.b16 %v2493
    %v2604 = vunpack.c.l.b16 %v2494
    %v2605 = vunpack.c.h.b16 %v2494
    %v2606 = vunpack.c.l.b16 %v2495
    %v2607 = vunpack.c.h.b16 %v2495
    %v2608 = vunpack.c.l.b16 %v2496
    %v2609 = vunpack.c.h.b16 %v2496
    %v2610 = vunpack.c.l.b16 %v2497
    %v2611 = vunpack.c.h.b16 %v2497
    %v2612 = vunpack.c.l.b16 %v2498
    %v2613 = vunpack.c.h.b16 %v2498
    %v2614 = vunpack.c.l.b16 %v2499
    %v2615 = vunpack.c.h.b16 %v2499
    %v2616 = vunpack.c.l.b16 %v2500
    %v2617 = vunpack.c.h.b16 %v2500
    %v2618 = vpack.c.b16 %v2556, %v2554
    %v2619 = vpack.c.b16 %v2557, %v2555
    %v2620 = vpack.c.b16 %v2560, %v2558
    %v2621 = vpack.c.b16 %v2561, %v2559
    %v2622 = vpack.c.b16 %v2564, %v2562
    %v2623 = vpack.c.b16 %v2565, %v2563
    %v2624 = vpack.c.b16 %v2568, %v2566
    %v2625 = vpack.c.b16 %v2569, %v2567
    %v2626 = vpack.c.b16 %v2572, %v2570
    %v2627 = vpack.c.b16 %v2573, %v2571
    %v2628 = vpack.c.b16 %v2576, %v2574
    %v2629 = vpack.c.b16 %v2577, %v2575
    %v2630 = vpack.c.b16 %v2580, %v2578
    %v2631 = vpack.c.b16 %v2581, %v2579
    %v2632 = vpack.c.b16 %v2584, %v2582
    %v2633 = vpack.c.b16 %v2585, %v2583
    %v2634 = vpack.c.b16 %v2588, %v2586
    %v2635 = vpack.c.b16 %v2589, %v2587
    %v2636 = vpack.c.b16 %v2592, %v2590
    %v2637 = vpack.c.b16 %v2593, %v2591
    %v2638 = vpack.c.b16 %v2596, %v2594
    %v2639 = vpack.c.b16 %v2597, %v2595
    %v2640 = vpack.c.b16 %v2600, %v2598
    %v2641 = vpack.c.b16 %v2601, %v2599
    %v2642 = vpack.c.b16 %v2604, %v2602
    %v2643 = vpack.c.b16 %v2605, %v2603
    %v2644 = vpack.c.b16 %v2608, %v2606
    %v2645 = vpack.c.b16 %v2609, %v2607
    %v2646 = vpack.c.b16 %v2612, %v2610
    %v2647 = vpack.c.b16 %v2613, %v2611
    %v2648 = vpack.c.b16 %v2616, %v2614
    %v2649 = vpack.c.b16 %v2617, %v2615
    %2682 = vmatprep.subr.bf16.mxu0 %v2619
    %2683 = vmatpush1.bf16.msra.mxu0 %v2618
    %2684 = vmatprep.subr.bf16.mxu0 %v2621
    %2685 = vmatpush1.bf16.msra.mxu0 %v2620
    %2686 = vmatprep.subr.bf16.mxu0 %v2623
    %2687 = vmatpush1.bf16.msra.mxu0 %v2622
    %2688 = vmatprep.subr.bf16.mxu0 %v2625
    %2689 = vmatpush1.bf16.msra.mxu0 %v2624
    %2690 = vmatprep.subr.bf16.mxu0 %v2627
    %2691 = vmatpush1.bf16.msra.mxu0 %v2626
    %2692 = vmatprep.subr.bf16.mxu0 %v2629
    %2693 = vmatpush1.bf16.msra.mxu0 %v2628
    %2694 = vmatprep.subr.bf16.mxu0 %v2631
    %2695 = vmatpush1.bf16.msra.mxu0 %v2630
    %2696 = vmatprep.subr.bf16.mxu0 %v2633
    %2697 = vmatpush1.bf16.msra.mxu0 %v2632
    %2698 = vmatprep.subr.bf16.mxu0 %v2635
    %2699 = vmatpush1.bf16.msra.mxu0 %v2634
    %2700 = vmatprep.subr.bf16.mxu0 %v2637
    %2701 = vmatpush1.bf16.msra.mxu0 %v2636
    %2702 = vmatprep.subr.bf16.mxu0 %v2639
    %2703 = vmatpush1.bf16.msra.mxu0 %v2638
    %2704 = vmatprep.subr.bf16.mxu0 %v2641
    %2705 = vmatpush1.bf16.msra.mxu0 %v2640
    %2706 = vmatprep.subr.bf16.mxu0 %v2643
    %2707 = vmatpush1.bf16.msra.mxu0 %v2642
    %2708 = vmatprep.subr.bf16.mxu0 %v2645
    %2709 = vmatpush1.bf16.msra.mxu0 %v2644
    %2710 = vmatprep.subr.bf16.mxu0 %v2647
    %2711 = vmatpush1.bf16.msra.mxu0 %v2646
    %2712 = vmatprep.subr.bf16.mxu0 %v2649
    %2713 = vmatpush1.bf16.msra.mxu0 %v2648
    %2714 = vmatprep.mubr.bf16.mxu0 %v2511
    %2715 = vmatmul.mubr.bf16.gmra.mrb[0].mxu0 %v2508
    %v2716 = vpop.f32.mrb[0].mxu0
    %v2717 = vadd.f32 0.0, %v2716
    %v2718 = vpop.f32.mrb[0].mxu0
    %v2719 = vadd.f32 0.0, %v2718
    %v2720 = vpop.f32.mrb[0].mxu0
    %v2721 = vadd.f32 0.0, %v2720
    %v2722 = vpop.f32.mrb[0].mxu0
    %v2723 = vadd.f32 0.0, %v2722
    %2724 = vmatprep.mubr.bf16.mxu0 %v2515
    %2725 = vmatmul.mubr.bf16.gmra.mrb[0].mxu0 %v2513
    %v2726 = vpop.f32.mrb[0].mxu0
    %v2727 = vadd.f32 0.0, %v2726
    %v2728 = vpop.f32.mrb[0].mxu0
    %v2729 = vadd.f32 0.0, %v2728
    %v2730 = vpop.f32.mrb[0].mxu0
    %v2731 = vadd.f32 0.0, %v2730
    %v2732 = vpop.f32.mrb[0].mxu0
    %v2733 = vadd.f32 0.0, %v2732
    %2734 = vmatprep.mubr.bf16.mxu0 %v2514
    %2735 = vmatmul.mubr.bf16.gmra.mrb[0].mxu0 %v2512
    %v2736 = vpop.f32.mrb[0].mxu0
    %v2737 = vadd.f32 0.0, %v2736
    %v2738 = vpop.f32.mrb[0].mxu0
    %v2739 = vadd.f32 0.0, %v2738
    %v2740 = vpop.f32.mrb[0].mxu0
    %v2741 = vpop.f32.mrb[0].mxu0
    %2742 = vdwg.mxu0
    %v2743 = vadd.f32 %v2441, %v2717
    %v2744 = vadd.f32 %v2443, %v2719
    %v2745 = vadd.f32 %v2445, %v2721
    %v2746 = vadd.f32 %v2447, %v2723
    %v2747 = vadd.f32 %v2451, %v2727
    %v2748 = vadd.f32 %v2453, %v2729
    %v2749 = vadd.f32 %v2455, %v2731
    %v2750 = vadd.f32 %v2457, %v2733
    %v2751 = vadd.f32 %v2461, %v2737
    %v2752 = vadd.f32 %v2463, %v2739
    %v2754 = vlaneseq
    %v2755 = vshrl.u32 %v2754, 7
    %v2756 = vsub.s32 0, %v2755
    %v2757 = vrot.slane %v1868, %v2756
    %v2758 = vlaneseq
    %v2759 = vshrl.u32 %v2758, 7
    %v2760 = vsub.s32 1, %v2759
    %v2761 = vrot.slane %v1868, %v2760
    %v2764 = vadd.f32 %v2743, %v2757
    %v2765 = vadd.f32 %v2744, %v2761
    %v2766 = vadd.f32 %v2745, %v2757
    %v2767 = vadd.f32 %v2746, %v2761
    %v2768 = vadd.f32 %v2747, %v2757
    %v2769 = vadd.f32 %v2748, %v2761
    %v2770 = vadd.f32 %v2749, %v2757
    %v2771 = vadd.f32 %v2750, %v2761
    %v2772 = vadd.f32 %v2751, %v2757
    %v2773 = vadd.f32 %v2752, %v2761
    %v2774 = vld [vmem:[%s8] sm:$0x3]
    %vm2775 = vcmask 293888
    %v2777 = vsel %vm2775, %v2774, 0
    %vm2779 = vcmask 1043456
    %v2781 = vsel %vm2779, %v2772, 0
    %v2784 = vsel %vm2779, %v2773, 0
    %2786 = vmatprep.subr.mxu0 %v2765
    %2787 = vmatpush1.msra.mxu0 %v2764
    %2788 = vmatprep.subr.mxu0 %v2767
    %2789 = vmatpush1.msra.mxu0 %v2766
    %2790 = vmatprep.subr.mxu0 %v2769
    %2791 = vmatpush1.msra.mxu0 %v2768
    %2792 = vmatprep.subr.mxu0 %v2771
    %2793 = vmatpush1.msra.mxu0 %v2770
    %2794 = vmatprep.subr.mxu0 %v2784
    %2795 = vmatpush1.msra.mxu0 %v2781
    %2796 = vmatprep.subr.mxu0 0.0
    %2797 = vmatpush1.msra.mxu0 0.0
    %2798 = vmatprep.subr.mxu0 0.0
    %2799 = vmatpush1.msra.mxu0 0.0
    %2800 = vmatprep.subr.mxu0 0.0
    %2801 = vmatpush1.msra.mxu0 0.0
    %2802 = vmatprep.subr.mxu0 0.0
    %2803 = vmatpush1.msra.mxu0 0.0
    %2804 = vmatprep.subr.mxu0 0.0
    %2805 = vmatpush1.msra.mxu0 0.0
    %2806 = vmatprep.subr.mxu0 0.0
    %2807 = vmatpush1.msra.mxu0 0.0
    %2808 = vmatprep.subr.mxu0 0.0
    %2809 = vmatpush1.msra.mxu0 0.0
    %2810 = vmatprep.subr.mxu0 0.0
    %2811 = vmatpush1.msra.mxu0 0.0
    %2812 = vmatprep.subr.mxu0 0.0
    %2813 = vmatpush1.msra.mxu0 0.0
    %2814 = vmatprep.subr.mxu0 0.0
    %2815 = vmatpush1.msra.mxu0 0.0
    %2816 = vmatprep.subr.mxu0 0.0
    %2817 = vmatpush1.msra.mxu0 0.0
    %2818 = vmatprep.subr.mxu0 0.0
    %2819 = vmatpush1.msra.mxu0 0.0
    %2820 = vmatprep.subr.mxu0 0.0
    %2821 = vmatpush1.msra.mxu0 0.0
    %2822 = vmatprep.subr.mxu0 0.0
    %2823 = vmatpush1.msra.mxu0 0.0
    %2824 = vmatprep.subr.mxu0 0.0
    %2825 = vmatpush1.msra.mxu0 0.0
    %2826 = vmatprep.subr.mxu0 0.0
    %2827 = vmatpush1.msra.mxu0 0.0
    %2828 = vmatprep.subr.mxu0 0.0
    %2829 = vmatpush1.msra.mxu0 0.0
    %2830 = vmatprep.subr.mxu0 0.0
    %2831 = vmatpush1.msra.mxu0 0.0
    %2832 = vmatprep.subr.mxu0 0.0
    %2833 = vmatpush1.msra.mxu0 0.0
    %2834 = vmatprep.subr.mxu0 0.0
    %2835 = vmatpush1.msra.mxu0 0.0
    %2836 = vmatprep.subr.mxu0 0.0
    %2837 = vmatpush1.msra.mxu0 0.0
    %2838 = vmatprep.subr.mxu0 0.0
    %2839 = vmatpush1.msra.mxu0 0.0
    %2840 = vmatprep.subr.mxu0 0.0
    %2841 = vmatpush1.msra.mxu0 0.0
    %2842 = vmatprep.subr.mxu0 0.0
    %2843 = vmatpush1.msra.mxu0 0.0
    %2844 = vmatprep.subr.mxu0 0.0
    %2845 = vmatpush1.msra.mxu0 0.0
    %2846 = vmatprep.subr.mxu0 0.0
    %2847 = vmatpush1.msra.mxu0 0.0
    %2848 = vmatprep.subr.mxu0 0.0
    %2849 = vmatpush1.msra.mxu0 0.0
    %2850 = vmatprep.mubr.f32.mxu0 0.0
    %2851 = vmatmul.mubr.f32.gmra.mrb[0].mxu0 %v2777
    %v2852 = vpop.f32.mrb[0].mxu0
    %v2853 = vadd.f32 0.0, %v2852
    %v2854 = vpop.f32.mrb[0].mxu0
    %v2855 = vadd.f32 0.0, %v2854
    %2856 = vdwg.mxu0
    %s2857 = sld [smem:[#allocation4 + $0x1]]
    %2858 = vrot.lane.b32.xlu0 %v2853, 2
    %v2859 = vpop.permute.xlu0 %2858
    %2860 = vrot.lane.b32.xlu0 %v2855, 2
    %v2861 = vpop.permute.xlu0 %2860
    %v2862 = vlaneseq
    %v2863 = vand.u32 %v2862, 127
    %vm2864 = vcmp.lt.s32.totalorder %v2863, 2
    %v2865 = vsel %vm2864, %v2859, %v2861
    %v2866 = vsel %vm2864, %v2861, %v2859
    %v2867 = vld [vmem:[%s11] sm:$0x3]
    %v2869 = vlaneseq
    %v2870 = vshrl.u32 %v2869, 7
    %v2871 = vsub.s32 0, %v2870
    %v2872 = vrot.slane %v2867, %v2871
    %v2873 = vlaneseq
    %v2874 = vshrl.u32 %v2873, 7
    %v2875 = vsub.s32 1, %v2874
    %v2876 = vrot.slane %v2867, %v2875
    %v2879 = vmul.f32 %v2866, %v2872
    %v2880 = vmul.f32 %v2865, %v2876
    %v2881 = vstv %s2857
    %v2882 = vmul.f32 %v2881, %v2879
    %v2883 = vmul.f32 %v2881, %v2880
    %v2884 = vadd.f32 %v2882, 0.0
    %v2885 = vadd.f32 %v2883, 0.0
    %s2886 = sld [smem:[#allocation4 + $0x2]]
    %2887 = vrot.lane.b32.xlu0 %v2853, 1
    %v2888 = vpop.permute.xlu0 %2887
    %2889 = vrot.lane.b32.xlu0 %v2855, 1
    %v2890 = vpop.permute.xlu0 %2889
    %vm2891 = vcmp.lt.s32.totalorder %v2863, 1
    %v2892 = vsel %vm2891, %v2888, %v2890
    %v2893 = vsel %vm2891, %v2890, %v2888
    %s2894 = scalar_lea.vmem %s11, 2
    %v2895 = vld [vmem:[%s2894] sm:$0x3]
    %v2897 = vlaneseq
    %v2898 = vshrl.u32 %v2897, 7
    %v2899 = vsub.s32 0, %v2898
    %v2900 = vrot.slane %v2895, %v2899
    %v2901 = vlaneseq
    %v2902 = vshrl.u32 %v2901, 7
    %v2903 = vsub.s32 1, %v2902
    %v2904 = vrot.slane %v2895, %v2903
    %v2907 = vmul.f32 %v2893, %v2900
    %v2908 = vmul.f32 %v2892, %v2904
    %v2909 = vstv %s2886
    %v2910 = vmul.f32 %v2909, %v2907
    %v2911 = vmul.f32 %v2909, %v2908
    %v2912 = vadd.f32 %v2884, %v2910
    %v2913 = vadd.f32 %v2885, %v2911
    %s2914 = sld [smem:[#allocation4 + $0x3]]
    %s2915 = scalar_lea.vmem %s11, 4
    %v2916 = vld [vmem:[%s2915] sm:$0x3]
    %v2918 = vlaneseq
    %v2919 = vshrl.u32 %v2918, 7
    %v2920 = vsub.s32 0, %v2919
    %v2921 = vrot.slane %v2916, %v2920
    %v2922 = vlaneseq
    %v2923 = vshrl.u32 %v2922, 7
    %v2924 = vsub.s32 1, %v2923
    %v2925 = vrot.slane %v2916, %v2924
    %v2928 = vmul.f32 %v2853, %v2921
    %v2929 = vmul.f32 %v2855, %v2925
    %v2930 = vstv %s2914
    %v2931 = vmul.f32 %v2930, %v2928
    %v2932 = vmul.f32 %v2930, %v2929
    %v2933 = vadd.f32 %v2912, %v2931
    %v2934 = vadd.f32 %v2913, %v2932
    %s2935 = sld [smem:[#allocation4 + $0x4]]
    %2936 = vrot.lane.b32.xlu0 %v2853, 127
    %v2937 = vpop.permute.xlu0 %2936
    %2938 = vrot.lane.b32.xlu0 %v2855, 127
    %v2939 = vpop.permute.xlu0 %2938
    %vm2940 = vcmp.lt.s32.totalorder %v2863, 127
    %v2941 = vsel %vm2940, %v2937, %v2939
    %v2942 = vsel %vm2940, %v2939, %v2937
    %s2943 = scalar_lea.vmem %s11, 6
    %v2944 = vld [vmem:[%s2943] sm:$0x3]
    %v2946 = vlaneseq
    %v2947 = vshrl.u32 %v2946, 7
    %v2948 = vsub.s32 0, %v2947
    %v2949 = vrot.slane %v2944, %v2948
    %v2950 = vlaneseq
    %v2951 = vshrl.u32 %v2950, 7
    %v2952 = vsub.s32 1, %v2951
    %v2953 = vrot.slane %v2944, %v2952
    %v2956 = vmul.f32 %v2941, %v2949
    %v2957 = vmul.f32 %v2942, %v2953
    %v2958 = vstv %s2935
    %v2959 = vmul.f32 %v2958, %v2956
    %v2960 = vmul.f32 %v2958, %v2957
    %v2961 = vadd.f32 %v2933, %v2959
    %v2962 = vadd.f32 %v2934, %v2960
    %s2963 = sld [smem:[#allocation4 + $0x5]]
    %2964 = vrot.lane.b32.xlu0 %v2853, 126
    %v2965 = vpop.permute.xlu0 %2964
    %2966 = vrot.lane.b32.xlu0 %v2855, 126
    %v2967 = vpop.permute.xlu0 %2966
    %vm2968 = vcmp.lt.s32.totalorder %v2863, 126
    %v2969 = vsel %vm2968, %v2965, %v2967
    %v2970 = vsel %vm2968, %v2967, %v2965
    %s2971 = scalar_lea.vmem %s11, 8
    %v2972 = vld [vmem:[%s2971] sm:$0x3]
    %v2974 = vlaneseq
    %v2975 = vshrl.u32 %v2974, 7
    %v2976 = vsub.s32 0, %v2975
    %v2977 = vrot.slane %v2972, %v2976
    %v2978 = vlaneseq
    %v2979 = vshrl.u32 %v2978, 7
    %v2980 = vsub.s32 1, %v2979
    %v2981 = vrot.slane %v2972, %v2980
    %v2984 = vmul.f32 %v2969, %v2977
    %v2985 = vmul.f32 %v2970, %v2981
    %v2986 = vstv %s2963
    %v2987 = vmul.f32 %v2986, %v2984
    %v2988 = vmul.f32 %v2986, %v2985
    %v2989 = vadd.f32 %v2961, %v2987
    %v2990 = vadd.f32 %v2962, %v2988
    %v2991 = vxor.u32 %v2989, 2147483648
    %v2992 = vxor.u32 %v2990, 2147483648
    %v2993 = vmul.f32 %v2991, 1.442695
    %v2994 = vpow.pop %v2993
    %v2995 = vmul.f32 %v2992, 1.442695
    %v2996 = vpow.pop %v2995
    %v2997 = vadd.f32 %v2994, 1.0
    %v2998 = vadd.f32 %v2996, 1.0
    %v2999 = vrcp.pop %v2997
    %v3000 = vmul.f32 1.0, %v2999
    %v3001 = vrcp.pop %v2998
    %v3002 = vmul.f32 1.0, %v3001
    %v3003 = vld [vmem:[%s9] sm:$0xff]
    %v3004 = vld [vmem:[%s9 + $0x8] sm:$0xff]
    %v3005 = vld [vmem:[%s9 + $0x10] sm:$0xff]
    %v3006 = vld [vmem:[%s9 + $0x18] sm:$0xff]
    %v3007 = vld [vmem:[%s9 + $0x20] sm:$0xf]
    %vm3008 = vcmask 15360
    %v3010 = vsel %vm3008, %v3003, 0
    %v3013 = vsel %vm3008, %v3004, 0
    %v3016 = vsel %vm3008, %v3005, 0
    %v3019 = vsel %vm3008, %v3006, 0
    %v3022 = vsel %vm3008, %v3007, 0
    %vm3024 = vcmask 1041408
    %v3026 = vsel %vm3024, %v3000, 0
    %v3029 = vsel %vm3024, %v3002, 0
    %3031 = vmatprep.subr.mxu0 %v3029
    %3032 = vmatpush1.msra.mxu0 %v3026
    %3033 = vmatprep.subr.mxu0 0.0
    %3034 = vmatpush1.msra.mxu0 0.0
    %3035 = vmatprep.subr.mxu0 0.0
    %3036 = vmatpush1.msra.mxu0 0.0
    %3037 = vmatprep.subr.mxu0 0.0
    %3038 = vmatpush1.msra.mxu0 0.0
    %3039 = vmatprep.subr.mxu0 0.0
    %3040 = vmatpush1.msra.mxu0 0.0
    %3041 = vmatprep.subr.mxu0 0.0
    %3042 = vmatpush1.msra.mxu0 0.0
    %3043 = vmatprep.subr.mxu0 0.0
    %3044 = vmatpush1.msra.mxu0 0.0
    %3045 = vmatprep.subr.mxu0 0.0
    %3046 = vmatpush1.msra.mxu0 0.0
    %3047 = vmatprep.subr.mxu0 0.0
    %3048 = vmatpush1.msra.mxu0 0.0
    %3049 = vmatprep.subr.mxu0 0.0
    %3050 = vmatpush1.msra.mxu0 0.0
    %3051 = vmatprep.subr.mxu0 0.0
    %3052 = vmatpush1.msra.mxu0 0.0
    %3053 = vmatprep.subr.mxu0 0.0
    %3054 = vmatpush1.msra.mxu0 0.0
    %3055 = vmatprep.subr.mxu0 0.0
    %3056 = vmatpush1.msra.mxu0 0.0
    %3057 = vmatprep.subr.mxu0 0.0
    %3058 = vmatpush1.msra.mxu0 0.0
    %3059 = vmatprep.subr.mxu0 0.0
    %3060 = vmatpush1.msra.mxu0 0.0
    %3061 = vmatprep.subr.mxu0 0.0
    %3062 = vmatpush1.msra.mxu0 0.0
    %3063 = vmatprep.subr.mxu0 0.0
    %3064 = vmatpush1.msra.mxu0 0.0
    %3065 = vmatprep.subr.mxu0 0.0
    %3066 = vmatpush1.msra.mxu0 0.0
    %3067 = vmatprep.subr.mxu0 0.0
    %3068 = vmatpush1.msra.mxu0 0.0
    %3069 = vmatprep.subr.mxu0 0.0
    %3070 = vmatpush1.msra.mxu0 0.0
    %3071 = vmatprep.subr.mxu0 0.0
    %3072 = vmatpush1.msra.mxu0 0.0
    %3073 = vmatprep.subr.mxu0 0.0
    %3074 = vmatpush1.msra.mxu0 0.0
    %3075 = vmatprep.subr.mxu0 0.0
    %3076 = vmatpush1.msra.mxu0 0.0
    %3077 = vmatprep.subr.mxu0 0.0
    %3078 = vmatpush1.msra.mxu0 0.0
    %3079 = vmatprep.subr.mxu0 0.0
    %3080 = vmatpush1.msra.mxu0 0.0
    %3081 = vmatprep.subr.mxu0 0.0
    %3082 = vmatpush1.msra.mxu0 0.0
    %3083 = vmatprep.subr.mxu0 0.0
    %3084 = vmatpush1.msra.mxu0 0.0
    %3085 = vmatprep.subr.mxu0 0.0
    %3086 = vmatpush1.msra.mxu0 0.0
    %3087 = vmatprep.subr.mxu0 0.0
    %3088 = vmatpush1.msra.mxu0 0.0
    %3089 = vmatprep.subr.mxu0 0.0
    %3090 = vmatpush1.msra.mxu0 0.0
    %3091 = vmatprep.subr.mxu0 0.0
    %3092 = vmatpush1.msra.mxu0 0.0
    %3093 = vmatprep.subr.mxu0 0.0
    %3094 = vmatpush1.msra.mxu0 0.0
    %3095 = vmatprep.mubr.f32.mxu0 0.0
    %3096 = vmatmul.mubr.f32.gmra.mrb[0].mxu0 %v3010
    %v3097 = vpop.f32.mrb[0].mxu0
    %v3098 = vadd.f32 0.0, %v3097
    %v3099 = vpop.f32.mrb[0].mxu0
    %v3100 = vadd.f32 0.0, %v3099
    %3101 = vmatprep.mubr.f32.mxu0 0.0
    %3102 = vmatmul.mubr.f32.gmra.mrb[0].mxu0 %v3013
    %v3103 = vpop.f32.mrb[0].mxu0
    %v3104 = vadd.f32 0.0, %v3103
    %v3105 = vpop.f32.mrb[0].mxu0
    %v3106 = vadd.f32 0.0, %v3105
    %3107 = vmatprep.mubr.f32.mxu0 0.0
    %3108 = vmatmul.mubr.f32.gmra.mrb[0].mxu0 %v3016
    %v3109 = vpop.f32.mrb[0].mxu0
    %v3110 = vadd.f32 0.0, %v3109
    %v3111 = vpop.f32.mrb[0].mxu0
    %v3112 = vadd.f32 0.0, %v3111
    %3113 = vmatprep.mubr.f32.mxu0 0.0
    %3114 = vmatmul.mubr.f32.gmra.mrb[0].mxu0 %v3019
    %v3115 = vpop.f32.mrb[0].mxu0
    %v3116 = vadd.f32 0.0, %v3115
    %v3117 = vpop.f32.mrb[0].mxu0
    %v3118 = vadd.f32 0.0, %v3117
    %3119 = vmatprep.mubr.f32.mxu0 0.0
    %3120 = vmatmul.mubr.f32.gmra.mrb[0].mxu0 %v3022
    %v3121 = vpop.f32.mrb[0].mxu0
    %v3122 = vadd.f32 0.0, %v3121
    %v3123 = vpop.f32.mrb[0].mxu0
    %v3124 = vadd.f32 0.0, %v3123
    %3125 = vdwg.mxu0
    %v3126 = vld [vmem:[%s6] sm:$0xff]
    %v3127 = vld [vmem:[%s6 + $0x8] sm:$0xff]
    %v3128 = vld [vmem:[%s6 + $0x10] sm:$0xff]
    %v3129 = vld [vmem:[%s6 + $0x18] sm:$0xff]
    %v3130 = vld [vmem:[%s6 + $0x20] sm:$0xff]
    %v3131 = vld [vmem:[%s6 + $0x28] sm:$0xff]
    %v3132 = vld [vmem:[%s6 + $0x30] sm:$0xff]
    %v3133 = vld [vmem:[%s6 + $0x38] sm:$0xff]
    %v3134 = vld [vmem:[%s6 + $0x40] sm:$0xff]
    %v3135 = vld [vmem:[%s6 + $0x48] sm:$0xff]
    %v3136 = vld [vmem:[%s6 + $0x50] sm:$0xff]
    %v3137 = vld [vmem:[%s6 + $0x58] sm:$0xff]
    %v3138 = vld [vmem:[%s6 + $0x60] sm:$0xff]
    %v3139 = vld [vmem:[%s6 + $0x68] sm:$0xff]
    %v3140 = vld [vmem:[%s6 + $0x70] sm:$0xff]
    %v3141 = vld [vmem:[%s6 + $0x78] sm:$0xff]
    %v3142 = vld [vmem:[%s6 + $0x80] sm:$0xff]
    %v3143 = vld [vmem:[%s6 + $0x88] sm:$0xff]
    %v3144 = vld [vmem:[%s6 + $0x90] sm:$0xff]
    %v3145 = vld [vmem:[%s6 + $0x98] sm:$0xff]
    %v3146 = vld [vmem:[%s6 + $0xa0] sm:$0xff]
    %v3147 = vld [vmem:[%s6 + $0xa8] sm:$0xff]
    %v3148 = vld [vmem:[%s6 + $0xb0] sm:$0xff]
    %v3149 = vld [vmem:[%s6 + $0xb8] sm:$0xff]
    %v3150 = vld [vmem:[%s6 + $0xc0] sm:$0xff]
    %v3151 = vld [vmem:[%s6 + $0xc8] sm:$0xff]
    %v3152 = vld [vmem:[%s6 + $0xd0] sm:$0xff]
    %v3153 = vld [vmem:[%s6 + $0xd8] sm:$0xff]
    %v3154 = vld [vmem:[%s6 + $0xe0] sm:$0xff]
    %v3155 = vld [vmem:[%s6 + $0xe8] sm:$0xff]
    %v3156 = vld [vmem:[%s6 + $0xf0] sm:$0xff]
    %v3157 = vld [vmem:[%s6 + $0xf8] sm:$0xff]
    %3158 = vmatprep.subr.mxu0 0.0
    %3159 = vmatpush1.msra.mxu0 %v3126
    %3160 = vmatprep.subr.mxu0 0.0
    %3161 = vmatpush1.msra.mxu0 %v3127
    %3162 = vmatprep.subr.mxu0 0.0
    %3163 = vmatpush1.msra.mxu0 %v3128
    %3164 = vmatprep.subr.mxu0 0.0
    %3165 = vmatpush1.msra.mxu0 %v3129
    %3166 = vmatprep.subr.mxu0 0.0
    %3167 = vmatpush1.msra.mxu0 %v3130
    %3168 = vmatprep.subr.mxu0 0.0
    %3169 = vmatpush1.msra.mxu0 %v3131
    %3170 = vmatprep.subr.mxu0 0.0
    %3171 = vmatpush1.msra.mxu0 %v3132
    %3172 = vmatprep.subr.mxu0 0.0
    %3173 = vmatpush1.msra.mxu0 %v3133
    %3174 = vmatprep.subr.mxu0 0.0
    %3175 = vmatpush1.msra.mxu0 %v3134
    %3176 = vmatprep.subr.mxu0 0.0
    %3177 = vmatpush1.msra.mxu0 %v3135
    %3178 = vmatprep.subr.mxu0 0.0
    %3179 = vmatpush1.msra.mxu0 %v3136
    %3180 = vmatprep.subr.mxu0 0.0
    %3181 = vmatpush1.msra.mxu0 %v3137
    %3182 = vmatprep.subr.mxu0 0.0
    %3183 = vmatpush1.msra.mxu0 %v3138
    %3184 = vmatprep.subr.mxu0 0.0
    %3185 = vmatpush1.msra.mxu0 %v3139
    %3186 = vmatprep.subr.mxu0 0.0
    %3187 = vmatpush1.msra.mxu0 %v3140
    %3188 = vmatprep.subr.mxu0 0.0
    %3189 = vmatpush1.msra.mxu0 %v3141
    %3190 = vmatprep.subr.mxu0 0.0
    %3191 = vmatpush1.msra.mxu0 %v3142
    %3192 = vmatprep.subr.mxu0 0.0
    %3193 = vmatpush1.msra.mxu0 %v3143
    %3194 = vmatprep.subr.mxu0 0.0
    %3195 = vmatpush1.msra.mxu0 %v3144
    %3196 = vmatprep.subr.mxu0 0.0
    %3197 = vmatpush1.msra.mxu0 %v3145
    %3198 = vmatprep.subr.mxu0 0.0
    %3199 = vmatpush1.msra.mxu0 %v3146
    %3200 = vmatprep.subr.mxu0 0.0
    %3201 = vmatpush1.msra.mxu0 %v3147
    %3202 = vmatprep.subr.mxu0 0.0
    %3203 = vmatpush1.msra.mxu0 %v3148
    %3204 = vmatprep.subr.mxu0 0.0
    %3205 = vmatpush1.msra.mxu0 %v3149
    %3206 = vmatprep.subr.mxu0 0.0
    %3207 = vmatpush1.msra.mxu0 %v3150
    %3208 = vmatprep.subr.mxu0 0.0
    %3209 = vmatpush1.msra.mxu0 %v3151
    %3210 = vmatprep.subr.mxu0 0.0
    %3211 = vmatpush1.msra.mxu0 %v3152
    %3212 = vmatprep.subr.mxu0 0.0
    %3213 = vmatpush1.msra.mxu0 %v3153
    %3214 = vmatprep.subr.mxu0 0.0
    %3215 = vmatpush1.msra.mxu0 %v3154
    %3216 = vmatprep.subr.mxu0 0.0
    %3217 = vmatpush1.msra.mxu0 %v3155
    %3218 = vmatprep.subr.mxu0 0.0
    %3219 = vmatpush1.msra.mxu0 %v3156
    %3220 = vmatprep.subr.mxu0 0.0
    %3221 = vmatpush1.msra.mxu0 %v3157
    %3222 = vmatprep.mubr.f32.mxu0 %v2765
    %3223 = vmatmul.mubr.f32.gmra.mrb[0].mxu0 %v2764
    %v3224 = vpop.f32.mrb[0].mxu0
    %v3225 = vadd.f32 0.0, %v3224
    %v3226 = vpop.f32.mrb[0].mxu0
    %3227 = vmatprep.mubr.f32.mxu0 %v2767
    %3228 = vmatmul.mubr.f32.gmra.mrb[0].mxu0 %v2766
    %v3229 = vpop.f32.mrb[0].mxu0
    %v3230 = vadd.f32 0.0, %v3229
    %v3231 = vpop.f32.mrb[0].mxu0
    %3232 = vmatprep.mubr.f32.mxu0 %v2769
    %3233 = vmatmul.mubr.f32.gmra.mrb[0].mxu0 %v2768
    %v3234 = vpop.f32.mrb[0].mxu0
    %v3235 = vadd.f32 0.0, %v3234
    %v3236 = vpop.f32.mrb[0].mxu0
    %3237 = vmatprep.mubr.f32.mxu0 %v2771
    %3238 = vmatmul.mubr.f32.gmra.mrb[0].mxu0 %v2770
    %v3239 = vpop.f32.mrb[0].mxu0
    %v3240 = vadd.f32 0.0, %v3239
    %v3241 = vpop.f32.mrb[0].mxu0
    %3242 = vmatprep.mubr.f32.mxu0 %v2773
    %3243 = vmatmul.mubr.f32.gmra.mrb[0].mxu0 %v2772
    %v3244 = vpop.f32.mrb[0].mxu0
    %v3245 = vadd.f32 0.0, %v3244
    %v3246 = vpop.f32.mrb[0].mxu0
    %3247 = vdwg.mxu0
    %v3248 = vxor.u32 %v3225, 2147483648
    %v3249 = vxor.u32 %v3230, 2147483648
    %v3250 = vxor.u32 %v3235, 2147483648
    %v3251 = vxor.u32 %v3240, 2147483648
    %v3252 = vxor.u32 %v3245, 2147483648
    %v3253 = vmul.f32 %v3248, 1.442695
    %v3254 = vpow.pop %v3253
    %v3255 = vmul.f32 %v3249, 1.442695
    %v3256 = vpow.pop %v3255
    %v3257 = vmul.f32 %v3250, 1.442695
    %v3258 = vpow.pop %v3257
    %v3259 = vmul.f32 %v3251, 1.442695
    %v3260 = vpow.pop %v3259
    %v3261 = vmul.f32 %v3252, 1.442695
    %v3262 = vpow.pop %v3261
    %v3263 = vadd.f32 %v3254, 1.0
    %v3264 = vadd.f32 %v3256, 1.0
    %v3265 = vadd.f32 %v3258, 1.0
    %v3266 = vadd.f32 %v3260, 1.0
    %v3267 = vadd.f32 %v3262, 1.0
    %v3268 = vrcp.pop %v3263
    %v3269 = vmul.f32 1.0, %v3268
    %v3270 = vrcp.pop %v3264
    %v3271 = vmul.f32 1.0, %v3270
    %v3272 = vrcp.pop %v3265
    %v3273 = vmul.f32 1.0, %v3272
    %v3274 = vrcp.pop %v3266
    %v3275 = vmul.f32 1.0, %v3274
    %v3276 = vrcp.pop %v3267
    %v3277 = vmul.f32 1.0, %v3276
    %v3278 = vld [vmem:[%s7] sm:$0xff]
    %v3279 = vld [vmem:[%s7 + $0x8] sm:$0xff]
    %v3280 = vld [vmem:[%s7 + $0x10] sm:$0xff]
    %v3281 = vld [vmem:[%s7 + $0x18] sm:$0xff]
    %vm3282 = vcmask 130048
    %v3284 = vsel %vm3282, %v3269, 0
    %v3287 = vsel %vm3282, %v3271, 0
    %v3290 = vsel %vm3282, %v3273, 0
    %v3293 = vsel %vm3282, %v3275, 0
    %v3296 = vsel %vm3282, %v3277, 0
    %3298 = vmatprep.subr.mxu0 %v3279
    %3299 = vmatpush1.msra.mxu0 %v3278
    %3300 = vmatprep.subr.mxu0 %v3281
    %3301 = vmatpush1.msra.mxu0 %v3280
    %3302 = vmatprep.subr.mxu0 0.0
    %3303 = vmatpush1.msra.mxu0 0.0
    %3304 = vmatprep.subr.mxu0 0.0
    %3305 = vmatpush1.msra.mxu0 0.0
    %3306 = vmatprep.subr.mxu0 0.0
    %3307 = vmatpush1.msra.mxu0 0.0
    %3308 = vmatprep.subr.mxu0 0.0
    %3309 = vmatpush1.msra.mxu0 0.0
    %3310 = vmatprep.subr.mxu0 0.0
    %3311 = vmatpush1.msra.mxu0 0.0
    %3312 = vmatprep.subr.mxu0 0.0
    %3313 = vmatpush1.msra.mxu0 0.0
    %3314 = vmatprep.subr.mxu0 0.0
    %3315 = vmatpush1.msra.mxu0 0.0
    %3316 = vmatprep.subr.mxu0 0.0
    %3317 = vmatpush1.msra.mxu0 0.0
    %3318 = vmatprep.subr.mxu0 0.0
    %3319 = vmatpush1.msra.mxu0 0.0
    %3320 = vmatprep.subr.mxu0 0.0
    %3321 = vmatpush1.msra.mxu0 0.0
    %3322 = vmatprep.subr.mxu0 0.0
    %3323 = vmatpush1.msra.mxu0 0.0
    %3324 = vmatprep.subr.mxu0 0.0
    %3325 = vmatpush1.msra.mxu0 0.0
    %3326 = vmatprep.subr.mxu0 0.0
    %3327 = vmatpush1.msra.mxu0 0.0
    %3328 = vmatprep.subr.mxu0 0.0
    %3329 = vmatpush1.msra.mxu0 0.0
    %3330 = vmatprep.subr.mxu0 0.0
    %3331 = vmatpush1.msra.mxu0 0.0
    %3332 = vmatprep.subr.mxu0 0.0
    %3333 = vmatpush1.msra.mxu0 0.0
    %3334 = vmatprep.subr.mxu0 0.0
    %3335 = vmatpush1.msra.mxu0 0.0
    %3336 = vmatprep.subr.mxu0 0.0
    %3337 = vmatpush1.msra.mxu0 0.0
    %3338 = vmatprep.subr.mxu0 0.0
    %3339 = vmatpush1.msra.mxu0 0.0
    %3340 = vmatprep.subr.mxu0 0.0
    %3341 = vmatpush1.msra.mxu0 0.0
    %3342 = vmatprep.subr.mxu0 0.0
    %3343 = vmatpush1.msra.mxu0 0.0
    %3344 = vmatprep.subr.mxu0 0.0
    %3345 = vmatpush1.msra.mxu0 0.0
    %3346 = vmatprep.subr.mxu0 0.0
    %3347 = vmatpush1.msra.mxu0 0.0
    %3348 = vmatprep.subr.mxu0 0.0
    %3349 = vmatpush1.msra.mxu0 0.0
    %3350 = vmatprep.subr.mxu0 0.0
    %3351 = vmatpush1.msra.mxu0 0.0
    %3352 = vmatprep.subr.mxu0 0.0
    %3353 = vmatpush1.msra.mxu0 0.0
    %3354 = vmatprep.subr.mxu0 0.0
    %3355 = vmatpush1.msra.mxu0 0.0
    %3356 = vmatprep.subr.mxu0 0.0
    %3357 = vmatpush1.msra.mxu0 0.0
    %3358 = vmatprep.subr.mxu0 0.0
    %3359 = vmatpush1.msra.mxu0 0.0
    %3360 = vmatprep.subr.mxu0 0.0
    %3361 = vmatpush1.msra.mxu0 0.0
    %3362 = vmatprep.mubr.f32.mxu0 0.0
    %3363 = vmatmul.mubr.f32.gmra.mrb[0].mxu0 %v3284
    %v3364 = vpop.f32.mrb[0].mxu0
    %v3365 = vadd.f32 0.0, %v3364
    %v3366 = vpop.f32.mrb[0].mxu0
    %v3367 = vadd.f32 0.0, %v3366
    %3368 = vmatprep.mubr.f32.mxu0 0.0
    %3369 = vmatmul.mubr.f32.gmra.mrb[0].mxu0 %v3287
    %v3370 = vpop.f32.mrb[0].mxu0
    %v3371 = vadd.f32 0.0, %v3370
    %v3372 = vpop.f32.mrb[0].mxu0
    %v3373 = vadd.f32 0.0, %v3372
    %3374 = vmatprep.mubr.f32.mxu0 0.0
    %3375 = vmatmul.mubr.f32.gmra.mrb[0].mxu0 %v3290
    %v3376 = vpop.f32.mrb[0].mxu0
    %v3377 = vadd.f32 0.0, %v3376
    %v3378 = vpop.f32.mrb[0].mxu0
    %v3379 = vadd.f32 0.0, %v3378
    %3380 = vmatprep.mubr.f32.mxu0 0.0
    %3381 = vmatmul.mubr.f32.gmra.mrb[0].mxu0 %v3293
    %v3382 = vpop.f32.mrb[0].mxu0
    %v3383 = vadd.f32 0.0, %v3382
    %v3384 = vpop.f32.mrb[0].mxu0
    %v3385 = vadd.f32 0.0, %v3384
    %3386 = vmatprep.mubr.f32.mxu0 0.0
    %3387 = vmatmul.mubr.f32.gmra.mrb[0].mxu0 %v3296
    %v3388 = vpop.f32.mrb[0].mxu0
    %v3389 = vadd.f32 0.0, %v3388
    %v3390 = vpop.f32.mrb[0].mxu0
    %v3391 = vadd.f32 0.0, %v3390
    %3392 = vdwg.mxu0
    %v3393 = vmul.f32 %v2764, %v3098
    %v3394 = vmul.f32 %v2765, %v3100
    %v3395 = vmul.f32 %v2766, %v3104
    %v3396 = vmul.f32 %v2767, %v3106
    %v3397 = vmul.f32 %v2768, %v3110
    %v3398 = vmul.f32 %v2769, %v3112
    %v3399 = vmul.f32 %v2770, %v3116
    %v3400 = vmul.f32 %v2771, %v3118
    %v3401 = vmul.f32 %v2772, %v3122
    %v3402 = vmul.f32 %v2773, %v3124
    %v3403 = vmul.f32 %v3393, %v3365
    %v3404 = vmul.f32 %v3394, %v3367
    %v3405 = vmul.f32 %v3395, %v3371
    %v3406 = vmul.f32 %v3396, %v3373
    %v3407 = vmul.f32 %v3397, %v3377
    %v3408 = vmul.f32 %v3398, %v3379
    %v3409 = vmul.f32 %v3399, %v3383
    %v3410 = vmul.f32 %v3400, %v3385
    %v3411 = vmul.f32 %v3401, %v3389
    %v3412 = vmul.f32 %v3402, %v3391
    %v3413 = vmul.f32 %v3403, %v705
    %v3414 = vmul.f32 %v3404, %v705
    %v3415 = vmul.f32 %v3405, %v710
    %v3416 = vmul.f32 %v3406, %v710
    %v3417 = vmul.f32 %v3407, %v715
    %v3418 = vmul.f32 %v3408, %v715
    %v3419 = vmul.f32 %v3409, %v720
    %v3420 = vmul.f32 %v3410, %v720
    %v3421 = vmul.f32 %v3411, %v725
    %v3422 = vmul.f32 %v3412, %v725
    %v3423 = vadd.f32 %v3413, %v727
    %v3424 = vadd.f32 %v3414, %v728
    %v3425 = vadd.f32 %v3415, %v729
    %v3426 = vadd.f32 %v3416, %v730
    %v3427 = vadd.f32 %v3417, %v731
    %v3428 = vadd.f32 %v3418, %v732
    %v3429 = vadd.f32 %v3419, %v733
    %v3430 = vadd.f32 %v3420, %v734
    %v3431 = vadd.f32 %v3421, %v735
    %v3432 = vadd.f32 %v3422, %v736
    %v3433 = vpack.c.bf16 %v3425, %v3423
    %v3434 = vpack.c.bf16 %v3426, %v3424
    %v3435 = vpack.c.bf16 %v3429, %v3427
    %v3436 = vpack.c.bf16 %v3430, %v3428
    %v3437 = vpack.c.bf16 %v3431, %v3431
    %v3438 = vpack.c.bf16 %v3432, %v3432
    %v3445 = vunpack.c.l.b16 %v3433
    %v3446 = vunpack.c.l.b16 %v3434
    %v3447 = vunpack.c.h.b16 %v3433
    %v3448 = vunpack.c.h.b16 %v3434
    %v3449 = vunpack.c.l.b16 %v3435
    %v3450 = vunpack.c.l.b16 %v3436
    %v3451 = vunpack.c.h.b16 %v3435
    %v3452 = vunpack.c.h.b16 %v3436
    %v3453 = vunpack.c.l.b16 %v3437
    %v3454 = vunpack.c.l.b16 %v3438
    %v3455 = vpack.c.b16 %v3446, %v3445
    %v3456 = vpack.c.b16 %v3448, %v3447
    %v3457 = vpack.c.b16 %v3450, %v3449
    %v3458 = vpack.c.b16 %v3452, %v3451
    %v3459 = vpack.c.b16 %v3454, %v3453
    %v3461 = vshrl.u32 %v3455, 16
    %v3463 = vrot.slane %v3461, 7
    %v3464 = vshll.u32 %v3455, 16
    %v3466 = vor.u32 %v3463, %v3464
    %v3467 = vrot.slane %v3463, 4
    %v3469 = vshrl.u32 %v3456, 16
    %v3471 = vrot.slane %v3469, 7
    %v3472 = vshll.u32 %v3456, 16
    %v3474 = vor.u32 %v3471, %v3472
    %v3475 = vsel %vm765, %v3467, %v3474
    %v3476 = vrot.slane %v3471, 4
    %v3478 = vshrl.u32 %v3457, 16
    %v3480 = vrot.slane %v3478, 7
    %v3481 = vshll.u32 %v3457, 16
    %v3483 = vor.u32 %v3480, %v3481
    %v3484 = vsel %vm765, %v3476, %v3483
    %v3485 = vrot.slane %v3480, 4
    %v3487 = vshrl.u32 %v3458, 16
    %v3489 = vrot.slane %v3487, 7
    %v3490 = vshll.u32 %v3458, 16
    %v3492 = vor.u32 %v3489, %v3490
    %v3493 = vsel %vm765, %v3485, %v3492
    %v3494 = vrot.slane %v3489, 4
    %v3496 = vshrl.u32 %v3459, 16
    %v3498 = vrot.slane %v3496, 7
    %v3499 = vshll.u32 %v3459, 16
    %v3501 = vor.u32 %v3498, %v3499
    %v3502 = vsel %vm765, %v3494, %v3501
    %v3508 = vsel %vm820, %v3466, %v1869
    %3509 = vst [vmem:[#allocation3] sm:$0xff] %v3508
    %3510 = vst [vmem:[#allocation3 + $0x8] sm:$0xff] %v3475
    %3511 = vst [vmem:[#allocation3 + $0x10] sm:$0xff] %v3484
    %3512 = vst [vmem:[#allocation3 + $0x18] sm:$0xff] %v3493
    %v3513 = vld [vmem:[#allocation3 + $0x20] sm:$0x77]
    %v3514 = vsel %vm833, %v3502, %v3513
    %3515 = vst [vmem:[#allocation3 + $0x20] sm:$0x77] %v3514
    %s3516 = scalar_lea.vmem %s4, 4
    %v3517 = vld [vmem:[%s3516] sm:$0x3]
    %v3518 = vld [vmem:[#allocation3] sm:$0xff]
    %v3519 = vld [vmem:[#allocation3 + $0x8] sm:$0xff]
    %v3520 = vld [vmem:[#allocation3 + $0x10] sm:$0xff]
    %v3521 = vld [vmem:[#allocation3 + $0x18] sm:$0xff]
    %v3522 = vld [vmem:[#allocation3 + $0x20] sm:$0x33]
    %s3523 = scalar_lea.vmem %s3, 1536
    %v3524 = vld [vmem:[%s3523] sm:$0xff]
    %v3525 = vld [vmem:[%s3523 + $0x8] sm:$0xff]
    %v3526 = vld [vmem:[%s3523 + $0x10] sm:$0xff]
    %v3527 = vld [vmem:[%s3523 + $0x18] sm:$0xff]
    %v3528 = vld [vmem:[%s3523 + $0x20] sm:$0xff]
    %v3529 = vld [vmem:[%s3523 + $0x28] sm:$0xff]
    %v3530 = vld [vmem:[%s3523 + $0x30] sm:$0xff]
    %v3531 = vld [vmem:[%s3523 + $0x38] sm:$0xff]
    %v3532 = vld [vmem:[%s3523 + $0x40] sm:$0xff]
    %v3533 = vld [vmem:[%s3523 + $0x48] sm:$0xff]
    %v3534 = vld [vmem:[%s3523 + $0x50] sm:$0xff]
    %v3535 = vld [vmem:[%s3523 + $0x58] sm:$0xff]
    %v3536 = vld [vmem:[%s3523 + $0x60] sm:$0xff]
    %v3537 = vld [vmem:[%s3523 + $0x68] sm:$0xff]
    %v3538 = vld [vmem:[%s3523 + $0x70] sm:$0xff]
    %v3539 = vld [vmem:[%s3523 + $0x78] sm:$0xff]
    %v3540 = vld [vmem:[%s3523 + $0x80] sm:$0xff]
    %v3541 = vld [vmem:[%s3523 + $0x88] sm:$0xff]
    %v3542 = vld [vmem:[%s3523 + $0x90] sm:$0xff]
    %v3543 = vld [vmem:[%s3523 + $0x98] sm:$0xff]
    %v3544 = vld [vmem:[%s3523 + $0xa0] sm:$0xff]
    %v3545 = vld [vmem:[%s3523 + $0xa8] sm:$0xff]
    %v3546 = vld [vmem:[%s3523 + $0xb0] sm:$0xff]
    %v3547 = vld [vmem:[%s3523 + $0xb8] sm:$0xff]
    %v3548 = vld [vmem:[%s3523 + $0xc0] sm:$0xff]
    %v3549 = vld [vmem:[%s3523 + $0xc8] sm:$0xff]
    %v3550 = vld [vmem:[%s3523 + $0xd0] sm:$0xff]
    %v3551 = vld [vmem:[%s3523 + $0xd8] sm:$0xff]
    %v3552 = vld [vmem:[%s3523 + $0xe0] sm:$0xff]
    %v3553 = vld [vmem:[%s3523 + $0xe8] sm:$0xff]
    %v3554 = vld [vmem:[%s3523 + $0xf0] sm:$0xff]
    %v3555 = vld [vmem:[%s3523 + $0xf8] sm:$0xff]
    %v3556 = vld [vmem:[#allocation3 + $0x20] sm:$0x77]
    %s3557 = scalar_lea.vmem %s3, 1792
    %v3558 = vld [vmem:[%s3557] sm:$0xff]
    %v3559 = vld [vmem:[%s3557 + $0x8] sm:$0xff]
    %v3560 = vld [vmem:[%s3557 + $0x10] sm:$0xff]
    %v3561 = vld [vmem:[%s3557 + $0x18] sm:$0xff]
    %v3562 = vld [vmem:[%s3557 + $0x20] sm:$0xff]
    %v3563 = vld [vmem:[%s3557 + $0x28] sm:$0xff]
    %v3564 = vld [vmem:[%s3557 + $0x30] sm:$0xff]
    %v3565 = vld [vmem:[%s3557 + $0x38] sm:$0xff]
    %v3566 = vld [vmem:[%s3557 + $0x40] sm:$0xff]
    %v3567 = vld [vmem:[%s3557 + $0x48] sm:$0xff]
    %v3568 = vld [vmem:[%s3557 + $0x50] sm:$0xff]
    %v3569 = vld [vmem:[%s3557 + $0x58] sm:$0xff]
    %v3570 = vld [vmem:[%s3557 + $0x60] sm:$0xff]
    %v3571 = vld [vmem:[%s3557 + $0x68] sm:$0xff]
    %v3572 = vld [vmem:[%s3557 + $0x70] sm:$0xff]
    %v3573 = vld [vmem:[%s3557 + $0x78] sm:$0xff]
    %v3574 = vld [vmem:[%s3557 + $0x80] sm:$0xff]
    %v3575 = vld [vmem:[%s3557 + $0x88] sm:$0xff]
    %v3576 = vld [vmem:[%s3557 + $0x90] sm:$0xff]
    %v3577 = vld [vmem:[%s3557 + $0x98] sm:$0xff]
    %v3578 = vld [vmem:[%s3557 + $0xa0] sm:$0xff]
    %v3579 = vld [vmem:[%s3557 + $0xa8] sm:$0xff]
    %v3580 = vld [vmem:[%s3557 + $0xb0] sm:$0xff]
    %v3581 = vld [vmem:[%s3557 + $0xb8] sm:$0xff]
    %v3582 = vld [vmem:[%s3557 + $0xc0] sm:$0xff]
    %v3583 = vld [vmem:[%s3557 + $0xc8] sm:$0xff]
    %v3584 = vld [vmem:[%s3557 + $0xd0] sm:$0xff]
    %v3585 = vld [vmem:[%s3557 + $0xd8] sm:$0xff]
    %v3586 = vld [vmem:[%s3557 + $0xe0] sm:$0xff]
    %v3587 = vld [vmem:[%s3557 + $0xe8] sm:$0xff]
    %v3588 = vld [vmem:[%s3557 + $0xf0] sm:$0xff]
    %v3589 = vld [vmem:[%s3557 + $0xf8] sm:$0xff]
    %v3595 = vunpack.c.l.b16 %v3518
    %v3596 = vunpack.c.h.b16 %v3518
    %v3597 = vunpack.c.l.b16 %v3519
    %v3598 = vunpack.c.h.b16 %v3519
    %v3599 = vunpack.c.l.b16 %v3520
    %v3600 = vunpack.c.h.b16 %v3520
    %v3601 = vunpack.c.l.b16 %v3521
    %v3602 = vunpack.c.h.b16 %v3521
    %v3603 = vunpack.c.l.b16 %v3556
    %v3604 = vunpack.c.h.b16 %v3556
    %v3605 = vpack.c.b16 %v3597, %v3595
    %v3606 = vpack.c.b16 %v3598, %v3596
    %v3607 = vpack.c.b16 %v3601, %v3599
    %v3608 = vpack.c.b16 %v3602, %v3600
    %v3609 = vpack.c.b16 %v3603, %v3603
    %v3610 = vpack.c.b16 %v3604, %v3604
    %v3612 = vshrl.u32 %v3605, 16
    %v3614 = vshll.u32 %v3605, 16
    %v3616 = vrot.slane %v3614, 1
    %v3617 = vor.u32 %v3612, %v3616
    %v3619 = vshll.u32 %v3607, 16
    %v3621 = vrot.slane %v3619, 1
    %v3622 = vsel %vm185, %v3617, %v3621
    %v3624 = vshrl.u32 %v3606, 16
    %v3626 = vshll.u32 %v3606, 16
    %v3628 = vrot.slane %v3626, 1
    %v3629 = vor.u32 %v3624, %v3628
    %v3631 = vshll.u32 %v3608, 16
    %v3633 = vrot.slane %v3631, 1
    %v3634 = vsel %vm185, %v3629, %v3633
    %v3635 = vshrl.u32 %v3607, 16
    %v3637 = vor.u32 %v3635, %v3621
    %v3639 = vshll.u32 %v3609, 16
    %v3641 = vrot.slane %v3639, 1
    %v3642 = vsel %vm185, %v3637, %v3641
    %v3643 = vshrl.u32 %v3608, 16
    %v3645 = vor.u32 %v3643, %v3633
    %v3647 = vshll.u32 %v3610, 16
    %v3649 = vrot.slane %v3647, 1
    %v3650 = vsel %vm185, %v3645, %v3649
    %v3651 = vshrl.u32 %v3609, 16
    %v3653 = vor.u32 %v3651, %v3641
    %v3654 = vshrl.u32 %v3610, 16
    %v3656 = vor.u32 %v3654, %v3649
    %v3695 = vunpack.c.l.b16 %v3558
    %v3696 = vunpack.c.h.b16 %v3558
    %v3697 = vunpack.c.l.b16 %v3559
    %v3698 = vunpack.c.h.b16 %v3559
    %v3699 = vunpack.c.l.b16 %v3560
    %v3700 = vunpack.c.h.b16 %v3560
    %v3701 = vunpack.c.l.b16 %v3561
    %v3702 = vunpack.c.h.b16 %v3561
    %v3703 = vunpack.c.l.b16 %v3562
    %v3704 = vunpack.c.h.b16 %v3562
    %v3705 = vunpack.c.l.b16 %v3563
    %v3706 = vunpack.c.h.b16 %v3563
    %v3707 = vunpack.c.l.b16 %v3564
    %v3708 = vunpack.c.h.b16 %v3564
    %v3709 = vunpack.c.l.b16 %v3565
    %v3710 = vunpack.c.h.b16 %v3565
    %v3711 = vunpack.c.l.b16 %v3566
    %v3712 = vunpack.c.h.b16 %v3566
    %v3713 = vunpack.c.l.b16 %v3567
    %v3714 = vunpack.c.h.b16 %v3567
    %v3715 = vunpack.c.l.b16 %v3568
    %v3716 = vunpack.c.h.b16 %v3568
    %v3717 = vunpack.c.l.b16 %v3569
    %v3718 = vunpack.c.h.b16 %v3569
    %v3719 = vunpack.c.l.b16 %v3570
    %v3720 = vunpack.c.h.b16 %v3570
    %v3721 = vunpack.c.l.b16 %v3571
    %v3722 = vunpack.c.h.b16 %v3571
    %v3723 = vunpack.c.l.b16 %v3572
    %v3724 = vunpack.c.h.b16 %v3572
    %v3725 = vunpack.c.l.b16 %v3573
    %v3726 = vunpack.c.h.b16 %v3573
    %v3727 = vunpack.c.l.b16 %v3574
    %v3728 = vunpack.c.h.b16 %v3574
    %v3729 = vunpack.c.l.b16 %v3575
    %v3730 = vunpack.c.h.b16 %v3575
    %v3731 = vunpack.c.l.b16 %v3576
    %v3732 = vunpack.c.h.b16 %v3576
    %v3733 = vunpack.c.l.b16 %v3577
    %v3734 = vunpack.c.h.b16 %v3577
    %v3735 = vunpack.c.l.b16 %v3578
    %v3736 = vunpack.c.h.b16 %v3578
    %v3737 = vunpack.c.l.b16 %v3579
    %v3738 = vunpack.c.h.b16 %v3579
    %v3739 = vunpack.c.l.b16 %v3580
    %v3740 = vunpack.c.h.b16 %v3580
    %v3741 = vunpack.c.l.b16 %v3581
    %v3742 = vunpack.c.h.b16 %v3581
    %v3743 = vunpack.c.l.b16 %v3582
    %v3744 = vunpack.c.h.b16 %v3582
    %v3745 = vunpack.c.l.b16 %v3583
    %v3746 = vunpack.c.h.b16 %v3583
    %v3747 = vunpack.c.l.b16 %v3584
    %v3748 = vunpack.c.h.b16 %v3584
    %v3749 = vunpack.c.l.b16 %v3585
    %v3750 = vunpack.c.h.b16 %v3585
    %v3751 = vunpack.c.l.b16 %v3586
    %v3752 = vunpack.c.h.b16 %v3586
    %v3753 = vunpack.c.l.b16 %v3587
    %v3754 = vunpack.c.h.b16 %v3587
    %v3755 = vunpack.c.l.b16 %v3588
    %v3756 = vunpack.c.h.b16 %v3588
    %v3757 = vunpack.c.l.b16 %v3589
    %v3758 = vunpack.c.h.b16 %v3589
    %v3759 = vpack.c.b16 %v3697, %v3695
    %v3760 = vpack.c.b16 %v3698, %v3696
    %v3761 = vpack.c.b16 %v3701, %v3699
    %v3762 = vpack.c.b16 %v3702, %v3700
    %v3763 = vpack.c.b16 %v3705, %v3703
    %v3764 = vpack.c.b16 %v3706, %v3704
    %v3765 = vpack.c.b16 %v3709, %v3707
    %v3766 = vpack.c.b16 %v3710, %v3708
    %v3767 = vpack.c.b16 %v3713, %v3711
    %v3768 = vpack.c.b16 %v3714, %v3712
    %v3769 = vpack.c.b16 %v3717, %v3715
    %v3770 = vpack.c.b16 %v3718, %v3716
    %v3771 = vpack.c.b16 %v3721, %v3719
    %v3772 = vpack.c.b16 %v3722, %v3720
    %v3773 = vpack.c.b16 %v3725, %v3723
    %v3774 = vpack.c.b16 %v3726, %v3724
    %v3775 = vpack.c.b16 %v3729, %v3727
    %v3776 = vpack.c.b16 %v3730, %v3728
    %v3777 = vpack.c.b16 %v3733, %v3731
    %v3778 = vpack.c.b16 %v3734, %v3732
    %v3779 = vpack.c.b16 %v3737, %v3735
    %v3780 = vpack.c.b16 %v3738, %v3736
    %v3781 = vpack.c.b16 %v3741, %v3739
    %v3782 = vpack.c.b16 %v3742, %v3740
    %v3783 = vpack.c.b16 %v3745, %v3743
    %v3784 = vpack.c.b16 %v3746, %v3744
    %v3785 = vpack.c.b16 %v3749, %v3747
    %v3786 = vpack.c.b16 %v3750, %v3748
    %v3787 = vpack.c.b16 %v3753, %v3751
    %v3788 = vpack.c.b16 %v3754, %v3752
    %v3789 = vpack.c.b16 %v3757, %v3755
    %v3790 = vpack.c.b16 %v3758, %v3756
    %3823 = vmatprep.subr.bf16.mxu0 %v3760
    %3824 = vmatpush1.bf16.msra.mxu0 %v3759
    %3825 = vmatprep.subr.bf16.mxu0 %v3762
    %3826 = vmatpush1.bf16.msra.mxu0 %v3761
    %3827 = vmatprep.subr.bf16.mxu0 %v3764
    %3828 = vmatpush1.bf16.msra.mxu0 %v3763
    %3829 = vmatprep.subr.bf16.mxu0 %v3766
    %3830 = vmatpush1.bf16.msra.mxu0 %v3765
    %3831 = vmatprep.subr.bf16.mxu0 %v3768
    %3832 = vmatpush1.bf16.msra.mxu0 %v3767
    %3833 = vmatprep.subr.bf16.mxu0 %v3770
    %3834 = vmatpush1.bf16.msra.mxu0 %v3769
    %3835 = vmatprep.subr.bf16.mxu0 %v3772
    %3836 = vmatpush1.bf16.msra.mxu0 %v3771
    %3837 = vmatprep.subr.bf16.mxu0 %v3774
    %3838 = vmatpush1.bf16.msra.mxu0 %v3773
    %3839 = vmatprep.subr.bf16.mxu0 %v3776
    %3840 = vmatpush1.bf16.msra.mxu0 %v3775
    %3841 = vmatprep.subr.bf16.mxu0 %v3778
    %3842 = vmatpush1.bf16.msra.mxu0 %v3777
    %3843 = vmatprep.subr.bf16.mxu0 %v3780
    %3844 = vmatpush1.bf16.msra.mxu0 %v3779
    %3845 = vmatprep.subr.bf16.mxu0 %v3782
    %3846 = vmatpush1.bf16.msra.mxu0 %v3781
    %3847 = vmatprep.subr.bf16.mxu0 %v3784
    %3848 = vmatpush1.bf16.msra.mxu0 %v3783
    %3849 = vmatprep.subr.bf16.mxu0 %v3786
    %3850 = vmatpush1.bf16.msra.mxu0 %v3785
    %3851 = vmatprep.subr.bf16.mxu0 %v3788
    %3852 = vmatpush1.bf16.msra.mxu0 %v3787
    %3853 = vmatprep.subr.bf16.mxu0 %v3790
    %3854 = vmatpush1.bf16.msra.mxu0 %v3789
    %3855 = vmatprep.mubr.bf16.mxu0 %v3634
    %3856 = vmatmul.mubr.bf16.gmra.mrb[0].mxu0 %v3622
    %v3857 = vpop.f32.mrb[0].mxu0
    %v3858 = vadd.f32 0.0, %v3857
    %v3859 = vpop.f32.mrb[0].mxu0
    %v3860 = vadd.f32 0.0, %v3859
    %v3861 = vpop.f32.mrb[0].mxu0
    %v3862 = vadd.f32 0.0, %v3861
    %v3863 = vpop.f32.mrb[0].mxu0
    %v3864 = vadd.f32 0.0, %v3863
    %3865 = vmatprep.mubr.bf16.mxu0 %v3650
    %3866 = vmatmul.mubr.bf16.gmra.mrb[0].mxu0 %v3642
    %v3867 = vpop.f32.mrb[0].mxu0
    %v3868 = vadd.f32 0.0, %v3867
    %v3869 = vpop.f32.mrb[0].mxu0
    %v3870 = vadd.f32 0.0, %v3869
    %v3871 = vpop.f32.mrb[0].mxu0
    %v3872 = vadd.f32 0.0, %v3871
    %v3873 = vpop.f32.mrb[0].mxu0
    %v3874 = vadd.f32 0.0, %v3873
    %3875 = vmatprep.mubr.bf16.mxu0 %v3656
    %3876 = vmatmul.mubr.bf16.gmra.mrb[0].mxu0 %v3653
    %v3877 = vpop.f32.mrb[0].mxu0
    %v3878 = vadd.f32 0.0, %v3877
    %v3879 = vpop.f32.mrb[0].mxu0
    %v3880 = vadd.f32 0.0, %v3879
    %v3881 = vpop.f32.mrb[0].mxu0
    %v3882 = vpop.f32.mrb[0].mxu0
    %3883 = vdwg.mxu0
    %v3885 = vunpack.c.l.b16 %v3522
    %v3886 = vunpack.c.h.b16 %v3522
    %v3887 = vpack.c.b16 %v3885, %v3885
    %v3888 = vpack.c.b16 %v3886, %v3886
    %v3927 = vunpack.c.l.b16 %v3524
    %v3928 = vunpack.c.h.b16 %v3524
    %v3929 = vunpack.c.l.b16 %v3525
    %v3930 = vunpack.c.h.b16 %v3525
    %v3931 = vunpack.c.l.b16 %v3526
    %v3932 = vunpack.c.h.b16 %v3526
    %v3933 = vunpack.c.l.b16 %v3527
    %v3934 = vunpack.c.h.b16 %v3527
    %v3935 = vunpack.c.l.b16 %v3528
    %v3936 = vunpack.c.h.b16 %v3528
    %v3937 = vunpack.c.l.b16 %v3529
    %v3938 = vunpack.c.h.b16 %v3529
    %v3939 = vunpack.c.l.b16 %v3530
    %v3940 = vunpack.c.h.b16 %v3530
    %v3941 = vunpack.c.l.b16 %v3531
    %v3942 = vunpack.c.h.b16 %v3531
    %v3943 = vunpack.c.l.b16 %v3532
    %v3944 = vunpack.c.h.b16 %v3532
    %v3945 = vunpack.c.l.b16 %v3533
    %v3946 = vunpack.c.h.b16 %v3533
    %v3947 = vunpack.c.l.b16 %v3534
    %v3948 = vunpack.c.h.b16 %v3534
    %v3949 = vunpack.c.l.b16 %v3535
    %v3950 = vunpack.c.h.b16 %v3535
    %v3951 = vunpack.c.l.b16 %v3536
    %v3952 = vunpack.c.h.b16 %v3536
    %v3953 = vunpack.c.l.b16 %v3537
    %v3954 = vunpack.c.h.b16 %v3537
    %v3955 = vunpack.c.l.b16 %v3538
    %v3956 = vunpack.c.h.b16 %v3538
    %v3957 = vunpack.c.l.b16 %v3539
    %v3958 = vunpack.c.h.b16 %v3539
    %v3959 = vunpack.c.l.b16 %v3540
    %v3960 = vunpack.c.h.b16 %v3540
    %v3961 = vunpack.c.l.b16 %v3541
    %v3962 = vunpack.c.h.b16 %v3541
    %v3963 = vunpack.c.l.b16 %v3542
    %v3964 = vunpack.c.h.b16 %v3542
    %v3965 = vunpack.c.l.b16 %v3543
    %v3966 = vunpack.c.h.b16 %v3543
    %v3967 = vunpack.c.l.b16 %v3544
    %v3968 = vunpack.c.h.b16 %v3544
    %v3969 = vunpack.c.l.b16 %v3545
    %v3970 = vunpack.c.h.b16 %v3545
    %v3971 = vunpack.c.l.b16 %v3546
    %v3972 = vunpack.c.h.b16 %v3546
    %v3973 = vunpack.c.l.b16 %v3547
    %v3974 = vunpack.c.h.b16 %v3547
    %v3975 = vunpack.c.l.b16 %v3548
    %v3976 = vunpack.c.h.b16 %v3548
    %v3977 = vunpack.c.l.b16 %v3549
    %v3978 = vunpack.c.h.b16 %v3549
    %v3979 = vunpack.c.l.b16 %v3550
    %v3980 = vunpack.c.h.b16 %v3550
    %v3981 = vunpack.c.l.b16 %v3551
    %v3982 = vunpack.c.h.b16 %v3551
    %v3983 = vunpack.c.l.b16 %v3552
    %v3984 = vunpack.c.h.b16 %v3552
    %v3985 = vunpack.c.l.b16 %v3553
    %v3986 = vunpack.c.h.b16 %v3553
    %v3987 = vunpack.c.l.b16 %v3554
    %v3988 = vunpack.c.h.b16 %v3554
    %v3989 = vunpack.c.l.b16 %v3555
    %v3990 = vunpack.c.h.b16 %v3555
    %v3991 = vpack.c.b16 %v3929, %v3927
    %v3992 = vpack.c.b16 %v3930, %v3928
    %v3993 = vpack.c.b16 %v3933, %v3931
    %v3994 = vpack.c.b16 %v3934, %v3932
    %v3995 = vpack.c.b16 %v3937, %v3935
    %v3996 = vpack.c.b16 %v3938, %v3936
    %v3997 = vpack.c.b16 %v3941, %v3939
    %v3998 = vpack.c.b16 %v3942, %v3940
    %v3999 = vpack.c.b16 %v3945, %v3943
    %v4000 = vpack.c.b16 %v3946, %v3944
    %v4001 = vpack.c.b16 %v3949, %v3947
    %v4002 = vpack.c.b16 %v3950, %v3948
    %v4003 = vpack.c.b16 %v3953, %v3951
    %v4004 = vpack.c.b16 %v3954, %v3952
    %v4005 = vpack.c.b16 %v3957, %v3955
    %v4006 = vpack.c.b16 %v3958, %v3956
    %v4007 = vpack.c.b16 %v3961, %v3959
    %v4008 = vpack.c.b16 %v3962, %v3960
    %v4009 = vpack.c.b16 %v3965, %v3963
    %v4010 = vpack.c.b16 %v3966, %v3964
    %v4011 = vpack.c.b16 %v3969, %v3967
    %v4012 = vpack.c.b16 %v3970, %v3968
    %v4013 = vpack.c.b16 %v3973, %v3971
    %v4014 = vpack.c.b16 %v3974, %v3972
    %v4015 = vpack.c.b16 %v3977, %v3975
    %v4016 = vpack.c.b16 %v3978, %v3976
    %v4017 = vpack.c.b16 %v3981, %v3979
    %v4018 = vpack.c.b16 %v3982, %v3980
    %v4019 = vpack.c.b16 %v3985, %v3983
    %v4020 = vpack.c.b16 %v3986, %v3984
    %v4021 = vpack.c.b16 %v3989, %v3987
    %v4022 = vpack.c.b16 %v3990, %v3988
    %4055 = vmatprep.subr.bf16.mxu0 %v3992
    %4056 = vmatpush1.bf16.msra.mxu0 %v3991
    %4057 = vmatprep.subr.bf16.mxu0 %v3994
    %4058 = vmatpush1.bf16.msra.mxu0 %v3993
    %4059 = vmatprep.subr.bf16.mxu0 %v3996
    %4060 = vmatpush1.bf16.msra.mxu0 %v3995
    %4061 = vmatprep.subr.bf16.mxu0 %v3998
    %4062 = vmatpush1.bf16.msra.mxu0 %v3997
    %4063 = vmatprep.subr.bf16.mxu0 %v4000
    %4064 = vmatpush1.bf16.msra.mxu0 %v3999
    %4065 = vmatprep.subr.bf16.mxu0 %v4002
    %4066 = vmatpush1.bf16.msra.mxu0 %v4001
    %4067 = vmatprep.subr.bf16.mxu0 %v4004
    %4068 = vmatpush1.bf16.msra.mxu0 %v4003
    %4069 = vmatprep.subr.bf16.mxu0 %v4006
    %4070 = vmatpush1.bf16.msra.mxu0 %v4005
    %4071 = vmatprep.subr.bf16.mxu0 %v4008
    %4072 = vmatpush1.bf16.msra.mxu0 %v4007
    %4073 = vmatprep.subr.bf16.mxu0 %v4010
    %4074 = vmatpush1.bf16.msra.mxu0 %v4009
    %4075 = vmatprep.subr.bf16.mxu0 %v4012
    %4076 = vmatpush1.bf16.msra.mxu0 %v4011
    %4077 = vmatprep.subr.bf16.mxu0 %v4014
    %4078 = vmatpush1.bf16.msra.mxu0 %v4013
    %4079 = vmatprep.subr.bf16.mxu0 %v4016
    %4080 = vmatpush1.bf16.msra.mxu0 %v4015
    %4081 = vmatprep.subr.bf16.mxu0 %v4018
    %4082 = vmatpush1.bf16.msra.mxu0 %v4017
    %4083 = vmatprep.subr.bf16.mxu0 %v4020
    %4084 = vmatpush1.bf16.msra.mxu0 %v4019
    %4085 = vmatprep.subr.bf16.mxu0 %v4022
    %4086 = vmatpush1.bf16.msra.mxu0 %v4021
    %4087 = vmatprep.mubr.bf16.mxu0 %v3606
    %4088 = vmatmul.mubr.bf16.gmra.mrb[0].mxu0 %v3605
    %v4089 = vpop.f32.mrb[0].mxu0
    %v4090 = vadd.f32 %v3858, %v4089
    %v4091 = vpop.f32.mrb[0].mxu0
    %v4092 = vadd.f32 %v3860, %v4091
    %v4093 = vpop.f32.mrb[0].mxu0
    %v4094 = vadd.f32 %v3862, %v4093
    %v4095 = vpop.f32.mrb[0].mxu0
    %v4096 = vadd.f32 %v3864, %v4095
    %4097 = vmatprep.mubr.bf16.mxu0 %v3608
    %4098 = vmatmul.mubr.bf16.gmra.mrb[0].mxu0 %v3607
    %v4099 = vpop.f32.mrb[0].mxu0
    %v4100 = vadd.f32 %v3868, %v4099
    %v4101 = vpop.f32.mrb[0].mxu0
    %v4102 = vadd.f32 %v3870, %v4101
    %v4103 = vpop.f32.mrb[0].mxu0
    %v4104 = vadd.f32 %v3872, %v4103
    %v4105 = vpop.f32.mrb[0].mxu0
    %v4106 = vadd.f32 %v3874, %v4105
    %4107 = vmatprep.mubr.bf16.mxu0 %v3888
    %4108 = vmatmul.mubr.bf16.gmra.mrb[0].mxu0 %v3887
    %v4109 = vpop.f32.mrb[0].mxu0
    %v4110 = vadd.f32 %v3878, %v4109
    %v4111 = vpop.f32.mrb[0].mxu0
    %v4112 = vadd.f32 %v3880, %v4111
    %v4113 = vpop.f32.mrb[0].mxu0
    %v4114 = vpop.f32.mrb[0].mxu0
    %4115 = vdwg.mxu0
    %v4116 = vld [vmem:[#allocation3] sm:$0xee]
    %s4117 = scalar_lea.vmem %s3, 2048
    %v4118 = vld [vmem:[%s4117] sm:$0xff]
    %v4119 = vld [vmem:[%s4117 + $0x8] sm:$0xff]
    %v4120 = vld [vmem:[%s4117 + $0x10] sm:$0xff]
    %v4121 = vld [vmem:[%s4117 + $0x18] sm:$0xff]
    %v4122 = vld [vmem:[%s4117 + $0x20] sm:$0xff]
    %v4123 = vld [vmem:[%s4117 + $0x28] sm:$0xff]
    %v4124 = vld [vmem:[%s4117 + $0x30] sm:$0xff]
    %v4125 = vld [vmem:[%s4117 + $0x38] sm:$0xff]
    %v4126 = vld [vmem:[%s4117 + $0x40] sm:$0xff]
    %v4127 = vld [vmem:[%s4117 + $0x48] sm:$0xff]
    %v4128 = vld [vmem:[%s4117 + $0x50] sm:$0xff]
    %v4129 = vld [vmem:[%s4117 + $0x58] sm:$0xff]
    %v4130 = vld [vmem:[%s4117 + $0x60] sm:$0xff]
    %v4131 = vld [vmem:[%s4117 + $0x68] sm:$0xff]
    %v4132 = vld [vmem:[%s4117 + $0x70] sm:$0xff]
    %v4133 = vld [vmem:[%s4117 + $0x78] sm:$0xff]
    %v4134 = vld [vmem:[%s4117 + $0x80] sm:$0xff]
    %v4135 = vld [vmem:[%s4117 + $0x88] sm:$0xff]
    %v4136 = vld [vmem:[%s4117 + $0x90] sm:$0xff]
    %v4137 = vld [vmem:[%s4117 + $0x98] sm:$0xff]
    %v4138 = vld [vmem:[%s4117 + $0xa0] sm:$0xff]
    %v4139 = vld [vmem:[%s4117 + $0xa8] sm:$0xff]
    %v4140 = vld [vmem:[%s4117 + $0xb0] sm:$0xff]
    %v4141 = vld [vmem:[%s4117 + $0xb8] sm:$0xff]
    %v4142 = vld [vmem:[%s4117 + $0xc0] sm:$0xff]
    %v4143 = vld [vmem:[%s4117 + $0xc8] sm:$0xff]
    %v4144 = vld [vmem:[%s4117 + $0xd0] sm:$0xff]
    %v4145 = vld [vmem:[%s4117 + $0xd8] sm:$0xff]
    %v4146 = vld [vmem:[%s4117 + $0xe0] sm:$0xff]
    %v4147 = vld [vmem:[%s4117 + $0xe8] sm:$0xff]
    %v4148 = vld [vmem:[%s4117 + $0xf0] sm:$0xff]
    %v4149 = vld [vmem:[%s4117 + $0xf8] sm:$0xff]
    %v4151 = vunpack.c.l.b16 %v4116
    %v4152 = vunpack.c.h.b16 %v4116
    %v4153 = vpack.c.b16 %v3597, %v4151
    %v4154 = vpack.c.b16 %v3598, %v4152
    %v4155 = vrot.slane %v4153, 1
    %v4156 = vrot.slane %v3607, 1
    %v4157 = vsel %vm521, %v4155, %v4156
    %v4158 = vrot.slane %v4154, 1
    %v4159 = vrot.slane %v3608, 1
    %v4160 = vsel %vm521, %v4158, %v4159
    %v4161 = vrot.slane %v3609, 1
    %v4162 = vsel %vm521, %v4156, %v4161
    %v4163 = vrot.slane %v3610, 1
    %v4164 = vsel %vm521, %v4159, %v4163
    %v4203 = vunpack.c.l.b16 %v4118
    %v4204 = vunpack.c.h.b16 %v4118
    %v4205 = vunpack.c.l.b16 %v4119
    %v4206 = vunpack.c.h.b16 %v4119
    %v4207 = vunpack.c.l.b16 %v4120
    %v4208 = vunpack.c.h.b16 %v4120
    %v4209 = vunpack.c.l.b16 %v4121
    %v4210 = vunpack.c.h.b16 %v4121
    %v4211 = vunpack.c.l.b16 %v4122
    %v4212 = vunpack.c.h.b16 %v4122
    %v4213 = vunpack.c.l.b16 %v4123
    %v4214 = vunpack.c.h.b16 %v4123
    %v4215 = vunpack.c.l.b16 %v4124
    %v4216 = vunpack.c.h.b16 %v4124
    %v4217 = vunpack.c.l.b16 %v4125
    %v4218 = vunpack.c.h.b16 %v4125
    %v4219 = vunpack.c.l.b16 %v4126
    %v4220 = vunpack.c.h.b16 %v4126
    %v4221 = vunpack.c.l.b16 %v4127
    %v4222 = vunpack.c.h.b16 %v4127
    %v4223 = vunpack.c.l.b16 %v4128
    %v4224 = vunpack.c.h.b16 %v4128
    %v4225 = vunpack.c.l.b16 %v4129
    %v4226 = vunpack.c.h.b16 %v4129
    %v4227 = vunpack.c.l.b16 %v4130
    %v4228 = vunpack.c.h.b16 %v4130
    %v4229 = vunpack.c.l.b16 %v4131
    %v4230 = vunpack.c.h.b16 %v4131
    %v4231 = vunpack.c.l.b16 %v4132
    %v4232 = vunpack.c.h.b16 %v4132
    %v4233 = vunpack.c.l.b16 %v4133
    %v4234 = vunpack.c.h.b16 %v4133
    %v4235 = vunpack.c.l.b16 %v4134
    %v4236 = vunpack.c.h.b16 %v4134
    %v4237 = vunpack.c.l.b16 %v4135
    %v4238 = vunpack.c.h.b16 %v4135
    %v4239 = vunpack.c.l.b16 %v4136
    %v4240 = vunpack.c.h.b16 %v4136
    %v4241 = vunpack.c.l.b16 %v4137
    %v4242 = vunpack.c.h.b16 %v4137
    %v4243 = vunpack.c.l.b16 %v4138
    %v4244 = vunpack.c.h.b16 %v4138
    %v4245 = vunpack.c.l.b16 %v4139
    %v4246 = vunpack.c.h.b16 %v4139
    %v4247 = vunpack.c.l.b16 %v4140
    %v4248 = vunpack.c.h.b16 %v4140
    %v4249 = vunpack.c.l.b16 %v4141
    %v4250 = vunpack.c.h.b16 %v4141
    %v4251 = vunpack.c.l.b16 %v4142
    %v4252 = vunpack.c.h.b16 %v4142
    %v4253 = vunpack.c.l.b16 %v4143
    %v4254 = vunpack.c.h.b16 %v4143
    %v4255 = vunpack.c.l.b16 %v4144
    %v4256 = vunpack.c.h.b16 %v4144
    %v4257 = vunpack.c.l.b16 %v4145
    %v4258 = vunpack.c.h.b16 %v4145
    %v4259 = vunpack.c.l.b16 %v4146
    %v4260 = vunpack.c.h.b16 %v4146
    %v4261 = vunpack.c.l.b16 %v4147
    %v4262 = vunpack.c.h.b16 %v4147
    %v4263 = vunpack.c.l.b16 %v4148
    %v4264 = vunpack.c.h.b16 %v4148
    %v4265 = vunpack.c.l.b16 %v4149
    %v4266 = vunpack.c.h.b16 %v4149
    %v4267 = vpack.c.b16 %v4205, %v4203
    %v4268 = vpack.c.b16 %v4206, %v4204
    %v4269 = vpack.c.b16 %v4209, %v4207
    %v4270 = vpack.c.b16 %v4210, %v4208
    %v4271 = vpack.c.b16 %v4213, %v4211
    %v4272 = vpack.c.b16 %v4214, %v4212
    %v4273 = vpack.c.b16 %v4217, %v4215
    %v4274 = vpack.c.b16 %v4218, %v4216
    %v4275 = vpack.c.b16 %v4221, %v4219
    %v4276 = vpack.c.b16 %v4222, %v4220
    %v4277 = vpack.c.b16 %v4225, %v4223
    %v4278 = vpack.c.b16 %v4226, %v4224
    %v4279 = vpack.c.b16 %v4229, %v4227
    %v4280 = vpack.c.b16 %v4230, %v4228
    %v4281 = vpack.c.b16 %v4233, %v4231
    %v4282 = vpack.c.b16 %v4234, %v4232
    %v4283 = vpack.c.b16 %v4237, %v4235
    %v4284 = vpack.c.b16 %v4238, %v4236
    %v4285 = vpack.c.b16 %v4241, %v4239
    %v4286 = vpack.c.b16 %v4242, %v4240
    %v4287 = vpack.c.b16 %v4245, %v4243
    %v4288 = vpack.c.b16 %v4246, %v4244
    %v4289 = vpack.c.b16 %v4249, %v4247
    %v4290 = vpack.c.b16 %v4250, %v4248
    %v4291 = vpack.c.b16 %v4253, %v4251
    %v4292 = vpack.c.b16 %v4254, %v4252
    %v4293 = vpack.c.b16 %v4257, %v4255
    %v4294 = vpack.c.b16 %v4258, %v4256
    %v4295 = vpack.c.b16 %v4261, %v4259
    %v4296 = vpack.c.b16 %v4262, %v4260
    %v4297 = vpack.c.b16 %v4265, %v4263
    %v4298 = vpack.c.b16 %v4266, %v4264
    %4331 = vmatprep.subr.bf16.mxu0 %v4268
    %4332 = vmatpush1.bf16.msra.mxu0 %v4267
    %4333 = vmatprep.subr.bf16.mxu0 %v4270
    %4334 = vmatpush1.bf16.msra.mxu0 %v4269
    %4335 = vmatprep.subr.bf16.mxu0 %v4272
    %4336 = vmatpush1.bf16.msra.mxu0 %v4271
    %4337 = vmatprep.subr.bf16.mxu0 %v4274
    %4338 = vmatpush1.bf16.msra.mxu0 %v4273
    %4339 = vmatprep.subr.bf16.mxu0 %v4276
    %4340 = vmatpush1.bf16.msra.mxu0 %v4275
    %4341 = vmatprep.subr.bf16.mxu0 %v4278
    %4342 = vmatpush1.bf16.msra.mxu0 %v4277
    %4343 = vmatprep.subr.bf16.mxu0 %v4280
    %4344 = vmatpush1.bf16.msra.mxu0 %v4279
    %4345 = vmatprep.subr.bf16.mxu0 %v4282
    %4346 = vmatpush1.bf16.msra.mxu0 %v4281
    %4347 = vmatprep.subr.bf16.mxu0 %v4284
    %4348 = vmatpush1.bf16.msra.mxu0 %v4283
    %4349 = vmatprep.subr.bf16.mxu0 %v4286
    %4350 = vmatpush1.bf16.msra.mxu0 %v4285
    %4351 = vmatprep.subr.bf16.mxu0 %v4288
    %4352 = vmatpush1.bf16.msra.mxu0 %v4287
    %4353 = vmatprep.subr.bf16.mxu0 %v4290
    %4354 = vmatpush1.bf16.msra.mxu0 %v4289
    %4355 = vmatprep.subr.bf16.mxu0 %v4292
    %4356 = vmatpush1.bf16.msra.mxu0 %v4291
    %4357 = vmatprep.subr.bf16.mxu0 %v4294
    %4358 = vmatpush1.bf16.msra.mxu0 %v4293
    %4359 = vmatprep.subr.bf16.mxu0 %v4296
    %4360 = vmatpush1.bf16.msra.mxu0 %v4295
    %4361 = vmatprep.subr.bf16.mxu0 %v4298
    %4362 = vmatpush1.bf16.msra.mxu0 %v4297
    %4363 = vmatprep.mubr.bf16.mxu0 %v4160
    %4364 = vmatmul.mubr.bf16.gmra.mrb[0].mxu0 %v4157
    %v4365 = vpop.f32.mrb[0].mxu0
    %v4366 = vadd.f32 0.0, %v4365
    %v4367 = vpop.f32.mrb[0].mxu0
    %v4368 = vadd.f32 0.0, %v4367
    %v4369 = vpop.f32.mrb[0].mxu0
    %v4370 = vadd.f32 0.0, %v4369
    %v4371 = vpop.f32.mrb[0].mxu0
    %v4372 = vadd.f32 0.0, %v4371
    %4373 = vmatprep.mubr.bf16.mxu0 %v4164
    %4374 = vmatmul.mubr.bf16.gmra.mrb[0].mxu0 %v4162
    %v4375 = vpop.f32.mrb[0].mxu0
    %v4376 = vadd.f32 0.0, %v4375
    %v4377 = vpop.f32.mrb[0].mxu0
    %v4378 = vadd.f32 0.0, %v4377
    %v4379 = vpop.f32.mrb[0].mxu0
    %v4380 = vadd.f32 0.0, %v4379
    %v4381 = vpop.f32.mrb[0].mxu0
    %v4382 = vadd.f32 0.0, %v4381
    %4383 = vmatprep.mubr.bf16.mxu0 %v4163
    %4384 = vmatmul.mubr.bf16.gmra.mrb[0].mxu0 %v4161
    %v4385 = vpop.f32.mrb[0].mxu0
    %v4386 = vadd.f32 0.0, %v4385
    %v4387 = vpop.f32.mrb[0].mxu0
    %v4388 = vadd.f32 0.0, %v4387
    %v4389 = vpop.f32.mrb[0].mxu0
    %v4390 = vpop.f32.mrb[0].mxu0
    %4391 = vdwg.mxu0
    %v4392 = vadd.f32 %v4090, %v4366
    %v4393 = vadd.f32 %v4092, %v4368
    %v4394 = vadd.f32 %v4094, %v4370
    %v4395 = vadd.f32 %v4096, %v4372
    %v4396 = vadd.f32 %v4100, %v4376
    %v4397 = vadd.f32 %v4102, %v4378
    %v4398 = vadd.f32 %v4104, %v4380
    %v4399 = vadd.f32 %v4106, %v4382
    %v4400 = vadd.f32 %v4110, %v4386
    %v4401 = vadd.f32 %v4112, %v4388
    %v4403 = vlaneseq
    %v4404 = vshrl.u32 %v4403, 7
    %v4405 = vsub.s32 0, %v4404
    %v4406 = vrot.slane %v3517, %v4405
    %v4407 = vlaneseq
    %v4408 = vshrl.u32 %v4407, 7
    %v4409 = vsub.s32 1, %v4408
    %v4410 = vrot.slane %v3517, %v4409
    %v4413 = vadd.f32 %v4392, %v4406
    %v4414 = vadd.f32 %v4393, %v4410
    %v4415 = vadd.f32 %v4394, %v4406
    %v4416 = vadd.f32 %v4395, %v4410
    %v4417 = vadd.f32 %v4396, %v4406
    %v4418 = vadd.f32 %v4397, %v4410
    %v4419 = vadd.f32 %v4398, %v4406
    %v4420 = vadd.f32 %v4399, %v4410
    %v4421 = vadd.f32 %v4400, %v4406
    %v4422 = vadd.f32 %v4401, %v4410
    %s4423 = sld [smem:[#allocation4 + $0x6]]
    %vm4424 = vcmp.ge.f32.partialorder %v4413, 0.0
    %vm4425 = vcmp.ge.f32.partialorder %v4414, 0.0
    %vm4426 = vcmp.ge.f32.partialorder %v4415, 0.0
    %vm4427 = vcmp.ge.f32.partialorder %v4416, 0.0
    %vm4428 = vcmp.ge.f32.partialorder %v4417, 0.0
    %vm4429 = vcmp.ge.f32.partialorder %v4418, 0.0
    %vm4430 = vcmp.ge.f32.partialorder %v4419, 0.0
    %vm4431 = vcmp.ge.f32.partialorder %v4420, 0.0
    %vm4432 = vcmp.ge.f32.partialorder %v4421, 0.0
    %vm4433 = vcmp.ge.f32.partialorder %v4422, 0.0
    %v4434 = vstv %s4423
    %v4435 = vmul.f32 %v4434, %v4413
    %v4436 = vmul.f32 %v4434, %v4414
    %v4437 = vmul.f32 %v4434, %v4415
    %v4438 = vmul.f32 %v4434, %v4416
    %v4439 = vmul.f32 %v4434, %v4417
    %v4440 = vmul.f32 %v4434, %v4418
    %v4441 = vmul.f32 %v4434, %v4419
    %v4442 = vmul.f32 %v4434, %v4420
    %v4443 = vmul.f32 %v4434, %v4421
    %v4444 = vmul.f32 %v4434, %v4422
    %v4445 = vsel %vm4424, %v4413, %v4435
    %v4446 = vsel %vm4425, %v4414, %v4436
    %v4447 = vsel %vm4426, %v4415, %v4437
    %v4448 = vsel %vm4427, %v4416, %v4438
    %v4449 = vsel %vm4428, %v4417, %v4439
    %v4450 = vsel %vm4429, %v4418, %v4440
    %v4451 = vsel %vm4430, %v4419, %v4441
    %v4452 = vsel %vm4431, %v4420, %v4442
    %v4453 = vsel %vm4432, %v4421, %v4443
    %v4454 = vsel %vm4433, %v4422, %v4444
    %v4455 = vmul.f32 %v4445, %v705
    %v4456 = vmul.f32 %v4446, %v705
    %v4457 = vmul.f32 %v4447, %v710
    %v4458 = vmul.f32 %v4448, %v710
    %v4459 = vmul.f32 %v4449, %v715
    %v4460 = vmul.f32 %v4450, %v715
    %v4461 = vmul.f32 %v4451, %v720
    %v4462 = vmul.f32 %v4452, %v720
    %v4463 = vmul.f32 %v4453, %v725
    %v4464 = vmul.f32 %v4454, %v725
    %v4465 = vpack.c.bf16 %v4457, %v4455
    %v4466 = vpack.c.bf16 %v4458, %v4456
    %v4467 = vpack.c.bf16 %v4461, %v4459
    %v4468 = vpack.c.bf16 %v4462, %v4460
    %v4469 = vpack.c.bf16 %v4463, %v4463
    %v4470 = vpack.c.bf16 %v4464, %v4464
    %v4477 = vunpack.c.l.b16 %v4465
    %v4478 = vunpack.c.l.b16 %v4466
    %v4479 = vunpack.c.h.b16 %v4465
    %v4480 = vunpack.c.h.b16 %v4466
    %v4481 = vunpack.c.l.b16 %v4467
    %v4482 = vunpack.c.l.b16 %v4468
    %v4483 = vunpack.c.h.b16 %v4467
    %v4484 = vunpack.c.h.b16 %v4468
    %v4485 = vunpack.c.l.b16 %v4469
    %v4486 = vunpack.c.l.b16 %v4470
    %v4487 = vpack.c.b16 %v4478, %v4477
    %v4488 = vpack.c.b16 %v4480, %v4479
    %v4489 = vpack.c.b16 %v4482, %v4481
    %v4490 = vpack.c.b16 %v4484, %v4483
    %v4491 = vpack.c.b16 %v4486, %v4485
    %v4493 = vshrl.u32 %v4487, 16
    %v4495 = vrot.slane %v4493, 7
    %v4496 = vshll.u32 %v4487, 16
    %v4498 = vor.u32 %v4495, %v4496
    %v4499 = vrot.slane %v4495, 4
    %v4501 = vshrl.u32 %v4488, 16
    %v4503 = vrot.slane %v4501, 7
    %v4504 = vshll.u32 %v4488, 16
    %v4506 = vor.u32 %v4503, %v4504
    %v4507 = vsel %vm765, %v4499, %v4506
    %v4508 = vrot.slane %v4503, 4
    %v4510 = vshrl.u32 %v4489, 16
    %v4512 = vrot.slane %v4510, 7
    %v4513 = vshll.u32 %v4489, 16
    %v4515 = vor.u32 %v4512, %v4513
    %v4516 = vsel %vm765, %v4508, %v4515
    %v4517 = vrot.slane %v4512, 4
    %v4519 = vshrl.u32 %v4490, 16
    %v4521 = vrot.slane %v4519, 7
    %v4522 = vshll.u32 %v4490, 16
    %v4524 = vor.u32 %v4521, %v4522
    %v4525 = vsel %vm765, %v4517, %v4524
    %v4526 = vrot.slane %v4521, 4
    %v4528 = vshrl.u32 %v4491, 16
    %v4530 = vrot.slane %v4528, 7
    %v4531 = vshll.u32 %v4491, 16
    %v4533 = vor.u32 %v4530, %v4531
    %v4534 = vsel %vm765, %v4526, %v4533
    %v4540 = vsel %vm820, %v4498, %v3518
    %4541 = vst [vmem:[#allocation3] sm:$0xff] %v4540
    %4542 = vst [vmem:[#allocation3 + $0x8] sm:$0xff] %v4507
    %4543 = vst [vmem:[#allocation3 + $0x10] sm:$0xff] %v4516
    %4544 = vst [vmem:[#allocation3 + $0x18] sm:$0xff] %v4525
    %v4545 = vld [vmem:[#allocation3 + $0x20] sm:$0x77]
    %v4546 = vsel %vm833, %v4534, %v4545
    %4547 = vst [vmem:[#allocation3 + $0x20] sm:$0x77] %v4546
    %s4548 = scalar_lea.vmem %s4, 6
    %v4549 = vld [vmem:[%s4548] sm:$0x3]
    %v4550 = vld [vmem:[#allocation3] sm:$0xff]
    %v4551 = vld [vmem:[#allocation3 + $0x8] sm:$0xff]
    %v4552 = vld [vmem:[#allocation3 + $0x10] sm:$0xff]
    %v4553 = vld [vmem:[#allocation3 + $0x18] sm:$0xff]
    %v4554 = vld [vmem:[#allocation3 + $0x20] sm:$0x33]
    %s4555 = scalar_lea.vmem %s3, 2304
    %v4556 = vld [vmem:[%s4555] sm:$0xff]
    %v4557 = vld [vmem:[%s4555 + $0x8] sm:$0xff]
    %v4558 = vld [vmem:[%s4555 + $0x10] sm:$0xff]
    %v4559 = vld [vmem:[%s4555 + $0x18] sm:$0xff]
    %v4560 = vld [vmem:[%s4555 + $0x20] sm:$0xff]
    %v4561 = vld [vmem:[%s4555 + $0x28] sm:$0xff]
    %v4562 = vld [vmem:[%s4555 + $0x30] sm:$0xff]
    %v4563 = vld [vmem:[%s4555 + $0x38] sm:$0xff]
    %v4564 = vld [vmem:[%s4555 + $0x40] sm:$0xff]
    %v4565 = vld [vmem:[%s4555 + $0x48] sm:$0xff]
    %v4566 = vld [vmem:[%s4555 + $0x50] sm:$0xff]
    %v4567 = vld [vmem:[%s4555 + $0x58] sm:$0xff]
    %v4568 = vld [vmem:[%s4555 + $0x60] sm:$0xff]
    %v4569 = vld [vmem:[%s4555 + $0x68] sm:$0xff]
    %v4570 = vld [vmem:[%s4555 + $0x70] sm:$0xff]
    %v4571 = vld [vmem:[%s4555 + $0x78] sm:$0xff]
    %v4572 = vld [vmem:[%s4555 + $0x80] sm:$0xff]
    %v4573 = vld [vmem:[%s4555 + $0x88] sm:$0xff]
    %v4574 = vld [vmem:[%s4555 + $0x90] sm:$0xff]
    %v4575 = vld [vmem:[%s4555 + $0x98] sm:$0xff]
    %v4576 = vld [vmem:[%s4555 + $0xa0] sm:$0xff]
    %v4577 = vld [vmem:[%s4555 + $0xa8] sm:$0xff]
    %v4578 = vld [vmem:[%s4555 + $0xb0] sm:$0xff]
    %v4579 = vld [vmem:[%s4555 + $0xb8] sm:$0xff]
    %v4580 = vld [vmem:[%s4555 + $0xc0] sm:$0xff]
    %v4581 = vld [vmem:[%s4555 + $0xc8] sm:$0xff]
    %v4582 = vld [vmem:[%s4555 + $0xd0] sm:$0xff]
    %v4583 = vld [vmem:[%s4555 + $0xd8] sm:$0xff]
    %v4584 = vld [vmem:[%s4555 + $0xe0] sm:$0xff]
    %v4585 = vld [vmem:[%s4555 + $0xe8] sm:$0xff]
    %v4586 = vld [vmem:[%s4555 + $0xf0] sm:$0xff]
    %v4587 = vld [vmem:[%s4555 + $0xf8] sm:$0xff]
    %v4588 = vld [vmem:[#allocation3 + $0x20] sm:$0x77]
    %s4589 = scalar_lea.vmem %s3, 2560
    %v4590 = vld [vmem:[%s4589] sm:$0xff]
    %v4591 = vld [vmem:[%s4589 + $0x8] sm:$0xff]
    %v4592 = vld [vmem:[%s4589 + $0x10] sm:$0xff]
    %v4593 = vld [vmem:[%s4589 + $0x18] sm:$0xff]
    %v4594 = vld [vmem:[%s4589 + $0x20] sm:$0xff]
    %v4595 = vld [vmem:[%s4589 + $0x28] sm:$0xff]
    %v4596 = vld [vmem:[%s4589 + $0x30] sm:$0xff]
    %v4597 = vld [vmem:[%s4589 + $0x38] sm:$0xff]
    %v4598 = vld [vmem:[%s4589 + $0x40] sm:$0xff]
    %v4599 = vld [vmem:[%s4589 + $0x48] sm:$0xff]
    %v4600 = vld [vmem:[%s4589 + $0x50] sm:$0xff]
    %v4601 = vld [vmem:[%s4589 + $0x58] sm:$0xff]
    %v4602 = vld [vmem:[%s4589 + $0x60] sm:$0xff]
    %v4603 = vld [vmem:[%s4589 + $0x68] sm:$0xff]
    %v4604 = vld [vmem:[%s4589 + $0x70] sm:$0xff]
    %v4605 = vld [vmem:[%s4589 + $0x78] sm:$0xff]
    %v4606 = vld [vmem:[%s4589 + $0x80] sm:$0xff]
    %v4607 = vld [vmem:[%s4589 + $0x88] sm:$0xff]
    %v4608 = vld [vmem:[%s4589 + $0x90] sm:$0xff]
    %v4609 = vld [vmem:[%s4589 + $0x98] sm:$0xff]
    %v4610 = vld [vmem:[%s4589 + $0xa0] sm:$0xff]
    %v4611 = vld [vmem:[%s4589 + $0xa8] sm:$0xff]
    %v4612 = vld [vmem:[%s4589 + $0xb0] sm:$0xff]
    %v4613 = vld [vmem:[%s4589 + $0xb8] sm:$0xff]
    %v4614 = vld [vmem:[%s4589 + $0xc0] sm:$0xff]
    %v4615 = vld [vmem:[%s4589 + $0xc8] sm:$0xff]
    %v4616 = vld [vmem:[%s4589 + $0xd0] sm:$0xff]
    %v4617 = vld [vmem:[%s4589 + $0xd8] sm:$0xff]
    %v4618 = vld [vmem:[%s4589 + $0xe0] sm:$0xff]
    %v4619 = vld [vmem:[%s4589 + $0xe8] sm:$0xff]
    %v4620 = vld [vmem:[%s4589 + $0xf0] sm:$0xff]
    %v4621 = vld [vmem:[%s4589 + $0xf8] sm:$0xff]
    %v4627 = vunpack.c.l.b16 %v4550
    %v4628 = vunpack.c.h.b16 %v4550
    %v4629 = vunpack.c.l.b16 %v4551
    %v4630 = vunpack.c.h.b16 %v4551
    %v4631 = vunpack.c.l.b16 %v4552
    %v4632 = vunpack.c.h.b16 %v4552
    %v4633 = vunpack.c.l.b16 %v4553
    %v4634 = vunpack.c.h.b16 %v4553
    %v4635 = vunpack.c.l.b16 %v4588
    %v4636 = vunpack.c.h.b16 %v4588
    %v4637 = vpack.c.b16 %v4629, %v4627
    %v4638 = vpack.c.b16 %v4630, %v4628
    %v4639 = vpack.c.b16 %v4633, %v4631
    %v4640 = vpack.c.b16 %v4634, %v4632
    %v4641 = vpack.c.b16 %v4635, %v4635
    %v4642 = vpack.c.b16 %v4636, %v4636
    %v4644 = vshrl.u32 %v4637, 16
    %v4646 = vshll.u32 %v4637, 16
    %v4648 = vrot.slane %v4646, 1
    %v4649 = vor.u32 %v4644, %v4648
    %v4651 = vshll.u32 %v4639, 16
    %v4653 = vrot.slane %v4651, 1
    %v4654 = vsel %vm185, %v4649, %v4653
    %v4656 = vshrl.u32 %v4638, 16
    %v4658 = vshll.u32 %v4638, 16
    %v4660 = vrot.slane %v4658, 1
    %v4661 = vor.u32 %v4656, %v4660
    %v4663 = vshll.u32 %v4640, 16
    %v4665 = vrot.slane %v4663, 1
    %v4666 = vsel %vm185, %v4661, %v4665
    %v4667 = vshrl.u32 %v4639, 16
    %v4669 = vor.u32 %v4667, %v4653
    %v4671 = vshll.u32 %v4641, 16
    %v4673 = vrot.slane %v4671, 1
    %v4674 = vsel %vm185, %v4669, %v4673
    %v4675 = vshrl.u32 %v4640, 16
    %v4677 = vor.u32 %v4675, %v4665
    %v4679 = vshll.u32 %v4642, 16
    %v4681 = vrot.slane %v4679, 1
    %v4682 = vsel %vm185, %v4677, %v4681
    %v4683 = vshrl.u32 %v4641, 16
    %v4685 = vor.u32 %v4683, %v4673
    %v4686 = vshrl.u32 %v4642, 16
    %v4688 = vor.u32 %v4686, %v4681
    %v4727 = vunpack.c.l.b16 %v4590
    %v4728 = vunpack.c.h.b16 %v4590
    %v4729 = vunpack.c.l.b16 %v4591
    %v4730 = vunpack.c.h.b16 %v4591
    %v4731 = vunpack.c.l.b16 %v4592
    %v4732 = vunpack.c.h.b16 %v4592
    %v4733 = vunpack.c.l.b16 %v4593
    %v4734 = vunpack.c.h.b16 %v4593
    %v4735 = vunpack.c.l.b16 %v4594
    %v4736 = vunpack.c.h.b16 %v4594
    %v4737 = vunpack.c.l.b16 %v4595
    %v4738 = vunpack.c.h.b16 %v4595
    %v4739 = vunpack.c.l.b16 %v4596
    %v4740 = vunpack.c.h.b16 %v4596
    %v4741 = vunpack.c.l.b16 %v4597
    %v4742 = vunpack.c.h.b16 %v4597
    %v4743 = vunpack.c.l.b16 %v4598
    %v4744 = vunpack.c.h.b16 %v4598
    %v4745 = vunpack.c.l.b16 %v4599
    %v4746 = vunpack.c.h.b16 %v4599
    %v4747 = vunpack.c.l.b16 %v4600
    %v4748 = vunpack.c.h.b16 %v4600
    %v4749 = vunpack.c.l.b16 %v4601
    %v4750 = vunpack.c.h.b16 %v4601
    %v4751 = vunpack.c.l.b16 %v4602
    %v4752 = vunpack.c.h.b16 %v4602
    %v4753 = vunpack.c.l.b16 %v4603
    %v4754 = vunpack.c.h.b16 %v4603
    %v4755 = vunpack.c.l.b16 %v4604
    %v4756 = vunpack.c.h.b16 %v4604
    %v4757 = vunpack.c.l.b16 %v4605
    %v4758 = vunpack.c.h.b16 %v4605
    %v4759 = vunpack.c.l.b16 %v4606
    %v4760 = vunpack.c.h.b16 %v4606
    %v4761 = vunpack.c.l.b16 %v4607
    %v4762 = vunpack.c.h.b16 %v4607
    %v4763 = vunpack.c.l.b16 %v4608
    %v4764 = vunpack.c.h.b16 %v4608
    %v4765 = vunpack.c.l.b16 %v4609
    %v4766 = vunpack.c.h.b16 %v4609
    %v4767 = vunpack.c.l.b16 %v4610
    %v4768 = vunpack.c.h.b16 %v4610
    %v4769 = vunpack.c.l.b16 %v4611
    %v4770 = vunpack.c.h.b16 %v4611
    %v4771 = vunpack.c.l.b16 %v4612
    %v4772 = vunpack.c.h.b16 %v4612
    %v4773 = vunpack.c.l.b16 %v4613
    %v4774 = vunpack.c.h.b16 %v4613
    %v4775 = vunpack.c.l.b16 %v4614
    %v4776 = vunpack.c.h.b16 %v4614
    %v4777 = vunpack.c.l.b16 %v4615
    %v4778 = vunpack.c.h.b16 %v4615
    %v4779 = vunpack.c.l.b16 %v4616
    %v4780 = vunpack.c.h.b16 %v4616
    %v4781 = vunpack.c.l.b16 %v4617
    %v4782 = vunpack.c.h.b16 %v4617
    %v4783 = vunpack.c.l.b16 %v4618
    %v4784 = vunpack.c.h.b16 %v4618
    %v4785 = vunpack.c.l.b16 %v4619
    %v4786 = vunpack.c.h.b16 %v4619
    %v4787 = vunpack.c.l.b16 %v4620
    %v4788 = vunpack.c.h.b16 %v4620
    %v4789 = vunpack.c.l.b16 %v4621
    %v4790 = vunpack.c.h.b16 %v4621
    %v4791 = vpack.c.b16 %v4729, %v4727
    %v4792 = vpack.c.b16 %v4730, %v4728
    %v4793 = vpack.c.b16 %v4733, %v4731
    %v4794 = vpack.c.b16 %v4734, %v4732
    %v4795 = vpack.c.b16 %v4737, %v4735
    %v4796 = vpack.c.b16 %v4738, %v4736
    %v4797 = vpack.c.b16 %v4741, %v4739
    %v4798 = vpack.c.b16 %v4742, %v4740
    %v4799 = vpack.c.b16 %v4745, %v4743
    %v4800 = vpack.c.b16 %v4746, %v4744
    %v4801 = vpack.c.b16 %v4749, %v4747
    %v4802 = vpack.c.b16 %v4750, %v4748
    %v4803 = vpack.c.b16 %v4753, %v4751
    %v4804 = vpack.c.b16 %v4754, %v4752
    %v4805 = vpack.c.b16 %v4757, %v4755
    %v4806 = vpack.c.b16 %v4758, %v4756
    %v4807 = vpack.c.b16 %v4761, %v4759
    %v4808 = vpack.c.b16 %v4762, %v4760
    %v4809 = vpack.c.b16 %v4765, %v4763
    %v4810 = vpack.c.b16 %v4766, %v4764
    %v4811 = vpack.c.b16 %v4769, %v4767
    %v4812 = vpack.c.b16 %v4770, %v4768
    %v4813 = vpack.c.b16 %v4773, %v4771
    %v4814 = vpack.c.b16 %v4774, %v4772
    %v4815 = vpack.c.b16 %v4777, %v4775
    %v4816 = vpack.c.b16 %v4778, %v4776
    %v4817 = vpack.c.b16 %v4781, %v4779
    %v4818 = vpack.c.b16 %v4782, %v4780
    %v4819 = vpack.c.b16 %v4785, %v4783
    %v4820 = vpack.c.b16 %v4786, %v4784
    %v4821 = vpack.c.b16 %v4789, %v4787
    %v4822 = vpack.c.b16 %v4790, %v4788
    %4855 = vmatprep.subr.bf16.mxu0 %v4792
    %4856 = vmatpush1.bf16.msra.mxu0 %v4791
    %4857 = vmatprep.subr.bf16.mxu0 %v4794
    %4858 = vmatpush1.bf16.msra.mxu0 %v4793
    %4859 = vmatprep.subr.bf16.mxu0 %v4796
    %4860 = vmatpush1.bf16.msra.mxu0 %v4795
    %4861 = vmatprep.subr.bf16.mxu0 %v4798
    %4862 = vmatpush1.bf16.msra.mxu0 %v4797
    %4863 = vmatprep.subr.bf16.mxu0 %v4800
    %4864 = vmatpush1.bf16.msra.mxu0 %v4799
    %4865 = vmatprep.subr.bf16.mxu0 %v4802
    %4866 = vmatpush1.bf16.msra.mxu0 %v4801
    %4867 = vmatprep.subr.bf16.mxu0 %v4804
    %4868 = vmatpush1.bf16.msra.mxu0 %v4803
    %4869 = vmatprep.subr.bf16.mxu0 %v4806
    %4870 = vmatpush1.bf16.msra.mxu0 %v4805
    %4871 = vmatprep.subr.bf16.mxu0 %v4808
    %4872 = vmatpush1.bf16.msra.mxu0 %v4807
    %4873 = vmatprep.subr.bf16.mxu0 %v4810
    %4874 = vmatpush1.bf16.msra.mxu0 %v4809
    %4875 = vmatprep.subr.bf16.mxu0 %v4812
    %4876 = vmatpush1.bf16.msra.mxu0 %v4811
    %4877 = vmatprep.subr.bf16.mxu0 %v4814
    %4878 = vmatpush1.bf16.msra.mxu0 %v4813
    %4879 = vmatprep.subr.bf16.mxu0 %v4816
    %4880 = vmatpush1.bf16.msra.mxu0 %v4815
    %4881 = vmatprep.subr.bf16.mxu0 %v4818
    %4882 = vmatpush1.bf16.msra.mxu0 %v4817
    %4883 = vmatprep.subr.bf16.mxu0 %v4820
    %4884 = vmatpush1.bf16.msra.mxu0 %v4819
    %4885 = vmatprep.subr.bf16.mxu0 %v4822
    %4886 = vmatpush1.bf16.msra.mxu0 %v4821
    %4887 = vmatprep.mubr.bf16.mxu0 %v4666
    %4888 = vmatmul.mubr.bf16.gmra.mrb[0].mxu0 %v4654
    %v4889 = vpop.f32.mrb[0].mxu0
    %v4890 = vadd.f32 0.0, %v4889
    %v4891 = vpop.f32.mrb[0].mxu0
    %v4892 = vadd.f32 0.0, %v4891
    %v4893 = vpop.f32.mrb[0].mxu0
    %v4894 = vadd.f32 0.0, %v4893
    %v4895 = vpop.f32.mrb[0].mxu0
    %v4896 = vadd.f32 0.0, %v4895
    %4897 = vmatprep.mubr.bf16.mxu0 %v4682
    %4898 = vmatmul.mubr.bf16.gmra.mrb[0].mxu0 %v4674
    %v4899 = vpop.f32.mrb[0].mxu0
    %v4900 = vadd.f32 0.0, %v4899
    %v4901 = vpop.f32.mrb[0].mxu0
    %v4902 = vadd.f32 0.0, %v4901
    %v4903 = vpop.f32.mrb[0].mxu0
    %v4904 = vadd.f32 0.0, %v4903
    %v4905 = vpop.f32.mrb[0].mxu0
    %v4906 = vadd.f32 0.0, %v4905
    %4907 = vmatprep.mubr.bf16.mxu0 %v4688
    %4908 = vmatmul.mubr.bf16.gmra.mrb[0].mxu0 %v4685
    %v4909 = vpop.f32.mrb[0].mxu0
    %v4910 = vadd.f32 0.0, %v4909
    %v4911 = vpop.f32.mrb[0].mxu0
    %v4912 = vadd.f32 0.0, %v4911
    %v4913 = vpop.f32.mrb[0].mxu0
    %v4914 = vpop.f32.mrb[0].mxu0
    %4915 = vdwg.mxu0
    %v4917 = vunpack.c.l.b16 %v4554
    %v4918 = vunpack.c.h.b16 %v4554
    %v4919 = vpack.c.b16 %v4917, %v4917
    %v4920 = vpack.c.b16 %v4918, %v4918
    %v4959 = vunpack.c.l.b16 %v4556
    %v4960 = vunpack.c.h.b16 %v4556
    %v4961 = vunpack.c.l.b16 %v4557
    %v4962 = vunpack.c.h.b16 %v4557
    %v4963 = vunpack.c.l.b16 %v4558
    %v4964 = vunpack.c.h.b16 %v4558
    %v4965 = vunpack.c.l.b16 %v4559
    %v4966 = vunpack.c.h.b16 %v4559
    %v4967 = vunpack.c.l.b16 %v4560
    %v4968 = vunpack.c.h.b16 %v4560
    %v4969 = vunpack.c.l.b16 %v4561
    %v4970 = vunpack.c.h.b16 %v4561
    %v4971 = vunpack.c.l.b16 %v4562
    %v4972 = vunpack.c.h.b16 %v4562
    %v4973 = vunpack.c.l.b16 %v4563
    %v4974 = vunpack.c.h.b16 %v4563
    %v4975 = vunpack.c.l.b16 %v4564
    %v4976 = vunpack.c.h.b16 %v4564
    %v4977 = vunpack.c.l.b16 %v4565
    %v4978 = vunpack.c.h.b16 %v4565
    %v4979 = vunpack.c.l.b16 %v4566
    %v4980 = vunpack.c.h.b16 %v4566
    %v4981 = vunpack.c.l.b16 %v4567
    %v4982 = vunpack.c.h.b16 %v4567
    %v4983 = vunpack.c.l.b16 %v4568
    %v4984 = vunpack.c.h.b16 %v4568
    %v4985 = vunpack.c.l.b16 %v4569
    %v4986 = vunpack.c.h.b16 %v4569
    %v4987 = vunpack.c.l.b16 %v4570
    %v4988 = vunpack.c.h.b16 %v4570
    %v4989 = vunpack.c.l.b16 %v4571
    %v4990 = vunpack.c.h.b16 %v4571
    %v4991 = vunpack.c.l.b16 %v4572
    %v4992 = vunpack.c.h.b16 %v4572
    %v4993 = vunpack.c.l.b16 %v4573
    %v4994 = vunpack.c.h.b16 %v4573
    %v4995 = vunpack.c.l.b16 %v4574
    %v4996 = vunpack.c.h.b16 %v4574
    %v4997 = vunpack.c.l.b16 %v4575
    %v4998 = vunpack.c.h.b16 %v4575
    %v4999 = vunpack.c.l.b16 %v4576
    %v5000 = vunpack.c.h.b16 %v4576
    %v5001 = vunpack.c.l.b16 %v4577
    %v5002 = vunpack.c.h.b16 %v4577
    %v5003 = vunpack.c.l.b16 %v4578
    %v5004 = vunpack.c.h.b16 %v4578
    %v5005 = vunpack.c.l.b16 %v4579
    %v5006 = vunpack.c.h.b16 %v4579
    %v5007 = vunpack.c.l.b16 %v4580
    %v5008 = vunpack.c.h.b16 %v4580
    %v5009 = vunpack.c.l.b16 %v4581
    %v5010 = vunpack.c.h.b16 %v4581
    %v5011 = vunpack.c.l.b16 %v4582
    %v5012 = vunpack.c.h.b16 %v4582
    %v5013 = vunpack.c.l.b16 %v4583
    %v5014 = vunpack.c.h.b16 %v4583
    %v5015 = vunpack.c.l.b16 %v4584
    %v5016 = vunpack.c.h.b16 %v4584
    %v5017 = vunpack.c.l.b16 %v4585
    %v5018 = vunpack.c.h.b16 %v4585
    %v5019 = vunpack.c.l.b16 %v4586
    %v5020 = vunpack.c.h.b16 %v4586
    %v5021 = vunpack.c.l.b16 %v4587
    %v5022 = vunpack.c.h.b16 %v4587
    %v5023 = vpack.c.b16 %v4961, %v4959
    %v5024 = vpack.c.b16 %v4962, %v4960
    %v5025 = vpack.c.b16 %v4965, %v4963
    %v5026 = vpack.c.b16 %v4966, %v4964
    %v5027 = vpack.c.b16 %v4969, %v4967
    %v5028 = vpack.c.b16 %v4970, %v4968
    %v5029 = vpack.c.b16 %v4973, %v4971
    %v5030 = vpack.c.b16 %v4974, %v4972
    %v5031 = vpack.c.b16 %v4977, %v4975
    %v5032 = vpack.c.b16 %v4978, %v4976
    %v5033 = vpack.c.b16 %v4981, %v4979
    %v5034 = vpack.c.b16 %v4982, %v4980
    %v5035 = vpack.c.b16 %v4985, %v4983
    %v5036 = vpack.c.b16 %v4986, %v4984
    %v5037 = vpack.c.b16 %v4989, %v4987
    %v5038 = vpack.c.b16 %v4990, %v4988
    %v5039 = vpack.c.b16 %v4993, %v4991
    %v5040 = vpack.c.b16 %v4994, %v4992
    %v5041 = vpack.c.b16 %v4997, %v4995
    %v5042 = vpack.c.b16 %v4998, %v4996
    %v5043 = vpack.c.b16 %v5001, %v4999
    %v5044 = vpack.c.b16 %v5002, %v5000
    %v5045 = vpack.c.b16 %v5005, %v5003
    %v5046 = vpack.c.b16 %v5006, %v5004
    %v5047 = vpack.c.b16 %v5009, %v5007
    %v5048 = vpack.c.b16 %v5010, %v5008
    %v5049 = vpack.c.b16 %v5013, %v5011
    %v5050 = vpack.c.b16 %v5014, %v5012
    %v5051 = vpack.c.b16 %v5017, %v5015
    %v5052 = vpack.c.b16 %v5018, %v5016
    %v5053 = vpack.c.b16 %v5021, %v5019
    %v5054 = vpack.c.b16 %v5022, %v5020
    %5087 = vmatprep.subr.bf16.mxu0 %v5024
    %5088 = vmatpush1.bf16.msra.mxu0 %v5023
    %5089 = vmatprep.subr.bf16.mxu0 %v5026
    %5090 = vmatpush1.bf16.msra.mxu0 %v5025
    %5091 = vmatprep.subr.bf16.mxu0 %v5028
    %5092 = vmatpush1.bf16.msra.mxu0 %v5027
    %5093 = vmatprep.subr.bf16.mxu0 %v5030
    %5094 = vmatpush1.bf16.msra.mxu0 %v5029
    %5095 = vmatprep.subr.bf16.mxu0 %v5032
    %5096 = vmatpush1.bf16.msra.mxu0 %v5031
    %5097 = vmatprep.subr.bf16.mxu0 %v5034
    %5098 = vmatpush1.bf16.msra.mxu0 %v5033
    %5099 = vmatprep.subr.bf16.mxu0 %v5036
    %5100 = vmatpush1.bf16.msra.mxu0 %v5035
    %5101 = vmatprep.subr.bf16.mxu0 %v5038
    %5102 = vmatpush1.bf16.msra.mxu0 %v5037
    %5103 = vmatprep.subr.bf16.mxu0 %v5040
    %5104 = vmatpush1.bf16.msra.mxu0 %v5039
    %5105 = vmatprep.subr.bf16.mxu0 %v5042
    %5106 = vmatpush1.bf16.msra.mxu0 %v5041
    %5107 = vmatprep.subr.bf16.mxu0 %v5044
    %5108 = vmatpush1.bf16.msra.mxu0 %v5043
    %5109 = vmatprep.subr.bf16.mxu0 %v5046
    %5110 = vmatpush1.bf16.msra.mxu0 %v5045
    %5111 = vmatprep.subr.bf16.mxu0 %v5048
    %5112 = vmatpush1.bf16.msra.mxu0 %v5047
    %5113 = vmatprep.subr.bf16.mxu0 %v5050
    %5114 = vmatpush1.bf16.msra.mxu0 %v5049
    %5115 = vmatprep.subr.bf16.mxu0 %v5052
    %5116 = vmatpush1.bf16.msra.mxu0 %v5051
    %5117 = vmatprep.subr.bf16.mxu0 %v5054
    %5118 = vmatpush1.bf16.msra.mxu0 %v5053
    %5119 = vmatprep.mubr.bf16.mxu0 %v4638
    %5120 = vmatmul.mubr.bf16.gmra.mrb[0].mxu0 %v4637
    %v5121 = vpop.f32.mrb[0].mxu0
    %v5122 = vadd.f32 %v4890, %v5121
    %v5123 = vpop.f32.mrb[0].mxu0
    %v5124 = vadd.f32 %v4892, %v5123
    %v5125 = vpop.f32.mrb[0].mxu0
    %v5126 = vadd.f32 %v4894, %v5125
    %v5127 = vpop.f32.mrb[0].mxu0
    %v5128 = vadd.f32 %v4896, %v5127
    %5129 = vmatprep.mubr.bf16.mxu0 %v4640
    %5130 = vmatmul.mubr.bf16.gmra.mrb[0].mxu0 %v4639
    %v5131 = vpop.f32.mrb[0].mxu0
    %v5132 = vadd.f32 %v4900, %v5131
    %v5133 = vpop.f32.mrb[0].mxu0
    %v5134 = vadd.f32 %v4902, %v5133
    %v5135 = vpop.f32.mrb[0].mxu0
    %v5136 = vadd.f32 %v4904, %v5135
    %v5137 = vpop.f32.mrb[0].mxu0
    %v5138 = vadd.f32 %v4906, %v5137
    %5139 = vmatprep.mubr.bf16.mxu0 %v4920
    %5140 = vmatmul.mubr.bf16.gmra.mrb[0].mxu0 %v4919
    %v5141 = vpop.f32.mrb[0].mxu0
    %v5142 = vadd.f32 %v4910, %v5141
    %v5143 = vpop.f32.mrb[0].mxu0
    %v5144 = vadd.f32 %v4912, %v5143
    %v5145 = vpop.f32.mrb[0].mxu0
    %v5146 = vpop.f32.mrb[0].mxu0
    %5147 = vdwg.mxu0
    %v5148 = vld [vmem:[#allocation3] sm:$0xee]
    %s5149 = scalar_lea.vmem %s3, 2816
    %v5150 = vld [vmem:[%s5149] sm:$0xff]
    %v5151 = vld [vmem:[%s5149 + $0x8] sm:$0xff]
    %v5152 = vld [vmem:[%s5149 + $0x10] sm:$0xff]
    %v5153 = vld [vmem:[%s5149 + $0x18] sm:$0xff]
    %v5154 = vld [vmem:[%s5149 + $0x20] sm:$0xff]
    %v5155 = vld [vmem:[%s5149 + $0x28] sm:$0xff]
    %v5156 = vld [vmem:[%s5149 + $0x30] sm:$0xff]
    %v5157 = vld [vmem:[%s5149 + $0x38] sm:$0xff]
    %v5158 = vld [vmem:[%s5149 + $0x40] sm:$0xff]
    %v5159 = vld [vmem:[%s5149 + $0x48] sm:$0xff]
    %v5160 = vld [vmem:[%s5149 + $0x50] sm:$0xff]
    %v5161 = vld [vmem:[%s5149 + $0x58] sm:$0xff]
    %v5162 = vld [vmem:[%s5149 + $0x60] sm:$0xff]
    %v5163 = vld [vmem:[%s5149 + $0x68] sm:$0xff]
    %v5164 = vld [vmem:[%s5149 + $0x70] sm:$0xff]
    %v5165 = vld [vmem:[%s5149 + $0x78] sm:$0xff]
    %v5166 = vld [vmem:[%s5149 + $0x80] sm:$0xff]
    %v5167 = vld [vmem:[%s5149 + $0x88] sm:$0xff]
    %v5168 = vld [vmem:[%s5149 + $0x90] sm:$0xff]
    %v5169 = vld [vmem:[%s5149 + $0x98] sm:$0xff]
    %v5170 = vld [vmem:[%s5149 + $0xa0] sm:$0xff]
    %v5171 = vld [vmem:[%s5149 + $0xa8] sm:$0xff]
    %v5172 = vld [vmem:[%s5149 + $0xb0] sm:$0xff]
    %v5173 = vld [vmem:[%s5149 + $0xb8] sm:$0xff]
    %v5174 = vld [vmem:[%s5149 + $0xc0] sm:$0xff]
    %v5175 = vld [vmem:[%s5149 + $0xc8] sm:$0xff]
    %v5176 = vld [vmem:[%s5149 + $0xd0] sm:$0xff]
    %v5177 = vld [vmem:[%s5149 + $0xd8] sm:$0xff]
    %v5178 = vld [vmem:[%s5149 + $0xe0] sm:$0xff]
    %v5179 = vld [vmem:[%s5149 + $0xe8] sm:$0xff]
    %v5180 = vld [vmem:[%s5149 + $0xf0] sm:$0xff]
    %v5181 = vld [vmem:[%s5149 + $0xf8] sm:$0xff]
    %v5183 = vunpack.c.l.b16 %v5148
    %v5184 = vunpack.c.h.b16 %v5148
    %v5185 = vpack.c.b16 %v4629, %v5183
    %v5186 = vpack.c.b16 %v4630, %v5184
    %v5187 = vrot.slane %v5185, 1
    %v5188 = vrot.slane %v4639, 1
    %v5189 = vsel %vm521, %v5187, %v5188
    %v5190 = vrot.slane %v5186, 1
    %v5191 = vrot.slane %v4640, 1
    %v5192 = vsel %vm521, %v5190, %v5191
    %v5193 = vrot.slane %v4641, 1
    %v5194 = vsel %vm521, %v5188, %v5193
    %v5195 = vrot.slane %v4642, 1
    %v5196 = vsel %vm521, %v5191, %v5195
    %v5235 = vunpack.c.l.b16 %v5150
    %v5236 = vunpack.c.h.b16 %v5150
    %v5237 = vunpack.c.l.b16 %v5151
    %v5238 = vunpack.c.h.b16 %v5151
    %v5239 = vunpack.c.l.b16 %v5152
    %v5240 = vunpack.c.h.b16 %v5152
    %v5241 = vunpack.c.l.b16 %v5153
    %v5242 = vunpack.c.h.b16 %v5153
    %v5243 = vunpack.c.l.b16 %v5154
    %v5244 = vunpack.c.h.b16 %v5154
    %v5245 = vunpack.c.l.b16 %v5155
    %v5246 = vunpack.c.h.b16 %v5155
    %v5247 = vunpack.c.l.b16 %v5156
    %v5248 = vunpack.c.h.b16 %v5156
    %v5249 = vunpack.c.l.b16 %v5157
    %v5250 = vunpack.c.h.b16 %v5157
    %v5251 = vunpack.c.l.b16 %v5158
    %v5252 = vunpack.c.h.b16 %v5158
    %v5253 = vunpack.c.l.b16 %v5159
    %v5254 = vunpack.c.h.b16 %v5159
    %v5255 = vunpack.c.l.b16 %v5160
    %v5256 = vunpack.c.h.b16 %v5160
    %v5257 = vunpack.c.l.b16 %v5161
    %v5258 = vunpack.c.h.b16 %v5161
    %v5259 = vunpack.c.l.b16 %v5162
    %v5260 = vunpack.c.h.b16 %v5162
    %v5261 = vunpack.c.l.b16 %v5163
    %v5262 = vunpack.c.h.b16 %v5163
    %v5263 = vunpack.c.l.b16 %v5164
    %v5264 = vunpack.c.h.b16 %v5164
    %v5265 = vunpack.c.l.b16 %v5165
    %v5266 = vunpack.c.h.b16 %v5165
    %v5267 = vunpack.c.l.b16 %v5166
    %v5268 = vunpack.c.h.b16 %v5166
    %v5269 = vunpack.c.l.b16 %v5167
    %v5270 = vunpack.c.h.b16 %v5167
    %v5271 = vunpack.c.l.b16 %v5168
    %v5272 = vunpack.c.h.b16 %v5168
    %v5273 = vunpack.c.l.b16 %v5169
    %v5274 = vunpack.c.h.b16 %v5169
    %v5275 = vunpack.c.l.b16 %v5170
    %v5276 = vunpack.c.h.b16 %v5170
    %v5277 = vunpack.c.l.b16 %v5171
    %v5278 = vunpack.c.h.b16 %v5171
    %v5279 = vunpack.c.l.b16 %v5172
    %v5280 = vunpack.c.h.b16 %v5172
    %v5281 = vunpack.c.l.b16 %v5173
    %v5282 = vunpack.c.h.b16 %v5173
    %v5283 = vunpack.c.l.b16 %v5174
    %v5284 = vunpack.c.h.b16 %v5174
    %v5285 = vunpack.c.l.b16 %v5175
    %v5286 = vunpack.c.h.b16 %v5175
    %v5287 = vunpack.c.l.b16 %v5176
    %v5288 = vunpack.c.h.b16 %v5176
    %v5289 = vunpack.c.l.b16 %v5177
    %v5290 = vunpack.c.h.b16 %v5177
    %v5291 = vunpack.c.l.b16 %v5178
    %v5292 = vunpack.c.h.b16 %v5178
    %v5293 = vunpack.c.l.b16 %v5179
    %v5294 = vunpack.c.h.b16 %v5179
    %v5295 = vunpack.c.l.b16 %v5180
    %v5296 = vunpack.c.h.b16 %v5180
    %v5297 = vunpack.c.l.b16 %v5181
    %v5298 = vunpack.c.h.b16 %v5181
    %v5299 = vpack.c.b16 %v5237, %v5235
    %v5300 = vpack.c.b16 %v5238, %v5236
    %v5301 = vpack.c.b16 %v5241, %v5239
    %v5302 = vpack.c.b16 %v5242, %v5240
    %v5303 = vpack.c.b16 %v5245, %v5243
    %v5304 = vpack.c.b16 %v5246, %v5244
    %v5305 = vpack.c.b16 %v5249, %v5247
    %v5306 = vpack.c.b16 %v5250, %v5248
    %v5307 = vpack.c.b16 %v5253, %v5251
    %v5308 = vpack.c.b16 %v5254, %v5252
    %v5309 = vpack.c.b16 %v5257, %v5255
    %v5310 = vpack.c.b16 %v5258, %v5256
    %v5311 = vpack.c.b16 %v5261, %v5259
    %v5312 = vpack.c.b16 %v5262, %v5260
    %v5313 = vpack.c.b16 %v5265, %v5263
    %v5314 = vpack.c.b16 %v5266, %v5264
    %v5315 = vpack.c.b16 %v5269, %v5267
    %v5316 = vpack.c.b16 %v5270, %v5268
    %v5317 = vpack.c.b16 %v5273, %v5271
    %v5318 = vpack.c.b16 %v5274, %v5272
    %v5319 = vpack.c.b16 %v5277, %v5275
    %v5320 = vpack.c.b16 %v5278, %v5276
    %v5321 = vpack.c.b16 %v5281, %v5279
    %v5322 = vpack.c.b16 %v5282, %v5280
    %v5323 = vpack.c.b16 %v5285, %v5283
    %v5324 = vpack.c.b16 %v5286, %v5284
    %v5325 = vpack.c.b16 %v5289, %v5287
    %v5326 = vpack.c.b16 %v5290, %v5288
    %v5327 = vpack.c.b16 %v5293, %v5291
    %v5328 = vpack.c.b16 %v5294, %v5292
    %v5329 = vpack.c.b16 %v5297, %v5295
    %v5330 = vpack.c.b16 %v5298, %v5296
    %5363 = vmatprep.subr.bf16.mxu0 %v5300
    %5364 = vmatpush1.bf16.msra.mxu0 %v5299
    %5365 = vmatprep.subr.bf16.mxu0 %v5302
    %5366 = vmatpush1.bf16.msra.mxu0 %v5301
    %5367 = vmatprep.subr.bf16.mxu0 %v5304
    %5368 = vmatpush1.bf16.msra.mxu0 %v5303
    %5369 = vmatprep.subr.bf16.mxu0 %v5306
    %5370 = vmatpush1.bf16.msra.mxu0 %v5305
    %5371 = vmatprep.subr.bf16.mxu0 %v5308
    %5372 = vmatpush1.bf16.msra.mxu0 %v5307
    %5373 = vmatprep.subr.bf16.mxu0 %v5310
    %5374 = vmatpush1.bf16.msra.mxu0 %v5309
    %5375 = vmatprep.subr.bf16.mxu0 %v5312
    %5376 = vmatpush1.bf16.msra.mxu0 %v5311
    %5377 = vmatprep.subr.bf16.mxu0 %v5314
    %5378 = vmatpush1.bf16.msra.mxu0 %v5313
    %5379 = vmatprep.subr.bf16.mxu0 %v5316
    %5380 = vmatpush1.bf16.msra.mxu0 %v5315
    %5381 = vmatprep.subr.bf16.mxu0 %v5318
    %5382 = vmatpush1.bf16.msra.mxu0 %v5317
    %5383 = vmatprep.subr.bf16.mxu0 %v5320
    %5384 = vmatpush1.bf16.msra.mxu0 %v5319
    %5385 = vmatprep.subr.bf16.mxu0 %v5322
    %5386 = vmatpush1.bf16.msra.mxu0 %v5321
    %5387 = vmatprep.subr.bf16.mxu0 %v5324
    %5388 = vmatpush1.bf16.msra.mxu0 %v5323
    %5389 = vmatprep.subr.bf16.mxu0 %v5326
    %5390 = vmatpush1.bf16.msra.mxu0 %v5325
    %5391 = vmatprep.subr.bf16.mxu0 %v5328
    %5392 = vmatpush1.bf16.msra.mxu0 %v5327
    %5393 = vmatprep.subr.bf16.mxu0 %v5330
    %5394 = vmatpush1.bf16.msra.mxu0 %v5329
    %5395 = vmatprep.mubr.bf16.mxu0 %v5192
    %5396 = vmatmul.mubr.bf16.gmra.mrb[0].mxu0 %v5189
    %v5397 = vpop.f32.mrb[0].mxu0
    %v5398 = vadd.f32 0.0, %v5397
    %v5399 = vpop.f32.mrb[0].mxu0
    %v5400 = vadd.f32 0.0, %v5399
    %v5401 = vpop.f32.mrb[0].mxu0
    %v5402 = vadd.f32 0.0, %v5401
    %v5403 = vpop.f32.mrb[0].mxu0
    %v5404 = vadd.f32 0.0, %v5403
    %5405 = vmatprep.mubr.bf16.mxu0 %v5196
    %5406 = vmatmul.mubr.bf16.gmra.mrb[0].mxu0 %v5194
    %v5407 = vpop.f32.mrb[0].mxu0
    %v5408 = vadd.f32 0.0, %v5407
    %v5409 = vpop.f32.mrb[0].mxu0
    %v5410 = vadd.f32 0.0, %v5409
    %v5411 = vpop.f32.mrb[0].mxu0
    %v5412 = vadd.f32 0.0, %v5411
    %v5413 = vpop.f32.mrb[0].mxu0
    %v5414 = vadd.f32 0.0, %v5413
    %5415 = vmatprep.mubr.bf16.mxu0 %v5195
    %5416 = vmatmul.mubr.bf16.gmra.mrb[0].mxu0 %v5193
    %v5417 = vpop.f32.mrb[0].mxu0
    %v5418 = vadd.f32 0.0, %v5417
    %v5419 = vpop.f32.mrb[0].mxu0
    %v5420 = vadd.f32 0.0, %v5419
    %v5421 = vpop.f32.mrb[0].mxu0
    %v5422 = vpop.f32.mrb[0].mxu0
    %5423 = vdwg.mxu0
    %v5424 = vadd.f32 %v5122, %v5398
    %v5425 = vadd.f32 %v5124, %v5400
    %v5426 = vadd.f32 %v5126, %v5402
    %v5427 = vadd.f32 %v5128, %v5404
    %v5428 = vadd.f32 %v5132, %v5408
    %v5429 = vadd.f32 %v5134, %v5410
    %v5430 = vadd.f32 %v5136, %v5412
    %v5431 = vadd.f32 %v5138, %v5414
    %v5432 = vadd.f32 %v5142, %v5418
    %v5433 = vadd.f32 %v5144, %v5420
    %v5435 = vlaneseq
    %v5436 = vshrl.u32 %v5435, 7
    %v5437 = vsub.s32 0, %v5436
    %v5438 = vrot.slane %v4549, %v5437
    %v5439 = vlaneseq
    %v5440 = vshrl.u32 %v5439, 7
    %v5441 = vsub.s32 1, %v5440
    %v5442 = vrot.slane %v4549, %v5441
    %v5445 = vadd.f32 %v5424, %v5438
    %v5446 = vadd.f32 %v5425, %v5442
    %v5447 = vadd.f32 %v5426, %v5438
    %v5448 = vadd.f32 %v5427, %v5442
    %v5449 = vadd.f32 %v5428, %v5438
    %v5450 = vadd.f32 %v5429, %v5442
    %v5451 = vadd.f32 %v5430, %v5438
    %v5452 = vadd.f32 %v5431, %v5442
    %v5453 = vadd.f32 %v5432, %v5438
    %v5454 = vadd.f32 %v5433, %v5442
    %v5455 = vld [vmem:[%s8] sm:$0x3]
    %v5457 = vsel %vm2775, %v5455, 0
    %v5460 = vsel %vm2779, %v5453, 0
    %v5463 = vsel %vm2779, %v5454, 0
    %5465 = vmatprep.subr.mxu0 %v5446
    %5466 = vmatpush1.msra.mxu0 %v5445
    %5467 = vmatprep.subr.mxu0 %v5448
    %5468 = vmatpush1.msra.mxu0 %v5447
    %5469 = vmatprep.subr.mxu0 %v5450
    %5470 = vmatpush1.msra.mxu0 %v5449
    %5471 = vmatprep.subr.mxu0 %v5452
    %5472 = vmatpush1.msra.mxu0 %v5451
    %5473 = vmatprep.subr.mxu0 %v5463
    %5474 = vmatpush1.msra.mxu0 %v5460
    %5475 = vmatprep.subr.mxu0 0.0
    %5476 = vmatpush1.msra.mxu0 0.0
    %5477 = vmatprep.subr.mxu0 0.0
    %5478 = vmatpush1.msra.mxu0 0.0
    %5479 = vmatprep.subr.mxu0 0.0
    %5480 = vmatpush1.msra.mxu0 0.0
    %5481 = vmatprep.subr.mxu0 0.0
    %5482 = vmatpush1.msra.mxu0 0.0
    %5483 = vmatprep.subr.mxu0 0.0
    %5484 = vmatpush1.msra.mxu0 0.0
    %5485 = vmatprep.subr.mxu0 0.0
    %5486 = vmatpush1.msra.mxu0 0.0
    %5487 = vmatprep.subr.mxu0 0.0
    %5488 = vmatpush1.msra.mxu0 0.0
    %5489 = vmatprep.subr.mxu0 0.0
    %5490 = vmatpush1.msra.mxu0 0.0
    %5491 = vmatprep.subr.mxu0 0.0
    %5492 = vmatpush1.msra.mxu0 0.0
    %5493 = vmatprep.subr.mxu0 0.0
    %5494 = vmatpush1.msra.mxu0 0.0
    %5495 = vmatprep.subr.mxu0 0.0
    %5496 = vmatpush1.msra.mxu0 0.0
    %5497 = vmatprep.subr.mxu0 0.0
    %5498 = vmatpush1.msra.mxu0 0.0
    %5499 = vmatprep.subr.mxu0 0.0
    %5500 = vmatpush1.msra.mxu0 0.0
    %5501 = vmatprep.subr.mxu0 0.0
    %5502 = vmatpush1.msra.mxu0 0.0
    %5503 = vmatprep.subr.mxu0 0.0
    %5504 = vmatpush1.msra.mxu0 0.0
    %5505 = vmatprep.subr.mxu0 0.0
    %5506 = vmatpush1.msra.mxu0 0.0
    %5507 = vmatprep.subr.mxu0 0.0
    %5508 = vmatpush1.msra.mxu0 0.0
    %5509 = vmatprep.subr.mxu0 0.0
    %5510 = vmatpush1.msra.mxu0 0.0
    %5511 = vmatprep.subr.mxu0 0.0
    %5512 = vmatpush1.msra.mxu0 0.0
    %5513 = vmatprep.subr.mxu0 0.0
    %5514 = vmatpush1.msra.mxu0 0.0
    %5515 = vmatprep.subr.mxu0 0.0
    %5516 = vmatpush1.msra.mxu0 0.0
    %5517 = vmatprep.subr.mxu0 0.0
    %5518 = vmatpush1.msra.mxu0 0.0
    %5519 = vmatprep.subr.mxu0 0.0
    %5520 = vmatpush1.msra.mxu0 0.0
    %5521 = vmatprep.subr.mxu0 0.0
    %5522 = vmatpush1.msra.mxu0 0.0
    %5523 = vmatprep.subr.mxu0 0.0
    %5524 = vmatpush1.msra.mxu0 0.0
    %5525 = vmatprep.subr.mxu0 0.0
    %5526 = vmatpush1.msra.mxu0 0.0
    %5527 = vmatprep.subr.mxu0 0.0
    %5528 = vmatpush1.msra.mxu0 0.0
    %5529 = vmatprep.mubr.f32.mxu0 0.0
    %5530 = vmatmul.mubr.f32.gmra.mrb[0].mxu0 %v5457
    %v5531 = vpop.f32.mrb[0].mxu0
    %v5532 = vadd.f32 0.0, %v5531
    %v5533 = vpop.f32.mrb[0].mxu0
    %v5534 = vadd.f32 0.0, %v5533
    %5535 = vdwg.mxu0
    %s5536 = sld [smem:[#allocation4 + $0x7]]
    %5537 = vrot.lane.b32.xlu0 %v5532, 2
    %v5538 = vpop.permute.xlu0 %5537
    %5539 = vrot.lane.b32.xlu0 %v5534, 2
    %v5540 = vpop.permute.xlu0 %5539
    %v5541 = vsel %vm2864, %v5538, %v5540
    %v5542 = vsel %vm2864, %v5540, %v5538
    %v5543 = vld [vmem:[%s11] sm:$0x3]
    %v5545 = vlaneseq
    %v5546 = vshrl.u32 %v5545, 7
    %v5547 = vsub.s32 0, %v5546
    %v5548 = vrot.slane %v5543, %v5547
    %v5549 = vlaneseq
    %v5550 = vshrl.u32 %v5549, 7
    %v5551 = vsub.s32 1, %v5550
    %v5552 = vrot.slane %v5543, %v5551
    %v5555 = vmul.f32 %v5542, %v5548
    %v5556 = vmul.f32 %v5541, %v5552
    %v5557 = vstv %s5536
    %v5558 = vmul.f32 %v5557, %v5555
    %v5559 = vmul.f32 %v5557, %v5556
    %v5560 = vadd.f32 %v5558, 0.0
    %v5561 = vadd.f32 %v5559, 0.0
    %s5562 = sld [smem:[#allocation4 + $0x8]]
    %5563 = vrot.lane.b32.xlu0 %v5532, 1
    %v5564 = vpop.permute.xlu0 %5563
    %5565 = vrot.lane.b32.xlu0 %v5534, 1
    %v5566 = vpop.permute.xlu0 %5565
    %v5567 = vsel %vm2891, %v5564, %v5566
    %v5568 = vsel %vm2891, %v5566, %v5564
    %v5569 = vld [vmem:[%s2894] sm:$0x3]
    %v5571 = vlaneseq
    %v5572 = vshrl.u32 %v5571, 7
    %v5573 = vsub.s32 0, %v5572
    %v5574 = vrot.slane %v5569, %v5573
    %v5575 = vlaneseq
    %v5576 = vshrl.u32 %v5575, 7
    %v5577 = vsub.s32 1, %v5576
    %v5578 = vrot.slane %v5569, %v5577
    %v5581 = vmul.f32 %v5568, %v5574
    %v5582 = vmul.f32 %v5567, %v5578
    %v5583 = vstv %s5562
    %v5584 = vmul.f32 %v5583, %v5581
    %v5585 = vmul.f32 %v5583, %v5582
    %v5586 = vadd.f32 %v5560, %v5584
    %v5587 = vadd.f32 %v5561, %v5585
    %s5588 = sld [smem:[#allocation4 + $0x9]]
    %v5589 = vld [vmem:[%s2915] sm:$0x3]
    %v5591 = vlaneseq
    %v5592 = vshrl.u32 %v5591, 7
    %v5593 = vsub.s32 0, %v5592
    %v5594 = vrot.slane %v5589, %v5593
    %v5595 = vlaneseq
    %v5596 = vshrl.u32 %v5595, 7
    %v5597 = vsub.s32 1, %v5596
    %v5598 = vrot.slane %v5589, %v5597
    %v5601 = vmul.f32 %v5532, %v5594
    %v5602 = vmul.f32 %v5534, %v5598
    %v5603 = vstv %s5588
    %v5604 = vmul.f32 %v5603, %v5601
    %v5605 = vmul.f32 %v5603, %v5602
    %v5606 = vadd.f32 %v5586, %v5604
    %v5607 = vadd.f32 %v5587, %v5605
    %s5608 = sld [smem:[#allocation4 + $0xa]]
    %5609 = vrot.lane.b32.xlu0 %v5532, 127
    %v5610 = vpop.permute.xlu0 %5609
    %5611 = vrot.lane.b32.xlu0 %v5534, 127
    %v5612 = vpop.permute.xlu0 %5611
    %v5613 = vsel %vm2940, %v5610, %v5612
    %v5614 = vsel %vm2940, %v5612, %v5610
    %v5615 = vld [vmem:[%s2943] sm:$0x3]
    %v5617 = vlaneseq
    %v5618 = vshrl.u32 %v5617, 7
    %v5619 = vsub.s32 0, %v5618
    %v5620 = vrot.slane %v5615, %v5619
    %v5621 = vlaneseq
    %v5622 = vshrl.u32 %v5621, 7
    %v5623 = vsub.s32 1, %v5622
    %v5624 = vrot.slane %v5615, %v5623
    %v5627 = vmul.f32 %v5613, %v5620
    %v5628 = vmul.f32 %v5614, %v5624
    %v5629 = vstv %s5608
    %v5630 = vmul.f32 %v5629, %v5627
    %v5631 = vmul.f32 %v5629, %v5628
    %v5632 = vadd.f32 %v5606, %v5630
    %v5633 = vadd.f32 %v5607, %v5631
    %s5634 = sld [smem:[#allocation4 + $0xb]]
    %5635 = vrot.lane.b32.xlu0 %v5532, 126
    %v5636 = vpop.permute.xlu0 %5635
    %5637 = vrot.lane.b32.xlu0 %v5534, 126
    %v5638 = vpop.permute.xlu0 %5637
    %v5639 = vsel %vm2968, %v5636, %v5638
    %v5640 = vsel %vm2968, %v5638, %v5636
    %v5641 = vld [vmem:[%s2971] sm:$0x3]
    %v5643 = vlaneseq
    %v5644 = vshrl.u32 %v5643, 7
    %v5645 = vsub.s32 0, %v5644
    %v5646 = vrot.slane %v5641, %v5645
    %v5647 = vlaneseq
    %v5648 = vshrl.u32 %v5647, 7
    %v5649 = vsub.s32 1, %v5648
    %v5650 = vrot.slane %v5641, %v5649
    %v5653 = vmul.f32 %v5639, %v5646
    %v5654 = vmul.f32 %v5640, %v5650
    %v5655 = vstv %s5634
    %v5656 = vmul.f32 %v5655, %v5653
    %v5657 = vmul.f32 %v5655, %v5654
    %v5658 = vadd.f32 %v5632, %v5656
    %v5659 = vadd.f32 %v5633, %v5657
    %v5660 = vxor.u32 %v5658, 2147483648
    %v5661 = vxor.u32 %v5659, 2147483648
    %v5662 = vmul.f32 %v5660, 1.442695
    %v5663 = vpow.pop %v5662
    %v5664 = vmul.f32 %v5661, 1.442695
    %v5665 = vpow.pop %v5664
    %v5666 = vadd.f32 %v5663, 1.0
    %v5667 = vadd.f32 %v5665, 1.0
    %v5668 = vrcp.pop %v5666
    %v5669 = vmul.f32 1.0, %v5668
    %v5670 = vrcp.pop %v5667
    %v5671 = vmul.f32 1.0, %v5670
    %v5672 = vld [vmem:[%s9] sm:$0xff]
    %v5673 = vld [vmem:[%s9 + $0x8] sm:$0xff]
    %v5674 = vld [vmem:[%s9 + $0x10] sm:$0xff]
    %v5675 = vld [vmem:[%s9 + $0x18] sm:$0xff]
    %v5676 = vld [vmem:[%s9 + $0x20] sm:$0xf]
    %v5678 = vsel %vm3008, %v5672, 0
    %v5681 = vsel %vm3008, %v5673, 0
    %v5684 = vsel %vm3008, %v5674, 0
    %v5687 = vsel %vm3008, %v5675, 0
    %v5690 = vsel %vm3008, %v5676, 0
    %v5693 = vsel %vm3024, %v5669, 0
    %v5696 = vsel %vm3024, %v5671, 0
    %5698 = vmatprep.subr.mxu0 %v5696
    %5699 = vmatpush1.msra.mxu0 %v5693
    %5700 = vmatprep.subr.mxu0 0.0
    %5701 = vmatpush1.msra.mxu0 0.0
    %5702 = vmatprep.subr.mxu0 0.0
    %5703 = vmatpush1.msra.mxu0 0.0
    %5704 = vmatprep.subr.mxu0 0.0
    %5705 = vmatpush1.msra.mxu0 0.0
    %5706 = vmatprep.subr.mxu0 0.0
    %5707 = vmatpush1.msra.mxu0 0.0
    %5708 = vmatprep.subr.mxu0 0.0
    %5709 = vmatpush1.msra.mxu0 0.0
    %5710 = vmatprep.subr.mxu0 0.0
    %5711 = vmatpush1.msra.mxu0 0.0
    %5712 = vmatprep.subr.mxu0 0.0
    %5713 = vmatpush1.msra.mxu0 0.0
    %5714 = vmatprep.subr.mxu0 0.0
    %5715 = vmatpush1.msra.mxu0 0.0
    %5716 = vmatprep.subr.mxu0 0.0
    %5717 = vmatpush1.msra.mxu0 0.0
    %5718 = vmatprep.subr.mxu0 0.0
    %5719 = vmatpush1.msra.mxu0 0.0
    %5720 = vmatprep.subr.mxu0 0.0
    %5721 = vmatpush1.msra.mxu0 0.0
    %5722 = vmatprep.subr.mxu0 0.0
    %5723 = vmatpush1.msra.mxu0 0.0
    %5724 = vmatprep.subr.mxu0 0.0
    %5725 = vmatpush1.msra.mxu0 0.0
    %5726 = vmatprep.subr.mxu0 0.0
    %5727 = vmatpush1.msra.mxu0 0.0
    %5728 = vmatprep.subr.mxu0 0.0
    %5729 = vmatpush1.msra.mxu0 0.0
    %5730 = vmatprep.subr.mxu0 0.0
    %5731 = vmatpush1.msra.mxu0 0.0
    %5732 = vmatprep.subr.mxu0 0.0
    %5733 = vmatpush1.msra.mxu0 0.0
    %5734 = vmatprep.subr.mxu0 0.0
    %5735 = vmatpush1.msra.mxu0 0.0
    %5736 = vmatprep.subr.mxu0 0.0
    %5737 = vmatpush1.msra.mxu0 0.0
    %5738 = vmatprep.subr.mxu0 0.0
    %5739 = vmatpush1.msra.mxu0 0.0
    %5740 = vmatprep.subr.mxu0 0.0
    %5741 = vmatpush1.msra.mxu0 0.0
    %5742 = vmatprep.subr.mxu0 0.0
    %5743 = vmatpush1.msra.mxu0 0.0
    %5744 = vmatprep.subr.mxu0 0.0
    %5745 = vmatpush1.msra.mxu0 0.0
    %5746 = vmatprep.subr.mxu0 0.0
    %5747 = vmatpush1.msra.mxu0 0.0
    %5748 = vmatprep.subr.mxu0 0.0
    %5749 = vmatpush1.msra.mxu0 0.0
    %5750 = vmatprep.subr.mxu0 0.0
    %5751 = vmatpush1.msra.mxu0 0.0
    %5752 = vmatprep.subr.mxu0 0.0
    %5753 = vmatpush1.msra.mxu0 0.0
    %5754 = vmatprep.subr.mxu0 0.0
    %5755 = vmatpush1.msra.mxu0 0.0
    %5756 = vmatprep.subr.mxu0 0.0
    %5757 = vmatpush1.msra.mxu0 0.0
    %5758 = vmatprep.subr.mxu0 0.0
    %5759 = vmatpush1.msra.mxu0 0.0
    %5760 = vmatprep.subr.mxu0 0.0
    %5761 = vmatpush1.msra.mxu0 0.0
    %5762 = vmatprep.mubr.f32.mxu0 0.0
    %5763 = vmatmul.mubr.f32.gmra.mrb[0].mxu0 %v5678
    %v5764 = vpop.f32.mrb[0].mxu0
    %v5765 = vadd.f32 0.0, %v5764
    %v5766 = vpop.f32.mrb[0].mxu0
    %v5767 = vadd.f32 0.0, %v5766
    %5768 = vmatprep.mubr.f32.mxu0 0.0
    %5769 = vmatmul.mubr.f32.gmra.mrb[0].mxu0 %v5681
    %v5770 = vpop.f32.mrb[0].mxu0
    %v5771 = vadd.f32 0.0, %v5770
    %v5772 = vpop.f32.mrb[0].mxu0
    %v5773 = vadd.f32 0.0, %v5772
    %5774 = vmatprep.mubr.f32.mxu0 0.0
    %5775 = vmatmul.mubr.f32.gmra.mrb[0].mxu0 %v5684
    %v5776 = vpop.f32.mrb[0].mxu0
    %v5777 = vadd.f32 0.0, %v5776
    %v5778 = vpop.f32.mrb[0].mxu0
    %v5779 = vadd.f32 0.0, %v5778
    %5780 = vmatprep.mubr.f32.mxu0 0.0
    %5781 = vmatmul.mubr.f32.gmra.mrb[0].mxu0 %v5687
    %v5782 = vpop.f32.mrb[0].mxu0
    %v5783 = vadd.f32 0.0, %v5782
    %v5784 = vpop.f32.mrb[0].mxu0
    %v5785 = vadd.f32 0.0, %v5784
    %5786 = vmatprep.mubr.f32.mxu0 0.0
    %5787 = vmatmul.mubr.f32.gmra.mrb[0].mxu0 %v5690
    %v5788 = vpop.f32.mrb[0].mxu0
    %v5789 = vadd.f32 0.0, %v5788
    %v5790 = vpop.f32.mrb[0].mxu0
    %v5791 = vadd.f32 0.0, %v5790
    %5792 = vdwg.mxu0
    %s5793 = scalar_lea.vmem %s6, 256
    %v5794 = vld [vmem:[%s5793] sm:$0xff]
    %v5795 = vld [vmem:[%s5793 + $0x8] sm:$0xff]
    %v5796 = vld [vmem:[%s5793 + $0x10] sm:$0xff]
    %v5797 = vld [vmem:[%s5793 + $0x18] sm:$0xff]
    %v5798 = vld [vmem:[%s5793 + $0x20] sm:$0xff]
    %v5799 = vld [vmem:[%s5793 + $0x28] sm:$0xff]
    %v5800 = vld [vmem:[%s5793 + $0x30] sm:$0xff]
    %v5801 = vld [vmem:[%s5793 + $0x38] sm:$0xff]
    %v5802 = vld [vmem:[%s5793 + $0x40] sm:$0xff]
    %v5803 = vld [vmem:[%s5793 + $0x48] sm:$0xff]
    %v5804 = vld [vmem:[%s5793 + $0x50] sm:$0xff]
    %v5805 = vld [vmem:[%s5793 + $0x58] sm:$0xff]
    %v5806 = vld [vmem:[%s5793 + $0x60] sm:$0xff]
    %v5807 = vld [vmem:[%s5793 + $0x68] sm:$0xff]
    %v5808 = vld [vmem:[%s5793 + $0x70] sm:$0xff]
    %v5809 = vld [vmem:[%s5793 + $0x78] sm:$0xff]
    %v5810 = vld [vmem:[%s5793 + $0x80] sm:$0xff]
    %v5811 = vld [vmem:[%s5793 + $0x88] sm:$0xff]
    %v5812 = vld [vmem:[%s5793 + $0x90] sm:$0xff]
    %v5813 = vld [vmem:[%s5793 + $0x98] sm:$0xff]
    %v5814 = vld [vmem:[%s5793 + $0xa0] sm:$0xff]
    %v5815 = vld [vmem:[%s5793 + $0xa8] sm:$0xff]
    %v5816 = vld [vmem:[%s5793 + $0xb0] sm:$0xff]
    %v5817 = vld [vmem:[%s5793 + $0xb8] sm:$0xff]
    %v5818 = vld [vmem:[%s5793 + $0xc0] sm:$0xff]
    %v5819 = vld [vmem:[%s5793 + $0xc8] sm:$0xff]
    %v5820 = vld [vmem:[%s5793 + $0xd0] sm:$0xff]
    %v5821 = vld [vmem:[%s5793 + $0xd8] sm:$0xff]
    %v5822 = vld [vmem:[%s5793 + $0xe0] sm:$0xff]
    %v5823 = vld [vmem:[%s5793 + $0xe8] sm:$0xff]
    %v5824 = vld [vmem:[%s5793 + $0xf0] sm:$0xff]
    %v5825 = vld [vmem:[%s5793 + $0xf8] sm:$0xff]
    %5826 = vmatprep.subr.mxu0 0.0
    %5827 = vmatpush1.msra.mxu0 %v5794
    %5828 = vmatprep.subr.mxu0 0.0
    %5829 = vmatpush1.msra.mxu0 %v5795
    %5830 = vmatprep.subr.mxu0 0.0
    %5831 = vmatpush1.msra.mxu0 %v5796
    %5832 = vmatprep.subr.mxu0 0.0
    %5833 = vmatpush1.msra.mxu0 %v5797
    %5834 = vmatprep.subr.mxu0 0.0
    %5835 = vmatpush1.msra.mxu0 %v5798
    %5836 = vmatprep.subr.mxu0 0.0
    %5837 = vmatpush1.msra.mxu0 %v5799
    %5838 = vmatprep.subr.mxu0 0.0
    %5839 = vmatpush1.msra.mxu0 %v5800
    %5840 = vmatprep.subr.mxu0 0.0
    %5841 = vmatpush1.msra.mxu0 %v5801
    %5842 = vmatprep.subr.mxu0 0.0
    %5843 = vmatpush1.msra.mxu0 %v5802
    %5844 = vmatprep.subr.mxu0 0.0
    %5845 = vmatpush1.msra.mxu0 %v5803
    %5846 = vmatprep.subr.mxu0 0.0
    %5847 = vmatpush1.msra.mxu0 %v5804
    %5848 = vmatprep.subr.mxu0 0.0
    %5849 = vmatpush1.msra.mxu0 %v5805
    %5850 = vmatprep.subr.mxu0 0.0
    %5851 = vmatpush1.msra.mxu0 %v5806
    %5852 = vmatprep.subr.mxu0 0.0
    %5853 = vmatpush1.msra.mxu0 %v5807
    %5854 = vmatprep.subr.mxu0 0.0
    %5855 = vmatpush1.msra.mxu0 %v5808
    %5856 = vmatprep.subr.mxu0 0.0
    %5857 = vmatpush1.msra.mxu0 %v5809
    %5858 = vmatprep.subr.mxu0 0.0
    %5859 = vmatpush1.msra.mxu0 %v5810
    %5860 = vmatprep.subr.mxu0 0.0
    %5861 = vmatpush1.msra.mxu0 %v5811
    %5862 = vmatprep.subr.mxu0 0.0
    %5863 = vmatpush1.msra.mxu0 %v5812
    %5864 = vmatprep.subr.mxu0 0.0
    %5865 = vmatpush1.msra.mxu0 %v5813
    %5866 = vmatprep.subr.mxu0 0.0
    %5867 = vmatpush1.msra.mxu0 %v5814
    %5868 = vmatprep.subr.mxu0 0.0
    %5869 = vmatpush1.msra.mxu0 %v5815
    %5870 = vmatprep.subr.mxu0 0.0
    %5871 = vmatpush1.msra.mxu0 %v5816
    %5872 = vmatprep.subr.mxu0 0.0
    %5873 = vmatpush1.msra.mxu0 %v5817
    %5874 = vmatprep.subr.mxu0 0.0
    %5875 = vmatpush1.msra.mxu0 %v5818
    %5876 = vmatprep.subr.mxu0 0.0
    %5877 = vmatpush1.msra.mxu0 %v5819
    %5878 = vmatprep.subr.mxu0 0.0
    %5879 = vmatpush1.msra.mxu0 %v5820
    %5880 = vmatprep.subr.mxu0 0.0
    %5881 = vmatpush1.msra.mxu0 %v5821
    %5882 = vmatprep.subr.mxu0 0.0
    %5883 = vmatpush1.msra.mxu0 %v5822
    %5884 = vmatprep.subr.mxu0 0.0
    %5885 = vmatpush1.msra.mxu0 %v5823
    %5886 = vmatprep.subr.mxu0 0.0
    %5887 = vmatpush1.msra.mxu0 %v5824
    %5888 = vmatprep.subr.mxu0 0.0
    %5889 = vmatpush1.msra.mxu0 %v5825
    %5890 = vmatprep.mubr.f32.mxu0 %v5446
    %5891 = vmatmul.mubr.f32.gmra.mrb[0].mxu0 %v5445
    %v5892 = vpop.f32.mrb[0].mxu0
    %v5893 = vadd.f32 0.0, %v5892
    %v5894 = vpop.f32.mrb[0].mxu0
    %5895 = vmatprep.mubr.f32.mxu0 %v5448
    %5896 = vmatmul.mubr.f32.gmra.mrb[0].mxu0 %v5447
    %v5897 = vpop.f32.mrb[0].mxu0
    %v5898 = vadd.f32 0.0, %v5897
    %v5899 = vpop.f32.mrb[0].mxu0
    %5900 = vmatprep.mubr.f32.mxu0 %v5450
    %5901 = vmatmul.mubr.f32.gmra.mrb[0].mxu0 %v5449
    %v5902 = vpop.f32.mrb[0].mxu0
    %v5903 = vadd.f32 0.0, %v5902
    %v5904 = vpop.f32.mrb[0].mxu0
    %5905 = vmatprep.mubr.f32.mxu0 %v5452
    %5906 = vmatmul.mubr.f32.gmra.mrb[0].mxu0 %v5451
    %v5907 = vpop.f32.mrb[0].mxu0
    %v5908 = vadd.f32 0.0, %v5907
    %v5909 = vpop.f32.mrb[0].mxu0
    %5910 = vmatprep.mubr.f32.mxu0 %v5454
    %5911 = vmatmul.mubr.f32.gmra.mrb[0].mxu0 %v5453
    %v5912 = vpop.f32.mrb[0].mxu0
    %v5913 = vadd.f32 0.0, %v5912
    %v5914 = vpop.f32.mrb[0].mxu0
    %5915 = vdwg.mxu0
    %v5916 = vxor.u32 %v5893, 2147483648
    %v5917 = vxor.u32 %v5898, 2147483648
    %v5918 = vxor.u32 %v5903, 2147483648
    %v5919 = vxor.u32 %v5908, 2147483648
    %v5920 = vxor.u32 %v5913, 2147483648
    %v5921 = vmul.f32 %v5916, 1.442695
    %v5922 = vpow.pop %v5921
    %v5923 = vmul.f32 %v5917, 1.442695
    %v5924 = vpow.pop %v5923
    %v5925 = vmul.f32 %v5918, 1.442695
    %v5926 = vpow.pop %v5925
    %v5927 = vmul.f32 %v5919, 1.442695
    %v5928 = vpow.pop %v5927
    %v5929 = vmul.f32 %v5920, 1.442695
    %v5930 = vpow.pop %v5929
    %v5931 = vadd.f32 %v5922, 1.0
    %v5932 = vadd.f32 %v5924, 1.0
    %v5933 = vadd.f32 %v5926, 1.0
    %v5934 = vadd.f32 %v5928, 1.0
    %v5935 = vadd.f32 %v5930, 1.0
    %v5936 = vrcp.pop %v5931
    %v5937 = vmul.f32 1.0, %v5936
    %v5938 = vrcp.pop %v5932
    %v5939 = vmul.f32 1.0, %v5938
    %v5940 = vrcp.pop %v5933
    %v5941 = vmul.f32 1.0, %v5940
    %v5942 = vrcp.pop %v5934
    %v5943 = vmul.f32 1.0, %v5942
    %v5944 = vrcp.pop %v5935
    %v5945 = vmul.f32 1.0, %v5944
    %v5946 = vld [vmem:[%s7] sm:$0xff]
    %v5947 = vld [vmem:[%s7 + $0x8] sm:$0xff]
    %v5948 = vld [vmem:[%s7 + $0x10] sm:$0xff]
    %v5949 = vld [vmem:[%s7 + $0x18] sm:$0xff]
    %v5951 = vsel %vm3282, %v5937, 0
    %v5954 = vsel %vm3282, %v5939, 0
    %v5957 = vsel %vm3282, %v5941, 0
    %v5960 = vsel %vm3282, %v5943, 0
    %v5963 = vsel %vm3282, %v5945, 0
    %5965 = vmatprep.subr.mxu0 %v5947
    %5966 = vmatpush1.msra.mxu0 %v5946
    %5967 = vmatprep.subr.mxu0 %v5949
    %5968 = vmatpush1.msra.mxu0 %v5948
    %5969 = vmatprep.subr.mxu0 0.0
    %5970 = vmatpush1.msra.mxu0 0.0
    %5971 = vmatprep.subr.mxu0 0.0
    %5972 = vmatpush1.msra.mxu0 0.0
    %5973 = vmatprep.subr.mxu0 0.0
    %5974 = vmatpush1.msra.mxu0 0.0
    %5975 = vmatprep.subr.mxu0 0.0
    %5976 = vmatpush1.msra.mxu0 0.0
    %5977 = vmatprep.subr.mxu0 0.0
    %5978 = vmatpush1.msra.mxu0 0.0
    %5979 = vmatprep.subr.mxu0 0.0
    %5980 = vmatpush1.msra.mxu0 0.0
    %5981 = vmatprep.subr.mxu0 0.0
    %5982 = vmatpush1.msra.mxu0 0.0
    %5983 = vmatprep.subr.mxu0 0.0
    %5984 = vmatpush1.msra.mxu0 0.0
    %5985 = vmatprep.subr.mxu0 0.0
    %5986 = vmatpush1.msra.mxu0 0.0
    %5987 = vmatprep.subr.mxu0 0.0
    %5988 = vmatpush1.msra.mxu0 0.0
    %5989 = vmatprep.subr.mxu0 0.0
    %5990 = vmatpush1.msra.mxu0 0.0
    %5991 = vmatprep.subr.mxu0 0.0
    %5992 = vmatpush1.msra.mxu0 0.0
    %5993 = vmatprep.subr.mxu0 0.0
    %5994 = vmatpush1.msra.mxu0 0.0
    %5995 = vmatprep.subr.mxu0 0.0
    %5996 = vmatpush1.msra.mxu0 0.0
    %5997 = vmatprep.subr.mxu0 0.0
    %5998 = vmatpush1.msra.mxu0 0.0
    %5999 = vmatprep.subr.mxu0 0.0
    %6000 = vmatpush1.msra.mxu0 0.0
    %6001 = vmatprep.subr.mxu0 0.0
    %6002 = vmatpush1.msra.mxu0 0.0
    %6003 = vmatprep.subr.mxu0 0.0
    %6004 = vmatpush1.msra.mxu0 0.0
    %6005 = vmatprep.subr.mxu0 0.0
    %6006 = vmatpush1.msra.mxu0 0.0
    %6007 = vmatprep.subr.mxu0 0.0
    %6008 = vmatpush1.msra.mxu0 0.0
    %6009 = vmatprep.subr.mxu0 0.0
    %6010 = vmatpush1.msra.mxu0 0.0
    %6011 = vmatprep.subr.mxu0 0.0
    %6012 = vmatpush1.msra.mxu0 0.0
    %6013 = vmatprep.subr.mxu0 0.0
    %6014 = vmatpush1.msra.mxu0 0.0
    %6015 = vmatprep.subr.mxu0 0.0
    %6016 = vmatpush1.msra.mxu0 0.0
    %6017 = vmatprep.subr.mxu0 0.0
    %6018 = vmatpush1.msra.mxu0 0.0
    %6019 = vmatprep.subr.mxu0 0.0
    %6020 = vmatpush1.msra.mxu0 0.0
    %6021 = vmatprep.subr.mxu0 0.0
    %6022 = vmatpush1.msra.mxu0 0.0
    %6023 = vmatprep.subr.mxu0 0.0
    %6024 = vmatpush1.msra.mxu0 0.0
    %6025 = vmatprep.subr.mxu0 0.0
    %6026 = vmatpush1.msra.mxu0 0.0
    %6027 = vmatprep.subr.mxu0 0.0
    %6028 = vmatpush1.msra.mxu0 0.0
    %6029 = vmatprep.mubr.f32.mxu0 0.0
    %6030 = vmatmul.mubr.f32.gmra.mrb[0].mxu0 %v5951
    %v6031 = vpop.f32.mrb[0].mxu0
    %v6032 = vadd.f32 0.0, %v6031
    %v6033 = vpop.f32.mrb[0].mxu0
    %v6034 = vadd.f32 0.0, %v6033
    %6035 = vmatprep.mubr.f32.mxu0 0.0
    %6036 = vmatmul.mubr.f32.gmra.mrb[0].mxu0 %v5954
    %v6037 = vpop.f32.mrb[0].mxu0
    %v6038 = vadd.f32 0.0, %v6037
    %v6039 = vpop.f32.mrb[0].mxu0
    %v6040 = vadd.f32 0.0, %v6039
    %6041 = vmatprep.mubr.f32.mxu0 0.0
    %6042 = vmatmul.mubr.f32.gmra.mrb[0].mxu0 %v5957
    %v6043 = vpop.f32.mrb[0].mxu0
    %v6044 = vadd.f32 0.0, %v6043
    %v6045 = vpop.f32.mrb[0].mxu0
    %v6046 = vadd.f32 0.0, %v6045
    %6047 = vmatprep.mubr.f32.mxu0 0.0
    %6048 = vmatmul.mubr.f32.gmra.mrb[0].mxu0 %v5960
    %v6049 = vpop.f32.mrb[0].mxu0
    %v6050 = vadd.f32 0.0, %v6049
    %v6051 = vpop.f32.mrb[0].mxu0
    %v6052 = vadd.f32 0.0, %v6051
    %6053 = vmatprep.mubr.f32.mxu0 0.0
    %6054 = vmatmul.mubr.f32.gmra.mrb[0].mxu0 %v5963
    %v6055 = vpop.f32.mrb[0].mxu0
    %v6056 = vadd.f32 0.0, %v6055
    %v6057 = vpop.f32.mrb[0].mxu0
    %v6058 = vadd.f32 0.0, %v6057
    %6059 = vdwg.mxu0
    %v6060 = vmul.f32 %v5445, %v5765
    %v6061 = vmul.f32 %v5446, %v5767
    %v6062 = vmul.f32 %v5447, %v5771
    %v6063 = vmul.f32 %v5448, %v5773
    %v6064 = vmul.f32 %v5449, %v5777
    %v6065 = vmul.f32 %v5450, %v5779
    %v6066 = vmul.f32 %v5451, %v5783
    %v6067 = vmul.f32 %v5452, %v5785
    %v6068 = vmul.f32 %v5453, %v5789
    %v6069 = vmul.f32 %v5454, %v5791
    %v6070 = vmul.f32 %v6060, %v6032
    %v6071 = vmul.f32 %v6061, %v6034
    %v6072 = vmul.f32 %v6062, %v6038
    %v6073 = vmul.f32 %v6063, %v6040
    %v6074 = vmul.f32 %v6064, %v6044
    %v6075 = vmul.f32 %v6065, %v6046
    %v6076 = vmul.f32 %v6066, %v6050
    %v6077 = vmul.f32 %v6067, %v6052
    %v6078 = vmul.f32 %v6068, %v6056
    %v6079 = vmul.f32 %v6069, %v6058
    %v6080 = vmul.f32 %v6070, %v705
    %v6081 = vmul.f32 %v6071, %v705
    %v6082 = vmul.f32 %v6072, %v710
    %v6083 = vmul.f32 %v6073, %v710
    %v6084 = vmul.f32 %v6074, %v715
    %v6085 = vmul.f32 %v6075, %v715
    %v6086 = vmul.f32 %v6076, %v720
    %v6087 = vmul.f32 %v6077, %v720
    %v6088 = vmul.f32 %v6078, %v725
    %v6089 = vmul.f32 %v6079, %v725
    %v6090 = vadd.f32 %v6080, %v3423
    %v6091 = vadd.f32 %v6081, %v3424
    %v6092 = vadd.f32 %v6082, %v3425
    %v6093 = vadd.f32 %v6083, %v3426
    %v6094 = vadd.f32 %v6084, %v3427
    %v6095 = vadd.f32 %v6085, %v3428
    %v6096 = vadd.f32 %v6086, %v3429
    %v6097 = vadd.f32 %v6087, %v3430
    %v6098 = vadd.f32 %v6088, %v3431
    %v6099 = vadd.f32 %v6089, %v3432
    %v6100 = vadd.f32 %v6090, %v727
    %v6101 = vadd.f32 %v6091, %v728
    %v6102 = vadd.f32 %v6092, %v729
    %v6103 = vadd.f32 %v6093, %v730
    %v6104 = vadd.f32 %v6094, %v731
    %v6105 = vadd.f32 %v6095, %v732
    %v6106 = vadd.f32 %v6096, %v733
    %v6107 = vadd.f32 %v6097, %v734
    %v6108 = vadd.f32 %v6098, %v735
    %v6109 = vadd.f32 %v6099, %v736
    %v6110 = vpack.c.bf16 %v6102, %v6100
    %v6111 = vpack.c.bf16 %v6103, %v6101
    %v6112 = vpack.c.bf16 %v6106, %v6104
    %v6113 = vpack.c.bf16 %v6107, %v6105
    %v6114 = vpack.c.bf16 %v6108, %v6108
    %v6115 = vpack.c.bf16 %v6109, %v6109
    %v6122 = vunpack.c.l.b16 %v6110
    %v6123 = vunpack.c.l.b16 %v6111
    %v6124 = vunpack.c.h.b16 %v6110
    %v6125 = vunpack.c.h.b16 %v6111
    %v6126 = vunpack.c.l.b16 %v6112
    %v6127 = vunpack.c.l.b16 %v6113
    %v6128 = vunpack.c.h.b16 %v6112
    %v6129 = vunpack.c.h.b16 %v6113
    %v6130 = vunpack.c.l.b16 %v6114
    %v6131 = vunpack.c.l.b16 %v6115
    %v6132 = vpack.c.b16 %v6123, %v6122
    %v6133 = vpack.c.b16 %v6125, %v6124
    %v6134 = vpack.c.b16 %v6127, %v6126
    %v6135 = vpack.c.b16 %v6129, %v6128
    %v6136 = vpack.c.b16 %v6131, %v6130
    %v6138 = vshrl.u32 %v6132, 16
    %v6140 = vrot.slane %v6138, 7
    %v6141 = vshll.u32 %v6132, 16
    %v6143 = vor.u32 %v6140, %v6141
    %v6144 = vrot.slane %v6140, 4
    %v6146 = vshrl.u32 %v6133, 16
    %v6148 = vrot.slane %v6146, 7
    %v6149 = vshll.u32 %v6133, 16
    %v6151 = vor.u32 %v6148, %v6149
    %v6152 = vsel %vm765, %v6144, %v6151
    %v6153 = vrot.slane %v6148, 4
    %v6155 = vshrl.u32 %v6134, 16
    %v6157 = vrot.slane %v6155, 7
    %v6158 = vshll.u32 %v6134, 16
    %v6160 = vor.u32 %v6157, %v6158
    %v6161 = vsel %vm765, %v6153, %v6160
    %v6162 = vrot.slane %v6157, 4
    %v6164 = vshrl.u32 %v6135, 16
    %v6166 = vrot.slane %v6164, 7
    %v6167 = vshll.u32 %v6135, 16
    %v6169 = vor.u32 %v6166, %v6167
    %v6170 = vsel %vm765, %v6162, %v6169
    %v6171 = vrot.slane %v6166, 4
    %v6173 = vshrl.u32 %v6136, 16
    %v6175 = vrot.slane %v6173, 7
    %v6176 = vshll.u32 %v6136, 16
    %v6178 = vor.u32 %v6175, %v6176
    %v6179 = vsel %vm765, %v6171, %v6178
    %v6185 = vsel %vm820, %v6143, %v4550
    %6186 = vst [vmem:[#allocation3] sm:$0xff] %v6185
    %6187 = vst [vmem:[#allocation3 + $0x8] sm:$0xff] %v6152
    %6188 = vst [vmem:[#allocation3 + $0x10] sm:$0xff] %v6161
    %6189 = vst [vmem:[#allocation3 + $0x18] sm:$0xff] %v6170
    %v6190 = vld [vmem:[#allocation3 + $0x20] sm:$0x77]
    %v6191 = vsel %vm833, %v6179, %v6190
    %6192 = vst [vmem:[#allocation3 + $0x20] sm:$0x77] %v6191
    %v6193 = vld [vmem:[%s13] sm:$0x1]
    %v6194 = vld [vmem:[#allocation3] sm:$0xff]
    %v6195 = vld [vmem:[#allocation3 + $0x8] sm:$0xff]
    %v6196 = vld [vmem:[#allocation3 + $0x10] sm:$0xff]
    %v6197 = vld [vmem:[#allocation3 + $0x18] sm:$0xff]
    %v6198 = vld [vmem:[#allocation3 + $0x20] sm:$0x33]
    %v6199 = vld [vmem:[%s12] sm:$0xf]
    %v6200 = vld [vmem:[%s12 + $0x4] sm:$0xf]
    %v6201 = vld [vmem:[%s12 + $0x8] sm:$0xf]
    %v6202 = vld [vmem:[%s12 + $0xc] sm:$0xf]
    %v6203 = vld [vmem:[%s12 + $0x10] sm:$0xf]
    %v6204 = vld [vmem:[%s12 + $0x14] sm:$0xf]
    %v6205 = vld [vmem:[%s12 + $0x18] sm:$0xf]
    %v6206 = vld [vmem:[%s12 + $0x1c] sm:$0xf]
    %v6207 = vld [vmem:[%s12 + $0x20] sm:$0xf]
    %v6208 = vld [vmem:[%s12 + $0x24] sm:$0xf]
    %v6209 = vld [vmem:[%s12 + $0x28] sm:$0xf]
    %v6210 = vld [vmem:[%s12 + $0x2c] sm:$0xf]
    %v6211 = vld [vmem:[%s12 + $0x30] sm:$0xf]
    %v6212 = vld [vmem:[%s12 + $0x34] sm:$0xf]
    %v6213 = vld [vmem:[%s12 + $0x38] sm:$0xf]
    %v6214 = vld [vmem:[%s12 + $0x3c] sm:$0xf]
    %v6215 = vld [vmem:[%s12 + $0x40] sm:$0xf]
    %v6216 = vld [vmem:[%s12 + $0x44] sm:$0xf]
    %v6217 = vld [vmem:[%s12 + $0x48] sm:$0xf]
    %v6218 = vld [vmem:[%s12 + $0x4c] sm:$0xf]
    %v6219 = vld [vmem:[%s12 + $0x50] sm:$0xf]
    %v6220 = vld [vmem:[%s12 + $0x54] sm:$0xf]
    %v6221 = vld [vmem:[%s12 + $0x58] sm:$0xf]
    %v6222 = vld [vmem:[%s12 + $0x5c] sm:$0xf]
    %v6223 = vld [vmem:[%s12 + $0x60] sm:$0xf]
    %v6224 = vld [vmem:[%s12 + $0x64] sm:$0xf]
    %v6225 = vld [vmem:[%s12 + $0x68] sm:$0xf]
    %v6226 = vld [vmem:[%s12 + $0x6c] sm:$0xf]
    %v6227 = vld [vmem:[%s12 + $0x70] sm:$0xf]
    %v6228 = vld [vmem:[%s12 + $0x74] sm:$0xf]
    %v6229 = vld [vmem:[%s12 + $0x78] sm:$0xf]
    %v6230 = vld [vmem:[%s12 + $0x7c] sm:$0xf]
    %v6231 = vld [vmem:[#allocation3 + $0x20] sm:$0x77]
    %s6232 = scalar_lea.vmem %s12, 128
    %v6233 = vld [vmem:[%s6232] sm:$0xf]
    %v6234 = vld [vmem:[%s6232 + $0x4] sm:$0xf]
    %v6235 = vld [vmem:[%s6232 + $0x8] sm:$0xf]
    %v6236 = vld [vmem:[%s6232 + $0xc] sm:$0xf]
    %v6237 = vld [vmem:[%s6232 + $0x10] sm:$0xf]
    %v6238 = vld [vmem:[%s6232 + $0x14] sm:$0xf]
    %v6239 = vld [vmem:[%s6232 + $0x18] sm:$0xf]
    %v6240 = vld [vmem:[%s6232 + $0x1c] sm:$0xf]
    %v6241 = vld [vmem:[%s6232 + $0x20] sm:$0xf]
    %v6242 = vld [vmem:[%s6232 + $0x24] sm:$0xf]
    %v6243 = vld [vmem:[%s6232 + $0x28] sm:$0xf]
    %v6244 = vld [vmem:[%s6232 + $0x2c] sm:$0xf]
    %v6245 = vld [vmem:[%s6232 + $0x30] sm:$0xf]
    %v6246 = vld [vmem:[%s6232 + $0x34] sm:$0xf]
    %v6247 = vld [vmem:[%s6232 + $0x38] sm:$0xf]
    %v6248 = vld [vmem:[%s6232 + $0x3c] sm:$0xf]
    %v6249 = vld [vmem:[%s6232 + $0x40] sm:$0xf]
    %v6250 = vld [vmem:[%s6232 + $0x44] sm:$0xf]
    %v6251 = vld [vmem:[%s6232 + $0x48] sm:$0xf]
    %v6252 = vld [vmem:[%s6232 + $0x4c] sm:$0xf]
    %v6253 = vld [vmem:[%s6232 + $0x50] sm:$0xf]
    %v6254 = vld [vmem:[%s6232 + $0x54] sm:$0xf]
    %v6255 = vld [vmem:[%s6232 + $0x58] sm:$0xf]
    %v6256 = vld [vmem:[%s6232 + $0x5c] sm:$0xf]
    %v6257 = vld [vmem:[%s6232 + $0x60] sm:$0xf]
    %v6258 = vld [vmem:[%s6232 + $0x64] sm:$0xf]
    %v6259 = vld [vmem:[%s6232 + $0x68] sm:$0xf]
    %v6260 = vld [vmem:[%s6232 + $0x6c] sm:$0xf]
    %v6261 = vld [vmem:[%s6232 + $0x70] sm:$0xf]
    %v6262 = vld [vmem:[%s6232 + $0x74] sm:$0xf]
    %v6263 = vld [vmem:[%s6232 + $0x78] sm:$0xf]
    %v6264 = vld [vmem:[%s6232 + $0x7c] sm:$0xf]
    %v6270 = vunpack.c.l.b16 %v6194
    %v6271 = vunpack.c.h.b16 %v6194
    %v6272 = vunpack.c.l.b16 %v6195
    %v6273 = vunpack.c.h.b16 %v6195
    %v6274 = vunpack.c.l.b16 %v6196
    %v6275 = vunpack.c.h.b16 %v6196
    %v6276 = vunpack.c.l.b16 %v6197
    %v6277 = vunpack.c.h.b16 %v6197
    %v6278 = vunpack.c.l.b16 %v6231
    %v6279 = vunpack.c.h.b16 %v6231
    %v6280 = vpack.c.b16 %v6272, %v6270
    %v6281 = vpack.c.b16 %v6273, %v6271
    %v6282 = vpack.c.b16 %v6276, %v6274
    %v6283 = vpack.c.b16 %v6277, %v6275
    %v6284 = vpack.c.b16 %v6278, %v6278
    %v6285 = vpack.c.b16 %v6279, %v6279
    %v6287 = vshrl.u32 %v6280, 16
    %v6289 = vshll.u32 %v6280, 16
    %v6291 = vrot.slane %v6289, 1
    %v6292 = vor.u32 %v6287, %v6291
    %v6294 = vshll.u32 %v6282, 16
    %v6296 = vrot.slane %v6294, 1
    %v6297 = vsel %vm185, %v6292, %v6296
    %v6299 = vshrl.u32 %v6281, 16
    %v6301 = vshll.u32 %v6281, 16
    %v6303 = vrot.slane %v6301, 1
    %v6304 = vor.u32 %v6299, %v6303
    %v6306 = vshll.u32 %v6283, 16
    %v6308 = vrot.slane %v6306, 1
    %v6309 = vsel %vm185, %v6304, %v6308
    %v6310 = vshrl.u32 %v6282, 16
    %v6312 = vor.u32 %v6310, %v6296
    %v6314 = vshll.u32 %v6284, 16
    %v6316 = vrot.slane %v6314, 1
    %v6317 = vsel %vm185, %v6312, %v6316
    %v6318 = vshrl.u32 %v6283, 16
    %v6320 = vor.u32 %v6318, %v6308
    %v6322 = vshll.u32 %v6285, 16
    %v6324 = vrot.slane %v6322, 1
    %v6325 = vsel %vm185, %v6320, %v6324
    %v6326 = vshrl.u32 %v6284, 16
    %v6328 = vor.u32 %v6326, %v6316
    %v6329 = vshrl.u32 %v6285, 16
    %v6331 = vor.u32 %v6329, %v6324
    %v6370 = vunpack.c.l.b16 %v6233
    %v6371 = vunpack.c.l.b16 %v6234
    %v6372 = vunpack.c.l.b16 %v6235
    %v6373 = vunpack.c.l.b16 %v6236
    %v6374 = vunpack.c.l.b16 %v6237
    %v6375 = vunpack.c.l.b16 %v6238
    %v6376 = vunpack.c.l.b16 %v6239
    %v6377 = vunpack.c.l.b16 %v6240
    %v6378 = vunpack.c.l.b16 %v6241
    %v6379 = vunpack.c.l.b16 %v6242
    %v6380 = vunpack.c.l.b16 %v6243
    %v6381 = vunpack.c.l.b16 %v6244
    %v6382 = vunpack.c.l.b16 %v6245
    %v6383 = vunpack.c.l.b16 %v6246
    %v6384 = vunpack.c.l.b16 %v6247
    %v6385 = vunpack.c.l.b16 %v6248
    %v6386 = vunpack.c.l.b16 %v6249
    %v6387 = vunpack.c.l.b16 %v6250
    %v6388 = vunpack.c.l.b16 %v6251
    %v6389 = vunpack.c.l.b16 %v6252
    %v6390 = vunpack.c.l.b16 %v6253
    %v6391 = vunpack.c.l.b16 %v6254
    %v6392 = vunpack.c.l.b16 %v6255
    %v6393 = vunpack.c.l.b16 %v6256
    %v6394 = vunpack.c.l.b16 %v6257
    %v6395 = vunpack.c.l.b16 %v6258
    %v6396 = vunpack.c.l.b16 %v6259
    %v6397 = vunpack.c.l.b16 %v6260
    %v6398 = vunpack.c.l.b16 %v6261
    %v6399 = vunpack.c.l.b16 %v6262
    %v6400 = vunpack.c.l.b16 %v6263
    %v6401 = vunpack.c.l.b16 %v6264
    %v6402 = vpack.c.b16 %v6371, %v6370
    %v6403 = vpack.c.b16 %v6373, %v6372
    %v6404 = vpack.c.b16 %v6375, %v6374
    %v6405 = vpack.c.b16 %v6377, %v6376
    %v6406 = vpack.c.b16 %v6379, %v6378
    %v6407 = vpack.c.b16 %v6381, %v6380
    %v6408 = vpack.c.b16 %v6383, %v6382
    %v6409 = vpack.c.b16 %v6385, %v6384
    %v6410 = vpack.c.b16 %v6387, %v6386
    %v6411 = vpack.c.b16 %v6389, %v6388
    %v6412 = vpack.c.b16 %v6391, %v6390
    %v6413 = vpack.c.b16 %v6393, %v6392
    %v6414 = vpack.c.b16 %v6395, %v6394
    %v6415 = vpack.c.b16 %v6397, %v6396
    %v6416 = vpack.c.b16 %v6399, %v6398
    %v6417 = vpack.c.b16 %v6401, %v6400
    %6434 = vmatprep.subr.bf16.mxu0 0
    %6435 = vmatpush1.bf16.msra.mxu0 %v6402
    %6436 = vmatprep.subr.bf16.mxu0 0
    %6437 = vmatpush1.bf16.msra.mxu0 %v6403
    %6438 = vmatprep.subr.bf16.mxu0 0
    %6439 = vmatpush1.bf16.msra.mxu0 %v6404
    %6440 = vmatprep.subr.bf16.mxu0 0
    %6441 = vmatpush1.bf16.msra.mxu0 %v6405
    %6442 = vmatprep.subr.bf16.mxu0 0
    %6443 = vmatpush1.bf16.msra.mxu0 %v6406
    %6444 = vmatprep.subr.bf16.mxu0 0
    %6445 = vmatpush1.bf16.msra.mxu0 %v6407
    %6446 = vmatprep.subr.bf16.mxu0 0
    %6447 = vmatpush1.bf16.msra.mxu0 %v6408
    %6448 = vmatprep.subr.bf16.mxu0 0
    %6449 = vmatpush1.bf16.msra.mxu0 %v6409
    %6450 = vmatprep.subr.bf16.mxu0 0
    %6451 = vmatpush1.bf16.msra.mxu0 %v6410
    %6452 = vmatprep.subr.bf16.mxu0 0
    %6453 = vmatpush1.bf16.msra.mxu0 %v6411
    %6454 = vmatprep.subr.bf16.mxu0 0
    %6455 = vmatpush1.bf16.msra.mxu0 %v6412
    %6456 = vmatprep.subr.bf16.mxu0 0
    %6457 = vmatpush1.bf16.msra.mxu0 %v6413
    %6458 = vmatprep.subr.bf16.mxu0 0
    %6459 = vmatpush1.bf16.msra.mxu0 %v6414
    %6460 = vmatprep.subr.bf16.mxu0 0
    %6461 = vmatpush1.bf16.msra.mxu0 %v6415
    %6462 = vmatprep.subr.bf16.mxu0 0
    %6463 = vmatpush1.bf16.msra.mxu0 %v6416
    %6464 = vmatprep.subr.bf16.mxu0 0
    %6465 = vmatpush1.bf16.msra.mxu0 %v6417
    %6466 = vmatprep.mubr.bf16.mxu0 %v6309
    %6467 = vmatmul.mubr.bf16.gmra.mrb[0].mxu0 %v6297
    %v6468 = vpop.f32.mrb[0].mxu0
    %v6469 = vadd.f32 0.0, %v6468
    %v6470 = vpop.f32.mrb[0].mxu0
    %v6471 = vpop.f32.mrb[0].mxu0
    %v6472 = vadd.f32 0.0, %v6471
    %v6473 = vpop.f32.mrb[0].mxu0
    %6474 = vmatprep.mubr.bf16.mxu0 %v6325
    %6475 = vmatmul.mubr.bf16.gmra.mrb[0].mxu0 %v6317
    %v6476 = vpop.f32.mrb[0].mxu0
    %v6477 = vadd.f32 0.0, %v6476
    %v6478 = vpop.f32.mrb[0].mxu0
    %v6479 = vpop.f32.mrb[0].mxu0
    %v6480 = vadd.f32 0.0, %v6479
    %v6481 = vpop.f32.mrb[0].mxu0
    %6482 = vmatprep.mubr.bf16.mxu0 %v6331
    %6483 = vmatmul.mubr.bf16.gmra.mrb[0].mxu0 %v6328
    %v6484 = vpop.f32.mrb[0].mxu0
    %v6485 = vadd.f32 0.0, %v6484
    %v6486 = vpop.f32.mrb[0].mxu0
    %v6487 = vpop.f32.mrb[0].mxu0
    %v6488 = vpop.f32.mrb[0].mxu0
    %6489 = vdwg.mxu0
    %v6491 = vunpack.c.l.b16 %v6198
    %v6492 = vunpack.c.h.b16 %v6198
    %v6493 = vpack.c.b16 %v6491, %v6491
    %v6494 = vpack.c.b16 %v6492, %v6492
    %v6533 = vunpack.c.l.b16 %v6199
    %v6534 = vunpack.c.l.b16 %v6200
    %v6535 = vunpack.c.l.b16 %v6201
    %v6536 = vunpack.c.l.b16 %v6202
    %v6537 = vunpack.c.l.b16 %v6203
    %v6538 = vunpack.c.l.b16 %v6204
    %v6539 = vunpack.c.l.b16 %v6205
    %v6540 = vunpack.c.l.b16 %v6206
    %v6541 = vunpack.c.l.b16 %v6207
    %v6542 = vunpack.c.l.b16 %v6208
    %v6543 = vunpack.c.l.b16 %v6209
    %v6544 = vunpack.c.l.b16 %v6210
    %v6545 = vunpack.c.l.b16 %v6211
    %v6546 = vunpack.c.l.b16 %v6212
    %v6547 = vunpack.c.l.b16 %v6213
    %v6548 = vunpack.c.l.b16 %v6214
    %v6549 = vunpack.c.l.b16 %v6215
    %v6550 = vunpack.c.l.b16 %v6216
    %v6551 = vunpack.c.l.b16 %v6217
    %v6552 = vunpack.c.l.b16 %v6218
    %v6553 = vunpack.c.l.b16 %v6219
    %v6554 = vunpack.c.l.b16 %v6220
    %v6555 = vunpack.c.l.b16 %v6221
    %v6556 = vunpack.c.l.b16 %v6222
    %v6557 = vunpack.c.l.b16 %v6223
    %v6558 = vunpack.c.l.b16 %v6224
    %v6559 = vunpack.c.l.b16 %v6225
    %v6560 = vunpack.c.l.b16 %v6226
    %v6561 = vunpack.c.l.b16 %v6227
    %v6562 = vunpack.c.l.b16 %v6228
    %v6563 = vunpack.c.l.b16 %v6229
    %v6564 = vunpack.c.l.b16 %v6230
    %v6565 = vpack.c.b16 %v6534, %v6533
    %v6566 = vpack.c.b16 %v6536, %v6535
    %v6567 = vpack.c.b16 %v6538, %v6537
    %v6568 = vpack.c.b16 %v6540, %v6539
    %v6569 = vpack.c.b16 %v6542, %v6541
    %v6570 = vpack.c.b16 %v6544, %v6543
    %v6571 = vpack.c.b16 %v6546, %v6545
    %v6572 = vpack.c.b16 %v6548, %v6547
    %v6573 = vpack.c.b16 %v6550, %v6549
    %v6574 = vpack.c.b16 %v6552, %v6551
    %v6575 = vpack.c.b16 %v6554, %v6553
    %v6576 = vpack.c.b16 %v6556, %v6555
    %v6577 = vpack.c.b16 %v6558, %v6557
    %v6578 = vpack.c.b16 %v6560, %v6559
    %v6579 = vpack.c.b16 %v6562, %v6561
    %v6580 = vpack.c.b16 %v6564, %v6563
    %6597 = vmatprep.subr.bf16.mxu0 0
    %6598 = vmatpush1.bf16.msra.mxu0 %v6565
    %6599 = vmatprep.subr.bf16.mxu0 0
    %6600 = vmatpush1.bf16.msra.mxu0 %v6566
    %6601 = vmatprep.subr.bf16.mxu0 0
    %6602 = vmatpush1.bf16.msra.mxu0 %v6567
    %6603 = vmatprep.subr.bf16.mxu0 0
    %6604 = vmatpush1.bf16.msra.mxu0 %v6568
    %6605 = vmatprep.subr.bf16.mxu0 0
    %6606 = vmatpush1.bf16.msra.mxu0 %v6569
    %6607 = vmatprep.subr.bf16.mxu0 0
    %6608 = vmatpush1.bf16.msra.mxu0 %v6570
    %6609 = vmatprep.subr.bf16.mxu0 0
    %6610 = vmatpush1.bf16.msra.mxu0 %v6571
    %6611 = vmatprep.subr.bf16.mxu0 0
    %6612 = vmatpush1.bf16.msra.mxu0 %v6572
    %6613 = vmatprep.subr.bf16.mxu0 0
    %6614 = vmatpush1.bf16.msra.mxu0 %v6573
    %6615 = vmatprep.subr.bf16.mxu0 0
    %6616 = vmatpush1.bf16.msra.mxu0 %v6574
    %6617 = vmatprep.subr.bf16.mxu0 0
    %6618 = vmatpush1.bf16.msra.mxu0 %v6575
    %6619 = vmatprep.subr.bf16.mxu0 0
    %6620 = vmatpush1.bf16.msra.mxu0 %v6576
    %6621 = vmatprep.subr.bf16.mxu0 0
    %6622 = vmatpush1.bf16.msra.mxu0 %v6577
    %6623 = vmatprep.subr.bf16.mxu0 0
    %6624 = vmatpush1.bf16.msra.mxu0 %v6578
    %6625 = vmatprep.subr.bf16.mxu0 0
    %6626 = vmatpush1.bf16.msra.mxu0 %v6579
    %6627 = vmatprep.subr.bf16.mxu0 0
    %6628 = vmatpush1.bf16.msra.mxu0 %v6580
    %6629 = vmatprep.mubr.bf16.mxu0 %v6281
    %6630 = vmatmul.mubr.bf16.gmra.mrb[0].mxu0 %v6280
    %v6631 = vpop.f32.mrb[0].mxu0
    %v6632 = vadd.f32 %v6469, %v6631
    %v6633 = vpop.f32.mrb[0].mxu0
    %v6634 = vpop.f32.mrb[0].mxu0
    %v6635 = vadd.f32 %v6472, %v6634
    %v6636 = vpop.f32.mrb[0].mxu0
    %6637 = vmatprep.mubr.bf16.mxu0 %v6283
    %6638 = vmatmul.mubr.bf16.gmra.mrb[0].mxu0 %v6282
    %v6639 = vpop.f32.mrb[0].mxu0
    %v6640 = vadd.f32 %v6477, %v6639
    %v6641 = vpop.f32.mrb[0].mxu0
    %v6642 = vpop.f32.mrb[0].mxu0
    %v6643 = vadd.f32 %v6480, %v6642
    %v6644 = vpop.f32.mrb[0].mxu0
    %6645 = vmatprep.mubr.bf16.mxu0 %v6494
    %6646 = vmatmul.mubr.bf16.gmra.mrb[0].mxu0 %v6493
    %v6647 = vpop.f32.mrb[0].mxu0
    %v6648 = vadd.f32 %v6485, %v6647
    %v6649 = vpop.f32.mrb[0].mxu0
    %v6650 = vpop.f32.mrb[0].mxu0
    %v6651 = vpop.f32.mrb[0].mxu0
    %6652 = vdwg.mxu0
    %v6653 = vld [vmem:[#allocation3] sm:$0xee]
    %s6654 = scalar_lea.vmem %s12, 256
    %v6655 = vld [vmem:[%s6654] sm:$0xf]
    %v6656 = vld [vmem:[%s6654 + $0x4] sm:$0xf]
    %v6657 = vld [vmem:[%s6654 + $0x8] sm:$0xf]
    %v6658 = vld [vmem:[%s6654 + $0xc] sm:$0xf]
    %v6659 = vld [vmem:[%s6654 + $0x10] sm:$0xf]
    %v6660 = vld [vmem:[%s6654 + $0x14] sm:$0xf]
    %v6661 = vld [vmem:[%s6654 + $0x18] sm:$0xf]
    %v6662 = vld [vmem:[%s6654 + $0x1c] sm:$0xf]
    %v6663 = vld [vmem:[%s6654 + $0x20] sm:$0xf]
    %v6664 = vld [vmem:[%s6654 + $0x24] sm:$0xf]
    %v6665 = vld [vmem:[%s6654 + $0x28] sm:$0xf]
    %v6666 = vld [vmem:[%s6654 + $0x2c] sm:$0xf]
    %v6667 = vld [vmem:[%s6654 + $0x30] sm:$0xf]
    %v6668 = vld [vmem:[%s6654 + $0x34] sm:$0xf]
    %v6669 = vld [vmem:[%s6654 + $0x38] sm:$0xf]
    %v6670 = vld [vmem:[%s6654 + $0x3c] sm:$0xf]
    %v6671 = vld [vmem:[%s6654 + $0x40] sm:$0xf]
    %v6672 = vld [vmem:[%s6654 + $0x44] sm:$0xf]
    %v6673 = vld [vmem:[%s6654 + $0x48] sm:$0xf]
    %v6674 = vld [vmem:[%s6654 + $0x4c] sm:$0xf]
    %v6675 = vld [vmem:[%s6654 + $0x50] sm:$0xf]
    %v6676 = vld [vmem:[%s6654 + $0x54] sm:$0xf]
    %v6677 = vld [vmem:[%s6654 + $0x58] sm:$0xf]
    %v6678 = vld [vmem:[%s6654 + $0x5c] sm:$0xf]
    %v6679 = vld [vmem:[%s6654 + $0x60] sm:$0xf]
    %v6680 = vld [vmem:[%s6654 + $0x64] sm:$0xf]
    %v6681 = vld [vmem:[%s6654 + $0x68] sm:$0xf]
    %v6682 = vld [vmem:[%s6654 + $0x6c] sm:$0xf]
    %v6683 = vld [vmem:[%s6654 + $0x70] sm:$0xf]
    %v6684 = vld [vmem:[%s6654 + $0x74] sm:$0xf]
    %v6685 = vld [vmem:[%s6654 + $0x78] sm:$0xf]
    %v6686 = vld [vmem:[%s6654 + $0x7c] sm:$0xf]
    %v6688 = vunpack.c.l.b16 %v6653
    %v6689 = vunpack.c.h.b16 %v6653
    %v6690 = vpack.c.b16 %v6272, %v6688
    %v6691 = vpack.c.b16 %v6273, %v6689
    %v6692 = vrot.slane %v6690, 1
    %v6693 = vrot.slane %v6282, 1
    %v6694 = vsel %vm521, %v6692, %v6693
    %v6695 = vrot.slane %v6691, 1
    %v6696 = vrot.slane %v6283, 1
    %v6697 = vsel %vm521, %v6695, %v6696
    %v6698 = vrot.slane %v6284, 1
    %v6699 = vsel %vm521, %v6693, %v6698
    %v6700 = vrot.slane %v6285, 1
    %v6701 = vsel %vm521, %v6696, %v6700
    %v6740 = vunpack.c.l.b16 %v6655
    %v6741 = vunpack.c.l.b16 %v6656
    %v6742 = vunpack.c.l.b16 %v6657
    %v6743 = vunpack.c.l.b16 %v6658
    %v6744 = vunpack.c.l.b16 %v6659
    %v6745 = vunpack.c.l.b16 %v6660
    %v6746 = vunpack.c.l.b16 %v6661
    %v6747 = vunpack.c.l.b16 %v6662
    %v6748 = vunpack.c.l.b16 %v6663
    %v6749 = vunpack.c.l.b16 %v6664
    %v6750 = vunpack.c.l.b16 %v6665
    %v6751 = vunpack.c.l.b16 %v6666
    %v6752 = vunpack.c.l.b16 %v6667
    %v6753 = vunpack.c.l.b16 %v6668
    %v6754 = vunpack.c.l.b16 %v6669
    %v6755 = vunpack.c.l.b16 %v6670
    %v6756 = vunpack.c.l.b16 %v6671
    %v6757 = vunpack.c.l.b16 %v6672
    %v6758 = vunpack.c.l.b16 %v6673
    %v6759 = vunpack.c.l.b16 %v6674
    %v6760 = vunpack.c.l.b16 %v6675
    %v6761 = vunpack.c.l.b16 %v6676
    %v6762 = vunpack.c.l.b16 %v6677
    %v6763 = vunpack.c.l.b16 %v6678
    %v6764 = vunpack.c.l.b16 %v6679
    %v6765 = vunpack.c.l.b16 %v6680
    %v6766 = vunpack.c.l.b16 %v6681
    %v6767 = vunpack.c.l.b16 %v6682
    %v6768 = vunpack.c.l.b16 %v6683
    %v6769 = vunpack.c.l.b16 %v6684
    %v6770 = vunpack.c.l.b16 %v6685
    %v6771 = vunpack.c.l.b16 %v6686
    %v6772 = vpack.c.b16 %v6741, %v6740
    %v6773 = vpack.c.b16 %v6743, %v6742
    %v6774 = vpack.c.b16 %v6745, %v6744
    %v6775 = vpack.c.b16 %v6747, %v6746
    %v6776 = vpack.c.b16 %v6749, %v6748
    %v6777 = vpack.c.b16 %v6751, %v6750
    %v6778 = vpack.c.b16 %v6753, %v6752
    %v6779 = vpack.c.b16 %v6755, %v6754
    %v6780 = vpack.c.b16 %v6757, %v6756
    %v6781 = vpack.c.b16 %v6759, %v6758
    %v6782 = vpack.c.b16 %v6761, %v6760
    %v6783 = vpack.c.b16 %v6763, %v6762
    %v6784 = vpack.c.b16 %v6765, %v6764
    %v6785 = vpack.c.b16 %v6767, %v6766
    %v6786 = vpack.c.b16 %v6769, %v6768
    %v6787 = vpack.c.b16 %v6771, %v6770
    %6804 = vmatprep.subr.bf16.mxu0 0
    %6805 = vmatpush1.bf16.msra.mxu0 %v6772
    %6806 = vmatprep.subr.bf16.mxu0 0
    %6807 = vmatpush1.bf16.msra.mxu0 %v6773
    %6808 = vmatprep.subr.bf16.mxu0 0
    %6809 = vmatpush1.bf16.msra.mxu0 %v6774
    %6810 = vmatprep.subr.bf16.mxu0 0
    %6811 = vmatpush1.bf16.msra.mxu0 %v6775
    %6812 = vmatprep.subr.bf16.mxu0 0
    %6813 = vmatpush1.bf16.msra.mxu0 %v6776
    %6814 = vmatprep.subr.bf16.mxu0 0
    %6815 = vmatpush1.bf16.msra.mxu0 %v6777
    %6816 = vmatprep.subr.bf16.mxu0 0
    %6817 = vmatpush1.bf16.msra.mxu0 %v6778
    %6818 = vmatprep.subr.bf16.mxu0 0
    %6819 = vmatpush1.bf16.msra.mxu0 %v6779
    %6820 = vmatprep.subr.bf16.mxu0 0
    %6821 = vmatpush1.bf16.msra.mxu0 %v6780
    %6822 = vmatprep.subr.bf16.mxu0 0
    %6823 = vmatpush1.bf16.msra.mxu0 %v6781
    %6824 = vmatprep.subr.bf16.mxu0 0
    %6825 = vmatpush1.bf16.msra.mxu0 %v6782
    %6826 = vmatprep.subr.bf16.mxu0 0
    %6827 = vmatpush1.bf16.msra.mxu0 %v6783
    %6828 = vmatprep.subr.bf16.mxu0 0
    %6829 = vmatpush1.bf16.msra.mxu0 %v6784
    %6830 = vmatprep.subr.bf16.mxu0 0
    %6831 = vmatpush1.bf16.msra.mxu0 %v6785
    %6832 = vmatprep.subr.bf16.mxu0 0
    %6833 = vmatpush1.bf16.msra.mxu0 %v6786
    %6834 = vmatprep.subr.bf16.mxu0 0
    %6835 = vmatpush1.bf16.msra.mxu0 %v6787
    %6836 = vmatprep.mubr.bf16.mxu0 %v6697
    %6837 = vmatmul.mubr.bf16.gmra.mrb[0].mxu0 %v6694
    %v6838 = vpop.f32.mrb[0].mxu0
    %v6839 = vadd.f32 0.0, %v6838
    %v6840 = vpop.f32.mrb[0].mxu0
    %v6841 = vpop.f32.mrb[0].mxu0
    %v6842 = vadd.f32 0.0, %v6841
    %v6843 = vpop.f32.mrb[0].mxu0
    %6844 = vmatprep.mubr.bf16.mxu0 %v6701
    %6845 = vmatmul.mubr.bf16.gmra.mrb[0].mxu0 %v6699
    %v6846 = vpop.f32.mrb[0].mxu0
    %v6847 = vadd.f32 0.0, %v6846
    %v6848 = vpop.f32.mrb[0].mxu0
    %v6849 = vpop.f32.mrb[0].mxu0
    %v6850 = vadd.f32 0.0, %v6849
    %v6851 = vpop.f32.mrb[0].mxu0
    %6852 = vmatprep.mubr.bf16.mxu0 %v6700
    %6853 = vmatmul.mubr.bf16.gmra.mrb[0].mxu0 %v6698
    %v6854 = vpop.f32.mrb[0].mxu0
    %v6855 = vadd.f32 0.0, %v6854
    %v6856 = vpop.f32.mrb[0].mxu0
    %v6857 = vpop.f32.mrb[0].mxu0
    %v6858 = vpop.f32.mrb[0].mxu0
    %6859 = vdwg.mxu0
    %v6860 = vadd.f32 %v6632, %v6839
    %v6861 = vadd.f32 %v6635, %v6842
    %v6862 = vadd.f32 %v6640, %v6847
    %v6863 = vadd.f32 %v6643, %v6850
    %v6864 = vadd.f32 %v6648, %v6855
    %v6866 = vlaneseq
    %v6867 = vshrl.u32 %v6866, 7
    %v6868 = vsub.s32 0, %v6867
    %v6869 = vrot.slane %v6193, %v6868
    %v6871 = vadd.f32 %v6860, %v6869
    %v6872 = vadd.f32 %v6861, %v6869
    %v6873 = vadd.f32 %v6862, %v6869
    %v6874 = vadd.f32 %v6863, %v6869
    %v6875 = vadd.f32 %v6864, %v6869
    %6876 = vst [vmem:[%s14 - $0x1] sm:$0xfe] %v6871
    %6877 = vst [vmem:[%s14 + $0x7] sm:$0xff] %v6872
    %6878 = vst [vmem:[%s14 + $0xf] sm:$0x1] %v6873
    %s6879 = scalar_lea.vmem %s14, 16
    %6880 = vst [vmem:[%s6879 - $0x3] sm:$0xf8] %v6873
    %6881 = vst [vmem:[%s6879 + $0x5] sm:$0xff] %v6874
    %6882 = vst [vmem:[%s6879 + $0xd] sm:$0x7] %v6875
    // Predicated region
    $region62: #{repcpsi_forward.1} parent=1 // pred_check
      _
    $region63: #{repcpsi_forward.1} parent=1 // pred_check_branch
      %6884 = sbr.rel (0) target = $region65
    $region64: #{repcpsi_forward.1} parent=1 // pred_region
      _
    $region65: #{repcpsi_forward.1} parent=1 // pred_fallthru
      _
    // Predicated region
    $region66: #{repcpsi_forward.1} parent=1 // pred_check
      _
    $region67: #{repcpsi_forward.1} parent=1 // pred_check_branch
      %6886 = sbr.rel (0) target = $region69
    $region68: #{repcpsi_forward.1} parent=1 // pred_region
      _
    $region69: #{repcpsi_forward.1} parent=1 // pred_fallthru
      _
    %6887 = vsyncpa [#allocation5], 1

</llo_original>
